<compile_context>
chip_gen: v6e
topology: v6e:2x2x1
jax: 0.10.0
libtpu: 0.0.40
codegen_flags: <defaults>
</compile_context>

<pallas_src>
import math
import functools

import jax
import jax.numpy as jnp
from jax import lax
from jax.experimental import pallas as pl
from jax.experimental.pallas import tpu as pltpu

NEG_INF = -1e9
EPS_SQ = 1e-10  # ScaleNorm eps=1e-5 on the l2-norm -> 1e-10 on sum-of-squares


# ----------------------------------------------------------------------------
# In-kernel helpers (traced inline inside the fused kernel)
# ----------------------------------------------------------------------------

def _scalenorm(x, g):
    # g * x / max(||x||_2, eps)  ==  x * g * rsqrt(max(sum(x^2), eps^2))
    ssq = jnp.sum(x * x, axis=-1, keepdims=True)
    return x * (g * lax.rsqrt(jnp.maximum(ssq, EPS_SQ)))


def _mha(q, k, v, wo, bigmask, *, H, dh):
    """Multi-head attention + output projection, batched over batch via a
    block-diagonal additive mask.

    q        : (Nq, H*dh) value   (scale 1/sqrt(dh) already folded into Wq)
    k, v     : (Nk, H*dh) values
    wo       : (H*dh, D)  value
    bigmask  : (Nq, Nk)   additive mask; off-batch blocks and masked keys
               carry -1e9 so they underflow to 0 after softmax.
    Returns (Nq, D).  Heads are folded through Wo (sum_h o_h @ Wo[h*dh:]) so
    there is no head concat and no transpose anywhere.
    Note: a fully-masked query row degenerates to a uniform distribution
    (same caveat as the reference); not triggered by the test masks.
    """
    acc = None
    for h in range(H):  # static unroll, H small
        sl = slice(h * dh, (h + 1) * dh)
        s = lax.dot_general(q[:, sl], k[:, sl], (((1,), (1,)), ((), ())),
                            preferred_element_type=jnp.float32)
        s = s + bigmask
        s = s - jnp.max(s, axis=-1, keepdims=True)
        p = jnp.exp(s)
        p = p * pl.reciprocal(jnp.sum(p, axis=-1, keepdims=True), approx=True)
        oh = jnp.dot(p, v[:, sl], preferred_element_type=jnp.float32)
        c = jnp.dot(oh, wo[sl, :], preferred_element_type=jnp.float32)
        acc = c if acc is None else acc + c
    return acc


# ----------------------------------------------------------------------------
# The single fused model kernel
# ----------------------------------------------------------------------------

def _model_kernel(xs_ref, xt_ref, smask_ref, cmask_ref, tmask_ref, gs_ref,
                  e_wqkv, e_bqkv, e_wo, e_bo, e_w1, e_b1, e_w2, e_b2,
                  d_wqkv, d_bqkv, d_wo_s, d_bo_s,
                  d_wq, d_bq, d_wkv, d_bkv, d_wo_c, d_bo_c,
                  d_w1, d_b1, d_w2, d_b2,
                  wT_ref, o_ref, *, L, H, dh):
    D = H * dh
    smask = smask_ref[...]        # (B*Ss, B*Ss) additive, block-diagonal
    cmask = cmask_ref[...]        # (B*St, B*Ss)
    tmask = tmask_ref[...]        # (B*St, B*St)

    # ------------------------------ encoder ------------------------------
    x = xs_ref[...]               # (B*Ss, D)
    for l in range(L):            # static unroll over layers
        n0 = _scalenorm(x, gs_ref[2 * l])
        qkv = jnp.dot(n0, e_wqkv[l],
                      preferred_element_type=jnp.float32) + e_bqkv[l]
        attn = _mha(qkv[:, :D], qkv[:, D:2 * D], qkv[:, 2 * D:], e_wo[l],
                    smask, H=H, dh=dh)
        x = x + attn + e_bo[l]

        n1 = _scalenorm(x, gs_ref[2 * l + 1])
        h1 = jnp.maximum(
            jnp.dot(n1, e_w1[l], preferred_element_type=jnp.float32) + e_b1[l],
            0.0)
        x = x + jnp.dot(h1, e_w2[l],
                        preferred_element_type=jnp.float32) + e_b2[l]
    mem = _scalenorm(x, gs_ref[2 * L])          # encoder output (B*Ss, D)

    # ------------------------------ decoder ------------------------------
    y = xt_ref[...]               # (B*St, D)
    gbase = 2 * L + 1
    for l in range(L):
        # masked self-attention
        n0 = _scalenorm(y, gs_ref[gbase + 3 * l])
        qkv = jnp.dot(n0, d_wqkv[l],
                      preferred_element_type=jnp.float32) + d_bqkv[l]
        sa = _mha(qkv[:, :D], qkv[:, D:2 * D], qkv[:, 2 * D:], d_wo_s[l],
                  tmask, H=H, dh=dh)
        y = y + sa + d_bo_s[l]

        # cross-attention over encoder memory
        n1 = _scalenorm(y, gs_ref[gbase + 3 * l + 1])
        qc = jnp.dot(n1, d_wq[l],
                     preferred_element_type=jnp.float32) + d_bq[l]
        kv = jnp.dot(mem, d_wkv[l],
                     preferred_element_type=jnp.float32) + d_bkv[l]
        ca = _mha(qc, kv[:, :D], kv[:, D:], d_wo_c[l], cmask, H=H, dh=dh)
        y = y + ca + d_bo_c[l]

        # feed-forward
        n2 = _scalenorm(y, gs_ref[gbase + 3 * l + 2])
        h1 = jnp.maximum(
            jnp.dot(n2, d_w1[l], preferred_element_type=jnp.float32) + d_b1[l],
            0.0)
        y = y + jnp.dot(h1, d_w2[l],
                        preferred_element_type=jnp.float32) + d_b2[l]

    # final decoder ScaleNorm fused with the inverse-embedding matmul
    yn = _scalenorm(y, gs_ref[gbase + 3 * L])
    o_ref[...] = jnp.dot(yn, wT_ref[...], preferred_element_type=jnp.float32)


# ----------------------------------------------------------------------------
# pallas_call wrapper (no grid: everything VMEM resident at these sizes)
# ----------------------------------------------------------------------------

def model_call(params, x_src, x_tgt, src_big, cross_big, tgt_big, *, L, H, dh):
    M = x_tgt.shape[0]
    Npad = params["wT_pad"].shape[1]
    args = (x_src, x_tgt, src_big, cross_big, tgt_big, params["gs"],
            params["e_wqkv"], params["e_bqkv"], params["e_wo"], params["e_bo"],
            params["e_w1"], params["e_b1"], params["e_w2"], params["e_b2"],
            params["d_wqkv"], params["d_bqkv"], params["d_wo_s"], params["d_bo_s"],
            params["d_wq"], params["d_bq"], params["d_wkv"], params["d_bkv"],
            params["d_wo_c"], params["d_bo_c"],
            params["d_w1"], params["d_b1"], params["d_w2"], params["d_b2"],
            params["wT_pad"])
    vmem = lambda: pl.BlockSpec(memory_space=pltpu.MemorySpace.VMEM)
    smem = lambda: pl.BlockSpec(memory_space=pltpu.MemorySpace.SMEM)
    in_specs = ([vmem() for _ in range(5)] + [smem()]
                + [vmem() for _ in range(len(args) - 6)])
    # TODO(synk): at real dims (D>=512, long S) add a row-tiled grid with
    # dimension_semantics=("parallel",...) and bf16 MXU inputs for v6e/v7x.
    return pl.pallas_call(
        functools.partial(_model_kernel, L=L, H=H, dh=dh),
        out_shape=jax.ShapeDtypeStruct((M, Npad), jnp.float32),
        in_specs=in_specs,
        out_specs=pl.BlockSpec(memory_space=pltpu.MemorySpace.VMEM),
    )(*args)


# ----------------------------------------------------------------------------
# Plain-JAX glue (embedding gather + positional encoding + mask prep)
# ----------------------------------------------------------------------------

def positional_encoding(S, D):
    pos = jnp.arange(S, dtype=jnp.float32)[:, None]
    div = jnp.exp(jnp.arange(0, D, 2, dtype=jnp.float32)
                  * (-math.log(10000.0) / D))
    pe = jnp.zeros((S, D), jnp.float32)
    pe = pe.at[:, 0::2].set(jnp.sin(pos * div))
    pe = pe.at[:, 1::2].set(jnp.cos(pos * div))
    return pe


def embed(emb_w, nums, D):
    e = jnp.take(emb_w, nums, axis=0) * math.sqrt(D)
    return e + positional_encoding(nums.shape[1], D)[None]


def _block_diag_mask(add_mask, B, Sq, Sk):
    """Build the (B*Sq, B*Sk) additive mask: per-batch mask on the diagonal
    blocks, -1e9 everywhere else (so batched attention stays per-batch)."""
    m = jnp.broadcast_to(add_mask.astype(jnp.float32), (B, Sq, Sk))
    keep = jnp.eye(B, dtype=jnp.bool_)                       # (B, B)
    big = jnp.where(keep[:, None, :, None], m[:, :, None, :],
                    jnp.float32(NEG_INF))                    # (B, Sq, B, Sk)
    return big.reshape(B * Sq, B * Sk)


def model_forward(params, src_nums, tgt_nums, src_mask, tgt_mask, cfg):
    D, H, L = cfg["embed_dim"], cfg["num_heads"], cfg["num_layers"]
    dh = D // H
    B, Ss = src_nums.shape
    St = tgt_nums.shape[1]

    src_add = (1.0 - src_mask.astype(jnp.float32)) * NEG_INF   # (B, 1, Ss)
    tgt_add = (1.0 - tgt_mask.astype(jnp.float32)) * NEG_INF   # (B, St, St)
    src_big = _block_diag_mask(src_add, B, Ss, Ss)
    cross_big = _block_diag_mask(src_add, B, St, Ss)
    tgt_big = _block_diag_mask(tgt_add, B, St, St)

    x_src = embed(params["emb_w"], src_nums, D).reshape(B * Ss, D)
    x_tgt = embed(params["emb_w"], tgt_nums, D).reshape(B * St, D)

    logits_pad = model_call(params, x_src, x_tgt, src_big, cross_big, tgt_big,
                            L=L, H=H, dh=dh)
    vocab_pad = params["emb_w"].shape[0]          # ceil(vocab/8)*8, as in ref
    return logits_pad[:, :vocab_pad].reshape(B, St, vocab_pad)


# ----------------------------------------------------------------------------
# Deterministic parameter init (fused / scaled / stacked / padded weights)
# ----------------------------------------------------------------------------

def _init_linear(key, din, dout):
    k1, k2 = jax.random.split(key)
    w = jax.random.normal(k1, (din, dout), jnp.float32) * (1.0 / math.sqrt(din))
    b = jax.random.normal(k2, (dout,), jnp.float32) * 0.01
    return w, b


def _init_attn(key, D, dh):
    ks = jax.random.split(key, 4)
    wq, bq = _init_linear(ks[0], D, D)
    wk, bk = _init_linear(ks[1], D, D)
    wv, bv = _init_linear(ks[2], D, D)
    wo, bo = _init_linear(ks[3], D, D)
    s = 1.0 / math.sqrt(dh)                 # fold attention scale into Q proj
    return dict(
        wqkv=jnp.concatenate([wq * s, wk, wv], axis=1),            # (D, 3D)
        bqkv=jnp.concatenate([bq * s, bk, bv]).reshape(1, 3 * D),
        wq=wq * s, bq=(bq * s).reshape(1, D),
        wkv=jnp.concatenate([wk, wv], axis=1),                     # (D, 2D)
        bkv=jnp.concatenate([bk, bv]).reshape(1, 2 * D),
        wo=wo, bo=bo.reshape(1, D))


def init_params(key, vocab_dim, embed_dim, ff_dim, num_heads, num_layers):
    D, F, H, L = embed_dim, ff_dim, num_heads, num_layers
    dh = D // H
    vocab_pad = math.ceil(vocab_dim / 8) * 8
    n_pad = ((vocab_pad + 127) // 128) * 128
    keys = jax.random.split(key, 2 * L + 1)

    enc = {k: [] for k in ("wqkv", "bqkv", "wo", "bo", "w1", "b1", "w2", "b2")}
    for i in range(L):
        ka, kf = jax.random.split(keys[i])
        a = _init_attn(ka, D, dh)
        k1, k2 = jax.random.split(kf)
        w1, b1 = _init_linear(k1, D, F)
        w2, b2 = _init_linear(k2, F, D)
        enc["wqkv"].append(a["wqkv"]); enc["bqkv"].append(a["bqkv"])
        enc["wo"].append(a["wo"]);     enc["bo"].append(a["bo"])
        enc["w1"].append(w1);          enc["b1"].append(b1.reshape(1, F))
        enc["w2"].append(w2);          enc["b2"].append(b2.reshape(1, D))

    dec = {k: [] for k in ("wqkv", "bqkv", "wo_s", "bo_s", "wq", "bq", "wkv",
                           "bkv", "wo_c", "bo_c", "w1", "b1", "w2", "b2")}
    for i in range(L):
        ks_, kc, kf = jax.random.split(keys[L + i], 3)
        s = _init_attn(ks_, D, dh)
        c = _init_attn(kc, D, dh)
        k1, k2 = jax.random.split(kf)
        w1, b1 = _init_linear(k1, D, F)
        w2, b2 = _init_linear(k2, F, D)
        dec["wqkv"].append(s["wqkv"]); dec["bqkv"].append(s["bqkv"])
        dec["wo_s"].append(s["wo"]);   dec["bo_s"].append(s["bo"])
        dec["wq"].append(c["wq"]);     dec["bq"].append(c["bq"])
        dec["wkv"].append(c["wkv"]);   dec["bkv"].append(c["bkv"])
        dec["wo_c"].append(c["wo"]);   dec["bo_c"].append(c["bo"])
        dec["w1"].append(w1);          dec["b1"].append(b1.reshape(1, F))
        dec["w2"].append(w2);          dec["b2"].append(b2.reshape(1, D))

    params = {f"e_{k}": jnp.stack(v) for k, v in enc.items()}
    params.update({f"d_{k}": jnp.stack(v) for k, v in dec.items()})

    emb_w = jax.random.normal(keys[-1], (vocab_pad, D), jnp.float32) \
        * (1.0 / math.sqrt(D))
    wT_pad = jnp.zeros((D, n_pad), jnp.float32).at[:, :vocab_pad].set(emb_w.T)

    # All ScaleNorm gains (enc: 2/layer + 1 final, dec: 3/layer + 1 final),
    # init = sqrt(D), packed into one SMEM-resident scalar array.
    params.update(dict(
        gs=jnp.full((5 * L + 2,), D ** 0.5, jnp.float32),
        emb_w=emb_w, wT_pad=wT_pad))
    return params


# ----------------------------------------------------------------------------
# Main
# ----------------------------------------------------------------------------

if __name__ == "__main__":
    cfg = dict(vocab_dim=50, embed_dim=32, ff_dim=64, num_heads=4,
               dropout=0.0, num_layers=2, kernel_size=2, pool_method=None)
    # TODO(synk): pool_method 'max'/'avg'/'rnn' (and RNNPool.inverse) are not
    # translated; only the default pool_method=None forward path is implemented.

    B, S_src, S_tgt = 2, 8, 8
    key = jax.random.PRNGKey(0)
    k_par, k_src, k_tgt = jax.random.split(key, 3)

    params = init_params(k_par, cfg["vocab_dim"], cfg["embed_dim"],
                         cfg["ff_dim"], cfg["num_heads"], cfg["num_layers"])

    src_nums = jax.random.randint(k_src, (B, S_src), 0, cfg["vocab_dim"])
    tgt_nums = jax.random.randint(k_tgt, (B, S_tgt), 0, cfg["vocab_dim"])
    src_mask = jnp.ones((B, 1, S_src), jnp.float32)                   # (B,1,Ss)
    tgt_mask = jnp.broadcast_to(
        jnp.tril(jnp.ones((S_tgt, S_tgt), jnp.float32))[None], (B, S_tgt, S_tgt))

    @jax.jit
    def fwd(params, src_nums, tgt_nums, src_mask, tgt_mask):
        return model_forward(params, src_nums, tgt_nums, src_mask, tgt_mask, cfg)

    logits = fwd(params, src_nums, tgt_nums, src_mask, tgt_mask)
    jax.block_until_ready(logits)

    vocab_pad = math.ceil(cfg["vocab_dim"] / 8) * 8
    assert logits.shape == (B, S_tgt, vocab_pad), logits.shape
    assert bool(jnp.all(jnp.isfinite(logits)))
    print("KERNEL_OK")
</pallas_src>

<mosaic_0001>
module attributes {stable_mosaic.version = 11 : i64} {
  func.func @_model_kernel(%arg0: memref<16x32xf32, #tpu.memory_space<vmem>>, %arg1: memref<16x32xf32, #tpu.memory_space<vmem>>, %arg2: memref<16x16xf32, #tpu.memory_space<vmem>>, %arg3: memref<16x16xf32, #tpu.memory_space<vmem>>, %arg4: memref<16x16xf32, #tpu.memory_space<vmem>>, %arg5: memref<12xf32, #tpu.memory_space<smem>>, %arg6: memref<2x32x96xf32, #tpu.memory_space<vmem>>, %arg7: memref<2x1x96xf32, #tpu.memory_space<vmem>>, %arg8: memref<2x32x32xf32, #tpu.memory_space<vmem>>, %arg9: memref<2x1x32xf32, #tpu.memory_space<vmem>>, %arg10: memref<2x32x64xf32, #tpu.memory_space<vmem>>, %arg11: memref<2x1x64xf32, #tpu.memory_space<vmem>>, %arg12: memref<2x64x32xf32, #tpu.memory_space<vmem>>, %arg13: memref<2x1x32xf32, #tpu.memory_space<vmem>>, %arg14: memref<2x32x96xf32, #tpu.memory_space<vmem>>, %arg15: memref<2x1x96xf32, #tpu.memory_space<vmem>>, %arg16: memref<2x32x32xf32, #tpu.memory_space<vmem>>, %arg17: memref<2x1x32xf32, #tpu.memory_space<vmem>>, %arg18: memref<2x32x32xf32, #tpu.memory_space<vmem>>, %arg19: memref<2x1x32xf32, #tpu.memory_space<vmem>>, %arg20: memref<2x32x64xf32, #tpu.memory_space<vmem>>, %arg21: memref<2x1x64xf32, #tpu.memory_space<vmem>>, %arg22: memref<2x32x32xf32, #tpu.memory_space<vmem>>, %arg23: memref<2x1x32xf32, #tpu.memory_space<vmem>>, %arg24: memref<2x32x64xf32, #tpu.memory_space<vmem>>, %arg25: memref<2x1x64xf32, #tpu.memory_space<vmem>>, %arg26: memref<2x64x32xf32, #tpu.memory_space<vmem>>, %arg27: memref<2x1x32xf32, #tpu.memory_space<vmem>>, %arg28: memref<32x128xf32, #tpu.memory_space<vmem>>, %arg29: memref<16x128xf32, #tpu.memory_space<vmem>>) attributes {dimension_semantics = [], scalar_prefetch = 0 : i64, scratch_operands = 0 : i64, tpu.core_type = #tpu.core_type<tc>} {
    %c0 = arith.constant 0 : index
    %c0_0 = arith.constant 0 : index
    %0 = vector.load %arg2[%c0, %c0_0] : memref<16x16xf32, #tpu.memory_space<vmem>>, vector<16x16xf32>
    %c0_1 = arith.constant 0 : index
    %c0_2 = arith.constant 0 : index
    %1 = vector.load %arg3[%c0_1, %c0_2] : memref<16x16xf32, #tpu.memory_space<vmem>>, vector<16x16xf32>
    %c0_3 = arith.constant 0 : index
    %c0_4 = arith.constant 0 : index
    %2 = vector.load %arg4[%c0_3, %c0_4] : memref<16x16xf32, #tpu.memory_space<vmem>>, vector<16x16xf32>
    %c0_5 = arith.constant 0 : index
    %c0_6 = arith.constant 0 : index
    %3 = vector.load %arg0[%c0_5, %c0_6] : memref<16x32xf32, #tpu.memory_space<vmem>>, vector<16x32xf32>
    %c0_7 = arith.constant 0 : index
    %4 = memref.load %arg5[%c0_7] : memref<12xf32, #tpu.memory_space<smem>>
    %5 = arith.mulf %3, %3 : vector<16x32xf32>
    %cst = arith.constant dense<0.000000e+00> : vector<16xf32>
    %6 = vector.multi_reduction <add>, %5, %cst [1] : vector<16x32xf32> to vector<16xf32>
    %7 = vector.shape_cast %6 : vector<16xf32> to vector<16x1xf32>
    %cst_8 = arith.constant 1.000000e-10 : f32
    %8 = vector.broadcast %cst_8 : f32 to vector<16x1xf32>
    %9 = arith.maximumf %7, %8 : vector<16x1xf32>
    %10 = math.rsqrt %9 : vector<16x1xf32>
    %11 = vector.broadcast %4 : f32 to vector<16x1xf32>
    %12 = arith.mulf %11, %10 : vector<16x1xf32>
    %13 = vector.broadcast %12 : vector<16x1xf32> to vector<16x32xf32>
    %14 = arith.mulf %3, %13 : vector<16x32xf32>
    %c0_9 = arith.constant 0 : index
    %c0_10 = arith.constant 0 : index
    %c0_11 = arith.constant 0 : index
    %15 = vector.load %arg6[%c0_9, %c0_10, %c0_11] : memref<2x32x96xf32, #tpu.memory_space<vmem>>, vector<1x32x96xf32>
    %16 = vector.shape_cast %15 : vector<1x32x96xf32> to vector<32x96xf32>
    %cst_12 = arith.constant dense<0.000000e+00> : vector<16x96xf32>
    %17 = tpu.matmul %14, %16, %cst_12 {dimension_numbers = #tpu.dot_dimension_numbers<[1], [0], [0], [1], [0, 0, 1, 1], [], []>} : vector<16x32xf32>, vector<32x96xf32>, vector<16x96xf32> -> vector<16x96xf32>
    %c0_13 = arith.constant 0 : index
    %c0_14 = arith.constant 0 : index
    %c0_15 = arith.constant 0 : index
    %18 = vector.load %arg7[%c0_13, %c0_14, %c0_15] : memref<2x1x96xf32, #tpu.memory_space<vmem>>, vector<1x1x96xf32>
    %19 = vector.shape_cast %18 : vector<1x1x96xf32> to vector<1x96xf32>
    %20 = vector.broadcast %19 : vector<1x96xf32> to vector<16x96xf32>
    %21 = arith.addf %17, %20 : vector<16x96xf32>
    %22 = vector.extract_strided_slice %21 {offsets = [0, 0], sizes = [16, 32], strides = [1, 1]} : vector<16x96xf32> to vector<16x32xf32>
    %23 = vector.extract_strided_slice %21 {offsets = [0, 32], sizes = [16, 32], strides = [1, 1]} : vector<16x96xf32> to vector<16x32xf32>
    %24 = vector.extract_strided_slice %21 {offsets = [0, 64], sizes = [16, 32], strides = [1, 1]} : vector<16x96xf32> to vector<16x32xf32>
    %c0_16 = arith.constant 0 : index
    %c0_17 = arith.constant 0 : index
    %c0_18 = arith.constant 0 : index
    %25 = vector.load %arg8[%c0_16, %c0_17, %c0_18] : memref<2x32x32xf32, #tpu.memory_space<vmem>>, vector<1x32x32xf32>
    %26 = vector.shape_cast %25 : vector<1x32x32xf32> to vector<32x32xf32>
    %27 = vector.extract_strided_slice %22 {offsets = [0, 0], sizes = [16, 8], strides = [1, 1]} : vector<16x32xf32> to vector<16x8xf32>
    %28 = vector.extract_strided_slice %23 {offsets = [0, 0], sizes = [16, 8], strides = [1, 1]} : vector<16x32xf32> to vector<16x8xf32>
    %cst_19 = arith.constant dense<0.000000e+00> : vector<16x16xf32>
    %29 = tpu.matmul %27, %28, %cst_19 {dimension_numbers = #tpu.dot_dimension_numbers<[1], [1], [0], [0], [0, 0, 1, 0], [], []>} : vector<16x8xf32>, vector<16x8xf32>, vector<16x16xf32> -> vector<16x16xf32>
    %30 = arith.addf %29, %0 : vector<16x16xf32>
    %cst_20 = arith.constant dense<0xFF800000> : vector<16xf32>
    %31 = vector.multi_reduction <maximumf>, %30, %cst_20 [1] : vector<16x16xf32> to vector<16xf32>
    %32 = vector.shape_cast %31 : vector<16xf32> to vector<16x1xf32>
    %33 = vector.broadcast %32 : vector<16x1xf32> to vector<16x16xf32>
    %34 = arith.subf %30, %33 : vector<16x16xf32>
    %35 = math.exp %34 : vector<16x16xf32>
    %cst_21 = arith.constant dense<0.000000e+00> : vector<16xf32>
    %36 = vector.multi_reduction <add>, %35, %cst_21 [1] : vector<16x16xf32> to vector<16xf32>
    %37 = vector.shape_cast %36 : vector<16xf32> to vector<16x1xf32>
    %38 = tpu.reciprocal %37 {approx = true} : vector<16x1xf32> -> vector<16x1xf32>
    %39 = vector.broadcast %38 : vector<16x1xf32> to vector<16x16xf32>
    %40 = arith.mulf %35, %39 : vector<16x16xf32>
    %41 = vector.extract_strided_slice %24 {offsets = [0, 0], sizes = [16, 8], strides = [1, 1]} : vector<16x32xf32> to vector<16x8xf32>
    %cst_22 = arith.constant dense<0.000000e+00> : vector<16x8xf32>
    %42 = tpu.matmul %40, %41, %cst_22 {dimension_numbers = #tpu.dot_dimension_numbers<[1], [0], [0], [1], [0, 0, 1, 1], [], []>} : vector<16x16xf32>, vector<16x8xf32>, vector<16x8xf32> -> vector<16x8xf32>
    %43 = vector.extract_strided_slice %26 {offsets = [0, 0], sizes = [8, 32], strides = [1, 1]} : vector<32x32xf32> to vector<8x32xf32>
    %cst_23 = arith.constant dense<0.000000e+00> : vector<16x32xf32>
    %44 = tpu.matmul %42, %43, %cst_23 {dimension_numbers = #tpu.dot_dimension_numbers<[1], [0], [0], [1], [0, 0, 1, 1], [], []>} : vector<16x8xf32>, vector<8x32xf32>, vector<16x32xf32> -> vector<16x32xf32>
    %45 = vector.extract_strided_slice %22 {offsets = [0, 8], sizes = [16, 8], strides = [1, 1]} : vector<16x32xf32> to vector<16x8xf32>
    %46 = vector.extract_strided_slice %23 {offsets = [0, 8], sizes = [16, 8], strides = [1, 1]} : vector<16x32xf32> to vector<16x8xf32>
    %cst_24 = arith.constant dense<0.000000e+00> : vector<16x16xf32>
    %47 = tpu.matmul %45, %46, %cst_24 {dimension_numbers = #tpu.dot_dimension_numbers<[1], [1], [0], [0], [0, 0, 1, 0], [], []>} : vector<16x8xf32>, vector<16x8xf32>, vector<16x16xf32> -> vector<16x16xf32>
    %48 = arith.addf %47, %0 : vector<16x16xf32>
    %cst_25 = arith.constant dense<0xFF800000> : vector<16xf32>
    %49 = vector.multi_reduction <maximumf>, %48, %cst_25 [1] : vector<16x16xf32> to vector<16xf32>
    %50 = vector.shape_cast %49 : vector<16xf32> to vector<16x1xf32>
    %51 = vector.broadcast %50 : vector<16x1xf32> to vector<16x16xf32>
    %52 = arith.subf %48, %51 : vector<16x16xf32>
    %53 = math.exp %52 : vector<16x16xf32>
    %cst_26 = arith.constant dense<0.000000e+00> : vector<16xf32>
    %54 = vector.multi_reduction <add>, %53, %cst_26 [1] : vector<16x16xf32> to vector<16xf32>
    %55 = vector.shape_cast %54 : vector<16xf32> to vector<16x1xf32>
    %56 = tpu.reciprocal %55 {approx = true} : vector<16x1xf32> -> vector<16x1xf32>
    %57 = vector.broadcast %56 : vector<16x1xf32> to vector<16x16xf32>
    %58 = arith.mulf %53, %57 : vector<16x16xf32>
    %59 = vector.extract_strided_slice %24 {offsets = [0, 8], sizes = [16, 8], strides = [1, 1]} : vector<16x32xf32> to vector<16x8xf32>
    %cst_27 = arith.constant dense<0.000000e+00> : vector<16x8xf32>
    %60 = tpu.matmul %58, %59, %cst_27 {dimension_numbers = #tpu.dot_dimension_numbers<[1], [0], [0], [1], [0, 0, 1, 1], [], []>} : vector<16x16xf32>, vector<16x8xf32>, vector<16x8xf32> -> vector<16x8xf32>
    %61 = vector.extract_strided_slice %26 {offsets = [8, 0], sizes = [8, 32], strides = [1, 1]} : vector<32x32xf32> to vector<8x32xf32>
    %cst_28 = arith.constant dense<0.000000e+00> : vector<16x32xf32>
    %62 = tpu.matmul %60, %61, %cst_28 {dimension_numbers = #tpu.dot_dimension_numbers<[1], [0], [0], [1], [0, 0, 1, 1], [], []>} : vector<16x8xf32>, vector<8x32xf32>, vector<16x32xf32> -> vector<16x32xf32>
    %63 = arith.addf %44, %62 : vector<16x32xf32>
    %64 = vector.extract_strided_slice %22 {offsets = [0, 16], sizes = [16, 8], strides = [1, 1]} : vector<16x32xf32> to vector<16x8xf32>
    %65 = vector.extract_strided_slice %23 {offsets = [0, 16], sizes = [16, 8], strides = [1, 1]} : vector<16x32xf32> to vector<16x8xf32>
    %cst_29 = arith.constant dense<0.000000e+00> : vector<16x16xf32>
    %66 = tpu.matmul %64, %65, %cst_29 {dimension_numbers = #tpu.dot_dimension_numbers<[1], [1], [0], [0], [0, 0, 1, 0], [], []>} : vector<16x8xf32>, vector<16x8xf32>, vector<16x16xf32> -> vector<16x16xf32>
    %67 = arith.addf %66, %0 : vector<16x16xf32>
    %cst_30 = arith.constant dense<0xFF800000> : vector<16xf32>
    %68 = vector.multi_reduction <maximumf>, %67, %cst_30 [1] : vector<16x16xf32> to vector<16xf32>
    %69 = vector.shape_cast %68 : vector<16xf32> to vector<16x1xf32>
    %70 = vector.broadcast %69 : vector<16x1xf32> to vector<16x16xf32>
    %71 = arith.subf %67, %70 : vector<16x16xf32>
    %72 = math.exp %71 : vector<16x16xf32>
    %cst_31 = arith.constant dense<0.000000e+00> : vector<16xf32>
    %73 = vector.multi_reduction <add>, %72, %cst_31 [1] : vector<16x16xf32> to vector<16xf32>
    %74 = vector.shape_cast %73 : vector<16xf32> to vector<16x1xf32>
    %75 = tpu.reciprocal %74 {approx = true} : vector<16x1xf32> -> vector<16x1xf32>
    %76 = vector.broadcast %75 : vector<16x1xf32> to vector<16x16xf32>
    %77 = arith.mulf %72, %76 : vector<16x16xf32>
    %78 = vector.extract_strided_slice %24 {offsets = [0, 16], sizes = [16, 8], strides = [1, 1]} : vector<16x32xf32> to vector<16x8xf32>
    %cst_32 = arith.constant dense<0.000000e+00> : vector<16x8xf32>
    %79 = tpu.matmul %77, %78, %cst_32 {dimension_numbers = #tpu.dot_dimension_numbers<[1], [0], [0], [1], [0, 0, 1, 1], [], []>} : vector<16x16xf32>, vector<16x8xf32>, vector<16x8xf32> -> vector<16x8xf32>
    %80 = vector.extract_strided_slice %26 {offsets = [16, 0], sizes = [8, 32], strides = [1, 1]} : vector<32x32xf32> to vector<8x32xf32>
    %cst_33 = arith.constant dense<0.000000e+00> : vector<16x32xf32>
    %81 = tpu.matmul %79, %80, %cst_33 {dimension_numbers = #tpu.dot_dimension_numbers<[1], [0], [0], [1], [0, 0, 1, 1], [], []>} : vector<16x8xf32>, vector<8x32xf32>, vector<16x32xf32> -> vector<16x32xf32>
    %82 = arith.addf %63, %81 : vector<16x32xf32>
    %83 = vector.extract_strided_slice %22 {offsets = [0, 24], sizes = [16, 8], strides = [1, 1]} : vector<16x32xf32> to vector<16x8xf32>
    %84 = vector.extract_strided_slice %23 {offsets = [0, 24], sizes = [16, 8], strides = [1, 1]} : vector<16x32xf32> to vector<16x8xf32>
    %cst_34 = arith.constant dense<0.000000e+00> : vector<16x16xf32>
    %85 = tpu.matmul %83, %84, %cst_34 {dimension_numbers = #tpu.dot_dimension_numbers<[1], [1], [0], [0], [0, 0, 1, 0], [], []>} : vector<16x8xf32>, vector<16x8xf32>, vector<16x16xf32> -> vector<16x16xf32>
    %86 = arith.addf %85, %0 : vector<16x16xf32>
    %cst_35 = arith.constant dense<0xFF800000> : vector<16xf32>
    %87 = vector.multi_reduction <maximumf>, %86, %cst_35 [1] : vector<16x16xf32> to vector<16xf32>
    %88 = vector.shape_cast %87 : vector<16xf32> to vector<16x1xf32>
    %89 = vector.broadcast %88 : vector<16x1xf32> to vector<16x16xf32>
    %90 = arith.subf %86, %89 : vector<16x16xf32>
    %91 = math.exp %90 : vector<16x16xf32>
    %cst_36 = arith.constant dense<0.000000e+00> : vector<16xf32>
    %92 = vector.multi_reduction <add>, %91, %cst_36 [1] : vector<16x16xf32> to vector<16xf32>
    %93 = vector.shape_cast %92 : vector<16xf32> to vector<16x1xf32>
    %94 = tpu.reciprocal %93 {approx = true} : vector<16x1xf32> -> vector<16x1xf32>
    %95 = vector.broadcast %94 : vector<16x1xf32> to vector<16x16xf32>
    %96 = arith.mulf %91, %95 : vector<16x16xf32>
    %97 = vector.extract_strided_slice %24 {offsets = [0, 24], sizes = [16, 8], strides = [1, 1]} : vector<16x32xf32> to vector<16x8xf32>
    %cst_37 = arith.constant dense<0.000000e+00> : vector<16x8xf32>
    %98 = tpu.matmul %96, %97, %cst_37 {dimension_numbers = #tpu.dot_dimension_numbers<[1], [0], [0], [1], [0, 0, 1, 1], [], []>} : vector<16x16xf32>, vector<16x8xf32>, vector<16x8xf32> -> vector<16x8xf32>
    %99 = vector.extract_strided_slice %26 {offsets = [24, 0], sizes = [8, 32], strides = [1, 1]} : vector<32x32xf32> to vector<8x32xf32>
    %cst_38 = arith.constant dense<0.000000e+00> : vector<16x32xf32>
    %100 = tpu.matmul %98, %99, %cst_38 {dimension_numbers = #tpu.dot_dimension_numbers<[1], [0], [0], [1], [0, 0, 1, 1], [], []>} : vector<16x8xf32>, vector<8x32xf32>, vector<16x32xf32> -> vector<16x32xf32>
    %101 = arith.addf %82, %100 : vector<16x32xf32>
    %102 = arith.addf %3, %101 : vector<16x32xf32>
    %c0_39 = arith.constant 0 : index
    %c0_40 = arith.constant 0 : index
    %c0_41 = arith.constant 0 : index
    %103 = vector.load %arg9[%c0_39, %c0_40, %c0_41] : memref<2x1x32xf32, #tpu.memory_space<vmem>>, vector<1x1x32xf32>
    %104 = vector.shape_cast %103 : vector<1x1x32xf32> to vector<1x32xf32>
    %105 = vector.broadcast %104 : vector<1x32xf32> to vector<16x32xf32>
    %106 = arith.addf %102, %105 : vector<16x32xf32>
    %c1 = arith.constant 1 : index
    %107 = memref.load %arg5[%c1] : memref<12xf32, #tpu.memory_space<smem>>
    %108 = arith.mulf %106, %106 : vector<16x32xf32>
    %cst_42 = arith.constant dense<0.000000e+00> : vector<16xf32>
    %109 = vector.multi_reduction <add>, %108, %cst_42 [1] : vector<16x32xf32> to vector<16xf32>
    %110 = vector.shape_cast %109 : vector<16xf32> to vector<16x1xf32>
    %cst_43 = arith.constant 1.000000e-10 : f32
    %111 = vector.broadcast %cst_43 : f32 to vector<16x1xf32>
    %112 = arith.maximumf %110, %111 : vector<16x1xf32>
    %113 = math.rsqrt %112 : vector<16x1xf32>
    %114 = vector.broadcast %107 : f32 to vector<16x1xf32>
    %115 = arith.mulf %114, %113 : vector<16x1xf32>
    %116 = vector.broadcast %115 : vector<16x1xf32> to vector<16x32xf32>
    %117 = arith.mulf %106, %116 : vector<16x32xf32>
    %c0_44 = arith.constant 0 : index
    %c0_45 = arith.constant 0 : index
    %c0_46 = arith.constant 0 : index
    %118 = vector.load %arg10[%c0_44, %c0_45, %c0_46] : memref<2x32x64xf32, #tpu.memory_space<vmem>>, vector<1x32x64xf32>
    %119 = vector.shape_cast %118 : vector<1x32x64xf32> to vector<32x64xf32>
    %cst_47 = arith.constant dense<0.000000e+00> : vector<16x64xf32>
    %120 = tpu.matmul %117, %119, %cst_47 {dimension_numbers = #tpu.dot_dimension_numbers<[1], [0], [0], [1], [0, 0, 1, 1], [], []>} : vector<16x32xf32>, vector<32x64xf32>, vector<16x64xf32> -> vector<16x64xf32>
    %c0_48 = arith.constant 0 : index
    %c0_49 = arith.constant 0 : index
    %c0_50 = arith.constant 0 : index
    %121 = vector.load %arg11[%c0_48, %c0_49, %c0_50] : memref<2x1x64xf32, #tpu.memory_space<vmem>>, vector<1x1x64xf32>
    %122 = vector.shape_cast %121 : vector<1x1x64xf32> to vector<1x64xf32>
    %123 = vector.broadcast %122 : vector<1x64xf32> to vector<16x64xf32>
    %124 = arith.addf %120, %123 : vector<16x64xf32>
    %cst_51 = arith.constant 0.000000e+00 : f32
    %125 = vector.broadcast %cst_51 : f32 to vector<16x64xf32>
    %126 = arith.maximumf %124, %125 : vector<16x64xf32>
    %c0_52 = arith.constant 0 : index
    %c0_53 = arith.constant 0 : index
    %c0_54 = arith.constant 0 : index
    %127 = vector.load %arg12[%c0_52, %c0_53, %c0_54] : memref<2x64x32xf32, #tpu.memory_space<vmem>>, vector<1x64x32xf32>
    %128 = vector.shape_cast %127 : vector<1x64x32xf32> to vector<64x32xf32>
    %cst_55 = arith.constant dense<0.000000e+00> : vector<16x32xf32>
    %129 = tpu.matmul %126, %128, %cst_55 {dimension_numbers = #tpu.dot_dimension_numbers<[1], [0], [0], [1], [0, 0, 1, 1], [], []>} : vector<16x64xf32>, vector<64x32xf32>, vector<16x32xf32> -> vector<16x32xf32>
    %130 = arith.addf %106, %129 : vector<16x32xf32>
    %c0_56 = arith.constant 0 : index
    %c0_57 = arith.constant 0 : index
    %c0_58 = arith.constant 0 : index
    %131 = vector.load %arg13[%c0_56, %c0_57, %c0_58] : memref<2x1x32xf32, #tpu.memory_space<vmem>>, vector<1x1x32xf32>
    %132 = vector.shape_cast %131 : vector<1x1x32xf32> to vector<1x32xf32>
    %133 = vector.broadcast %132 : vector<1x32xf32> to vector<16x32xf32>
    %134 = arith.addf %130, %133 : vector<16x32xf32>
    %c2 = arith.constant 2 : index
    %135 = memref.load %arg5[%c2] : memref<12xf32, #tpu.memory_space<smem>>
    %136 = arith.mulf %134, %134 : vector<16x32xf32>
    %cst_59 = arith.constant dense<0.000000e+00> : vector<16xf32>
    %137 = vector.multi_reduction <add>, %136, %cst_59 [1] : vector<16x32xf32> to vector<16xf32>
    %138 = vector.shape_cast %137 : vector<16xf32> to vector<16x1xf32>
    %cst_60 = arith.constant 1.000000e-10 : f32
    %139 = vector.broadcast %cst_60 : f32 to vector<16x1xf32>
    %140 = arith.maximumf %138, %139 : vector<16x1xf32>
    %141 = math.rsqrt %140 : vector<16x1xf32>
    %142 = vector.broadcast %135 : f32 to vector<16x1xf32>
    %143 = arith.mulf %142, %141 : vector<16x1xf32>
    %144 = vector.broadcast %143 : vector<16x1xf32> to vector<16x32xf32>
    %145 = arith.mulf %134, %144 : vector<16x32xf32>
    %c1_61 = arith.constant 1 : index
    %c0_62 = arith.constant 0 : index
    %c0_63 = arith.constant 0 : index
    %146 = vector.load %arg6[%c1_61, %c0_62, %c0_63] : memref<2x32x96xf32, #tpu.memory_space<vmem>>, vector<1x32x96xf32>
    %147 = vector.shape_cast %146 : vector<1x32x96xf32> to vector<32x96xf32>
    %cst_64 = arith.constant dense<0.000000e+00> : vector<16x96xf32>
    %148 = tpu.matmul %145, %147, %cst_64 {dimension_numbers = #tpu.dot_dimension_numbers<[1], [0], [0], [1], [0, 0, 1, 1], [], []>} : vector<16x32xf32>, vector<32x96xf32>, vector<16x96xf32> -> vector<16x96xf32>
    %c1_65 = arith.constant 1 : index
    %c0_66 = arith.constant 0 : index
    %c0_67 = arith.constant 0 : index
    %149 = vector.load %arg7[%c1_65, %c0_66, %c0_67] : memref<2x1x96xf32, #tpu.memory_space<vmem>>, vector<1x1x96xf32>
    %150 = vector.shape_cast %149 : vector<1x1x96xf32> to vector<1x96xf32>
    %151 = vector.broadcast %150 : vector<1x96xf32> to vector<16x96xf32>
    %152 = arith.addf %148, %151 : vector<16x96xf32>
    %153 = vector.extract_strided_slice %152 {offsets = [0, 0], sizes = [16, 32], strides = [1, 1]} : vector<16x96xf32> to vector<16x32xf32>
    %154 = vector.extract_strided_slice %152 {offsets = [0, 32], sizes = [16, 32], strides = [1, 1]} : vector<16x96xf32> to vector<16x32xf32>
    %155 = vector.extract_strided_slice %152 {offsets = [0, 64], sizes = [16, 32], strides = [1, 1]} : vector<16x96xf32> to vector<16x32xf32>
    %c1_68 = arith.constant 1 : index
    %c0_69 = arith.constant 0 : index
    %c0_70 = arith.constant 0 : index
    %156 = vector.load %arg8[%c1_68, %c0_69, %c0_70] : memref<2x32x32xf32, #tpu.memory_space<vmem>>, vector<1x32x32xf32>
    %157 = vector.shape_cast %156 : vector<1x32x32xf32> to vector<32x32xf32>
    %158 = vector.extract_strided_slice %153 {offsets = [0, 0], sizes = [16, 8], strides = [1, 1]} : vector<16x32xf32> to vector<16x8xf32>
    %159 = vector.extract_strided_slice %154 {offsets = [0, 0], sizes = [16, 8], strides = [1, 1]} : vector<16x32xf32> to vector<16x8xf32>
    %cst_71 = arith.constant dense<0.000000e+00> : vector<16x16xf32>
    %160 = tpu.matmul %158, %159, %cst_71 {dimension_numbers = #tpu.dot_dimension_numbers<[1], [1], [0], [0], [0, 0, 1, 0], [], []>} : vector<16x8xf32>, vector<16x8xf32>, vector<16x16xf32> -> vector<16x16xf32>
    %161 = arith.addf %160, %0 : vector<16x16xf32>
    %cst_72 = arith.constant dense<0xFF800000> : vector<16xf32>
    %162 = vector.multi_reduction <maximumf>, %161, %cst_72 [1] : vector<16x16xf32> to vector<16xf32>
    %163 = vector.shape_cast %162 : vector<16xf32> to vector<16x1xf32>
    %164 = vector.broadcast %163 : vector<16x1xf32> to vector<16x16xf32>
    %165 = arith.subf %161, %164 : vector<16x16xf32>
    %166 = math.exp %165 : vector<16x16xf32>
    %cst_73 = arith.constant dense<0.000000e+00> : vector<16xf32>
    %167 = vector.multi_reduction <add>, %166, %cst_73 [1] : vector<16x16xf32> to vector<16xf32>
    %168 = vector.shape_cast %167 : vector<16xf32> to vector<16x1xf32>
    %169 = tpu.reciprocal %168 {approx = true} : vector<16x1xf32> -> vector<16x1xf32>
    %170 = vector.broadcast %169 : vector<16x1xf32> to vector<16x16xf32>
    %171 = arith.mulf %166, %170 : vector<16x16xf32>
    %172 = vector.extract_strided_slice %155 {offsets = [0, 0], sizes = [16, 8], strides = [1, 1]} : vector<16x32xf32> to vector<16x8xf32>
    %cst_74 = arith.constant dense<0.000000e+00> : vector<16x8xf32>
    %173 = tpu.matmul %171, %172, %cst_74 {dimension_numbers = #tpu.dot_dimension_numbers<[1], [0], [0], [1], [0, 0, 1, 1], [], []>} : vector<16x16xf32>, vector<16x8xf32>, vector<16x8xf32> -> vector<16x8xf32>
    %174 = vector.extract_strided_slice %157 {offsets = [0, 0], sizes = [8, 32], strides = [1, 1]} : vector<32x32xf32> to vector<8x32xf32>
    %cst_75 = arith.constant dense<0.000000e+00> : vector<16x32xf32>
    %175 = tpu.matmul %173, %174, %cst_75 {dimension_numbers = #tpu.dot_dimension_numbers<[1], [0], [0], [1], [0, 0, 1, 1], [], []>} : vector<16x8xf32>, vector<8x32xf32>, vector<16x32xf32> -> vector<16x32xf32>
    %176 = vector.extract_strided_slice %153 {offsets = [0, 8], sizes = [16, 8], strides = [1, 1]} : vector<16x32xf32> to vector<16x8xf32>
    %177 = vector.extract_strided_slice %154 {offsets = [0, 8], sizes = [16, 8], strides = [1, 1]} : vector<16x32xf32> to vector<16x8xf32>
    %cst_76 = arith.constant dense<0.000000e+00> : vector<16x16xf32>
    %178 = tpu.matmul %176, %177, %cst_76 {dimension_numbers = #tpu.dot_dimension_numbers<[1], [1], [0], [0], [0, 0, 1, 0], [], []>} : vector<16x8xf32>, vector<16x8xf32>, vector<16x16xf32> -> vector<16x16xf32>
    %179 = arith.addf %178, %0 : vector<16x16xf32>
    %cst_77 = arith.constant dense<0xFF800000> : vector<16xf32>
    %180 = vector.multi_reduction <maximumf>, %179, %cst_77 [1] : vector<16x16xf32> to vector<16xf32>
    %181 = vector.shape_cast %180 : vector<16xf32> to vector<16x1xf32>
    %182 = vector.broadcast %181 : vector<16x1xf32> to vector<16x16xf32>
    %183 = arith.subf %179, %182 : vector<16x16xf32>
    %184 = math.exp %183 : vector<16x16xf32>
    %cst_78 = arith.constant dense<0.000000e+00> : vector<16xf32>
    %185 = vector.multi_reduction <add>, %184, %cst_78 [1] : vector<16x16xf32> to vector<16xf32>
    %186 = vector.shape_cast %185 : vector<16xf32> to vector<16x1xf32>
    %187 = tpu.reciprocal %186 {approx = true} : vector<16x1xf32> -> vector<16x1xf32>
    %188 = vector.broadcast %187 : vector<16x1xf32> to vector<16x16xf32>
    %189 = arith.mulf %184, %188 : vector<16x16xf32>
    %190 = vector.extract_strided_slice %155 {offsets = [0, 8], sizes = [16, 8], strides = [1, 1]} : vector<16x32xf32> to vector<16x8xf32>
    %cst_79 = arith.constant dense<0.000000e+00> : vector<16x8xf32>
    %191 = tpu.matmul %189, %190, %cst_79 {dimension_numbers = #tpu.dot_dimension_numbers<[1], [0], [0], [1], [0, 0, 1, 1], [], []>} : vector<16x16xf32>, vector<16x8xf32>, vector<16x8xf32> -> vector<16x8xf32>
    %192 = vector.extract_strided_slice %157 {offsets = [8, 0], sizes = [8, 32], strides = [1, 1]} : vector<32x32xf32> to vector<8x32xf32>
    %cst_80 = arith.constant dense<0.000000e+00> : vector<16x32xf32>
    %193 = tpu.matmul %191, %192, %cst_80 {dimension_numbers = #tpu.dot_dimension_numbers<[1], [0], [0], [1], [0, 0, 1, 1], [], []>} : vector<16x8xf32>, vector<8x32xf32>, vector<16x32xf32> -> vector<16x32xf32>
    %194 = arith.addf %175, %193 : vector<16x32xf32>
    %195 = vector.extract_strided_slice %153 {offsets = [0, 16], sizes = [16, 8], strides = [1, 1]} : vector<16x32xf32> to vector<16x8xf32>
    %196 = vector.extract_strided_slice %154 {offsets = [0, 16], sizes = [16, 8], strides = [1, 1]} : vector<16x32xf32> to vector<16x8xf32>
    %cst_81 = arith.constant dense<0.000000e+00> : vector<16x16xf32>
    %197 = tpu.matmul %195, %196, %cst_81 {dimension_numbers = #tpu.dot_dimension_numbers<[1], [1], [0], [0], [0, 0, 1, 0], [], []>} : vector<16x8xf32>, vector<16x8xf32>, vector<16x16xf32> -> vector<16x16xf32>
    %198 = arith.addf %197, %0 : vector<16x16xf32>
    %cst_82 = arith.constant dense<0xFF800000> : vector<16xf32>
    %199 = vector.multi_reduction <maximumf>, %198, %cst_82 [1] : vector<16x16xf32> to vector<16xf32>
    %200 = vector.shape_cast %199 : vector<16xf32> to vector<16x1xf32>
    %201 = vector.broadcast %200 : vector<16x1xf32> to vector<16x16xf32>
    %202 = arith.subf %198, %201 : vector<16x16xf32>
    %203 = math.exp %202 : vector<16x16xf32>
    %cst_83 = arith.constant dense<0.000000e+00> : vector<16xf32>
    %204 = vector.multi_reduction <add>, %203, %cst_83 [1] : vector<16x16xf32> to vector<16xf32>
    %205 = vector.shape_cast %204 : vector<16xf32> to vector<16x1xf32>
    %206 = tpu.reciprocal %205 {approx = true} : vector<16x1xf32> -> vector<16x1xf32>
    %207 = vector.broadcast %206 : vector<16x1xf32> to vector<16x16xf32>
    %208 = arith.mulf %203, %207 : vector<16x16xf32>
    %209 = vector.extract_strided_slice %155 {offsets = [0, 16], sizes = [16, 8], strides = [1, 1]} : vector<16x32xf32> to vector<16x8xf32>
    %cst_84 = arith.constant dense<0.000000e+00> : vector<16x8xf32>
    %210 = tpu.matmul %208, %209, %cst_84 {dimension_numbers = #tpu.dot_dimension_numbers<[1], [0], [0], [1], [0, 0, 1, 1], [], []>} : vector<16x16xf32>, vector<16x8xf32>, vector<16x8xf32> -> vector<16x8xf32>
    %211 = vector.extract_strided_slice %157 {offsets = [16, 0], sizes = [8, 32], strides = [1, 1]} : vector<32x32xf32> to vector<8x32xf32>
    %cst_85 = arith.constant dense<0.000000e+00> : vector<16x32xf32>
    %212 = tpu.matmul %210, %211, %cst_85 {dimension_numbers = #tpu.dot_dimension_numbers<[1], [0], [0], [1], [0, 0, 1, 1], [], []>} : vector<16x8xf32>, vector<8x32xf32>, vector<16x32xf32> -> vector<16x32xf32>
    %213 = arith.addf %194, %212 : vector<16x32xf32>
    %214 = vector.extract_strided_slice %153 {offsets = [0, 24], sizes = [16, 8], strides = [1, 1]} : vector<16x32xf32> to vector<16x8xf32>
    %215 = vector.extract_strided_slice %154 {offsets = [0, 24], sizes = [16, 8], strides = [1, 1]} : vector<16x32xf32> to vector<16x8xf32>
    %cst_86 = arith.constant dense<0.000000e+00> : vector<16x16xf32>
    %216 = tpu.matmul %214, %215, %cst_86 {dimension_numbers = #tpu.dot_dimension_numbers<[1], [1], [0], [0], [0, 0, 1, 0], [], []>} : vector<16x8xf32>, vector<16x8xf32>, vector<16x16xf32> -> vector<16x16xf32>
    %217 = arith.addf %216, %0 : vector<16x16xf32>
    %cst_87 = arith.constant dense<0xFF800000> : vector<16xf32>
    %218 = vector.multi_reduction <maximumf>, %217, %cst_87 [1] : vector<16x16xf32> to vector<16xf32>
    %219 = vector.shape_cast %218 : vector<16xf32> to vector<16x1xf32>
    %220 = vector.broadcast %219 : vector<16x1xf32> to vector<16x16xf32>
    %221 = arith.subf %217, %220 : vector<16x16xf32>
    %222 = math.exp %221 : vector<16x16xf32>
    %cst_88 = arith.constant dense<0.000000e+00> : vector<16xf32>
    %223 = vector.multi_reduction <add>, %222, %cst_88 [1] : vector<16x16xf32> to vector<16xf32>
    %224 = vector.shape_cast %223 : vector<16xf32> to vector<16x1xf32>
    %225 = tpu.reciprocal %224 {approx = true} : vector<16x1xf32> -> vector<16x1xf32>
    %226 = vector.broadcast %225 : vector<16x1xf32> to vector<16x16xf32>
    %227 = arith.mulf %222, %226 : vector<16x16xf32>
    %228 = vector.extract_strided_slice %155 {offsets = [0, 24], sizes = [16, 8], strides = [1, 1]} : vector<16x32xf32> to vector<16x8xf32>
    %cst_89 = arith.constant dense<0.000000e+00> : vector<16x8xf32>
    %229 = tpu.matmul %227, %228, %cst_89 {dimension_numbers = #tpu.dot_dimension_numbers<[1], [0], [0], [1], [0, 0, 1, 1], [], []>} : vector<16x16xf32>, vector<16x8xf32>, vector<16x8xf32> -> vector<16x8xf32>
    %230 = vector.extract_strided_slice %157 {offsets = [24, 0], sizes = [8, 32], strides = [1, 1]} : vector<32x32xf32> to vector<8x32xf32>
    %cst_90 = arith.constant dense<0.000000e+00> : vector<16x32xf32>
    %231 = tpu.matmul %229, %230, %cst_90 {dimension_numbers = #tpu.dot_dimension_numbers<[1], [0], [0], [1], [0, 0, 1, 1], [], []>} : vector<16x8xf32>, vector<8x32xf32>, vector<16x32xf32> -> vector<16x32xf32>
    %232 = arith.addf %213, %231 : vector<16x32xf32>
    %233 = arith.addf %134, %232 : vector<16x32xf32>
    %c1_91 = arith.constant 1 : index
    %c0_92 = arith.constant 0 : index
    %c0_93 = arith.constant 0 : index
    %234 = vector.load %arg9[%c1_91, %c0_92, %c0_93] : memref<2x1x32xf32, #tpu.memory_space<vmem>>, vector<1x1x32xf32>
    %235 = vector.shape_cast %234 : vector<1x1x32xf32> to vector<1x32xf32>
    %236 = vector.broadcast %235 : vector<1x32xf32> to vector<16x32xf32>
    %237 = arith.addf %233, %236 : vector<16x32xf32>
    %c3 = arith.constant 3 : index
    %238 = memref.load %arg5[%c3] : memref<12xf32, #tpu.memory_space<smem>>
    %239 = arith.mulf %237, %237 : vector<16x32xf32>
    %cst_94 = arith.constant dense<0.000000e+00> : vector<16xf32>
    %240 = vector.multi_reduction <add>, %239, %cst_94 [1] : vector<16x32xf32> to vector<16xf32>
    %241 = vector.shape_cast %240 : vector<16xf32> to vector<16x1xf32>
    %cst_95 = arith.constant 1.000000e-10 : f32
    %242 = vector.broadcast %cst_95 : f32 to vector<16x1xf32>
    %243 = arith.maximumf %241, %242 : vector<16x1xf32>
    %244 = math.rsqrt %243 : vector<16x1xf32>
    %245 = vector.broadcast %238 : f32 to vector<16x1xf32>
    %246 = arith.mulf %245, %244 : vector<16x1xf32>
    %247 = vector.broadcast %246 : vector<16x1xf32> to vector<16x32xf32>
    %248 = arith.mulf %237, %247 : vector<16x32xf32>
    %c1_96 = arith.constant 1 : index
    %c0_97 = arith.constant 0 : index
    %c0_98 = arith.constant 0 : index
    %249 = vector.load %arg10[%c1_96, %c0_97, %c0_98] : memref<2x32x64xf32, #tpu.memory_space<vmem>>, vector<1x32x64xf32>
    %250 = vector.shape_cast %249 : vector<1x32x64xf32> to vector<32x64xf32>
    %cst_99 = arith.constant dense<0.000000e+00> : vector<16x64xf32>
    %251 = tpu.matmul %248, %250, %cst_99 {dimension_numbers = #tpu.dot_dimension_numbers<[1], [0], [0], [1], [0, 0, 1, 1], [], []>} : vector<16x32xf32>, vector<32x64xf32>, vector<16x64xf32> -> vector<16x64xf32>
    %c1_100 = arith.constant 1 : index
    %c0_101 = arith.constant 0 : index
    %c0_102 = arith.constant 0 : index
    %252 = vector.load %arg11[%c1_100, %c0_101, %c0_102] : memref<2x1x64xf32, #tpu.memory_space<vmem>>, vector<1x1x64xf32>
    %253 = vector.shape_cast %252 : vector<1x1x64xf32> to vector<1x64xf32>
    %254 = vector.broadcast %253 : vector<1x64xf32> to vector<16x64xf32>
    %255 = arith.addf %251, %254 : vector<16x64xf32>
    %cst_103 = arith.constant 0.000000e+00 : f32
    %256 = vector.broadcast %cst_103 : f32 to vector<16x64xf32>
    %257 = arith.maximumf %255, %256 : vector<16x64xf32>
    %c1_104 = arith.constant 1 : index
    %c0_105 = arith.constant 0 : index
    %c0_106 = arith.constant 0 : index
    %258 = vector.load %arg12[%c1_104, %c0_105, %c0_106] : memref<2x64x32xf32, #tpu.memory_space<vmem>>, vector<1x64x32xf32>
    %259 = vector.shape_cast %258 : vector<1x64x32xf32> to vector<64x32xf32>
    %cst_107 = arith.constant dense<0.000000e+00> : vector<16x32xf32>
    %260 = tpu.matmul %257, %259, %cst_107 {dimension_numbers = #tpu.dot_dimension_numbers<[1], [0], [0], [1], [0, 0, 1, 1], [], []>} : vector<16x64xf32>, vector<64x32xf32>, vector<16x32xf32> -> vector<16x32xf32>
    %261 = arith.addf %237, %260 : vector<16x32xf32>
    %c1_108 = arith.constant 1 : index
    %c0_109 = arith.constant 0 : index
    %c0_110 = arith.constant 0 : index
    %262 = vector.load %arg13[%c1_108, %c0_109, %c0_110] : memref<2x1x32xf32, #tpu.memory_space<vmem>>, vector<1x1x32xf32>
    %263 = vector.shape_cast %262 : vector<1x1x32xf32> to vector<1x32xf32>
    %264 = vector.broadcast %263 : vector<1x32xf32> to vector<16x32xf32>
    %265 = arith.addf %261, %264 : vector<16x32xf32>
    %c4 = arith.constant 4 : index
    %266 = memref.load %arg5[%c4] : memref<12xf32, #tpu.memory_space<smem>>
    %267 = arith.mulf %265, %265 : vector<16x32xf32>
    %cst_111 = arith.constant dense<0.000000e+00> : vector<16xf32>
    %268 = vector.multi_reduction <add>, %267, %cst_111 [1] : vector<16x32xf32> to vector<16xf32>
    %269 = vector.shape_cast %268 : vector<16xf32> to vector<16x1xf32>
    %cst_112 = arith.constant 1.000000e-10 : f32
    %270 = vector.broadcast %cst_112 : f32 to vector<16x1xf32>
    %271 = arith.maximumf %269, %270 : vector<16x1xf32>
    %272 = math.rsqrt %271 : vector<16x1xf32>
    %273 = vector.broadcast %266 : f32 to vector<16x1xf32>
    %274 = arith.mulf %273, %272 : vector<16x1xf32>
    %275 = vector.broadcast %274 : vector<16x1xf32> to vector<16x32xf32>
    %276 = arith.mulf %265, %275 : vector<16x32xf32>
    %c0_113 = arith.constant 0 : index
    %c0_114 = arith.constant 0 : index
    %277 = vector.load %arg1[%c0_113, %c0_114] : memref<16x32xf32, #tpu.memory_space<vmem>>, vector<16x32xf32>
    %c5 = arith.constant 5 : index
    %278 = memref.load %arg5[%c5] : memref<12xf32, #tpu.memory_space<smem>>
    %279 = arith.mulf %277, %277 : vector<16x32xf32>
    %cst_115 = arith.constant dense<0.000000e+00> : vector<16xf32>
    %280 = vector.multi_reduction <add>, %279, %cst_115 [1] : vector<16x32xf32> to vector<16xf32>
    %281 = vector.shape_cast %280 : vector<16xf32> to vector<16x1xf32>
    %cst_116 = arith.constant 1.000000e-10 : f32
    %282 = vector.broadcast %cst_116 : f32 to vector<16x1xf32>
    %283 = arith.maximumf %281, %282 : vector<16x1xf32>
    %284 = math.rsqrt %283 : vector<16x1xf32>
    %285 = vector.broadcast %278 : f32 to vector<16x1xf32>
    %286 = arith.mulf %285, %284 : vector<16x1xf32>
    %287 = vector.broadcast %286 : vector<16x1xf32> to vector<16x32xf32>
    %288 = arith.mulf %277, %287 : vector<16x32xf32>
    %c0_117 = arith.constant 0 : index
    %c0_118 = arith.constant 0 : index
    %c0_119 = arith.constant 0 : index
    %289 = vector.load %arg14[%c0_117, %c0_118, %c0_119] : memref<2x32x96xf32, #tpu.memory_space<vmem>>, vector<1x32x96xf32>
    %290 = vector.shape_cast %289 : vector<1x32x96xf32> to vector<32x96xf32>
    %cst_120 = arith.constant dense<0.000000e+00> : vector<16x96xf32>
    %291 = tpu.matmul %288, %290, %cst_120 {dimension_numbers = #tpu.dot_dimension_numbers<[1], [0], [0], [1], [0, 0, 1, 1], [], []>} : vector<16x32xf32>, vector<32x96xf32>, vector<16x96xf32> -> vector<16x96xf32>
    %c0_121 = arith.constant 0 : index
    %c0_122 = arith.constant 0 : index
    %c0_123 = arith.constant 0 : index
    %292 = vector.load %arg15[%c0_121, %c0_122, %c0_123] : memref<2x1x96xf32, #tpu.memory_space<vmem>>, vector<1x1x96xf32>
    %293 = vector.shape_cast %292 : vector<1x1x96xf32> to vector<1x96xf32>
    %294 = vector.broadcast %293 : vector<1x96xf32> to vector<16x96xf32>
    %295 = arith.addf %291, %294 : vector<16x96xf32>
    %296 = vector.extract_strided_slice %295 {offsets = [0, 0], sizes = [16, 32], strides = [1, 1]} : vector<16x96xf32> to vector<16x32xf32>
    %297 = vector.extract_strided_slice %295 {offsets = [0, 32], sizes = [16, 32], strides = [1, 1]} : vector<16x96xf32> to vector<16x32xf32>
    %298 = vector.extract_strided_slice %295 {offsets = [0, 64], sizes = [16, 32], strides = [1, 1]} : vector<16x96xf32> to vector<16x32xf32>
    %c0_124 = arith.constant 0 : index
    %c0_125 = arith.constant 0 : index
    %c0_126 = arith.constant 0 : index
    %299 = vector.load %arg16[%c0_124, %c0_125, %c0_126] : memref<2x32x32xf32, #tpu.memory_space<vmem>>, vector<1x32x32xf32>
    %300 = vector.shape_cast %299 : vector<1x32x32xf32> to vector<32x32xf32>
    %301 = vector.extract_strided_slice %296 {offsets = [0, 0], sizes = [16, 8], strides = [1, 1]} : vector<16x32xf32> to vector<16x8xf32>
    %302 = vector.extract_strided_slice %297 {offsets = [0, 0], sizes = [16, 8], strides = [1, 1]} : vector<16x32xf32> to vector<16x8xf32>
    %cst_127 = arith.constant dense<0.000000e+00> : vector<16x16xf32>
    %303 = tpu.matmul %301, %302, %cst_127 {dimension_numbers = #tpu.dot_dimension_numbers<[1], [1], [0], [0], [0, 0, 1, 0], [], []>} : vector<16x8xf32>, vector<16x8xf32>, vector<16x16xf32> -> vector<16x16xf32>
    %304 = arith.addf %303, %2 : vector<16x16xf32>
    %cst_128 = arith.constant dense<0xFF800000> : vector<16xf32>
    %305 = vector.multi_reduction <maximumf>, %304, %cst_128 [1] : vector<16x16xf32> to vector<16xf32>
    %306 = vector.shape_cast %305 : vector<16xf32> to vector<16x1xf32>
    %307 = vector.broadcast %306 : vector<16x1xf32> to vector<16x16xf32>
    %308 = arith.subf %304, %307 : vector<16x16xf32>
    %309 = math.exp %308 : vector<16x16xf32>
    %cst_129 = arith.constant dense<0.000000e+00> : vector<16xf32>
    %310 = vector.multi_reduction <add>, %309, %cst_129 [1] : vector<16x16xf32> to vector<16xf32>
    %311 = vector.shape_cast %310 : vector<16xf32> to vector<16x1xf32>
    %312 = tpu.reciprocal %311 {approx = true} : vector<16x1xf32> -> vector<16x1xf32>
    %313 = vector.broadcast %312 : vector<16x1xf32> to vector<16x16xf32>
    %314 = arith.mulf %309, %313 : vector<16x16xf32>
    %315 = vector.extract_strided_slice %298 {offsets = [0, 0], sizes = [16, 8], strides = [1, 1]} : vector<16x32xf32> to vector<16x8xf32>
    %cst_130 = arith.constant dense<0.000000e+00> : vector<16x8xf32>
    %316 = tpu.matmul %314, %315, %cst_130 {dimension_numbers = #tpu.dot_dimension_numbers<[1], [0], [0], [1], [0, 0, 1, 1], [], []>} : vector<16x16xf32>, vector<16x8xf32>, vector<16x8xf32> -> vector<16x8xf32>
    %317 = vector.extract_strided_slice %300 {offsets = [0, 0], sizes = [8, 32], strides = [1, 1]} : vector<32x32xf32> to vector<8x32xf32>
    %cst_131 = arith.constant dense<0.000000e+00> : vector<16x32xf32>
    %318 = tpu.matmul %316, %317, %cst_131 {dimension_numbers = #tpu.dot_dimension_numbers<[1], [0], [0], [1], [0, 0, 1, 1], [], []>} : vector<16x8xf32>, vector<8x32xf32>, vector<16x32xf32> -> vector<16x32xf32>
    %319 = vector.extract_strided_slice %296 {offsets = [0, 8], sizes = [16, 8], strides = [1, 1]} : vector<16x32xf32> to vector<16x8xf32>
    %320 = vector.extract_strided_slice %297 {offsets = [0, 8], sizes = [16, 8], strides = [1, 1]} : vector<16x32xf32> to vector<16x8xf32>
    %cst_132 = arith.constant dense<0.000000e+00> : vector<16x16xf32>
    %321 = tpu.matmul %319, %320, %cst_132 {dimension_numbers = #tpu.dot_dimension_numbers<[1], [1], [0], [0], [0, 0, 1, 0], [], []>} : vector<16x8xf32>, vector<16x8xf32>, vector<16x16xf32> -> vector<16x16xf32>
    %322 = arith.addf %321, %2 : vector<16x16xf32>
    %cst_133 = arith.constant dense<0xFF800000> : vector<16xf32>
    %323 = vector.multi_reduction <maximumf>, %322, %cst_133 [1] : vector<16x16xf32> to vector<16xf32>
    %324 = vector.shape_cast %323 : vector<16xf32> to vector<16x1xf32>
    %325 = vector.broadcast %324 : vector<16x1xf32> to vector<16x16xf32>
    %326 = arith.subf %322, %325 : vector<16x16xf32>
    %327 = math.exp %326 : vector<16x16xf32>
    %cst_134 = arith.constant dense<0.000000e+00> : vector<16xf32>
    %328 = vector.multi_reduction <add>, %327, %cst_134 [1] : vector<16x16xf32> to vector<16xf32>
    %329 = vector.shape_cast %328 : vector<16xf32> to vector<16x1xf32>
    %330 = tpu.reciprocal %329 {approx = true} : vector<16x1xf32> -> vector<16x1xf32>
    %331 = vector.broadcast %330 : vector<16x1xf32> to vector<16x16xf32>
    %332 = arith.mulf %327, %331 : vector<16x16xf32>
    %333 = vector.extract_strided_slice %298 {offsets = [0, 8], sizes = [16, 8], strides = [1, 1]} : vector<16x32xf32> to vector<16x8xf32>
    %cst_135 = arith.constant dense<0.000000e+00> : vector<16x8xf32>
    %334 = tpu.matmul %332, %333, %cst_135 {dimension_numbers = #tpu.dot_dimension_numbers<[1], [0], [0], [1], [0, 0, 1, 1], [], []>} : vector<16x16xf32>, vector<16x8xf32>, vector<16x8xf32> -> vector<16x8xf32>
    %335 = vector.extract_strided_slice %300 {offsets = [8, 0], sizes = [8, 32], strides = [1, 1]} : vector<32x32xf32> to vector<8x32xf32>
    %cst_136 = arith.constant dense<0.000000e+00> : vector<16x32xf32>
    %336 = tpu.matmul %334, %335, %cst_136 {dimension_numbers = #tpu.dot_dimension_numbers<[1], [0], [0], [1], [0, 0, 1, 1], [], []>} : vector<16x8xf32>, vector<8x32xf32>, vector<16x32xf32> -> vector<16x32xf32>
    %337 = arith.addf %318, %336 : vector<16x32xf32>
    %338 = vector.extract_strided_slice %296 {offsets = [0, 16], sizes = [16, 8], strides = [1, 1]} : vector<16x32xf32> to vector<16x8xf32>
    %339 = vector.extract_strided_slice %297 {offsets = [0, 16], sizes = [16, 8], strides = [1, 1]} : vector<16x32xf32> to vector<16x8xf32>
    %cst_137 = arith.constant dense<0.000000e+00> : vector<16x16xf32>
    %340 = tpu.matmul %338, %339, %cst_137 {dimension_numbers = #tpu.dot_dimension_numbers<[1], [1], [0], [0], [0, 0, 1, 0], [], []>} : vector<16x8xf32>, vector<16x8xf32>, vector<16x16xf32> -> vector<16x16xf32>
    %341 = arith.addf %340, %2 : vector<16x16xf32>
    %cst_138 = arith.constant dense<0xFF800000> : vector<16xf32>
    %342 = vector.multi_reduction <maximumf>, %341, %cst_138 [1] : vector<16x16xf32> to vector<16xf32>
    %343 = vector.shape_cast %342 : vector<16xf32> to vector<16x1xf32>
    %344 = vector.broadcast %343 : vector<16x1xf32> to vector<16x16xf32>
    %345 = arith.subf %341, %344 : vector<16x16xf32>
    %346 = math.exp %345 : vector<16x16xf32>
    %cst_139 = arith.constant dense<0.000000e+00> : vector<16xf32>
    %347 = vector.multi_reduction <add>, %346, %cst_139 [1] : vector<16x16xf32> to vector<16xf32>
    %348 = vector.shape_cast %347 : vector<16xf32> to vector<16x1xf32>
    %349 = tpu.reciprocal %348 {approx = true} : vector<16x1xf32> -> vector<16x1xf32>
    %350 = vector.broadcast %349 : vector<16x1xf32> to vector<16x16xf32>
    %351 = arith.mulf %346, %350 : vector<16x16xf32>
    %352 = vector.extract_strided_slice %298 {offsets = [0, 16], sizes = [16, 8], strides = [1, 1]} : vector<16x32xf32> to vector<16x8xf32>
    %cst_140 = arith.constant dense<0.000000e+00> : vector<16x8xf32>
    %353 = tpu.matmul %351, %352, %cst_140 {dimension_numbers = #tpu.dot_dimension_numbers<[1], [0], [0], [1], [0, 0, 1, 1], [], []>} : vector<16x16xf32>, vector<16x8xf32>, vector<16x8xf32> -> vector<16x8xf32>
    %354 = vector.extract_strided_slice %300 {offsets = [16, 0], sizes = [8, 32], strides = [1, 1]} : vector<32x32xf32> to vector<8x32xf32>
    %cst_141 = arith.constant dense<0.000000e+00> : vector<16x32xf32>
    %355 = tpu.matmul %353, %354, %cst_141 {dimension_numbers = #tpu.dot_dimension_numbers<[1], [0], [0], [1], [0, 0, 1, 1], [], []>} : vector<16x8xf32>, vector<8x32xf32>, vector<16x32xf32> -> vector<16x32xf32>
    %356 = arith.addf %337, %355 : vector<16x32xf32>
    %357 = vector.extract_strided_slice %296 {offsets = [0, 24], sizes = [16, 8], strides = [1, 1]} : vector<16x32xf32> to vector<16x8xf32>
    %358 = vector.extract_strided_slice %297 {offsets = [0, 24], sizes = [16, 8], strides = [1, 1]} : vector<16x32xf32> to vector<16x8xf32>
    %cst_142 = arith.constant dense<0.000000e+00> : vector<16x16xf32>
    %359 = tpu.matmul %357, %358, %cst_142 {dimension_numbers = #tpu.dot_dimension_numbers<[1], [1], [0], [0], [0, 0, 1, 0], [], []>} : vector<16x8xf32>, vector<16x8xf32>, vector<16x16xf32> -> vector<16x16xf32>
    %360 = arith.addf %359, %2 : vector<16x16xf32>
    %cst_143 = arith.constant dense<0xFF800000> : vector<16xf32>
    %361 = vector.multi_reduction <maximumf>, %360, %cst_143 [1] : vector<16x16xf32> to vector<16xf32>
    %362 = vector.shape_cast %361 : vector<16xf32> to vector<16x1xf32>
    %363 = vector.broadcast %362 : vector<16x1xf32> to vector<16x16xf32>
    %364 = arith.subf %360, %363 : vector<16x16xf32>
    %365 = math.exp %364 : vector<16x16xf32>
    %cst_144 = arith.constant dense<0.000000e+00> : vector<16xf32>
    %366 = vector.multi_reduction <add>, %365, %cst_144 [1] : vector<16x16xf32> to vector<16xf32>
    %367 = vector.shape_cast %366 : vector<16xf32> to vector<16x1xf32>
    %368 = tpu.reciprocal %367 {approx = true} : vector<16x1xf32> -> vector<16x1xf32>
    %369 = vector.broadcast %368 : vector<16x1xf32> to vector<16x16xf32>
    %370 = arith.mulf %365, %369 : vector<16x16xf32>
    %371 = vector.extract_strided_slice %298 {offsets = [0, 24], sizes = [16, 8], strides = [1, 1]} : vector<16x32xf32> to vector<16x8xf32>
    %cst_145 = arith.constant dense<0.000000e+00> : vector<16x8xf32>
    %372 = tpu.matmul %370, %371, %cst_145 {dimension_numbers = #tpu.dot_dimension_numbers<[1], [0], [0], [1], [0, 0, 1, 1], [], []>} : vector<16x16xf32>, vector<16x8xf32>, vector<16x8xf32> -> vector<16x8xf32>
    %373 = vector.extract_strided_slice %300 {offsets = [24, 0], sizes = [8, 32], strides = [1, 1]} : vector<32x32xf32> to vector<8x32xf32>
    %cst_146 = arith.constant dense<0.000000e+00> : vector<16x32xf32>
    %374 = tpu.matmul %372, %373, %cst_146 {dimension_numbers = #tpu.dot_dimension_numbers<[1], [0], [0], [1], [0, 0, 1, 1], [], []>} : vector<16x8xf32>, vector<8x32xf32>, vector<16x32xf32> -> vector<16x32xf32>
    %375 = arith.addf %356, %374 : vector<16x32xf32>
    %376 = arith.addf %277, %375 : vector<16x32xf32>
    %c0_147 = arith.constant 0 : index
    %c0_148 = arith.constant 0 : index
    %c0_149 = arith.constant 0 : index
    %377 = vector.load %arg17[%c0_147, %c0_148, %c0_149] : memref<2x1x32xf32, #tpu.memory_space<vmem>>, vector<1x1x32xf32>
    %378 = vector.shape_cast %377 : vector<1x1x32xf32> to vector<1x32xf32>
    %379 = vector.broadcast %378 : vector<1x32xf32> to vector<16x32xf32>
    %380 = arith.addf %376, %379 : vector<16x32xf32>
    %c6 = arith.constant 6 : index
    %381 = memref.load %arg5[%c6] : memref<12xf32, #tpu.memory_space<smem>>
    %382 = arith.mulf %380, %380 : vector<16x32xf32>
    %cst_150 = arith.constant dense<0.000000e+00> : vector<16xf32>
    %383 = vector.multi_reduction <add>, %382, %cst_150 [1] : vector<16x32xf32> to vector<16xf32>
    %384 = vector.shape_cast %383 : vector<16xf32> to vector<16x1xf32>
    %cst_151 = arith.constant 1.000000e-10 : f32
    %385 = vector.broadcast %cst_151 : f32 to vector<16x1xf32>
    %386 = arith.maximumf %384, %385 : vector<16x1xf32>
    %387 = math.rsqrt %386 : vector<16x1xf32>
    %388 = vector.broadcast %381 : f32 to vector<16x1xf32>
    %389 = arith.mulf %388, %387 : vector<16x1xf32>
    %390 = vector.broadcast %389 : vector<16x1xf32> to vector<16x32xf32>
    %391 = arith.mulf %380, %390 : vector<16x32xf32>
    %c0_152 = arith.constant 0 : index
    %c0_153 = arith.constant 0 : index
    %c0_154 = arith.constant 0 : index
    %392 = vector.load %arg18[%c0_152, %c0_153, %c0_154] : memref<2x32x32xf32, #tpu.memory_space<vmem>>, vector<1x32x32xf32>
    %393 = vector.shape_cast %392 : vector<1x32x32xf32> to vector<32x32xf32>
    %cst_155 = arith.constant dense<0.000000e+00> : vector<16x32xf32>
    %394 = tpu.matmul %391, %393, %cst_155 {dimension_numbers = #tpu.dot_dimension_numbers<[1], [0], [0], [1], [0, 0, 1, 1], [], []>} : vector<16x32xf32>, vector<32x32xf32>, vector<16x32xf32> -> vector<16x32xf32>
    %c0_156 = arith.constant 0 : index
    %c0_157 = arith.constant 0 : index
    %c0_158 = arith.constant 0 : index
    %395 = vector.load %arg19[%c0_156, %c0_157, %c0_158] : memref<2x1x32xf32, #tpu.memory_space<vmem>>, vector<1x1x32xf32>
    %396 = vector.shape_cast %395 : vector<1x1x32xf32> to vector<1x32xf32>
    %397 = vector.broadcast %396 : vector<1x32xf32> to vector<16x32xf32>
    %398 = arith.addf %394, %397 : vector<16x32xf32>
    %c0_159 = arith.constant 0 : index
    %c0_160 = arith.constant 0 : index
    %c0_161 = arith.constant 0 : index
    %399 = vector.load %arg20[%c0_159, %c0_160, %c0_161] : memref<2x32x64xf32, #tpu.memory_space<vmem>>, vector<1x32x64xf32>
    %400 = vector.shape_cast %399 : vector<1x32x64xf32> to vector<32x64xf32>
    %cst_162 = arith.constant dense<0.000000e+00> : vector<16x64xf32>
    %401 = tpu.matmul %276, %400, %cst_162 {dimension_numbers = #tpu.dot_dimension_numbers<[1], [0], [0], [1], [0, 0, 1, 1], [], []>} : vector<16x32xf32>, vector<32x64xf32>, vector<16x64xf32> -> vector<16x64xf32>
    %c0_163 = arith.constant 0 : index
    %c0_164 = arith.constant 0 : index
    %c0_165 = arith.constant 0 : index
    %402 = vector.load %arg21[%c0_163, %c0_164, %c0_165] : memref<2x1x64xf32, #tpu.memory_space<vmem>>, vector<1x1x64xf32>
    %403 = vector.shape_cast %402 : vector<1x1x64xf32> to vector<1x64xf32>
    %404 = vector.broadcast %403 : vector<1x64xf32> to vector<16x64xf32>
    %405 = arith.addf %401, %404 : vector<16x64xf32>
    %406 = vector.extract_strided_slice %405 {offsets = [0, 0], sizes = [16, 32], strides = [1, 1]} : vector<16x64xf32> to vector<16x32xf32>
    %407 = vector.extract_strided_slice %405 {offsets = [0, 32], sizes = [16, 32], strides = [1, 1]} : vector<16x64xf32> to vector<16x32xf32>
    %c0_166 = arith.constant 0 : index
    %c0_167 = arith.constant 0 : index
    %c0_168 = arith.constant 0 : index
    %408 = vector.load %arg22[%c0_166, %c0_167, %c0_168] : memref<2x32x32xf32, #tpu.memory_space<vmem>>, vector<1x32x32xf32>
    %409 = vector.shape_cast %408 : vector<1x32x32xf32> to vector<32x32xf32>
    %410 = vector.extract_strided_slice %398 {offsets = [0, 0], sizes = [16, 8], strides = [1, 1]} : vector<16x32xf32> to vector<16x8xf32>
    %411 = vector.extract_strided_slice %406 {offsets = [0, 0], sizes = [16, 8], strides = [1, 1]} : vector<16x32xf32> to vector<16x8xf32>
    %cst_169 = arith.constant dense<0.000000e+00> : vector<16x16xf32>
    %412 = tpu.matmul %410, %411, %cst_169 {dimension_numbers = #tpu.dot_dimension_numbers<[1], [1], [0], [0], [0, 0, 1, 0], [], []>} : vector<16x8xf32>, vector<16x8xf32>, vector<16x16xf32> -> vector<16x16xf32>
    %413 = arith.addf %412, %1 : vector<16x16xf32>
    %cst_170 = arith.constant dense<0xFF800000> : vector<16xf32>
    %414 = vector.multi_reduction <maximumf>, %413, %cst_170 [1] : vector<16x16xf32> to vector<16xf32>
    %415 = vector.shape_cast %414 : vector<16xf32> to vector<16x1xf32>
    %416 = vector.broadcast %415 : vector<16x1xf32> to vector<16x16xf32>
    %417 = arith.subf %413, %416 : vector<16x16xf32>
    %418 = math.exp %417 : vector<16x16xf32>
    %cst_171 = arith.constant dense<0.000000e+00> : vector<16xf32>
    %419 = vector.multi_reduction <add>, %418, %cst_171 [1] : vector<16x16xf32> to vector<16xf32>
    %420 = vector.shape_cast %419 : vector<16xf32> to vector<16x1xf32>
    %421 = tpu.reciprocal %420 {approx = true} : vector<16x1xf32> -> vector<16x1xf32>
    %422 = vector.broadcast %421 : vector<16x1xf32> to vector<16x16xf32>
    %423 = arith.mulf %418, %422 : vector<16x16xf32>
    %424 = vector.extract_strided_slice %407 {offsets = [0, 0], sizes = [16, 8], strides = [1, 1]} : vector<16x32xf32> to vector<16x8xf32>
    %cst_172 = arith.constant dense<0.000000e+00> : vector<16x8xf32>
    %425 = tpu.matmul %423, %424, %cst_172 {dimension_numbers = #tpu.dot_dimension_numbers<[1], [0], [0], [1], [0, 0, 1, 1], [], []>} : vector<16x16xf32>, vector<16x8xf32>, vector<16x8xf32> -> vector<16x8xf32>
    %426 = vector.extract_strided_slice %409 {offsets = [0, 0], sizes = [8, 32], strides = [1, 1]} : vector<32x32xf32> to vector<8x32xf32>
    %cst_173 = arith.constant dense<0.000000e+00> : vector<16x32xf32>
    %427 = tpu.matmul %425, %426, %cst_173 {dimension_numbers = #tpu.dot_dimension_numbers<[1], [0], [0], [1], [0, 0, 1, 1], [], []>} : vector<16x8xf32>, vector<8x32xf32>, vector<16x32xf32> -> vector<16x32xf32>
    %428 = vector.extract_strided_slice %398 {offsets = [0, 8], sizes = [16, 8], strides = [1, 1]} : vector<16x32xf32> to vector<16x8xf32>
    %429 = vector.extract_strided_slice %406 {offsets = [0, 8], sizes = [16, 8], strides = [1, 1]} : vector<16x32xf32> to vector<16x8xf32>
    %cst_174 = arith.constant dense<0.000000e+00> : vector<16x16xf32>
    %430 = tpu.matmul %428, %429, %cst_174 {dimension_numbers = #tpu.dot_dimension_numbers<[1], [1], [0], [0], [0, 0, 1, 0], [], []>} : vector<16x8xf32>, vector<16x8xf32>, vector<16x16xf32> -> vector<16x16xf32>
    %431 = arith.addf %430, %1 : vector<16x16xf32>
    %cst_175 = arith.constant dense<0xFF800000> : vector<16xf32>
    %432 = vector.multi_reduction <maximumf>, %431, %cst_175 [1] : vector<16x16xf32> to vector<16xf32>
    %433 = vector.shape_cast %432 : vector<16xf32> to vector<16x1xf32>
    %434 = vector.broadcast %433 : vector<16x1xf32> to vector<16x16xf32>
    %435 = arith.subf %431, %434 : vector<16x16xf32>
    %436 = math.exp %435 : vector<16x16xf32>
    %cst_176 = arith.constant dense<0.000000e+00> : vector<16xf32>
    %437 = vector.multi_reduction <add>, %436, %cst_176 [1] : vector<16x16xf32> to vector<16xf32>
    %438 = vector.shape_cast %437 : vector<16xf32> to vector<16x1xf32>
    %439 = tpu.reciprocal %438 {approx = true} : vector<16x1xf32> -> vector<16x1xf32>
    %440 = vector.broadcast %439 : vector<16x1xf32> to vector<16x16xf32>
    %441 = arith.mulf %436, %440 : vector<16x16xf32>
    %442 = vector.extract_strided_slice %407 {offsets = [0, 8], sizes = [16, 8], strides = [1, 1]} : vector<16x32xf32> to vector<16x8xf32>
    %cst_177 = arith.constant dense<0.000000e+00> : vector<16x8xf32>
    %443 = tpu.matmul %441, %442, %cst_177 {dimension_numbers = #tpu.dot_dimension_numbers<[1], [0], [0], [1], [0, 0, 1, 1], [], []>} : vector<16x16xf32>, vector<16x8xf32>, vector<16x8xf32> -> vector<16x8xf32>
    %444 = vector.extract_strided_slice %409 {offsets = [8, 0], sizes = [8, 32], strides = [1, 1]} : vector<32x32xf32> to vector<8x32xf32>
    %cst_178 = arith.constant dense<0.000000e+00> : vector<16x32xf32>
    %445 = tpu.matmul %443, %444, %cst_178 {dimension_numbers = #tpu.dot_dimension_numbers<[1], [0], [0], [1], [0, 0, 1, 1], [], []>} : vector<16x8xf32>, vector<8x32xf32>, vector<16x32xf32> -> vector<16x32xf32>
    %446 = arith.addf %427, %445 : vector<16x32xf32>
    %447 = vector.extract_strided_slice %398 {offsets = [0, 16], sizes = [16, 8], strides = [1, 1]} : vector<16x32xf32> to vector<16x8xf32>
    %448 = vector.extract_strided_slice %406 {offsets = [0, 16], sizes = [16, 8], strides = [1, 1]} : vector<16x32xf32> to vector<16x8xf32>
    %cst_179 = arith.constant dense<0.000000e+00> : vector<16x16xf32>
    %449 = tpu.matmul %447, %448, %cst_179 {dimension_numbers = #tpu.dot_dimension_numbers<[1], [1], [0], [0], [0, 0, 1, 0], [], []>} : vector<16x8xf32>, vector<16x8xf32>, vector<16x16xf32> -> vector<16x16xf32>
    %450 = arith.addf %449, %1 : vector<16x16xf32>
    %cst_180 = arith.constant dense<0xFF800000> : vector<16xf32>
    %451 = vector.multi_reduction <maximumf>, %450, %cst_180 [1] : vector<16x16xf32> to vector<16xf32>
    %452 = vector.shape_cast %451 : vector<16xf32> to vector<16x1xf32>
    %453 = vector.broadcast %452 : vector<16x1xf32> to vector<16x16xf32>
    %454 = arith.subf %450, %453 : vector<16x16xf32>
    %455 = math.exp %454 : vector<16x16xf32>
    %cst_181 = arith.constant dense<0.000000e+00> : vector<16xf32>
    %456 = vector.multi_reduction <add>, %455, %cst_181 [1] : vector<16x16xf32> to vector<16xf32>
    %457 = vector.shape_cast %456 : vector<16xf32> to vector<16x1xf32>
    %458 = tpu.reciprocal %457 {approx = true} : vector<16x1xf32> -> vector<16x1xf32>
    %459 = vector.broadcast %458 : vector<16x1xf32> to vector<16x16xf32>
    %460 = arith.mulf %455, %459 : vector<16x16xf32>
    %461 = vector.extract_strided_slice %407 {offsets = [0, 16], sizes = [16, 8], strides = [1, 1]} : vector<16x32xf32> to vector<16x8xf32>
    %cst_182 = arith.constant dense<0.000000e+00> : vector<16x8xf32>
    %462 = tpu.matmul %460, %461, %cst_182 {dimension_numbers = #tpu.dot_dimension_numbers<[1], [0], [0], [1], [0, 0, 1, 1], [], []>} : vector<16x16xf32>, vector<16x8xf32>, vector<16x8xf32> -> vector<16x8xf32>
    %463 = vector.extract_strided_slice %409 {offsets = [16, 0], sizes = [8, 32], strides = [1, 1]} : vector<32x32xf32> to vector<8x32xf32>
    %cst_183 = arith.constant dense<0.000000e+00> : vector<16x32xf32>
    %464 = tpu.matmul %462, %463, %cst_183 {dimension_numbers = #tpu.dot_dimension_numbers<[1], [0], [0], [1], [0, 0, 1, 1], [], []>} : vector<16x8xf32>, vector<8x32xf32>, vector<16x32xf32> -> vector<16x32xf32>
    %465 = arith.addf %446, %464 : vector<16x32xf32>
    %466 = vector.extract_strided_slice %398 {offsets = [0, 24], sizes = [16, 8], strides = [1, 1]} : vector<16x32xf32> to vector<16x8xf32>
    %467 = vector.extract_strided_slice %406 {offsets = [0, 24], sizes = [16, 8], strides = [1, 1]} : vector<16x32xf32> to vector<16x8xf32>
    %cst_184 = arith.constant dense<0.000000e+00> : vector<16x16xf32>
    %468 = tpu.matmul %466, %467, %cst_184 {dimension_numbers = #tpu.dot_dimension_numbers<[1], [1], [0], [0], [0, 0, 1, 0], [], []>} : vector<16x8xf32>, vector<16x8xf32>, vector<16x16xf32> -> vector<16x16xf32>
    %469 = arith.addf %468, %1 : vector<16x16xf32>
    %cst_185 = arith.constant dense<0xFF800000> : vector<16xf32>
    %470 = vector.multi_reduction <maximumf>, %469, %cst_185 [1] : vector<16x16xf32> to vector<16xf32>
    %471 = vector.shape_cast %470 : vector<16xf32> to vector<16x1xf32>
    %472 = vector.broadcast %471 : vector<16x1xf32> to vector<16x16xf32>
    %473 = arith.subf %469, %472 : vector<16x16xf32>
    %474 = math.exp %473 : vector<16x16xf32>
    %cst_186 = arith.constant dense<0.000000e+00> : vector<16xf32>
    %475 = vector.multi_reduction <add>, %474, %cst_186 [1] : vector<16x16xf32> to vector<16xf32>
    %476 = vector.shape_cast %475 : vector<16xf32> to vector<16x1xf32>
    %477 = tpu.reciprocal %476 {approx = true} : vector<16x1xf32> -> vector<16x1xf32>
    %478 = vector.broadcast %477 : vector<16x1xf32> to vector<16x16xf32>
    %479 = arith.mulf %474, %478 : vector<16x16xf32>
    %480 = vector.extract_strided_slice %407 {offsets = [0, 24], sizes = [16, 8], strides = [1, 1]} : vector<16x32xf32> to vector<16x8xf32>
    %cst_187 = arith.constant dense<0.000000e+00> : vector<16x8xf32>
    %481 = tpu.matmul %479, %480, %cst_187 {dimension_numbers = #tpu.dot_dimension_numbers<[1], [0], [0], [1], [0, 0, 1, 1], [], []>} : vector<16x16xf32>, vector<16x8xf32>, vector<16x8xf32> -> vector<16x8xf32>
    %482 = vector.extract_strided_slice %409 {offsets = [24, 0], sizes = [8, 32], strides = [1, 1]} : vector<32x32xf32> to vector<8x32xf32>
    %cst_188 = arith.constant dense<0.000000e+00> : vector<16x32xf32>
    %483 = tpu.matmul %481, %482, %cst_188 {dimension_numbers = #tpu.dot_dimension_numbers<[1], [0], [0], [1], [0, 0, 1, 1], [], []>} : vector<16x8xf32>, vector<8x32xf32>, vector<16x32xf32> -> vector<16x32xf32>
    %484 = arith.addf %465, %483 : vector<16x32xf32>
    %485 = arith.addf %380, %484 : vector<16x32xf32>
    %c0_189 = arith.constant 0 : index
    %c0_190 = arith.constant 0 : index
    %c0_191 = arith.constant 0 : index
    %486 = vector.load %arg23[%c0_189, %c0_190, %c0_191] : memref<2x1x32xf32, #tpu.memory_space<vmem>>, vector<1x1x32xf32>
    %487 = vector.shape_cast %486 : vector<1x1x32xf32> to vector<1x32xf32>
    %488 = vector.broadcast %487 : vector<1x32xf32> to vector<16x32xf32>
    %489 = arith.addf %485, %488 : vector<16x32xf32>
    %c7 = arith.constant 7 : index
    %490 = memref.load %arg5[%c7] : memref<12xf32, #tpu.memory_space<smem>>
    %491 = arith.mulf %489, %489 : vector<16x32xf32>
    %cst_192 = arith.constant dense<0.000000e+00> : vector<16xf32>
    %492 = vector.multi_reduction <add>, %491, %cst_192 [1] : vector<16x32xf32> to vector<16xf32>
    %493 = vector.shape_cast %492 : vector<16xf32> to vector<16x1xf32>
    %cst_193 = arith.constant 1.000000e-10 : f32
    %494 = vector.broadcast %cst_193 : f32 to vector<16x1xf32>
    %495 = arith.maximumf %493, %494 : vector<16x1xf32>
    %496 = math.rsqrt %495 : vector<16x1xf32>
    %497 = vector.broadcast %490 : f32 to vector<16x1xf32>
    %498 = arith.mulf %497, %496 : vector<16x1xf32>
    %499 = vector.broadcast %498 : vector<16x1xf32> to vector<16x32xf32>
    %500 = arith.mulf %489, %499 : vector<16x32xf32>
    %c0_194 = arith.constant 0 : index
    %c0_195 = arith.constant 0 : index
    %c0_196 = arith.constant 0 : index
    %501 = vector.load %arg24[%c0_194, %c0_195, %c0_196] : memref<2x32x64xf32, #tpu.memory_space<vmem>>, vector<1x32x64xf32>
    %502 = vector.shape_cast %501 : vector<1x32x64xf32> to vector<32x64xf32>
    %cst_197 = arith.constant dense<0.000000e+00> : vector<16x64xf32>
    %503 = tpu.matmul %500, %502, %cst_197 {dimension_numbers = #tpu.dot_dimension_numbers<[1], [0], [0], [1], [0, 0, 1, 1], [], []>} : vector<16x32xf32>, vector<32x64xf32>, vector<16x64xf32> -> vector<16x64xf32>
    %c0_198 = arith.constant 0 : index
    %c0_199 = arith.constant 0 : index
    %c0_200 = arith.constant 0 : index
    %504 = vector.load %arg25[%c0_198, %c0_199, %c0_200] : memref<2x1x64xf32, #tpu.memory_space<vmem>>, vector<1x1x64xf32>
    %505 = vector.shape_cast %504 : vector<1x1x64xf32> to vector<1x64xf32>
    %506 = vector.broadcast %505 : vector<1x64xf32> to vector<16x64xf32>
    %507 = arith.addf %503, %506 : vector<16x64xf32>
    %cst_201 = arith.constant 0.000000e+00 : f32
    %508 = vector.broadcast %cst_201 : f32 to vector<16x64xf32>
    %509 = arith.maximumf %507, %508 : vector<16x64xf32>
    %c0_202 = arith.constant 0 : index
    %c0_203 = arith.constant 0 : index
    %c0_204 = arith.constant 0 : index
    %510 = vector.load %arg26[%c0_202, %c0_203, %c0_204] : memref<2x64x32xf32, #tpu.memory_space<vmem>>, vector<1x64x32xf32>
    %511 = vector.shape_cast %510 : vector<1x64x32xf32> to vector<64x32xf32>
    %cst_205 = arith.constant dense<0.000000e+00> : vector<16x32xf32>
    %512 = tpu.matmul %509, %511, %cst_205 {dimension_numbers = #tpu.dot_dimension_numbers<[1], [0], [0], [1], [0, 0, 1, 1], [], []>} : vector<16x64xf32>, vector<64x32xf32>, vector<16x32xf32> -> vector<16x32xf32>
    %513 = arith.addf %489, %512 : vector<16x32xf32>
    %c0_206 = arith.constant 0 : index
    %c0_207 = arith.constant 0 : index
    %c0_208 = arith.constant 0 : index
    %514 = vector.load %arg27[%c0_206, %c0_207, %c0_208] : memref<2x1x32xf32, #tpu.memory_space<vmem>>, vector<1x1x32xf32>
    %515 = vector.shape_cast %514 : vector<1x1x32xf32> to vector<1x32xf32>
    %516 = vector.broadcast %515 : vector<1x32xf32> to vector<16x32xf32>
    %517 = arith.addf %513, %516 : vector<16x32xf32>
    %c8 = arith.constant 8 : index
    %518 = memref.load %arg5[%c8] : memref<12xf32, #tpu.memory_space<smem>>
    %519 = arith.mulf %517, %517 : vector<16x32xf32>
    %cst_209 = arith.constant dense<0.000000e+00> : vector<16xf32>
    %520 = vector.multi_reduction <add>, %519, %cst_209 [1] : vector<16x32xf32> to vector<16xf32>
    %521 = vector.shape_cast %520 : vector<16xf32> to vector<16x1xf32>
    %cst_210 = arith.constant 1.000000e-10 : f32
    %522 = vector.broadcast %cst_210 : f32 to vector<16x1xf32>
    %523 = arith.maximumf %521, %522 : vector<16x1xf32>
    %524 = math.rsqrt %523 : vector<16x1xf32>
    %525 = vector.broadcast %518 : f32 to vector<16x1xf32>
    %526 = arith.mulf %525, %524 : vector<16x1xf32>
    %527 = vector.broadcast %526 : vector<16x1xf32> to vector<16x32xf32>
    %528 = arith.mulf %517, %527 : vector<16x32xf32>
    %c1_211 = arith.constant 1 : index
    %c0_212 = arith.constant 0 : index
    %c0_213 = arith.constant 0 : index
    %529 = vector.load %arg14[%c1_211, %c0_212, %c0_213] : memref<2x32x96xf32, #tpu.memory_space<vmem>>, vector<1x32x96xf32>
    %530 = vector.shape_cast %529 : vector<1x32x96xf32> to vector<32x96xf32>
    %cst_214 = arith.constant dense<0.000000e+00> : vector<16x96xf32>
    %531 = tpu.matmul %528, %530, %cst_214 {dimension_numbers = #tpu.dot_dimension_numbers<[1], [0], [0], [1], [0, 0, 1, 1], [], []>} : vector<16x32xf32>, vector<32x96xf32>, vector<16x96xf32> -> vector<16x96xf32>
    %c1_215 = arith.constant 1 : index
    %c0_216 = arith.constant 0 : index
    %c0_217 = arith.constant 0 : index
    %532 = vector.load %arg15[%c1_215, %c0_216, %c0_217] : memref<2x1x96xf32, #tpu.memory_space<vmem>>, vector<1x1x96xf32>
    %533 = vector.shape_cast %532 : vector<1x1x96xf32> to vector<1x96xf32>
    %534 = vector.broadcast %533 : vector<1x96xf32> to vector<16x96xf32>
    %535 = arith.addf %531, %534 : vector<16x96xf32>
    %536 = vector.extract_strided_slice %535 {offsets = [0, 0], sizes = [16, 32], strides = [1, 1]} : vector<16x96xf32> to vector<16x32xf32>
    %537 = vector.extract_strided_slice %535 {offsets = [0, 32], sizes = [16, 32], strides = [1, 1]} : vector<16x96xf32> to vector<16x32xf32>
    %538 = vector.extract_strided_slice %535 {offsets = [0, 64], sizes = [16, 32], strides = [1, 1]} : vector<16x96xf32> to vector<16x32xf32>
    %c1_218 = arith.constant 1 : index
    %c0_219 = arith.constant 0 : index
    %c0_220 = arith.constant 0 : index
    %539 = vector.load %arg16[%c1_218, %c0_219, %c0_220] : memref<2x32x32xf32, #tpu.memory_space<vmem>>, vector<1x32x32xf32>
    %540 = vector.shape_cast %539 : vector<1x32x32xf32> to vector<32x32xf32>
    %541 = vector.extract_strided_slice %536 {offsets = [0, 0], sizes = [16, 8], strides = [1, 1]} : vector<16x32xf32> to vector<16x8xf32>
    %542 = vector.extract_strided_slice %537 {offsets = [0, 0], sizes = [16, 8], strides = [1, 1]} : vector<16x32xf32> to vector<16x8xf32>
    %cst_221 = arith.constant dense<0.000000e+00> : vector<16x16xf32>
    %543 = tpu.matmul %541, %542, %cst_221 {dimension_numbers = #tpu.dot_dimension_numbers<[1], [1], [0], [0], [0, 0, 1, 0], [], []>} : vector<16x8xf32>, vector<16x8xf32>, vector<16x16xf32> -> vector<16x16xf32>
    %544 = arith.addf %543, %2 : vector<16x16xf32>
    %cst_222 = arith.constant dense<0xFF800000> : vector<16xf32>
    %545 = vector.multi_reduction <maximumf>, %544, %cst_222 [1] : vector<16x16xf32> to vector<16xf32>
    %546 = vector.shape_cast %545 : vector<16xf32> to vector<16x1xf32>
    %547 = vector.broadcast %546 : vector<16x1xf32> to vector<16x16xf32>
    %548 = arith.subf %544, %547 : vector<16x16xf32>
    %549 = math.exp %548 : vector<16x16xf32>
    %cst_223 = arith.constant dense<0.000000e+00> : vector<16xf32>
    %550 = vector.multi_reduction <add>, %549, %cst_223 [1] : vector<16x16xf32> to vector<16xf32>
    %551 = vector.shape_cast %550 : vector<16xf32> to vector<16x1xf32>
    %552 = tpu.reciprocal %551 {approx = true} : vector<16x1xf32> -> vector<16x1xf32>
    %553 = vector.broadcast %552 : vector<16x1xf32> to vector<16x16xf32>
    %554 = arith.mulf %549, %553 : vector<16x16xf32>
    %555 = vector.extract_strided_slice %538 {offsets = [0, 0], sizes = [16, 8], strides = [1, 1]} : vector<16x32xf32> to vector<16x8xf32>
    %cst_224 = arith.constant dense<0.000000e+00> : vector<16x8xf32>
    %556 = tpu.matmul %554, %555, %cst_224 {dimension_numbers = #tpu.dot_dimension_numbers<[1], [0], [0], [1], [0, 0, 1, 1], [], []>} : vector<16x16xf32>, vector<16x8xf32>, vector<16x8xf32> -> vector<16x8xf32>
    %557 = vector.extract_strided_slice %540 {offsets = [0, 0], sizes = [8, 32], strides = [1, 1]} : vector<32x32xf32> to vector<8x32xf32>
    %cst_225 = arith.constant dense<0.000000e+00> : vector<16x32xf32>
    %558 = tpu.matmul %556, %557, %cst_225 {dimension_numbers = #tpu.dot_dimension_numbers<[1], [0], [0], [1], [0, 0, 1, 1], [], []>} : vector<16x8xf32>, vector<8x32xf32>, vector<16x32xf32> -> vector<16x32xf32>
    %559 = vector.extract_strided_slice %536 {offsets = [0, 8], sizes = [16, 8], strides = [1, 1]} : vector<16x32xf32> to vector<16x8xf32>
    %560 = vector.extract_strided_slice %537 {offsets = [0, 8], sizes = [16, 8], strides = [1, 1]} : vector<16x32xf32> to vector<16x8xf32>
    %cst_226 = arith.constant dense<0.000000e+00> : vector<16x16xf32>
    %561 = tpu.matmul %559, %560, %cst_226 {dimension_numbers = #tpu.dot_dimension_numbers<[1], [1], [0], [0], [0, 0, 1, 0], [], []>} : vector<16x8xf32>, vector<16x8xf32>, vector<16x16xf32> -> vector<16x16xf32>
    %562 = arith.addf %561, %2 : vector<16x16xf32>
    %cst_227 = arith.constant dense<0xFF800000> : vector<16xf32>
    %563 = vector.multi_reduction <maximumf>, %562, %cst_227 [1] : vector<16x16xf32> to vector<16xf32>
    %564 = vector.shape_cast %563 : vector<16xf32> to vector<16x1xf32>
    %565 = vector.broadcast %564 : vector<16x1xf32> to vector<16x16xf32>
    %566 = arith.subf %562, %565 : vector<16x16xf32>
    %567 = math.exp %566 : vector<16x16xf32>
    %cst_228 = arith.constant dense<0.000000e+00> : vector<16xf32>
    %568 = vector.multi_reduction <add>, %567, %cst_228 [1] : vector<16x16xf32> to vector<16xf32>
    %569 = vector.shape_cast %568 : vector<16xf32> to vector<16x1xf32>
    %570 = tpu.reciprocal %569 {approx = true} : vector<16x1xf32> -> vector<16x1xf32>
    %571 = vector.broadcast %570 : vector<16x1xf32> to vector<16x16xf32>
    %572 = arith.mulf %567, %571 : vector<16x16xf32>
    %573 = vector.extract_strided_slice %538 {offsets = [0, 8], sizes = [16, 8], strides = [1, 1]} : vector<16x32xf32> to vector<16x8xf32>
    %cst_229 = arith.constant dense<0.000000e+00> : vector<16x8xf32>
    %574 = tpu.matmul %572, %573, %cst_229 {dimension_numbers = #tpu.dot_dimension_numbers<[1], [0], [0], [1], [0, 0, 1, 1], [], []>} : vector<16x16xf32>, vector<16x8xf32>, vector<16x8xf32> -> vector<16x8xf32>
    %575 = vector.extract_strided_slice %540 {offsets = [8, 0], sizes = [8, 32], strides = [1, 1]} : vector<32x32xf32> to vector<8x32xf32>
    %cst_230 = arith.constant dense<0.000000e+00> : vector<16x32xf32>
    %576 = tpu.matmul %574, %575, %cst_230 {dimension_numbers = #tpu.dot_dimension_numbers<[1], [0], [0], [1], [0, 0, 1, 1], [], []>} : vector<16x8xf32>, vector<8x32xf32>, vector<16x32xf32> -> vector<16x32xf32>
    %577 = arith.addf %558, %576 : vector<16x32xf32>
    %578 = vector.extract_strided_slice %536 {offsets = [0, 16], sizes = [16, 8], strides = [1, 1]} : vector<16x32xf32> to vector<16x8xf32>
    %579 = vector.extract_strided_slice %537 {offsets = [0, 16], sizes = [16, 8], strides = [1, 1]} : vector<16x32xf32> to vector<16x8xf32>
    %cst_231 = arith.constant dense<0.000000e+00> : vector<16x16xf32>
    %580 = tpu.matmul %578, %579, %cst_231 {dimension_numbers = #tpu.dot_dimension_numbers<[1], [1], [0], [0], [0, 0, 1, 0], [], []>} : vector<16x8xf32>, vector<16x8xf32>, vector<16x16xf32> -> vector<16x16xf32>
    %581 = arith.addf %580, %2 : vector<16x16xf32>
    %cst_232 = arith.constant dense<0xFF800000> : vector<16xf32>
    %582 = vector.multi_reduction <maximumf>, %581, %cst_232 [1] : vector<16x16xf32> to vector<16xf32>
    %583 = vector.shape_cast %582 : vector<16xf32> to vector<16x1xf32>
    %584 = vector.broadcast %583 : vector<16x1xf32> to vector<16x16xf32>
    %585 = arith.subf %581, %584 : vector<16x16xf32>
    %586 = math.exp %585 : vector<16x16xf32>
    %cst_233 = arith.constant dense<0.000000e+00> : vector<16xf32>
    %587 = vector.multi_reduction <add>, %586, %cst_233 [1] : vector<16x16xf32> to vector<16xf32>
    %588 = vector.shape_cast %587 : vector<16xf32> to vector<16x1xf32>
    %589 = tpu.reciprocal %588 {approx = true} : vector<16x1xf32> -> vector<16x1xf32>
    %590 = vector.broadcast %589 : vector<16x1xf32> to vector<16x16xf32>
    %591 = arith.mulf %586, %590 : vector<16x16xf32>
    %592 = vector.extract_strided_slice %538 {offsets = [0, 16], sizes = [16, 8], strides = [1, 1]} : vector<16x32xf32> to vector<16x8xf32>
    %cst_234 = arith.constant dense<0.000000e+00> : vector<16x8xf32>
    %593 = tpu.matmul %591, %592, %cst_234 {dimension_numbers = #tpu.dot_dimension_numbers<[1], [0], [0], [1], [0, 0, 1, 1], [], []>} : vector<16x16xf32>, vector<16x8xf32>, vector<16x8xf32> -> vector<16x8xf32>
    %594 = vector.extract_strided_slice %540 {offsets = [16, 0], sizes = [8, 32], strides = [1, 1]} : vector<32x32xf32> to vector<8x32xf32>
    %cst_235 = arith.constant dense<0.000000e+00> : vector<16x32xf32>
    %595 = tpu.matmul %593, %594, %cst_235 {dimension_numbers = #tpu.dot_dimension_numbers<[1], [0], [0], [1], [0, 0, 1, 1], [], []>} : vector<16x8xf32>, vector<8x32xf32>, vector<16x32xf32> -> vector<16x32xf32>
    %596 = arith.addf %577, %595 : vector<16x32xf32>
    %597 = vector.extract_strided_slice %536 {offsets = [0, 24], sizes = [16, 8], strides = [1, 1]} : vector<16x32xf32> to vector<16x8xf32>
    %598 = vector.extract_strided_slice %537 {offsets = [0, 24], sizes = [16, 8], strides = [1, 1]} : vector<16x32xf32> to vector<16x8xf32>
    %cst_236 = arith.constant dense<0.000000e+00> : vector<16x16xf32>
    %599 = tpu.matmul %597, %598, %cst_236 {dimension_numbers = #tpu.dot_dimension_numbers<[1], [1], [0], [0], [0, 0, 1, 0], [], []>} : vector<16x8xf32>, vector<16x8xf32>, vector<16x16xf32> -> vector<16x16xf32>
    %600 = arith.addf %599, %2 : vector<16x16xf32>
    %cst_237 = arith.constant dense<0xFF800000> : vector<16xf32>
    %601 = vector.multi_reduction <maximumf>, %600, %cst_237 [1] : vector<16x16xf32> to vector<16xf32>
    %602 = vector.shape_cast %601 : vector<16xf32> to vector<16x1xf32>
    %603 = vector.broadcast %602 : vector<16x1xf32> to vector<16x16xf32>
    %604 = arith.subf %600, %603 : vector<16x16xf32>
    %605 = math.exp %604 : vector<16x16xf32>
    %cst_238 = arith.constant dense<0.000000e+00> : vector<16xf32>
    %606 = vector.multi_reduction <add>, %605, %cst_238 [1] : vector<16x16xf32> to vector<16xf32>
    %607 = vector.shape_cast %606 : vector<16xf32> to vector<16x1xf32>
    %608 = tpu.reciprocal %607 {approx = true} : vector<16x1xf32> -> vector<16x1xf32>
    %609 = vector.broadcast %608 : vector<16x1xf32> to vector<16x16xf32>
    %610 = arith.mulf %605, %609 : vector<16x16xf32>
    %611 = vector.extract_strided_slice %538 {offsets = [0, 24], sizes = [16, 8], strides = [1, 1]} : vector<16x32xf32> to vector<16x8xf32>
    %cst_239 = arith.constant dense<0.000000e+00> : vector<16x8xf32>
    %612 = tpu.matmul %610, %611, %cst_239 {dimension_numbers = #tpu.dot_dimension_numbers<[1], [0], [0], [1], [0, 0, 1, 1], [], []>} : vector<16x16xf32>, vector<16x8xf32>, vector<16x8xf32> -> vector<16x8xf32>
    %613 = vector.extract_strided_slice %540 {offsets = [24, 0], sizes = [8, 32], strides = [1, 1]} : vector<32x32xf32> to vector<8x32xf32>
    %cst_240 = arith.constant dense<0.000000e+00> : vector<16x32xf32>
    %614 = tpu.matmul %612, %613, %cst_240 {dimension_numbers = #tpu.dot_dimension_numbers<[1], [0], [0], [1], [0, 0, 1, 1], [], []>} : vector<16x8xf32>, vector<8x32xf32>, vector<16x32xf32> -> vector<16x32xf32>
    %615 = arith.addf %596, %614 : vector<16x32xf32>
    %616 = arith.addf %517, %615 : vector<16x32xf32>
    %c1_241 = arith.constant 1 : index
    %c0_242 = arith.constant 0 : index
    %c0_243 = arith.constant 0 : index
    %617 = vector.load %arg17[%c1_241, %c0_242, %c0_243] : memref<2x1x32xf32, #tpu.memory_space<vmem>>, vector<1x1x32xf32>
    %618 = vector.shape_cast %617 : vector<1x1x32xf32> to vector<1x32xf32>
    %619 = vector.broadcast %618 : vector<1x32xf32> to vector<16x32xf32>
    %620 = arith.addf %616, %619 : vector<16x32xf32>
    %c9 = arith.constant 9 : index
    %621 = memref.load %arg5[%c9] : memref<12xf32, #tpu.memory_space<smem>>
    %622 = arith.mulf %620, %620 : vector<16x32xf32>
    %cst_244 = arith.constant dense<0.000000e+00> : vector<16xf32>
    %623 = vector.multi_reduction <add>, %622, %cst_244 [1] : vector<16x32xf32> to vector<16xf32>
    %624 = vector.shape_cast %623 : vector<16xf32> to vector<16x1xf32>
    %cst_245 = arith.constant 1.000000e-10 : f32
    %625 = vector.broadcast %cst_245 : f32 to vector<16x1xf32>
    %626 = arith.maximumf %624, %625 : vector<16x1xf32>
    %627 = math.rsqrt %626 : vector<16x1xf32>
    %628 = vector.broadcast %621 : f32 to vector<16x1xf32>
    %629 = arith.mulf %628, %627 : vector<16x1xf32>
    %630 = vector.broadcast %629 : vector<16x1xf32> to vector<16x32xf32>
    %631 = arith.mulf %620, %630 : vector<16x32xf32>
    %c1_246 = arith.constant 1 : index
    %c0_247 = arith.constant 0 : index
    %c0_248 = arith.constant 0 : index
    %632 = vector.load %arg18[%c1_246, %c0_247, %c0_248] : memref<2x32x32xf32, #tpu.memory_space<vmem>>, vector<1x32x32xf32>
    %633 = vector.shape_cast %632 : vector<1x32x32xf32> to vector<32x32xf32>
    %cst_249 = arith.constant dense<0.000000e+00> : vector<16x32xf32>
    %634 = tpu.matmul %631, %633, %cst_249 {dimension_numbers = #tpu.dot_dimension_numbers<[1], [0], [0], [1], [0, 0, 1, 1], [], []>} : vector<16x32xf32>, vector<32x32xf32>, vector<16x32xf32> -> vector<16x32xf32>
    %c1_250 = arith.constant 1 : index
    %c0_251 = arith.constant 0 : index
    %c0_252 = arith.constant 0 : index
    %635 = vector.load %arg19[%c1_250, %c0_251, %c0_252] : memref<2x1x32xf32, #tpu.memory_space<vmem>>, vector<1x1x32xf32>
    %636 = vector.shape_cast %635 : vector<1x1x32xf32> to vector<1x32xf32>
    %637 = vector.broadcast %636 : vector<1x32xf32> to vector<16x32xf32>
    %638 = arith.addf %634, %637 : vector<16x32xf32>
    %c1_253 = arith.constant 1 : index
    %c0_254 = arith.constant 0 : index
    %c0_255 = arith.constant 0 : index
    %639 = vector.load %arg20[%c1_253, %c0_254, %c0_255] : memref<2x32x64xf32, #tpu.memory_space<vmem>>, vector<1x32x64xf32>
    %640 = vector.shape_cast %639 : vector<1x32x64xf32> to vector<32x64xf32>
    %cst_256 = arith.constant dense<0.000000e+00> : vector<16x64xf32>
    %641 = tpu.matmul %276, %640, %cst_256 {dimension_numbers = #tpu.dot_dimension_numbers<[1], [0], [0], [1], [0, 0, 1, 1], [], []>} : vector<16x32xf32>, vector<32x64xf32>, vector<16x64xf32> -> vector<16x64xf32>
    %c1_257 = arith.constant 1 : index
    %c0_258 = arith.constant 0 : index
    %c0_259 = arith.constant 0 : index
    %642 = vector.load %arg21[%c1_257, %c0_258, %c0_259] : memref<2x1x64xf32, #tpu.memory_space<vmem>>, vector<1x1x64xf32>
    %643 = vector.shape_cast %642 : vector<1x1x64xf32> to vector<1x64xf32>
    %644 = vector.broadcast %643 : vector<1x64xf32> to vector<16x64xf32>
    %645 = arith.addf %641, %644 : vector<16x64xf32>
    %646 = vector.extract_strided_slice %645 {offsets = [0, 0], sizes = [16, 32], strides = [1, 1]} : vector<16x64xf32> to vector<16x32xf32>
    %647 = vector.extract_strided_slice %645 {offsets = [0, 32], sizes = [16, 32], strides = [1, 1]} : vector<16x64xf32> to vector<16x32xf32>
    %c1_260 = arith.constant 1 : index
    %c0_261 = arith.constant 0 : index
    %c0_262 = arith.constant 0 : index
    %648 = vector.load %arg22[%c1_260, %c0_261, %c0_262] : memref<2x32x32xf32, #tpu.memory_space<vmem>>, vector<1x32x32xf32>
    %649 = vector.shape_cast %648 : vector<1x32x32xf32> to vector<32x32xf32>
    %650 = vector.extract_strided_slice %638 {offsets = [0, 0], sizes = [16, 8], strides = [1, 1]} : vector<16x32xf32> to vector<16x8xf32>
    %651 = vector.extract_strided_slice %646 {offsets = [0, 0], sizes = [16, 8], strides = [1, 1]} : vector<16x32xf32> to vector<16x8xf32>
    %cst_263 = arith.constant dense<0.000000e+00> : vector<16x16xf32>
    %652 = tpu.matmul %650, %651, %cst_263 {dimension_numbers = #tpu.dot_dimension_numbers<[1], [1], [0], [0], [0, 0, 1, 0], [], []>} : vector<16x8xf32>, vector<16x8xf32>, vector<16x16xf32> -> vector<16x16xf32>
    %653 = arith.addf %652, %1 : vector<16x16xf32>
    %cst_264 = arith.constant dense<0xFF800000> : vector<16xf32>
    %654 = vector.multi_reduction <maximumf>, %653, %cst_264 [1] : vector<16x16xf32> to vector<16xf32>
    %655 = vector.shape_cast %654 : vector<16xf32> to vector<16x1xf32>
    %656 = vector.broadcast %655 : vector<16x1xf32> to vector<16x16xf32>
    %657 = arith.subf %653, %656 : vector<16x16xf32>
    %658 = math.exp %657 : vector<16x16xf32>
    %cst_265 = arith.constant dense<0.000000e+00> : vector<16xf32>
    %659 = vector.multi_reduction <add>, %658, %cst_265 [1] : vector<16x16xf32> to vector<16xf32>
    %660 = vector.shape_cast %659 : vector<16xf32> to vector<16x1xf32>
    %661 = tpu.reciprocal %660 {approx = true} : vector<16x1xf32> -> vector<16x1xf32>
    %662 = vector.broadcast %661 : vector<16x1xf32> to vector<16x16xf32>
    %663 = arith.mulf %658, %662 : vector<16x16xf32>
    %664 = vector.extract_strided_slice %647 {offsets = [0, 0], sizes = [16, 8], strides = [1, 1]} : vector<16x32xf32> to vector<16x8xf32>
    %cst_266 = arith.constant dense<0.000000e+00> : vector<16x8xf32>
    %665 = tpu.matmul %663, %664, %cst_266 {dimension_numbers = #tpu.dot_dimension_numbers<[1], [0], [0], [1], [0, 0, 1, 1], [], []>} : vector<16x16xf32>, vector<16x8xf32>, vector<16x8xf32> -> vector<16x8xf32>
    %666 = vector.extract_strided_slice %649 {offsets = [0, 0], sizes = [8, 32], strides = [1, 1]} : vector<32x32xf32> to vector<8x32xf32>
    %cst_267 = arith.constant dense<0.000000e+00> : vector<16x32xf32>
    %667 = tpu.matmul %665, %666, %cst_267 {dimension_numbers = #tpu.dot_dimension_numbers<[1], [0], [0], [1], [0, 0, 1, 1], [], []>} : vector<16x8xf32>, vector<8x32xf32>, vector<16x32xf32> -> vector<16x32xf32>
    %668 = vector.extract_strided_slice %638 {offsets = [0, 8], sizes = [16, 8], strides = [1, 1]} : vector<16x32xf32> to vector<16x8xf32>
    %669 = vector.extract_strided_slice %646 {offsets = [0, 8], sizes = [16, 8], strides = [1, 1]} : vector<16x32xf32> to vector<16x8xf32>
    %cst_268 = arith.constant dense<0.000000e+00> : vector<16x16xf32>
    %670 = tpu.matmul %668, %669, %cst_268 {dimension_numbers = #tpu.dot_dimension_numbers<[1], [1], [0], [0], [0, 0, 1, 0], [], []>} : vector<16x8xf32>, vector<16x8xf32>, vector<16x16xf32> -> vector<16x16xf32>
    %671 = arith.addf %670, %1 : vector<16x16xf32>
    %cst_269 = arith.constant dense<0xFF800000> : vector<16xf32>
    %672 = vector.multi_reduction <maximumf>, %671, %cst_269 [1] : vector<16x16xf32> to vector<16xf32>
    %673 = vector.shape_cast %672 : vector<16xf32> to vector<16x1xf32>
    %674 = vector.broadcast %673 : vector<16x1xf32> to vector<16x16xf32>
    %675 = arith.subf %671, %674 : vector<16x16xf32>
    %676 = math.exp %675 : vector<16x16xf32>
    %cst_270 = arith.constant dense<0.000000e+00> : vector<16xf32>
    %677 = vector.multi_reduction <add>, %676, %cst_270 [1] : vector<16x16xf32> to vector<16xf32>
    %678 = vector.shape_cast %677 : vector<16xf32> to vector<16x1xf32>
    %679 = tpu.reciprocal %678 {approx = true} : vector<16x1xf32> -> vector<16x1xf32>
    %680 = vector.broadcast %679 : vector<16x1xf32> to vector<16x16xf32>
    %681 = arith.mulf %676, %680 : vector<16x16xf32>
    %682 = vector.extract_strided_slice %647 {offsets = [0, 8], sizes = [16, 8], strides = [1, 1]} : vector<16x32xf32> to vector<16x8xf32>
    %cst_271 = arith.constant dense<0.000000e+00> : vector<16x8xf32>
    %683 = tpu.matmul %681, %682, %cst_271 {dimension_numbers = #tpu.dot_dimension_numbers<[1], [0], [0], [1], [0, 0, 1, 1], [], []>} : vector<16x16xf32>, vector<16x8xf32>, vector<16x8xf32> -> vector<16x8xf32>
    %684 = vector.extract_strided_slice %649 {offsets = [8, 0], sizes = [8, 32], strides = [1, 1]} : vector<32x32xf32> to vector<8x32xf32>
    %cst_272 = arith.constant dense<0.000000e+00> : vector<16x32xf32>
    %685 = tpu.matmul %683, %684, %cst_272 {dimension_numbers = #tpu.dot_dimension_numbers<[1], [0], [0], [1], [0, 0, 1, 1], [], []>} : vector<16x8xf32>, vector<8x32xf32>, vector<16x32xf32> -> vector<16x32xf32>
    %686 = arith.addf %667, %685 : vector<16x32xf32>
    %687 = vector.extract_strided_slice %638 {offsets = [0, 16], sizes = [16, 8], strides = [1, 1]} : vector<16x32xf32> to vector<16x8xf32>
    %688 = vector.extract_strided_slice %646 {offsets = [0, 16], sizes = [16, 8], strides = [1, 1]} : vector<16x32xf32> to vector<16x8xf32>
    %cst_273 = arith.constant dense<0.000000e+00> : vector<16x16xf32>
    %689 = tpu.matmul %687, %688, %cst_273 {dimension_numbers = #tpu.dot_dimension_numbers<[1], [1], [0], [0], [0, 0, 1, 0], [], []>} : vector<16x8xf32>, vector<16x8xf32>, vector<16x16xf32> -> vector<16x16xf32>
    %690 = arith.addf %689, %1 : vector<16x16xf32>
    %cst_274 = arith.constant dense<0xFF800000> : vector<16xf32>
    %691 = vector.multi_reduction <maximumf>, %690, %cst_274 [1] : vector<16x16xf32> to vector<16xf32>
    %692 = vector.shape_cast %691 : vector<16xf32> to vector<16x1xf32>
    %693 = vector.broadcast %692 : vector<16x1xf32> to vector<16x16xf32>
    %694 = arith.subf %690, %693 : vector<16x16xf32>
    %695 = math.exp %694 : vector<16x16xf32>
    %cst_275 = arith.constant dense<0.000000e+00> : vector<16xf32>
    %696 = vector.multi_reduction <add>, %695, %cst_275 [1] : vector<16x16xf32> to vector<16xf32>
    %697 = vector.shape_cast %696 : vector<16xf32> to vector<16x1xf32>
    %698 = tpu.reciprocal %697 {approx = true} : vector<16x1xf32> -> vector<16x1xf32>
    %699 = vector.broadcast %698 : vector<16x1xf32> to vector<16x16xf32>
    %700 = arith.mulf %695, %699 : vector<16x16xf32>
    %701 = vector.extract_strided_slice %647 {offsets = [0, 16], sizes = [16, 8], strides = [1, 1]} : vector<16x32xf32> to vector<16x8xf32>
    %cst_276 = arith.constant dense<0.000000e+00> : vector<16x8xf32>
    %702 = tpu.matmul %700, %701, %cst_276 {dimension_numbers = #tpu.dot_dimension_numbers<[1], [0], [0], [1], [0, 0, 1, 1], [], []>} : vector<16x16xf32>, vector<16x8xf32>, vector<16x8xf32> -> vector<16x8xf32>
    %703 = vector.extract_strided_slice %649 {offsets = [16, 0], sizes = [8, 32], strides = [1, 1]} : vector<32x32xf32> to vector<8x32xf32>
    %cst_277 = arith.constant dense<0.000000e+00> : vector<16x32xf32>
    %704 = tpu.matmul %702, %703, %cst_277 {dimension_numbers = #tpu.dot_dimension_numbers<[1], [0], [0], [1], [0, 0, 1, 1], [], []>} : vector<16x8xf32>, vector<8x32xf32>, vector<16x32xf32> -> vector<16x32xf32>
    %705 = arith.addf %686, %704 : vector<16x32xf32>
    %706 = vector.extract_strided_slice %638 {offsets = [0, 24], sizes = [16, 8], strides = [1, 1]} : vector<16x32xf32> to vector<16x8xf32>
    %707 = vector.extract_strided_slice %646 {offsets = [0, 24], sizes = [16, 8], strides = [1, 1]} : vector<16x32xf32> to vector<16x8xf32>
    %cst_278 = arith.constant dense<0.000000e+00> : vector<16x16xf32>
    %708 = tpu.matmul %706, %707, %cst_278 {dimension_numbers = #tpu.dot_dimension_numbers<[1], [1], [0], [0], [0, 0, 1, 0], [], []>} : vector<16x8xf32>, vector<16x8xf32>, vector<16x16xf32> -> vector<16x16xf32>
    %709 = arith.addf %708, %1 : vector<16x16xf32>
    %cst_279 = arith.constant dense<0xFF800000> : vector<16xf32>
    %710 = vector.multi_reduction <maximumf>, %709, %cst_279 [1] : vector<16x16xf32> to vector<16xf32>
    %711 = vector.shape_cast %710 : vector<16xf32> to vector<16x1xf32>
    %712 = vector.broadcast %711 : vector<16x1xf32> to vector<16x16xf32>
    %713 = arith.subf %709, %712 : vector<16x16xf32>
    %714 = math.exp %713 : vector<16x16xf32>
    %cst_280 = arith.constant dense<0.000000e+00> : vector<16xf32>
    %715 = vector.multi_reduction <add>, %714, %cst_280 [1] : vector<16x16xf32> to vector<16xf32>
    %716 = vector.shape_cast %715 : vector<16xf32> to vector<16x1xf32>
    %717 = tpu.reciprocal %716 {approx = true} : vector<16x1xf32> -> vector<16x1xf32>
    %718 = vector.broadcast %717 : vector<16x1xf32> to vector<16x16xf32>
    %719 = arith.mulf %714, %718 : vector<16x16xf32>
    %720 = vector.extract_strided_slice %647 {offsets = [0, 24], sizes = [16, 8], strides = [1, 1]} : vector<16x32xf32> to vector<16x8xf32>
    %cst_281 = arith.constant dense<0.000000e+00> : vector<16x8xf32>
    %721 = tpu.matmul %719, %720, %cst_281 {dimension_numbers = #tpu.dot_dimension_numbers<[1], [0], [0], [1], [0, 0, 1, 1], [], []>} : vector<16x16xf32>, vector<16x8xf32>, vector<16x8xf32> -> vector<16x8xf32>
    %722 = vector.extract_strided_slice %649 {offsets = [24, 0], sizes = [8, 32], strides = [1, 1]} : vector<32x32xf32> to vector<8x32xf32>
    %cst_282 = arith.constant dense<0.000000e+00> : vector<16x32xf32>
    %723 = tpu.matmul %721, %722, %cst_282 {dimension_numbers = #tpu.dot_dimension_numbers<[1], [0], [0], [1], [0, 0, 1, 1], [], []>} : vector<16x8xf32>, vector<8x32xf32>, vector<16x32xf32> -> vector<16x32xf32>
    %724 = arith.addf %705, %723 : vector<16x32xf32>
    %725 = arith.addf %620, %724 : vector<16x32xf32>
    %c1_283 = arith.constant 1 : index
    %c0_284 = arith.constant 0 : index
    %c0_285 = arith.constant 0 : index
    %726 = vector.load %arg23[%c1_283, %c0_284, %c0_285] : memref<2x1x32xf32, #tpu.memory_space<vmem>>, vector<1x1x32xf32>
    %727 = vector.shape_cast %726 : vector<1x1x32xf32> to vector<1x32xf32>
    %728 = vector.broadcast %727 : vector<1x32xf32> to vector<16x32xf32>
    %729 = arith.addf %725, %728 : vector<16x32xf32>
    %c10 = arith.constant 10 : index
    %730 = memref.load %arg5[%c10] : memref<12xf32, #tpu.memory_space<smem>>
    %731 = arith.mulf %729, %729 : vector<16x32xf32>
    %cst_286 = arith.constant dense<0.000000e+00> : vector<16xf32>
    %732 = vector.multi_reduction <add>, %731, %cst_286 [1] : vector<16x32xf32> to vector<16xf32>
    %733 = vector.shape_cast %732 : vector<16xf32> to vector<16x1xf32>
    %cst_287 = arith.constant 1.000000e-10 : f32
    %734 = vector.broadcast %cst_287 : f32 to vector<16x1xf32>
    %735 = arith.maximumf %733, %734 : vector<16x1xf32>
    %736 = math.rsqrt %735 : vector<16x1xf32>
    %737 = vector.broadcast %730 : f32 to vector<16x1xf32>
    %738 = arith.mulf %737, %736 : vector<16x1xf32>
    %739 = vector.broadcast %738 : vector<16x1xf32> to vector<16x32xf32>
    %740 = arith.mulf %729, %739 : vector<16x32xf32>
    %c1_288 = arith.constant 1 : index
    %c0_289 = arith.constant 0 : index
    %c0_290 = arith.constant 0 : index
    %741 = vector.load %arg24[%c1_288, %c0_289, %c0_290] : memref<2x32x64xf32, #tpu.memory_space<vmem>>, vector<1x32x64xf32>
    %742 = vector.shape_cast %741 : vector<1x32x64xf32> to vector<32x64xf32>
    %cst_291 = arith.constant dense<0.000000e+00> : vector<16x64xf32>
    %743 = tpu.matmul %740, %742, %cst_291 {dimension_numbers = #tpu.dot_dimension_numbers<[1], [0], [0], [1], [0, 0, 1, 1], [], []>} : vector<16x32xf32>, vector<32x64xf32>, vector<16x64xf32> -> vector<16x64xf32>
    %c1_292 = arith.constant 1 : index
    %c0_293 = arith.constant 0 : index
    %c0_294 = arith.constant 0 : index
    %744 = vector.load %arg25[%c1_292, %c0_293, %c0_294] : memref<2x1x64xf32, #tpu.memory_space<vmem>>, vector<1x1x64xf32>
    %745 = vector.shape_cast %744 : vector<1x1x64xf32> to vector<1x64xf32>
    %746 = vector.broadcast %745 : vector<1x64xf32> to vector<16x64xf32>
    %747 = arith.addf %743, %746 : vector<16x64xf32>
    %cst_295 = arith.constant 0.000000e+00 : f32
    %748 = vector.broadcast %cst_295 : f32 to vector<16x64xf32>
    %749 = arith.maximumf %747, %748 : vector<16x64xf32>
    %c1_296 = arith.constant 1 : index
    %c0_297 = arith.constant 0 : index
    %c0_298 = arith.constant 0 : index
    %750 = vector.load %arg26[%c1_296, %c0_297, %c0_298] : memref<2x64x32xf32, #tpu.memory_space<vmem>>, vector<1x64x32xf32>
    %751 = vector.shape_cast %750 : vector<1x64x32xf32> to vector<64x32xf32>
    %cst_299 = arith.constant dense<0.000000e+00> : vector<16x32xf32>
    %752 = tpu.matmul %749, %751, %cst_299 {dimension_numbers = #tpu.dot_dimension_numbers<[1], [0], [0], [1], [0, 0, 1, 1], [], []>} : vector<16x64xf32>, vector<64x32xf32>, vector<16x32xf32> -> vector<16x32xf32>
    %753 = arith.addf %729, %752 : vector<16x32xf32>
    %c1_300 = arith.constant 1 : index
    %c0_301 = arith.constant 0 : index
    %c0_302 = arith.constant 0 : index
    %754 = vector.load %arg27[%c1_300, %c0_301, %c0_302] : memref<2x1x32xf32, #tpu.memory_space<vmem>>, vector<1x1x32xf32>
    %755 = vector.shape_cast %754 : vector<1x1x32xf32> to vector<1x32xf32>
    %756 = vector.broadcast %755 : vector<1x32xf32> to vector<16x32xf32>
    %757 = arith.addf %753, %756 : vector<16x32xf32>
    %c11 = arith.constant 11 : index
    %758 = memref.load %arg5[%c11] : memref<12xf32, #tpu.memory_space<smem>>
    %759 = arith.mulf %757, %757 : vector<16x32xf32>
    %cst_303 = arith.constant dense<0.000000e+00> : vector<16xf32>
    %760 = vector.multi_reduction <add>, %759, %cst_303 [1] : vector<16x32xf32> to vector<16xf32>
    %761 = vector.shape_cast %760 : vector<16xf32> to vector<16x1xf32>
    %cst_304 = arith.constant 1.000000e-10 : f32
    %762 = vector.broadcast %cst_304 : f32 to vector<16x1xf32>
    %763 = arith.maximumf %761, %762 : vector<16x1xf32>
    %764 = math.rsqrt %763 : vector<16x1xf32>
    %765 = vector.broadcast %758 : f32 to vector<16x1xf32>
    %766 = arith.mulf %765, %764 : vector<16x1xf32>
    %767 = vector.broadcast %766 : vector<16x1xf32> to vector<16x32xf32>
    %768 = arith.mulf %757, %767 : vector<16x32xf32>
    %c0_305 = arith.constant 0 : index
    %c0_306 = arith.constant 0 : index
    %769 = vector.load %arg28[%c0_305, %c0_306] : memref<32x128xf32, #tpu.memory_space<vmem>>, vector<32x128xf32>
    %cst_307 = arith.constant dense<0.000000e+00> : vector<16x128xf32>
    %770 = tpu.matmul %768, %769, %cst_307 {dimension_numbers = #tpu.dot_dimension_numbers<[1], [0], [0], [1], [0, 0, 1, 1], [], []>} : vector<16x32xf32>, vector<32x128xf32>, vector<16x128xf32> -> vector<16x128xf32>
    %c0_308 = arith.constant 0 : index
    %c0_309 = arith.constant 0 : index
    %771 = vector.load %arg29[%c0_308, %c0_309] : memref<16x128xf32, #tpu.memory_space<vmem>>, vector<16x128xf32>
    tpu.vector_store %arg29[%c0_308, %c0_309], %770 {strides = array<i32>} : memref<16x128xf32, #tpu.memory_space<vmem>>, vector<16x128xf32>,
    return
  }
}

</mosaic_0001>

<llo_original>
// kernel: fwd.1
$region0: #{fwd.1}
  #allocation0 [shape = 'u32[]', space=smem, size = 0x4, offset = 0x4, fixed_abs, tag = 'smem constant byte address 0x4 - core index']
  #allocation1 [shape = 'u32[144,128]{1,0:T(1,128)}', space=vmem, size = 0x12000, scoped, tag = 'internal scratch']
  %s0 = inlined_call_operand.smem [shape: u32[30], index: -1, kind: input, shape index: {}]
  %s1 = sld [smem:[%s0]]
  %s2 = scalar_lea.smem %s0, 1
  %s3 = sld [smem:[%s2]]
  %s4 = scalar_lea.smem %s0, 2
  %s5 = sld [smem:[%s4]]
  %s6 = scalar_lea.smem %s0, 3
  %s7 = sld [smem:[%s6]]
  %s8 = scalar_lea.smem %s0, 4
  %s9 = sld [smem:[%s8]]
  %s10 = scalar_lea.smem %s0, 5
  %s11 = sld [smem:[%s10]]
  %s12 = scalar_lea.smem %s0, 6
  %s13 = sld [smem:[%s12]]
  %s14 = scalar_lea.smem %s0, 7
  %s15 = sld [smem:[%s14]]
  %s16 = scalar_lea.smem %s0, 8
  %s17 = sld [smem:[%s16]]
  %s18 = scalar_lea.smem %s0, 9
  %s19 = sld [smem:[%s18]]
  %s20 = scalar_lea.smem %s0, 10
  %s21 = sld [smem:[%s20]]
  %s22 = scalar_lea.smem %s0, 11
  %s23 = sld [smem:[%s22]]
  %s24 = scalar_lea.smem %s0, 12
  %s25 = sld [smem:[%s24]]
  %s26 = scalar_lea.smem %s0, 13
  %s27 = sld [smem:[%s26]]
  %s28 = scalar_lea.smem %s0, 14
  %s29 = sld [smem:[%s28]]
  %s30 = scalar_lea.smem %s0, 15
  %s31 = sld [smem:[%s30]]
  %s32 = scalar_lea.smem %s0, 16
  %s33 = sld [smem:[%s32]]
  %s34 = scalar_lea.smem %s0, 17
  %s35 = sld [smem:[%s34]]
  %s36 = scalar_lea.smem %s0, 18
  %s37 = sld [smem:[%s36]]
  %s38 = scalar_lea.smem %s0, 19
  %s39 = sld [smem:[%s38]]
  %s40 = scalar_lea.smem %s0, 20
  %s41 = sld [smem:[%s40]]
  %s42 = scalar_lea.smem %s0, 21
  %s43 = sld [smem:[%s42]]
  %s44 = scalar_lea.smem %s0, 22
  %s45 = sld [smem:[%s44]]
  %s46 = scalar_lea.smem %s0, 23
  %s47 = sld [smem:[%s46]]
  %s48 = scalar_lea.smem %s0, 24
  %s49 = sld [smem:[%s48]]
  %s50 = scalar_lea.smem %s0, 25
  %s51 = sld [smem:[%s50]]
  %s52 = scalar_lea.smem %s0, 26
  %s53 = sld [smem:[%s52]]
  %s54 = scalar_lea.smem %s0, 27
  %s55 = sld [smem:[%s54]]
  %s56 = scalar_lea.smem %s0, 28
  %s57 = sld [smem:[%s56]]
  %s58 = scalar_lea.smem %s0, 29
  %s59 = sld [smem:[%s58]]
  %s60 = sld [smem:[#allocation0]]
  $region130: #{fwd.1} parent=0
    _
  %s62 = ssub.s32 1, %s60
  %s63 = scalar_select 0, %s62, %s60
  $region1: #{fwd.1} parent=0
    #allocation2 [shape = 'u8[512]{0}', space=smem, size = 0x200, scoped, tag = 'input window, operand 5, single buffered']
    #allocation3 [shape = 's32[1]{0}', space=sflag, size = 0x4, scoped, tag = 'scoped memory for fwd.1']
    %64 = vsyncpa [#allocation3], 0
    // Predicated region
    $region2: #{fwd.1} parent=1 // pred_check
      _
    $region3: #{fwd.1} parent=1 // pred_check_branch
      %66 = sbr.rel (0) target = $region5
    $region4: #{fwd.1} parent=1 // pred_region
      _
    $region5: #{fwd.1} parent=1 // pred_fallthru
      _
    // Predicated region
    $region6: #{fwd.1} parent=1 // pred_check
      _
    $region7: #{fwd.1} parent=1 // pred_check_branch
      %68 = sbr.rel (0) target = $region9
    $region8: #{fwd.1} parent=1 // pred_region
      _
    $region9: #{fwd.1} parent=1 // pred_fallthru
      _
    // Predicated region
    $region10: #{fwd.1} parent=1 // pred_check
      _
    $region11: #{fwd.1} parent=1 // pred_check_branch
      %70 = sbr.rel (0) target = $region13
    $region12: #{fwd.1} parent=1 // pred_region
      _
    $region13: #{fwd.1} parent=1 // pred_fallthru
      _
    // Predicated region
    $region14: #{fwd.1} parent=1 // pred_check
      _
    $region15: #{fwd.1} parent=1 // pred_check_branch
      %72 = sbr.rel (0) target = $region17
    $region16: #{fwd.1} parent=1 // pred_region
      _
    $region17: #{fwd.1} parent=1 // pred_fallthru
      _
    // Predicated region
    $region18: #{fwd.1} parent=1 // pred_check
      _
    $region19: #{fwd.1} parent=1 // pred_check_branch
      %74 = sbr.rel (0) target = $region21
    $region20: #{fwd.1} parent=1 // pred_region
      _
    $region21: #{fwd.1} parent=1 // pred_fallthru
      _
    // Predicated region
    $region22: #{fwd.1} parent=1 // pred_check
      _
    $region23: #{fwd.1} parent=1 // pred_check_branch
      %76 = sbr.rel (0) target = $region25
    $region24: #{fwd.1} parent=1 // pred_region
      %s78 = ssub.s32 16, 16
      %79 = vsyncadd [#allocation3], %s78
      %s81 = sshll.u32 %s11, 4
      %s82 = int_to_ptr.vmem [resolvable:$true] %s81
      %84 = dma.vmem_to_smem %s82, 16, [#allocation2], [#allocation3]
    $region25: #{fwd.1} parent=1 // pred_fallthru
      _
    // Predicated region
    $region26: #{fwd.1} parent=1 // pred_check
      _
    $region27: #{fwd.1} parent=1 // pred_check_branch
      %86 = sbr.rel (0) target = $region29
    $region28: #{fwd.1} parent=1 // pred_region
      _
    $region29: #{fwd.1} parent=1 // pred_fallthru
      _
    // Predicated region
    $region30: #{fwd.1} parent=1 // pred_check
      _
    $region31: #{fwd.1} parent=1 // pred_check_branch
      %88 = sbr.rel (0) target = $region33
    $region32: #{fwd.1} parent=1 // pred_region
      _
    $region33: #{fwd.1} parent=1 // pred_fallthru
      _
    // Predicated region
    $region34: #{fwd.1} parent=1 // pred_check
      _
    $region35: #{fwd.1} parent=1 // pred_check_branch
      %90 = sbr.rel (0) target = $region37
    $region36: #{fwd.1} parent=1 // pred_region
      _
    $region37: #{fwd.1} parent=1 // pred_fallthru
      _
    // Predicated region
    $region38: #{fwd.1} parent=1 // pred_check
      _
    $region39: #{fwd.1} parent=1 // pred_check_branch
      %92 = sbr.rel (0) target = $region41
    $region40: #{fwd.1} parent=1 // pred_region
      _
    $region41: #{fwd.1} parent=1 // pred_fallthru
      _
    // Predicated region
    $region42: #{fwd.1} parent=1 // pred_check
      _
    $region43: #{fwd.1} parent=1 // pred_check_branch
      %94 = sbr.rel (0) target = $region45
    $region44: #{fwd.1} parent=1 // pred_region
      _
    $region45: #{fwd.1} parent=1 // pred_fallthru
      _
    // Predicated region
    $region46: #{fwd.1} parent=1 // pred_check
      _
    $region47: #{fwd.1} parent=1 // pred_check_branch
      %96 = sbr.rel (0) target = $region49
    $region48: #{fwd.1} parent=1 // pred_region
      _
    $region49: #{fwd.1} parent=1 // pred_fallthru
      _
    // Predicated region
    $region50: #{fwd.1} parent=1 // pred_check
      _
    $region51: #{fwd.1} parent=1 // pred_check_branch
      %98 = sbr.rel (0) target = $region53
    $region52: #{fwd.1} parent=1 // pred_region
      _
    $region53: #{fwd.1} parent=1 // pred_fallthru
      _
    // Predicated region
    $region54: #{fwd.1} parent=1 // pred_check
      _
    $region55: #{fwd.1} parent=1 // pred_check_branch
      %100 = sbr.rel (0) target = $region57
    $region56: #{fwd.1} parent=1 // pred_region
      _
    $region57: #{fwd.1} parent=1 // pred_fallthru
      _
    // Predicated region
    $region58: #{fwd.1} parent=1 // pred_check
      _
    $region59: #{fwd.1} parent=1 // pred_check_branch
      %102 = sbr.rel (0) target = $region61
    $region60: #{fwd.1} parent=1 // pred_region
      _
    $region61: #{fwd.1} parent=1 // pred_fallthru
      _
    // Predicated region
    $region62: #{fwd.1} parent=1 // pred_check
      _
    $region63: #{fwd.1} parent=1 // pred_check_branch
      %104 = sbr.rel (0) target = $region65
    $region64: #{fwd.1} parent=1 // pred_region
      _
    $region65: #{fwd.1} parent=1 // pred_fallthru
      _
    // Predicated region
    $region66: #{fwd.1} parent=1 // pred_check
      _
    $region67: #{fwd.1} parent=1 // pred_check_branch
      %106 = sbr.rel (0) target = $region69
    $region68: #{fwd.1} parent=1 // pred_region
      _
    $region69: #{fwd.1} parent=1 // pred_fallthru
      _
    // Predicated region
    $region70: #{fwd.1} parent=1 // pred_check
      _
    $region71: #{fwd.1} parent=1 // pred_check_branch
      %108 = sbr.rel (0) target = $region73
    $region72: #{fwd.1} parent=1 // pred_region
      _
    $region73: #{fwd.1} parent=1 // pred_fallthru
      _
    // Predicated region
    $region74: #{fwd.1} parent=1 // pred_check
      _
    $region75: #{fwd.1} parent=1 // pred_check_branch
      %110 = sbr.rel (0) target = $region77
    $region76: #{fwd.1} parent=1 // pred_region
      _
    $region77: #{fwd.1} parent=1 // pred_fallthru
      _
    // Predicated region
    $region78: #{fwd.1} parent=1 // pred_check
      _
    $region79: #{fwd.1} parent=1 // pred_check_branch
      %112 = sbr.rel (0) target = $region81
    $region80: #{fwd.1} parent=1 // pred_region
      _
    $region81: #{fwd.1} parent=1 // pred_fallthru
      _
    // Predicated region
    $region82: #{fwd.1} parent=1 // pred_check
      _
    $region83: #{fwd.1} parent=1 // pred_check_branch
      %114 = sbr.rel (0) target = $region85
    $region84: #{fwd.1} parent=1 // pred_region
      _
    $region85: #{fwd.1} parent=1 // pred_fallthru
      _
    // Predicated region
    $region86: #{fwd.1} parent=1 // pred_check
      _
    $region87: #{fwd.1} parent=1 // pred_check_branch
      %116 = sbr.rel (0) target = $region89
    $region88: #{fwd.1} parent=1 // pred_region
      _
    $region89: #{fwd.1} parent=1 // pred_fallthru
      _
    // Predicated region
    $region90: #{fwd.1} parent=1 // pred_check
      _
    $region91: #{fwd.1} parent=1 // pred_check_branch
      %118 = sbr.rel (0) target = $region93
    $region92: #{fwd.1} parent=1 // pred_region
      _
    $region93: #{fwd.1} parent=1 // pred_fallthru
      _
    // Predicated region
    $region94: #{fwd.1} parent=1 // pred_check
      _
    $region95: #{fwd.1} parent=1 // pred_check_branch
      %120 = sbr.rel (0) target = $region97
    $region96: #{fwd.1} parent=1 // pred_region
      _
    $region97: #{fwd.1} parent=1 // pred_fallthru
      _
    // Predicated region
    $region98: #{fwd.1} parent=1 // pred_check
      _
    $region99: #{fwd.1} parent=1 // pred_check_branch
      %122 = sbr.rel (0) target = $region101
    $region100: #{fwd.1} parent=1 // pred_region
      _
    $region101: #{fwd.1} parent=1 // pred_fallthru
      _
    // Predicated region
    $region102: #{fwd.1} parent=1 // pred_check
      _
    $region103: #{fwd.1} parent=1 // pred_check_branch
      %124 = sbr.rel (0) target = $region105
    $region104: #{fwd.1} parent=1 // pred_region
      _
    $region105: #{fwd.1} parent=1 // pred_fallthru
      _
    // Predicated region
    $region106: #{fwd.1} parent=1 // pred_check
      _
    $region107: #{fwd.1} parent=1 // pred_check_branch
      %126 = sbr.rel (0) target = $region109
    $region108: #{fwd.1} parent=1 // pred_region
      _
    $region109: #{fwd.1} parent=1 // pred_fallthru
      _
    // Predicated region
    $region110: #{fwd.1} parent=1 // pred_check
      _
    $region111: #{fwd.1} parent=1 // pred_check_branch
      %128 = sbr.rel (0) target = $region113
    $region112: #{fwd.1} parent=1 // pred_region
      _
    $region113: #{fwd.1} parent=1 // pred_fallthru
      _
    // Predicated region
    $region114: #{fwd.1} parent=1 // pred_check
      _
    $region115: #{fwd.1} parent=1 // pred_check_branch
      %130 = sbr.rel (0) target = $region117
    $region116: #{fwd.1} parent=1 // pred_region
      _
    $region117: #{fwd.1} parent=1 // pred_fallthru
      _
    // Predicated region
    $region118: #{fwd.1} parent=1 // pred_check
      _
    $region119: #{fwd.1} parent=1 // pred_check_branch
      %132 = sbr.rel (0) target = $region121
    $region120: #{fwd.1} parent=1 // pred_region
      %133 = dma.done [#allocation3], 16
    $region121: #{fwd.1} parent=1 // pred_fallthru
      _
    %134 = sfence
    %v135 = vld [vmem:[%s5] sm:$0xff]
    %v136 = vld [vmem:[%s5 + $0x8] sm:$0xff]
    %v137 = vld [vmem:[%s7] sm:$0xff]
    %v138 = vld [vmem:[%s7 + $0x8] sm:$0xff]
    %v139 = vld [vmem:[%s9] sm:$0xff]
    %v140 = vld [vmem:[%s9 + $0x8] sm:$0xff]
    %v141 = vld [vmem:[%s1] sm:$0xff]
    %v142 = vld [vmem:[%s1 + $0x8] sm:$0xff]
    %s143 = sld [smem:[#allocation2]]
    %v144 = vmul.f32 %v141, %v141
    %v145 = vmul.f32 %v142, %v142
    %vm146 = vcmask 261120
    %v147 = vsel %vm146, %v144, 0.0
    %148 = vadd.xlane.f32.xlu0 %v147
    %v149 = vpop.xlane.xlu0 %148
    %v150 = vsel %vm146, %v145, 0.0
    %151 = vadd.xlane.f32.xlu0 %v150
    %v152 = vpop.xlane.xlu0 %151
    %v153 = vmax.f32 %v149, 1e-10
    %v154 = vmax.f32 %v152, 1e-10
    %v155 = vrsqrt.pop %v153
    %v156 = vrsqrt.pop %v154
    %v157 = vstv %s143
    %v158 = vmul.f32 %v157, %v155
    %v159 = vmul.f32 %v157, %v156
    %v160 = vmul.f32 %v141, %v158
    %v161 = vmul.f32 %v142, %v159
    %v162 = vld [vmem:[%s13] sm:$0xff]
    %v163 = vld [vmem:[%s13 + $0x8] sm:$0xff]
    %v164 = vld [vmem:[%s13 + $0x10] sm:$0xff]
    %v165 = vld [vmem:[%s13 + $0x18] sm:$0xff]
    %v166 = vld [vmem:[%s15] sm:$0x1]
    %v168 = vlaneseq
    %v169 = vshrl.u32 %v168, 7
    %v170 = vsub.s32 0, %v169
    %v171 = vrot.slane %v166, %v170
    %v174 = vsel %vm146, %v160, 0
    %v177 = vsel %vm146, %v161, 0
    %179 = vmatprep.subr.mxu0 0.0
    %180 = vmatpush1.msra.mxu0 0.0
    %181 = vmatprep.subr.mxu0 0.0
    %182 = vmatpush1.msra.mxu0 0.0
    %183 = vmatprep.subr.mxu0 0.0
    %184 = vmatpush1.msra.mxu0 0.0
    %185 = vmatprep.subr.mxu0 0.0
    %186 = vmatpush1.msra.mxu0 0.0
    %187 = vmatprep.subr.mxu0 0.0
    %188 = vmatpush1.msra.mxu0 0.0
    %189 = vmatprep.subr.mxu0 0.0
    %190 = vmatpush1.msra.mxu0 0.0
    %191 = vmatprep.subr.mxu0 0.0
    %192 = vmatpush1.msra.mxu0 0.0
    %193 = vmatprep.subr.mxu0 0.0
    %194 = vmatpush1.msra.mxu0 0.0
    %195 = vmatprep.subr.mxu0 0.0
    %196 = vmatpush1.msra.mxu0 0.0
    %197 = vmatprep.subr.mxu0 0.0
    %198 = vmatpush1.msra.mxu0 0.0
    %199 = vmatprep.subr.mxu0 0.0
    %200 = vmatpush1.msra.mxu0 0.0
    %201 = vmatprep.subr.mxu0 0.0
    %202 = vmatpush1.msra.mxu0 0.0
    %203 = vmatprep.subr.mxu0 0.0
    %204 = vmatpush1.msra.mxu0 %v165
    %205 = vmatprep.subr.mxu0 0.0
    %206 = vmatpush1.msra.mxu0 %v164
    %207 = vmatprep.subr.mxu0 0.0
    %208 = vmatpush1.msra.mxu0 %v163
    %209 = vmatprep.subr.mxu0 0.0
    %210 = vmatpush1.msra.mxu0 %v162
    %211 = vmatprep.subr.mxu0 0.0
    %212 = vmatpush2.msra.mxu0 0.0
    %213 = vmatprep.subr.mxu0 0.0
    %214 = vmatpush2.msra.mxu0 0.0
    %215 = vmatprep.subr.mxu0 0.0
    %216 = vmatpush2.msra.mxu0 0.0
    %217 = vmatprep.subr.mxu0 0.0
    %218 = vmatpush2.msra.mxu0 0.0
    %219 = vmatprep.subr.mxu0 0.0
    %220 = vmatpush2.msra.mxu0 0.0
    %221 = vmatprep.subr.mxu0 0.0
    %222 = vmatpush2.msra.mxu0 0.0
    %223 = vmatprep.subr.mxu0 0.0
    %224 = vmatpush2.msra.mxu0 0.0
    %225 = vmatprep.subr.mxu0 0.0
    %226 = vmatpush2.msra.mxu0 0.0
    %227 = vmatprep.subr.mxu0 0.0
    %228 = vmatpush2.msra.mxu0 0.0
    %229 = vmatprep.subr.mxu0 0.0
    %230 = vmatpush2.msra.mxu0 0.0
    %231 = vmatprep.subr.mxu0 0.0
    %232 = vmatpush2.msra.mxu0 0.0
    %233 = vmatprep.subr.mxu0 0.0
    %234 = vmatpush2.msra.mxu0 0.0
    %235 = vmatprep.subr.mxu0 0.0
    %236 = vmatpush2.msra.mxu0 0.0
    %237 = vmatprep.subr.mxu0 0.0
    %238 = vmatpush2.msra.mxu0 0.0
    %239 = vmatprep.subr.mxu0 0.0
    %240 = vmatpush2.msra.mxu0 0.0
    %241 = vmatprep.subr.mxu0 0.0
    %242 = vmatpush2.msra.mxu0 0.0
    %243 = vmatprep.mubr.f32.mxu0 0.0
    %244 = vmatmul.mubr.f32.gmra.mxu0 %v174
    %v245 = vpop.f32.mrf.mxu0
    %v246 = vadd.f32 %v171, %v245
    %v247 = vpop.f32.mrf.mxu0
    %248 = vmatprep.mubr.f32.mxu0 0.0
    %249 = vmatmul.mubr.f32.gmra.mxu0 %v177
    %v250 = vpop.f32.mrf.mxu0
    %v251 = vadd.f32 %v171, %v250
    %v252 = vpop.f32.mrf.mxu0
    %253 = vdwg.mxu0
    %v254 = vld [vmem:[%s17] sm:$0xff]
    %v255 = vld [vmem:[%s17 + $0x8] sm:$0xff]
    %v256 = vld [vmem:[%s17 + $0x10] sm:$0xff]
    %v257 = vld [vmem:[%s17 + $0x18] sm:$0xff]
    %260 = vrot.lane.b32.xlu0 %v246, 96
    %v261 = vpop.permute.xlu0 %260
    %262 = vrot.lane.b32.xlu0 %v251, 96
    %v263 = vpop.permute.xlu0 %262
    %vm264 = vcmask 64512
    %v265 = vsel %vm264, %v246, 0
    %v267 = vsel %vm264, %v251, 0
    %v269 = vsel %vm264, %v261, 0
    %v271 = vsel %vm264, %v263, 0
    %273 = vmatprep.subr.mxu0 0.0
    %274 = vmatpush1.xpose.msra.mxu0 0.0
    %275 = vmatprep.subr.mxu0 0.0
    %276 = vmatpush1.xpose.msra.mxu0 0.0
    %277 = vmatprep.subr.mxu0 0.0
    %278 = vmatpush1.xpose.msra.mxu0 0.0
    %279 = vmatprep.subr.mxu0 0.0
    %280 = vmatpush1.xpose.msra.mxu0 0.0
    %281 = vmatprep.subr.mxu0 0.0
    %282 = vmatpush1.xpose.msra.mxu0 0.0
    %283 = vmatprep.subr.mxu0 0.0
    %284 = vmatpush1.xpose.msra.mxu0 0.0
    %285 = vmatprep.subr.mxu0 0.0
    %286 = vmatpush1.xpose.msra.mxu0 0.0
    %287 = vmatprep.subr.mxu0 0.0
    %288 = vmatpush1.xpose.msra.mxu0 0.0
    %289 = vmatprep.subr.mxu0 0.0
    %290 = vmatpush1.xpose.msra.mxu0 0.0
    %291 = vmatprep.subr.mxu0 0.0
    %292 = vmatpush1.xpose.msra.mxu0 0.0
    %293 = vmatprep.subr.mxu0 0.0
    %294 = vmatpush1.xpose.msra.mxu0 0.0
    %295 = vmatprep.subr.mxu0 0.0
    %296 = vmatpush1.xpose.msra.mxu0 0.0
    %297 = vmatprep.subr.mxu0 0.0
    %298 = vmatpush1.xpose.msra.mxu0 0.0
    %299 = vmatprep.subr.mxu0 0.0
    %300 = vmatpush1.xpose.msra.mxu0 0.0
    %301 = vmatprep.subr.mxu0 0.0
    %302 = vmatpush1.xpose.msra.mxu0 %v271
    %303 = vmatprep.subr.mxu0 0.0
    %304 = vmatpush1.xpose.msra.mxu0 %v269
    %305 = vmatprep.subr.mxu0 0.0
    %306 = vmatpush2.xpose.msra.mxu0 0.0
    %307 = vmatprep.subr.mxu0 0.0
    %308 = vmatpush2.xpose.msra.mxu0 0.0
    %309 = vmatprep.subr.mxu0 0.0
    %310 = vmatpush2.xpose.msra.mxu0 0.0
    %311 = vmatprep.subr.mxu0 0.0
    %312 = vmatpush2.xpose.msra.mxu0 0.0
    %313 = vmatprep.subr.mxu0 0.0
    %314 = vmatpush2.xpose.msra.mxu0 0.0
    %315 = vmatprep.subr.mxu0 0.0
    %316 = vmatpush2.xpose.msra.mxu0 0.0
    %317 = vmatprep.subr.mxu0 0.0
    %318 = vmatpush2.xpose.msra.mxu0 0.0
    %319 = vmatprep.subr.mxu0 0.0
    %320 = vmatpush2.xpose.msra.mxu0 0.0
    %321 = vmatprep.subr.mxu0 0.0
    %322 = vmatpush2.xpose.msra.mxu0 0.0
    %323 = vmatprep.subr.mxu0 0.0
    %324 = vmatpush2.xpose.msra.mxu0 0.0
    %325 = vmatprep.subr.mxu0 0.0
    %326 = vmatpush2.xpose.msra.mxu0 0.0
    %327 = vmatprep.subr.mxu0 0.0
    %328 = vmatpush2.xpose.msra.mxu0 0.0
    %329 = vmatprep.subr.mxu0 0.0
    %330 = vmatpush2.xpose.msra.mxu0 0.0
    %331 = vmatprep.subr.mxu0 0.0
    %332 = vmatpush2.xpose.msra.mxu0 0.0
    %333 = vmatprep.subr.mxu0 0.0
    %334 = vmatpush2.xpose.msra.mxu0 0.0
    %335 = vmatprep.subr.mxu0 0.0
    %336 = vmatpush2.xpose.msra.mxu0 0.0
    %337 = vmatprep.mubr.f32.mxu0 0.0
    %338 = vmatmul.mubr.f32.gmra.mxu0 %v265
    %v339 = vpop.f32.mrf.mxu0
    %v340 = vadd.f32 %v135, %v339
    %v341 = vpop.f32.mrf.mxu0
    %342 = vmatprep.mubr.f32.mxu0 0.0
    %343 = vmatmul.mubr.f32.gmra.mxu0 %v267
    %v344 = vpop.f32.mrf.mxu0
    %v345 = vadd.f32 %v136, %v344
    %v346 = vpop.f32.mrf.mxu0
    %347 = vdwg.mxu0
    %vm348 = vcmask 130048
    %v349 = vsel %vm348, %v340, -inf
    %350 = vmax.xlane.f32.xlu0 %v349
    %v351 = vpop.xlane.xlu0 %350
    %v352 = vsel %vm348, %v345, -inf
    %353 = vmax.xlane.f32.xlu0 %v352
    %v354 = vpop.xlane.xlu0 %353
    %v355 = vsub.f32 %v340, %v351
    %v356 = vsub.f32 %v345, %v354
    %v357 = vmul.f32 %v355, 1.442695
    %v358 = vpow.pop %v357
    %v359 = vmul.f32 %v356, 1.442695
    %v360 = vpow.pop %v359
    %v361 = vsel %vm348, %v358, 0.0
    %362 = vadd.xlane.f32.xlu0 %v361
    %v363 = vpop.xlane.xlu0 %362
    %v364 = vsel %vm348, %v360, 0.0
    %365 = vadd.xlane.f32.xlu0 %v364
    %v366 = vpop.xlane.xlu0 %365
    %v367 = vrcp.pop %v363
    %v368 = vrcp.pop %v366
    %v369 = vmul.f32 %v358, %v367
    %v370 = vmul.f32 %v360, %v368
    %371 = vrot.lane.b32.xlu0 %v246, 64
    %v372 = vpop.permute.xlu0 %371
    %373 = vrot.lane.b32.xlu0 %v251, 64
    %v374 = vpop.permute.xlu0 %373
    %v378 = vsel %vm348, %v369, 0
    %v381 = vsel %vm348, %v370, 0
    %383 = vmatprep.subr.mxu0 0.0
    %384 = vmatpush1.msra.mxu0 0.0
    %385 = vmatprep.subr.mxu0 0.0
    %386 = vmatpush1.msra.mxu0 0.0
    %387 = vmatprep.subr.mxu0 0.0
    %388 = vmatpush1.msra.mxu0 0.0
    %389 = vmatprep.subr.mxu0 0.0
    %390 = vmatpush1.msra.mxu0 0.0
    %391 = vmatprep.subr.mxu0 0.0
    %392 = vmatpush1.msra.mxu0 0.0
    %393 = vmatprep.subr.mxu0 0.0
    %394 = vmatpush1.msra.mxu0 0.0
    %395 = vmatprep.subr.mxu0 0.0
    %396 = vmatpush1.msra.mxu0 0.0
    %397 = vmatprep.subr.mxu0 0.0
    %398 = vmatpush1.msra.mxu0 0.0
    %399 = vmatprep.subr.mxu0 0.0
    %400 = vmatpush1.msra.mxu0 0.0
    %401 = vmatprep.subr.mxu0 0.0
    %402 = vmatpush1.msra.mxu0 0.0
    %403 = vmatprep.subr.mxu0 0.0
    %404 = vmatpush1.msra.mxu0 0.0
    %405 = vmatprep.subr.mxu0 0.0
    %406 = vmatpush1.msra.mxu0 0.0
    %407 = vmatprep.subr.mxu0 0.0
    %408 = vmatpush1.msra.mxu0 0.0
    %409 = vmatprep.subr.mxu0 0.0
    %410 = vmatpush1.msra.mxu0 0.0
    %411 = vmatprep.subr.mxu0 0.0
    %412 = vmatpush1.msra.mxu0 %v374
    %413 = vmatprep.subr.mxu0 0.0
    %414 = vmatpush1.msra.mxu0 %v372
    %415 = vmatprep.subr.mxu0 0.0
    %416 = vmatpush2.msra.mxu0 0.0
    %417 = vmatprep.subr.mxu0 0.0
    %418 = vmatpush2.msra.mxu0 0.0
    %419 = vmatprep.subr.mxu0 0.0
    %420 = vmatpush2.msra.mxu0 0.0
    %421 = vmatprep.subr.mxu0 0.0
    %422 = vmatpush2.msra.mxu0 0.0
    %423 = vmatprep.subr.mxu0 0.0
    %424 = vmatpush2.msra.mxu0 0.0
    %425 = vmatprep.subr.mxu0 0.0
    %426 = vmatpush2.msra.mxu0 0.0
    %427 = vmatprep.subr.mxu0 0.0
    %428 = vmatpush2.msra.mxu0 0.0
    %429 = vmatprep.subr.mxu0 0.0
    %430 = vmatpush2.msra.mxu0 0.0
    %431 = vmatprep.subr.mxu0 0.0
    %432 = vmatpush2.msra.mxu0 0.0
    %433 = vmatprep.subr.mxu0 0.0
    %434 = vmatpush2.msra.mxu0 0.0
    %435 = vmatprep.subr.mxu0 0.0
    %436 = vmatpush2.msra.mxu0 0.0
    %437 = vmatprep.subr.mxu0 0.0
    %438 = vmatpush2.msra.mxu0 0.0
    %439 = vmatprep.subr.mxu0 0.0
    %440 = vmatpush2.msra.mxu0 0.0
    %441 = vmatprep.subr.mxu0 0.0
    %442 = vmatpush2.msra.mxu0 0.0
    %443 = vmatprep.subr.mxu0 0.0
    %444 = vmatpush2.msra.mxu0 0.0
    %445 = vmatprep.subr.mxu0 0.0
    %446 = vmatpush2.msra.mxu0 0.0
    %447 = vmatprep.mubr.f32.mxu0 0.0
    %448 = vmatmul.mubr.f32.gmra.mxu0 %v378
    %v449 = vpop.f32.mrf.mxu0
    %v450 = vadd.f32 0.0, %v449
    %v451 = vpop.f32.mrf.mxu0
    %452 = vmatprep.mubr.f32.mxu0 0.0
    %453 = vmatmul.mubr.f32.gmra.mxu0 %v381
    %v454 = vpop.f32.mrf.mxu0
    %v455 = vadd.f32 0.0, %v454
    %v456 = vpop.f32.mrf.mxu0
    %457 = vdwg.mxu0
    %458 = vrot.lane.b32.xlu0 %v246, 120
    %v459 = vpop.permute.xlu0 %458
    %460 = vrot.lane.b32.xlu0 %v251, 120
    %v461 = vpop.permute.xlu0 %460
    %462 = vrot.lane.b32.xlu0 %v246, 88
    %v463 = vpop.permute.xlu0 %462
    %464 = vrot.lane.b32.xlu0 %v251, 88
    %v465 = vpop.permute.xlu0 %464
    %v466 = vsel %vm264, %v459, 0
    %v468 = vsel %vm264, %v461, 0
    %v470 = vsel %vm264, %v463, 0
    %v472 = vsel %vm264, %v465, 0
    %474 = vmatprep.subr.mxu0 0.0
    %475 = vmatpush1.xpose.msra.mxu0 0.0
    %476 = vmatprep.subr.mxu0 0.0
    %477 = vmatpush1.xpose.msra.mxu0 0.0
    %478 = vmatprep.subr.mxu0 0.0
    %479 = vmatpush1.xpose.msra.mxu0 0.0
    %480 = vmatprep.subr.mxu0 0.0
    %481 = vmatpush1.xpose.msra.mxu0 0.0
    %482 = vmatprep.subr.mxu0 0.0
    %483 = vmatpush1.xpose.msra.mxu0 0.0
    %484 = vmatprep.subr.mxu0 0.0
    %485 = vmatpush1.xpose.msra.mxu0 0.0
    %486 = vmatprep.subr.mxu0 0.0
    %487 = vmatpush1.xpose.msra.mxu0 0.0
    %488 = vmatprep.subr.mxu0 0.0
    %489 = vmatpush1.xpose.msra.mxu0 0.0
    %490 = vmatprep.subr.mxu0 0.0
    %491 = vmatpush1.xpose.msra.mxu0 0.0
    %492 = vmatprep.subr.mxu0 0.0
    %493 = vmatpush1.xpose.msra.mxu0 0.0
    %494 = vmatprep.subr.mxu0 0.0
    %495 = vmatpush1.xpose.msra.mxu0 0.0
    %496 = vmatprep.subr.mxu0 0.0
    %497 = vmatpush1.xpose.msra.mxu0 0.0
    %498 = vmatprep.subr.mxu0 0.0
    %499 = vmatpush1.xpose.msra.mxu0 0.0
    %500 = vmatprep.subr.mxu0 0.0
    %501 = vmatpush1.xpose.msra.mxu0 0.0
    %502 = vmatprep.subr.mxu0 0.0
    %503 = vmatpush1.xpose.msra.mxu0 %v472
    %504 = vmatprep.subr.mxu0 0.0
    %505 = vmatpush1.xpose.msra.mxu0 %v470
    %506 = vmatprep.subr.mxu0 0.0
    %507 = vmatpush2.xpose.msra.mxu0 0.0
    %508 = vmatprep.subr.mxu0 0.0
    %509 = vmatpush2.xpose.msra.mxu0 0.0
    %510 = vmatprep.subr.mxu0 0.0
    %511 = vmatpush2.xpose.msra.mxu0 0.0
    %512 = vmatprep.subr.mxu0 0.0
    %513 = vmatpush2.xpose.msra.mxu0 0.0
    %514 = vmatprep.subr.mxu0 0.0
    %515 = vmatpush2.xpose.msra.mxu0 0.0
    %516 = vmatprep.subr.mxu0 0.0
    %517 = vmatpush2.xpose.msra.mxu0 0.0
    %518 = vmatprep.subr.mxu0 0.0
    %519 = vmatpush2.xpose.msra.mxu0 0.0
    %520 = vmatprep.subr.mxu0 0.0
    %521 = vmatpush2.xpose.msra.mxu0 0.0
    %522 = vmatprep.subr.mxu0 0.0
    %523 = vmatpush2.xpose.msra.mxu0 0.0
    %524 = vmatprep.subr.mxu0 0.0
    %525 = vmatpush2.xpose.msra.mxu0 0.0
    %526 = vmatprep.subr.mxu0 0.0
    %527 = vmatpush2.xpose.msra.mxu0 0.0
    %528 = vmatprep.subr.mxu0 0.0
    %529 = vmatpush2.xpose.msra.mxu0 0.0
    %530 = vmatprep.subr.mxu0 0.0
    %531 = vmatpush2.xpose.msra.mxu0 0.0
    %532 = vmatprep.subr.mxu0 0.0
    %533 = vmatpush2.xpose.msra.mxu0 0.0
    %534 = vmatprep.subr.mxu0 0.0
    %535 = vmatpush2.xpose.msra.mxu0 0.0
    %536 = vmatprep.subr.mxu0 0.0
    %537 = vmatpush2.xpose.msra.mxu0 0.0
    %538 = vmatprep.mubr.f32.mxu0 0.0
    %539 = vmatmul.mubr.f32.gmra.mxu0 %v466
    %v540 = vpop.f32.mrf.mxu0
    %v541 = vadd.f32 %v135, %v540
    %v542 = vpop.f32.mrf.mxu0
    %543 = vmatprep.mubr.f32.mxu0 0.0
    %544 = vmatmul.mubr.f32.gmra.mxu0 %v468
    %v545 = vpop.f32.mrf.mxu0
    %v546 = vadd.f32 %v136, %v545
    %v547 = vpop.f32.mrf.mxu0
    %548 = vdwg.mxu0
    %v549 = vsel %vm348, %v541, -inf
    %550 = vmax.xlane.f32.xlu0 %v549
    %v551 = vpop.xlane.xlu0 %550
    %v552 = vsel %vm348, %v546, -inf
    %553 = vmax.xlane.f32.xlu0 %v552
    %v554 = vpop.xlane.xlu0 %553
    %v555 = vsub.f32 %v541, %v551
    %v556 = vsub.f32 %v546, %v554
    %v557 = vmul.f32 %v555, 1.442695
    %v558 = vpow.pop %v557
    %v559 = vmul.f32 %v556, 1.442695
    %v560 = vpow.pop %v559
    %v561 = vsel %vm348, %v558, 0.0
    %562 = vadd.xlane.f32.xlu0 %v561
    %v563 = vpop.xlane.xlu0 %562
    %v564 = vsel %vm348, %v560, 0.0
    %565 = vadd.xlane.f32.xlu0 %v564
    %v566 = vpop.xlane.xlu0 %565
    %v567 = vrcp.pop %v563
    %v568 = vrcp.pop %v566
    %v569 = vmul.f32 %v558, %v567
    %v570 = vmul.f32 %v560, %v568
    %571 = vrot.lane.b32.xlu0 %v246, 56
    %v572 = vpop.permute.xlu0 %571
    %573 = vrot.lane.b32.xlu0 %v251, 56
    %v574 = vpop.permute.xlu0 %573
    %v578 = vsel %vm348, %v569, 0
    %v581 = vsel %vm348, %v570, 0
    %583 = vmatprep.subr.mxu0 0.0
    %584 = vmatpush1.msra.mxu0 0.0
    %585 = vmatprep.subr.mxu0 0.0
    %586 = vmatpush1.msra.mxu0 0.0
    %587 = vmatprep.subr.mxu0 0.0
    %588 = vmatpush1.msra.mxu0 0.0
    %589 = vmatprep.subr.mxu0 0.0
    %590 = vmatpush1.msra.mxu0 0.0
    %591 = vmatprep.subr.mxu0 0.0
    %592 = vmatpush1.msra.mxu0 0.0
    %593 = vmatprep.subr.mxu0 0.0
    %594 = vmatpush1.msra.mxu0 0.0
    %595 = vmatprep.subr.mxu0 0.0
    %596 = vmatpush1.msra.mxu0 0.0
    %597 = vmatprep.subr.mxu0 0.0
    %598 = vmatpush1.msra.mxu0 0.0
    %599 = vmatprep.subr.mxu0 0.0
    %600 = vmatpush1.msra.mxu0 0.0
    %601 = vmatprep.subr.mxu0 0.0
    %602 = vmatpush1.msra.mxu0 0.0
    %603 = vmatprep.subr.mxu0 0.0
    %604 = vmatpush1.msra.mxu0 0.0
    %605 = vmatprep.subr.mxu0 0.0
    %606 = vmatpush1.msra.mxu0 0.0
    %607 = vmatprep.subr.mxu0 0.0
    %608 = vmatpush1.msra.mxu0 0.0
    %609 = vmatprep.subr.mxu0 0.0
    %610 = vmatpush1.msra.mxu0 0.0
    %611 = vmatprep.subr.mxu0 0.0
    %612 = vmatpush1.msra.mxu0 %v574
    %613 = vmatprep.subr.mxu0 0.0
    %614 = vmatpush1.msra.mxu0 %v572
    %615 = vmatprep.subr.mxu0 0.0
    %616 = vmatpush2.msra.mxu0 0.0
    %617 = vmatprep.subr.mxu0 0.0
    %618 = vmatpush2.msra.mxu0 0.0
    %619 = vmatprep.subr.mxu0 0.0
    %620 = vmatpush2.msra.mxu0 0.0
    %621 = vmatprep.subr.mxu0 0.0
    %622 = vmatpush2.msra.mxu0 0.0
    %623 = vmatprep.subr.mxu0 0.0
    %624 = vmatpush2.msra.mxu0 0.0
    %625 = vmatprep.subr.mxu0 0.0
    %626 = vmatpush2.msra.mxu0 0.0
    %627 = vmatprep.subr.mxu0 0.0
    %628 = vmatpush2.msra.mxu0 0.0
    %629 = vmatprep.subr.mxu0 0.0
    %630 = vmatpush2.msra.mxu0 0.0
    %631 = vmatprep.subr.mxu0 0.0
    %632 = vmatpush2.msra.mxu0 0.0
    %633 = vmatprep.subr.mxu0 0.0
    %634 = vmatpush2.msra.mxu0 0.0
    %635 = vmatprep.subr.mxu0 0.0
    %636 = vmatpush2.msra.mxu0 0.0
    %637 = vmatprep.subr.mxu0 0.0
    %638 = vmatpush2.msra.mxu0 0.0
    %639 = vmatprep.subr.mxu0 0.0
    %640 = vmatpush2.msra.mxu0 0.0
    %641 = vmatprep.subr.mxu0 0.0
    %642 = vmatpush2.msra.mxu0 0.0
    %643 = vmatprep.subr.mxu0 0.0
    %644 = vmatpush2.msra.mxu0 0.0
    %645 = vmatprep.subr.mxu0 0.0
    %646 = vmatpush2.msra.mxu0 0.0
    %647 = vmatprep.mubr.f32.mxu0 0.0
    %648 = vmatmul.mubr.f32.gmra.mxu0 %v578
    %v649 = vpop.f32.mrf.mxu0
    %v650 = vadd.f32 0.0, %v649
    %v651 = vpop.f32.mrf.mxu0
    %652 = vmatprep.mubr.f32.mxu0 0.0
    %653 = vmatmul.mubr.f32.gmra.mxu0 %v581
    %v654 = vpop.f32.mrf.mxu0
    %v655 = vadd.f32 0.0, %v654
    %v656 = vpop.f32.mrf.mxu0
    %657 = vdwg.mxu0
    %v659 = vsel %vm264, %v650, 0
    %v662 = vsel %vm264, %v655, 0
    %664 = vmatprep.subr.mxu0 0.0
    %665 = vmatpush1.msra.mxu0 0.0
    %666 = vmatprep.subr.mxu0 0.0
    %667 = vmatpush1.msra.mxu0 0.0
    %668 = vmatprep.subr.mxu0 0.0
    %669 = vmatpush1.msra.mxu0 0.0
    %670 = vmatprep.subr.mxu0 0.0
    %671 = vmatpush1.msra.mxu0 0.0
    %672 = vmatprep.subr.mxu0 0.0
    %673 = vmatpush1.msra.mxu0 0.0
    %674 = vmatprep.subr.mxu0 0.0
    %675 = vmatpush1.msra.mxu0 0.0
    %676 = vmatprep.subr.mxu0 0.0
    %677 = vmatpush1.msra.mxu0 0.0
    %678 = vmatprep.subr.mxu0 0.0
    %679 = vmatpush1.msra.mxu0 0.0
    %680 = vmatprep.subr.mxu0 0.0
    %681 = vmatpush1.msra.mxu0 0.0
    %682 = vmatprep.subr.mxu0 0.0
    %683 = vmatpush1.msra.mxu0 0.0
    %684 = vmatprep.subr.mxu0 0.0
    %685 = vmatpush1.msra.mxu0 0.0
    %686 = vmatprep.subr.mxu0 0.0
    %687 = vmatpush1.msra.mxu0 0.0
    %688 = vmatprep.subr.mxu0 0.0
    %689 = vmatpush1.msra.mxu0 0.0
    %690 = vmatprep.subr.mxu0 0.0
    %691 = vmatpush1.msra.mxu0 0.0
    %692 = vmatprep.subr.mxu0 0.0
    %693 = vmatpush1.msra.mxu0 0.0
    %694 = vmatprep.subr.mxu0 0.0
    %695 = vmatpush1.msra.mxu0 %v255
    %696 = vmatprep.subr.mxu0 0.0
    %697 = vmatpush2.msra.mxu0 0.0
    %698 = vmatprep.subr.mxu0 0.0
    %699 = vmatpush2.msra.mxu0 0.0
    %700 = vmatprep.subr.mxu0 0.0
    %701 = vmatpush2.msra.mxu0 0.0
    %702 = vmatprep.subr.mxu0 0.0
    %703 = vmatpush2.msra.mxu0 0.0
    %704 = vmatprep.subr.mxu0 0.0
    %705 = vmatpush2.msra.mxu0 0.0
    %706 = vmatprep.subr.mxu0 0.0
    %707 = vmatpush2.msra.mxu0 0.0
    %708 = vmatprep.subr.mxu0 0.0
    %709 = vmatpush2.msra.mxu0 0.0
    %710 = vmatprep.subr.mxu0 0.0
    %711 = vmatpush2.msra.mxu0 0.0
    %712 = vmatprep.subr.mxu0 0.0
    %713 = vmatpush2.msra.mxu0 0.0
    %714 = vmatprep.subr.mxu0 0.0
    %715 = vmatpush2.msra.mxu0 0.0
    %716 = vmatprep.subr.mxu0 0.0
    %717 = vmatpush2.msra.mxu0 0.0
    %718 = vmatprep.subr.mxu0 0.0
    %719 = vmatpush2.msra.mxu0 0.0
    %720 = vmatprep.subr.mxu0 0.0
    %721 = vmatpush2.msra.mxu0 0.0
    %722 = vmatprep.subr.mxu0 0.0
    %723 = vmatpush2.msra.mxu0 0.0
    %724 = vmatprep.subr.mxu0 0.0
    %725 = vmatpush2.msra.mxu0 0.0
    %726 = vmatprep.subr.mxu0 0.0
    %727 = vmatpush2.msra.mxu0 0.0
    %728 = vmatprep.mubr.f32.mxu0 0.0
    %729 = vmatmul.mubr.f32.gmra.mxu0 %v659
    %v730 = vpop.f32.mrf.mxu0
    %v731 = vadd.f32 0.0, %v730
    %v732 = vpop.f32.mrf.mxu0
    %733 = vmatprep.mubr.f32.mxu0 0.0
    %734 = vmatmul.mubr.f32.gmra.mxu0 %v662
    %v735 = vpop.f32.mrf.mxu0
    %v736 = vadd.f32 0.0, %v735
    %v737 = vpop.f32.mrf.mxu0
    %738 = vdwg.mxu0
    %v740 = vsel %vm264, %v450, 0
    %v743 = vsel %vm264, %v455, 0
    %745 = vmatprep.subr.mxu0 0.0
    %746 = vmatpush1.msra.mxu0 0.0
    %747 = vmatprep.subr.mxu0 0.0
    %748 = vmatpush1.msra.mxu0 0.0
    %749 = vmatprep.subr.mxu0 0.0
    %750 = vmatpush1.msra.mxu0 0.0
    %751 = vmatprep.subr.mxu0 0.0
    %752 = vmatpush1.msra.mxu0 0.0
    %753 = vmatprep.subr.mxu0 0.0
    %754 = vmatpush1.msra.mxu0 0.0
    %755 = vmatprep.subr.mxu0 0.0
    %756 = vmatpush1.msra.mxu0 0.0
    %757 = vmatprep.subr.mxu0 0.0
    %758 = vmatpush1.msra.mxu0 0.0
    %759 = vmatprep.subr.mxu0 0.0
    %760 = vmatpush1.msra.mxu0 0.0
    %761 = vmatprep.subr.mxu0 0.0
    %762 = vmatpush1.msra.mxu0 0.0
    %763 = vmatprep.subr.mxu0 0.0
    %764 = vmatpush1.msra.mxu0 0.0
    %765 = vmatprep.subr.mxu0 0.0
    %766 = vmatpush1.msra.mxu0 0.0
    %767 = vmatprep.subr.mxu0 0.0
    %768 = vmatpush1.msra.mxu0 0.0
    %769 = vmatprep.subr.mxu0 0.0
    %770 = vmatpush1.msra.mxu0 0.0
    %771 = vmatprep.subr.mxu0 0.0
    %772 = vmatpush1.msra.mxu0 0.0
    %773 = vmatprep.subr.mxu0 0.0
    %774 = vmatpush1.msra.mxu0 0.0
    %775 = vmatprep.subr.mxu0 0.0
    %776 = vmatpush1.msra.mxu0 %v254
    %777 = vmatprep.subr.mxu0 0.0
    %778 = vmatpush2.msra.mxu0 0.0
    %779 = vmatprep.subr.mxu0 0.0
    %780 = vmatpush2.msra.mxu0 0.0
    %781 = vmatprep.subr.mxu0 0.0
    %782 = vmatpush2.msra.mxu0 0.0
    %783 = vmatprep.subr.mxu0 0.0
    %784 = vmatpush2.msra.mxu0 0.0
    %785 = vmatprep.subr.mxu0 0.0
    %786 = vmatpush2.msra.mxu0 0.0
    %787 = vmatprep.subr.mxu0 0.0
    %788 = vmatpush2.msra.mxu0 0.0
    %789 = vmatprep.subr.mxu0 0.0
    %790 = vmatpush2.msra.mxu0 0.0
    %791 = vmatprep.subr.mxu0 0.0
    %792 = vmatpush2.msra.mxu0 0.0
    %793 = vmatprep.subr.mxu0 0.0
    %794 = vmatpush2.msra.mxu0 0.0
    %795 = vmatprep.subr.mxu0 0.0
    %796 = vmatpush2.msra.mxu0 0.0
    %797 = vmatprep.subr.mxu0 0.0
    %798 = vmatpush2.msra.mxu0 0.0
    %799 = vmatprep.subr.mxu0 0.0
    %800 = vmatpush2.msra.mxu0 0.0
    %801 = vmatprep.subr.mxu0 0.0
    %802 = vmatpush2.msra.mxu0 0.0
    %803 = vmatprep.subr.mxu0 0.0
    %804 = vmatpush2.msra.mxu0 0.0
    %805 = vmatprep.subr.mxu0 0.0
    %806 = vmatpush2.msra.mxu0 0.0
    %807 = vmatprep.subr.mxu0 0.0
    %808 = vmatpush2.msra.mxu0 0.0
    %809 = vmatprep.mubr.f32.mxu0 0.0
    %810 = vmatmul.mubr.f32.gmra.mxu0 %v740
    %v811 = vpop.f32.mrf.mxu0
    %v812 = vadd.f32 %v731, %v811
    %v813 = vpop.f32.mrf.mxu0
    %814 = vmatprep.mubr.f32.mxu0 0.0
    %815 = vmatmul.mubr.f32.gmra.mxu0 %v743
    %v816 = vpop.f32.mrf.mxu0
    %v817 = vadd.f32 %v736, %v816
    %v818 = vpop.f32.mrf.mxu0
    %819 = vdwg.mxu0
    %820 = vrot.lane.b32.xlu0 %v246, 112
    %v821 = vpop.permute.xlu0 %820
    %822 = vrot.lane.b32.xlu0 %v251, 112
    %v823 = vpop.permute.xlu0 %822
    %824 = vrot.lane.b32.xlu0 %v246, 80
    %v825 = vpop.permute.xlu0 %824
    %826 = vrot.lane.b32.xlu0 %v251, 80
    %v827 = vpop.permute.xlu0 %826
    %v828 = vsel %vm264, %v821, 0
    %v830 = vsel %vm264, %v823, 0
    %v832 = vsel %vm264, %v825, 0
    %v834 = vsel %vm264, %v827, 0
    %836 = vmatprep.subr.mxu0 0.0
    %837 = vmatpush1.xpose.msra.mxu0 0.0
    %838 = vmatprep.subr.mxu0 0.0
    %839 = vmatpush1.xpose.msra.mxu0 0.0
    %840 = vmatprep.subr.mxu0 0.0
    %841 = vmatpush1.xpose.msra.mxu0 0.0
    %842 = vmatprep.subr.mxu0 0.0
    %843 = vmatpush1.xpose.msra.mxu0 0.0
    %844 = vmatprep.subr.mxu0 0.0
    %845 = vmatpush1.xpose.msra.mxu0 0.0
    %846 = vmatprep.subr.mxu0 0.0
    %847 = vmatpush1.xpose.msra.mxu0 0.0
    %848 = vmatprep.subr.mxu0 0.0
    %849 = vmatpush1.xpose.msra.mxu0 0.0
    %850 = vmatprep.subr.mxu0 0.0
    %851 = vmatpush1.xpose.msra.mxu0 0.0
    %852 = vmatprep.subr.mxu0 0.0
    %853 = vmatpush1.xpose.msra.mxu0 0.0
    %854 = vmatprep.subr.mxu0 0.0
    %855 = vmatpush1.xpose.msra.mxu0 0.0
    %856 = vmatprep.subr.mxu0 0.0
    %857 = vmatpush1.xpose.msra.mxu0 0.0
    %858 = vmatprep.subr.mxu0 0.0
    %859 = vmatpush1.xpose.msra.mxu0 0.0
    %860 = vmatprep.subr.mxu0 0.0
    %861 = vmatpush1.xpose.msra.mxu0 0.0
    %862 = vmatprep.subr.mxu0 0.0
    %863 = vmatpush1.xpose.msra.mxu0 0.0
    %864 = vmatprep.subr.mxu0 0.0
    %865 = vmatpush1.xpose.msra.mxu0 %v834
    %866 = vmatprep.subr.mxu0 0.0
    %867 = vmatpush1.xpose.msra.mxu0 %v832
    %868 = vmatprep.subr.mxu0 0.0
    %869 = vmatpush2.xpose.msra.mxu0 0.0
    %870 = vmatprep.subr.mxu0 0.0
    %871 = vmatpush2.xpose.msra.mxu0 0.0
    %872 = vmatprep.subr.mxu0 0.0
    %873 = vmatpush2.xpose.msra.mxu0 0.0
    %874 = vmatprep.subr.mxu0 0.0
    %875 = vmatpush2.xpose.msra.mxu0 0.0
    %876 = vmatprep.subr.mxu0 0.0
    %877 = vmatpush2.xpose.msra.mxu0 0.0
    %878 = vmatprep.subr.mxu0 0.0
    %879 = vmatpush2.xpose.msra.mxu0 0.0
    %880 = vmatprep.subr.mxu0 0.0
    %881 = vmatpush2.xpose.msra.mxu0 0.0
    %882 = vmatprep.subr.mxu0 0.0
    %883 = vmatpush2.xpose.msra.mxu0 0.0
    %884 = vmatprep.subr.mxu0 0.0
    %885 = vmatpush2.xpose.msra.mxu0 0.0
    %886 = vmatprep.subr.mxu0 0.0
    %887 = vmatpush2.xpose.msra.mxu0 0.0
    %888 = vmatprep.subr.mxu0 0.0
    %889 = vmatpush2.xpose.msra.mxu0 0.0
    %890 = vmatprep.subr.mxu0 0.0
    %891 = vmatpush2.xpose.msra.mxu0 0.0
    %892 = vmatprep.subr.mxu0 0.0
    %893 = vmatpush2.xpose.msra.mxu0 0.0
    %894 = vmatprep.subr.mxu0 0.0
    %895 = vmatpush2.xpose.msra.mxu0 0.0
    %896 = vmatprep.subr.mxu0 0.0
    %897 = vmatpush2.xpose.msra.mxu0 0.0
    %898 = vmatprep.subr.mxu0 0.0
    %899 = vmatpush2.xpose.msra.mxu0 0.0
    %900 = vmatprep.mubr.f32.mxu0 0.0
    %901 = vmatmul.mubr.f32.gmra.mxu0 %v828
    %v902 = vpop.f32.mrf.mxu0
    %v903 = vadd.f32 %v135, %v902
    %v904 = vpop.f32.mrf.mxu0
    %905 = vmatprep.mubr.f32.mxu0 0.0
    %906 = vmatmul.mubr.f32.gmra.mxu0 %v830
    %v907 = vpop.f32.mrf.mxu0
    %v908 = vadd.f32 %v136, %v907
    %v909 = vpop.f32.mrf.mxu0
    %910 = vdwg.mxu0
    %v911 = vsel %vm348, %v903, -inf
    %912 = vmax.xlane.f32.xlu0 %v911
    %v913 = vpop.xlane.xlu0 %912
    %v914 = vsel %vm348, %v908, -inf
    %915 = vmax.xlane.f32.xlu0 %v914
    %v916 = vpop.xlane.xlu0 %915
    %v917 = vsub.f32 %v903, %v913
    %v918 = vsub.f32 %v908, %v916
    %v919 = vmul.f32 %v917, 1.442695
    %v920 = vpow.pop %v919
    %v921 = vmul.f32 %v918, 1.442695
    %v922 = vpow.pop %v921
    %v923 = vsel %vm348, %v920, 0.0
    %924 = vadd.xlane.f32.xlu0 %v923
    %v925 = vpop.xlane.xlu0 %924
    %v926 = vsel %vm348, %v922, 0.0
    %927 = vadd.xlane.f32.xlu0 %v926
    %v928 = vpop.xlane.xlu0 %927
    %v929 = vrcp.pop %v925
    %v930 = vrcp.pop %v928
    %v931 = vmul.f32 %v920, %v929
    %v932 = vmul.f32 %v922, %v930
    %933 = vrot.lane.b32.xlu0 %v246, 48
    %v934 = vpop.permute.xlu0 %933
    %935 = vrot.lane.b32.xlu0 %v251, 48
    %v936 = vpop.permute.xlu0 %935
    %v940 = vsel %vm348, %v931, 0
    %v943 = vsel %vm348, %v932, 0
    %945 = vmatprep.subr.mxu0 0.0
    %946 = vmatpush1.msra.mxu0 0.0
    %947 = vmatprep.subr.mxu0 0.0
    %948 = vmatpush1.msra.mxu0 0.0
    %949 = vmatprep.subr.mxu0 0.0
    %950 = vmatpush1.msra.mxu0 0.0
    %951 = vmatprep.subr.mxu0 0.0
    %952 = vmatpush1.msra.mxu0 0.0
    %953 = vmatprep.subr.mxu0 0.0
    %954 = vmatpush1.msra.mxu0 0.0
    %955 = vmatprep.subr.mxu0 0.0
    %956 = vmatpush1.msra.mxu0 0.0
    %957 = vmatprep.subr.mxu0 0.0
    %958 = vmatpush1.msra.mxu0 0.0
    %959 = vmatprep.subr.mxu0 0.0
    %960 = vmatpush1.msra.mxu0 0.0
    %961 = vmatprep.subr.mxu0 0.0
    %962 = vmatpush1.msra.mxu0 0.0
    %963 = vmatprep.subr.mxu0 0.0
    %964 = vmatpush1.msra.mxu0 0.0
    %965 = vmatprep.subr.mxu0 0.0
    %966 = vmatpush1.msra.mxu0 0.0
    %967 = vmatprep.subr.mxu0 0.0
    %968 = vmatpush1.msra.mxu0 0.0
    %969 = vmatprep.subr.mxu0 0.0
    %970 = vmatpush1.msra.mxu0 0.0
    %971 = vmatprep.subr.mxu0 0.0
    %972 = vmatpush1.msra.mxu0 0.0
    %973 = vmatprep.subr.mxu0 0.0
    %974 = vmatpush1.msra.mxu0 %v936
    %975 = vmatprep.subr.mxu0 0.0
    %976 = vmatpush1.msra.mxu0 %v934
    %977 = vmatprep.subr.mxu0 0.0
    %978 = vmatpush2.msra.mxu0 0.0
    %979 = vmatprep.subr.mxu0 0.0
    %980 = vmatpush2.msra.mxu0 0.0
    %981 = vmatprep.subr.mxu0 0.0
    %982 = vmatpush2.msra.mxu0 0.0
    %983 = vmatprep.subr.mxu0 0.0
    %984 = vmatpush2.msra.mxu0 0.0
    %985 = vmatprep.subr.mxu0 0.0
    %986 = vmatpush2.msra.mxu0 0.0
    %987 = vmatprep.subr.mxu0 0.0
    %988 = vmatpush2.msra.mxu0 0.0
    %989 = vmatprep.subr.mxu0 0.0
    %990 = vmatpush2.msra.mxu0 0.0
    %991 = vmatprep.subr.mxu0 0.0
    %992 = vmatpush2.msra.mxu0 0.0
    %993 = vmatprep.subr.mxu0 0.0
    %994 = vmatpush2.msra.mxu0 0.0
    %995 = vmatprep.subr.mxu0 0.0
    %996 = vmatpush2.msra.mxu0 0.0
    %997 = vmatprep.subr.mxu0 0.0
    %998 = vmatpush2.msra.mxu0 0.0
    %999 = vmatprep.subr.mxu0 0.0
    %1000 = vmatpush2.msra.mxu0 0.0
    %1001 = vmatprep.subr.mxu0 0.0
    %1002 = vmatpush2.msra.mxu0 0.0
    %1003 = vmatprep.subr.mxu0 0.0
    %1004 = vmatpush2.msra.mxu0 0.0
    %1005 = vmatprep.subr.mxu0 0.0
    %1006 = vmatpush2.msra.mxu0 0.0
    %1007 = vmatprep.subr.mxu0 0.0
    %1008 = vmatpush2.msra.mxu0 0.0
    %1009 = vmatprep.mubr.f32.mxu0 0.0
    %1010 = vmatmul.mubr.f32.gmra.mxu0 %v940
    %v1011 = vpop.f32.mrf.mxu0
    %v1012 = vadd.f32 0.0, %v1011
    %v1013 = vpop.f32.mrf.mxu0
    %1014 = vmatprep.mubr.f32.mxu0 0.0
    %1015 = vmatmul.mubr.f32.gmra.mxu0 %v943
    %v1016 = vpop.f32.mrf.mxu0
    %v1017 = vadd.f32 0.0, %v1016
    %v1018 = vpop.f32.mrf.mxu0
    %1019 = vdwg.mxu0
    %v1021 = vsel %vm264, %v1012, 0
    %v1024 = vsel %vm264, %v1017, 0
    %1026 = vmatprep.subr.mxu0 0.0
    %1027 = vmatpush1.msra.mxu0 0.0
    %1028 = vmatprep.subr.mxu0 0.0
    %1029 = vmatpush1.msra.mxu0 0.0
    %1030 = vmatprep.subr.mxu0 0.0
    %1031 = vmatpush1.msra.mxu0 0.0
    %1032 = vmatprep.subr.mxu0 0.0
    %1033 = vmatpush1.msra.mxu0 0.0
    %1034 = vmatprep.subr.mxu0 0.0
    %1035 = vmatpush1.msra.mxu0 0.0
    %1036 = vmatprep.subr.mxu0 0.0
    %1037 = vmatpush1.msra.mxu0 0.0
    %1038 = vmatprep.subr.mxu0 0.0
    %1039 = vmatpush1.msra.mxu0 0.0
    %1040 = vmatprep.subr.mxu0 0.0
    %1041 = vmatpush1.msra.mxu0 0.0
    %1042 = vmatprep.subr.mxu0 0.0
    %1043 = vmatpush1.msra.mxu0 0.0
    %1044 = vmatprep.subr.mxu0 0.0
    %1045 = vmatpush1.msra.mxu0 0.0
    %1046 = vmatprep.subr.mxu0 0.0
    %1047 = vmatpush1.msra.mxu0 0.0
    %1048 = vmatprep.subr.mxu0 0.0
    %1049 = vmatpush1.msra.mxu0 0.0
    %1050 = vmatprep.subr.mxu0 0.0
    %1051 = vmatpush1.msra.mxu0 0.0
    %1052 = vmatprep.subr.mxu0 0.0
    %1053 = vmatpush1.msra.mxu0 0.0
    %1054 = vmatprep.subr.mxu0 0.0
    %1055 = vmatpush1.msra.mxu0 0.0
    %1056 = vmatprep.subr.mxu0 0.0
    %1057 = vmatpush1.msra.mxu0 %v256
    %1058 = vmatprep.subr.mxu0 0.0
    %1059 = vmatpush2.msra.mxu0 0.0
    %1060 = vmatprep.subr.mxu0 0.0
    %1061 = vmatpush2.msra.mxu0 0.0
    %1062 = vmatprep.subr.mxu0 0.0
    %1063 = vmatpush2.msra.mxu0 0.0
    %1064 = vmatprep.subr.mxu0 0.0
    %1065 = vmatpush2.msra.mxu0 0.0
    %1066 = vmatprep.subr.mxu0 0.0
    %1067 = vmatpush2.msra.mxu0 0.0
    %1068 = vmatprep.subr.mxu0 0.0
    %1069 = vmatpush2.msra.mxu0 0.0
    %1070 = vmatprep.subr.mxu0 0.0
    %1071 = vmatpush2.msra.mxu0 0.0
    %1072 = vmatprep.subr.mxu0 0.0
    %1073 = vmatpush2.msra.mxu0 0.0
    %1074 = vmatprep.subr.mxu0 0.0
    %1075 = vmatpush2.msra.mxu0 0.0
    %1076 = vmatprep.subr.mxu0 0.0
    %1077 = vmatpush2.msra.mxu0 0.0
    %1078 = vmatprep.subr.mxu0 0.0
    %1079 = vmatpush2.msra.mxu0 0.0
    %1080 = vmatprep.subr.mxu0 0.0
    %1081 = vmatpush2.msra.mxu0 0.0
    %1082 = vmatprep.subr.mxu0 0.0
    %1083 = vmatpush2.msra.mxu0 0.0
    %1084 = vmatprep.subr.mxu0 0.0
    %1085 = vmatpush2.msra.mxu0 0.0
    %1086 = vmatprep.subr.mxu0 0.0
    %1087 = vmatpush2.msra.mxu0 0.0
    %1088 = vmatprep.subr.mxu0 0.0
    %1089 = vmatpush2.msra.mxu0 0.0
    %1090 = vmatprep.mubr.f32.mxu0 0.0
    %1091 = vmatmul.mubr.f32.gmra.mxu0 %v1021
    %v1092 = vpop.f32.mrf.mxu0
    %v1093 = vadd.f32 0.0, %v1092
    %v1094 = vpop.f32.mrf.mxu0
    %1095 = vmatprep.mubr.f32.mxu0 0.0
    %1096 = vmatmul.mubr.f32.gmra.mxu0 %v1024
    %v1097 = vpop.f32.mrf.mxu0
    %v1098 = vadd.f32 0.0, %v1097
    %v1099 = vpop.f32.mrf.mxu0
    %1100 = vdwg.mxu0
    %v1101 = vadd.f32 %v812, %v1093
    %v1102 = vadd.f32 %v817, %v1098
    %1103 = vrot.lane.b32.xlu0 %v246, 104
    %v1104 = vpop.permute.xlu0 %1103
    %1105 = vrot.lane.b32.xlu0 %v251, 104
    %v1106 = vpop.permute.xlu0 %1105
    %1107 = vrot.lane.b32.xlu0 %v246, 72
    %v1108 = vpop.permute.xlu0 %1107
    %1109 = vrot.lane.b32.xlu0 %v251, 72
    %v1110 = vpop.permute.xlu0 %1109
    %v1111 = vsel %vm264, %v1104, 0
    %v1113 = vsel %vm264, %v1106, 0
    %v1115 = vsel %vm264, %v1108, 0
    %v1117 = vsel %vm264, %v1110, 0
    %1119 = vmatprep.subr.mxu0 0.0
    %1120 = vmatpush1.xpose.msra.mxu0 0.0
    %1121 = vmatprep.subr.mxu0 0.0
    %1122 = vmatpush1.xpose.msra.mxu0 0.0
    %1123 = vmatprep.subr.mxu0 0.0
    %1124 = vmatpush1.xpose.msra.mxu0 0.0
    %1125 = vmatprep.subr.mxu0 0.0
    %1126 = vmatpush1.xpose.msra.mxu0 0.0
    %1127 = vmatprep.subr.mxu0 0.0
    %1128 = vmatpush1.xpose.msra.mxu0 0.0
    %1129 = vmatprep.subr.mxu0 0.0
    %1130 = vmatpush1.xpose.msra.mxu0 0.0
    %1131 = vmatprep.subr.mxu0 0.0
    %1132 = vmatpush1.xpose.msra.mxu0 0.0
    %1133 = vmatprep.subr.mxu0 0.0
    %1134 = vmatpush1.xpose.msra.mxu0 0.0
    %1135 = vmatprep.subr.mxu0 0.0
    %1136 = vmatpush1.xpose.msra.mxu0 0.0
    %1137 = vmatprep.subr.mxu0 0.0
    %1138 = vmatpush1.xpose.msra.mxu0 0.0
    %1139 = vmatprep.subr.mxu0 0.0
    %1140 = vmatpush1.xpose.msra.mxu0 0.0
    %1141 = vmatprep.subr.mxu0 0.0
    %1142 = vmatpush1.xpose.msra.mxu0 0.0
    %1143 = vmatprep.subr.mxu0 0.0
    %1144 = vmatpush1.xpose.msra.mxu0 0.0
    %1145 = vmatprep.subr.mxu0 0.0
    %1146 = vmatpush1.xpose.msra.mxu0 0.0
    %1147 = vmatprep.subr.mxu0 0.0
    %1148 = vmatpush1.xpose.msra.mxu0 %v1117
    %1149 = vmatprep.subr.mxu0 0.0
    %1150 = vmatpush1.xpose.msra.mxu0 %v1115
    %1151 = vmatprep.subr.mxu0 0.0
    %1152 = vmatpush2.xpose.msra.mxu0 0.0
    %1153 = vmatprep.subr.mxu0 0.0
    %1154 = vmatpush2.xpose.msra.mxu0 0.0
    %1155 = vmatprep.subr.mxu0 0.0
    %1156 = vmatpush2.xpose.msra.mxu0 0.0
    %1157 = vmatprep.subr.mxu0 0.0
    %1158 = vmatpush2.xpose.msra.mxu0 0.0
    %1159 = vmatprep.subr.mxu0 0.0
    %1160 = vmatpush2.xpose.msra.mxu0 0.0
    %1161 = vmatprep.subr.mxu0 0.0
    %1162 = vmatpush2.xpose.msra.mxu0 0.0
    %1163 = vmatprep.subr.mxu0 0.0
    %1164 = vmatpush2.xpose.msra.mxu0 0.0
    %1165 = vmatprep.subr.mxu0 0.0
    %1166 = vmatpush2.xpose.msra.mxu0 0.0
    %1167 = vmatprep.subr.mxu0 0.0
    %1168 = vmatpush2.xpose.msra.mxu0 0.0
    %1169 = vmatprep.subr.mxu0 0.0
    %1170 = vmatpush2.xpose.msra.mxu0 0.0
    %1171 = vmatprep.subr.mxu0 0.0
    %1172 = vmatpush2.xpose.msra.mxu0 0.0
    %1173 = vmatprep.subr.mxu0 0.0
    %1174 = vmatpush2.xpose.msra.mxu0 0.0
    %1175 = vmatprep.subr.mxu0 0.0
    %1176 = vmatpush2.xpose.msra.mxu0 0.0
    %1177 = vmatprep.subr.mxu0 0.0
    %1178 = vmatpush2.xpose.msra.mxu0 0.0
    %1179 = vmatprep.subr.mxu0 0.0
    %1180 = vmatpush2.xpose.msra.mxu0 0.0
    %1181 = vmatprep.subr.mxu0 0.0
    %1182 = vmatpush2.xpose.msra.mxu0 0.0
    %1183 = vmatprep.mubr.f32.mxu0 0.0
    %1184 = vmatmul.mubr.f32.gmra.mxu0 %v1111
    %v1185 = vpop.f32.mrf.mxu0
    %v1186 = vadd.f32 %v135, %v1185
    %v1187 = vpop.f32.mrf.mxu0
    %1188 = vmatprep.mubr.f32.mxu0 0.0
    %1189 = vmatmul.mubr.f32.gmra.mxu0 %v1113
    %v1190 = vpop.f32.mrf.mxu0
    %v1191 = vadd.f32 %v136, %v1190
    %v1192 = vpop.f32.mrf.mxu0
    %1193 = vdwg.mxu0
    %v1194 = vsel %vm348, %v1186, -inf
    %1195 = vmax.xlane.f32.xlu0 %v1194
    %v1196 = vpop.xlane.xlu0 %1195
    %v1197 = vsel %vm348, %v1191, -inf
    %1198 = vmax.xlane.f32.xlu0 %v1197
    %v1199 = vpop.xlane.xlu0 %1198
    %v1200 = vsub.f32 %v1186, %v1196
    %v1201 = vsub.f32 %v1191, %v1199
    %v1202 = vmul.f32 %v1200, 1.442695
    %v1203 = vpow.pop %v1202
    %v1204 = vmul.f32 %v1201, 1.442695
    %v1205 = vpow.pop %v1204
    %v1206 = vsel %vm348, %v1203, 0.0
    %1207 = vadd.xlane.f32.xlu0 %v1206
    %v1208 = vpop.xlane.xlu0 %1207
    %v1209 = vsel %vm348, %v1205, 0.0
    %1210 = vadd.xlane.f32.xlu0 %v1209
    %v1211 = vpop.xlane.xlu0 %1210
    %v1212 = vrcp.pop %v1208
    %v1213 = vrcp.pop %v1211
    %v1214 = vmul.f32 %v1203, %v1212
    %v1215 = vmul.f32 %v1205, %v1213
    %1216 = vrot.lane.b32.xlu0 %v246, 40
    %v1217 = vpop.permute.xlu0 %1216
    %1218 = vrot.lane.b32.xlu0 %v251, 40
    %v1219 = vpop.permute.xlu0 %1218
    %v1223 = vsel %vm348, %v1214, 0
    %v1226 = vsel %vm348, %v1215, 0
    %1228 = vmatprep.subr.mxu0 0.0
    %1229 = vmatpush1.msra.mxu0 0.0
    %1230 = vmatprep.subr.mxu0 0.0
    %1231 = vmatpush1.msra.mxu0 0.0
    %1232 = vmatprep.subr.mxu0 0.0
    %1233 = vmatpush1.msra.mxu0 0.0
    %1234 = vmatprep.subr.mxu0 0.0
    %1235 = vmatpush1.msra.mxu0 0.0
    %1236 = vmatprep.subr.mxu0 0.0
    %1237 = vmatpush1.msra.mxu0 0.0
    %1238 = vmatprep.subr.mxu0 0.0
    %1239 = vmatpush1.msra.mxu0 0.0
    %1240 = vmatprep.subr.mxu0 0.0
    %1241 = vmatpush1.msra.mxu0 0.0
    %1242 = vmatprep.subr.mxu0 0.0
    %1243 = vmatpush1.msra.mxu0 0.0
    %1244 = vmatprep.subr.mxu0 0.0
    %1245 = vmatpush1.msra.mxu0 0.0
    %1246 = vmatprep.subr.mxu0 0.0
    %1247 = vmatpush1.msra.mxu0 0.0
    %1248 = vmatprep.subr.mxu0 0.0
    %1249 = vmatpush1.msra.mxu0 0.0
    %1250 = vmatprep.subr.mxu0 0.0
    %1251 = vmatpush1.msra.mxu0 0.0
    %1252 = vmatprep.subr.mxu0 0.0
    %1253 = vmatpush1.msra.mxu0 0.0
    %1254 = vmatprep.subr.mxu0 0.0
    %1255 = vmatpush1.msra.mxu0 0.0
    %1256 = vmatprep.subr.mxu0 0.0
    %1257 = vmatpush1.msra.mxu0 %v1219
    %1258 = vmatprep.subr.mxu0 0.0
    %1259 = vmatpush1.msra.mxu0 %v1217
    %1260 = vmatprep.subr.mxu0 0.0
    %1261 = vmatpush2.msra.mxu0 0.0
    %1262 = vmatprep.subr.mxu0 0.0
    %1263 = vmatpush2.msra.mxu0 0.0
    %1264 = vmatprep.subr.mxu0 0.0
    %1265 = vmatpush2.msra.mxu0 0.0
    %1266 = vmatprep.subr.mxu0 0.0
    %1267 = vmatpush2.msra.mxu0 0.0
    %1268 = vmatprep.subr.mxu0 0.0
    %1269 = vmatpush2.msra.mxu0 0.0
    %1270 = vmatprep.subr.mxu0 0.0
    %1271 = vmatpush2.msra.mxu0 0.0
    %1272 = vmatprep.subr.mxu0 0.0
    %1273 = vmatpush2.msra.mxu0 0.0
    %1274 = vmatprep.subr.mxu0 0.0
    %1275 = vmatpush2.msra.mxu0 0.0
    %1276 = vmatprep.subr.mxu0 0.0
    %1277 = vmatpush2.msra.mxu0 0.0
    %1278 = vmatprep.subr.mxu0 0.0
    %1279 = vmatpush2.msra.mxu0 0.0
    %1280 = vmatprep.subr.mxu0 0.0
    %1281 = vmatpush2.msra.mxu0 0.0
    %1282 = vmatprep.subr.mxu0 0.0
    %1283 = vmatpush2.msra.mxu0 0.0
    %1284 = vmatprep.subr.mxu0 0.0
    %1285 = vmatpush2.msra.mxu0 0.0
    %1286 = vmatprep.subr.mxu0 0.0
    %1287 = vmatpush2.msra.mxu0 0.0
    %1288 = vmatprep.subr.mxu0 0.0
    %1289 = vmatpush2.msra.mxu0 0.0
    %1290 = vmatprep.subr.mxu0 0.0
    %1291 = vmatpush2.msra.mxu0 0.0
    %1292 = vmatprep.mubr.f32.mxu0 0.0
    %1293 = vmatmul.mubr.f32.gmra.mxu0 %v1223
    %v1294 = vpop.f32.mrf.mxu0
    %v1295 = vadd.f32 0.0, %v1294
    %v1296 = vpop.f32.mrf.mxu0
    %1297 = vmatprep.mubr.f32.mxu0 0.0
    %1298 = vmatmul.mubr.f32.gmra.mxu0 %v1226
    %v1299 = vpop.f32.mrf.mxu0
    %v1300 = vadd.f32 0.0, %v1299
    %v1301 = vpop.f32.mrf.mxu0
    %1302 = vdwg.mxu0
    %v1304 = vsel %vm264, %v1295, 0
    %v1307 = vsel %vm264, %v1300, 0
    %1309 = vmatprep.subr.mxu0 0.0
    %1310 = vmatpush1.msra.mxu0 0.0
    %1311 = vmatprep.subr.mxu0 0.0
    %1312 = vmatpush1.msra.mxu0 0.0
    %1313 = vmatprep.subr.mxu0 0.0
    %1314 = vmatpush1.msra.mxu0 0.0
    %1315 = vmatprep.subr.mxu0 0.0
    %1316 = vmatpush1.msra.mxu0 0.0
    %1317 = vmatprep.subr.mxu0 0.0
    %1318 = vmatpush1.msra.mxu0 0.0
    %1319 = vmatprep.subr.mxu0 0.0
    %1320 = vmatpush1.msra.mxu0 0.0
    %1321 = vmatprep.subr.mxu0 0.0
    %1322 = vmatpush1.msra.mxu0 0.0
    %1323 = vmatprep.subr.mxu0 0.0
    %1324 = vmatpush1.msra.mxu0 0.0
    %1325 = vmatprep.subr.mxu0 0.0
    %1326 = vmatpush1.msra.mxu0 0.0
    %1327 = vmatprep.subr.mxu0 0.0
    %1328 = vmatpush1.msra.mxu0 0.0
    %1329 = vmatprep.subr.mxu0 0.0
    %1330 = vmatpush1.msra.mxu0 0.0
    %1331 = vmatprep.subr.mxu0 0.0
    %1332 = vmatpush1.msra.mxu0 0.0
    %1333 = vmatprep.subr.mxu0 0.0
    %1334 = vmatpush1.msra.mxu0 0.0
    %1335 = vmatprep.subr.mxu0 0.0
    %1336 = vmatpush1.msra.mxu0 0.0
    %1337 = vmatprep.subr.mxu0 0.0
    %1338 = vmatpush1.msra.mxu0 0.0
    %1339 = vmatprep.subr.mxu0 0.0
    %1340 = vmatpush1.msra.mxu0 %v257
    %1341 = vmatprep.subr.mxu0 0.0
    %1342 = vmatpush2.msra.mxu0 0.0
    %1343 = vmatprep.subr.mxu0 0.0
    %1344 = vmatpush2.msra.mxu0 0.0
    %1345 = vmatprep.subr.mxu0 0.0
    %1346 = vmatpush2.msra.mxu0 0.0
    %1347 = vmatprep.subr.mxu0 0.0
    %1348 = vmatpush2.msra.mxu0 0.0
    %1349 = vmatprep.subr.mxu0 0.0
    %1350 = vmatpush2.msra.mxu0 0.0
    %1351 = vmatprep.subr.mxu0 0.0
    %1352 = vmatpush2.msra.mxu0 0.0
    %1353 = vmatprep.subr.mxu0 0.0
    %1354 = vmatpush2.msra.mxu0 0.0
    %1355 = vmatprep.subr.mxu0 0.0
    %1356 = vmatpush2.msra.mxu0 0.0
    %1357 = vmatprep.subr.mxu0 0.0
    %1358 = vmatpush2.msra.mxu0 0.0
    %1359 = vmatprep.subr.mxu0 0.0
    %1360 = vmatpush2.msra.mxu0 0.0
    %1361 = vmatprep.subr.mxu0 0.0
    %1362 = vmatpush2.msra.mxu0 0.0
    %1363 = vmatprep.subr.mxu0 0.0
    %1364 = vmatpush2.msra.mxu0 0.0
    %1365 = vmatprep.subr.mxu0 0.0
    %1366 = vmatpush2.msra.mxu0 0.0
    %1367 = vmatprep.subr.mxu0 0.0
    %1368 = vmatpush2.msra.mxu0 0.0
    %1369 = vmatprep.subr.mxu0 0.0
    %1370 = vmatpush2.msra.mxu0 0.0
    %1371 = vmatprep.subr.mxu0 0.0
    %1372 = vmatpush2.msra.mxu0 0.0
    %1373 = vmatprep.mubr.f32.mxu0 0.0
    %1374 = vmatmul.mubr.f32.gmra.mxu0 %v1304
    %v1375 = vpop.f32.mrf.mxu0
    %v1376 = vadd.f32 0.0, %v1375
    %v1377 = vpop.f32.mrf.mxu0
    %1378 = vmatprep.mubr.f32.mxu0 0.0
    %1379 = vmatmul.mubr.f32.gmra.mxu0 %v1307
    %v1380 = vpop.f32.mrf.mxu0
    %v1381 = vadd.f32 0.0, %v1380
    %v1382 = vpop.f32.mrf.mxu0
    %1383 = vdwg.mxu0
    %v1384 = vadd.f32 %v1101, %v1376
    %v1385 = vadd.f32 %v1102, %v1381
    %v1386 = vadd.f32 %v141, %v1384
    %v1387 = vadd.f32 %v142, %v1385
    %v1388 = vld [vmem:[%s19] sm:$0x1]
    %v1390 = vlaneseq
    %v1391 = vshrl.u32 %v1390, 7
    %v1392 = vsub.s32 0, %v1391
    %v1393 = vrot.slane %v1388, %v1392
    %v1395 = vadd.f32 %v1386, %v1393
    %v1396 = vadd.f32 %v1387, %v1393
    %s1397 = sld [smem:[#allocation2 + $0x1]]
    %v1398 = vmul.f32 %v1395, %v1395
    %v1399 = vmul.f32 %v1396, %v1396
    %v1400 = vsel %vm146, %v1398, 0.0
    %1401 = vadd.xlane.f32.xlu0 %v1400
    %v1402 = vpop.xlane.xlu0 %1401
    %v1403 = vsel %vm146, %v1399, 0.0
    %1404 = vadd.xlane.f32.xlu0 %v1403
    %v1405 = vpop.xlane.xlu0 %1404
    %v1406 = vmax.f32 %v1402, 1e-10
    %v1407 = vmax.f32 %v1405, 1e-10
    %v1408 = vrsqrt.pop %v1406
    %v1409 = vrsqrt.pop %v1407
    %v1410 = vstv %s1397
    %v1411 = vmul.f32 %v1410, %v1408
    %v1412 = vmul.f32 %v1410, %v1409
    %v1413 = vmul.f32 %v1395, %v1411
    %v1414 = vmul.f32 %v1396, %v1412
    %v1415 = vld [vmem:[%s21] sm:$0xff]
    %v1416 = vld [vmem:[%s21 + $0x8] sm:$0xff]
    %v1417 = vld [vmem:[%s21 + $0x10] sm:$0xff]
    %v1418 = vld [vmem:[%s21 + $0x18] sm:$0xff]
    %v1419 = vld [vmem:[%s23] sm:$0x1]
    %v1421 = vlaneseq
    %v1422 = vshrl.u32 %v1421, 7
    %v1423 = vsub.s32 0, %v1422
    %v1424 = vrot.slane %v1419, %v1423
    %v1427 = vsel %vm146, %v1413, 0
    %v1430 = vsel %vm146, %v1414, 0
    %1432 = vmatprep.subr.mxu0 0.0
    %1433 = vmatpush1.msra.mxu0 0.0
    %1434 = vmatprep.subr.mxu0 0.0
    %1435 = vmatpush1.msra.mxu0 0.0
    %1436 = vmatprep.subr.mxu0 0.0
    %1437 = vmatpush1.msra.mxu0 0.0
    %1438 = vmatprep.subr.mxu0 0.0
    %1439 = vmatpush1.msra.mxu0 0.0
    %1440 = vmatprep.subr.mxu0 0.0
    %1441 = vmatpush1.msra.mxu0 0.0
    %1442 = vmatprep.subr.mxu0 0.0
    %1443 = vmatpush1.msra.mxu0 0.0
    %1444 = vmatprep.subr.mxu0 0.0
    %1445 = vmatpush1.msra.mxu0 0.0
    %1446 = vmatprep.subr.mxu0 0.0
    %1447 = vmatpush1.msra.mxu0 0.0
    %1448 = vmatprep.subr.mxu0 0.0
    %1449 = vmatpush1.msra.mxu0 0.0
    %1450 = vmatprep.subr.mxu0 0.0
    %1451 = vmatpush1.msra.mxu0 0.0
    %1452 = vmatprep.subr.mxu0 0.0
    %1453 = vmatpush1.msra.mxu0 0.0
    %1454 = vmatprep.subr.mxu0 0.0
    %1455 = vmatpush1.msra.mxu0 0.0
    %1456 = vmatprep.subr.mxu0 0.0
    %1457 = vmatpush1.msra.mxu0 %v1418
    %1458 = vmatprep.subr.mxu0 0.0
    %1459 = vmatpush1.msra.mxu0 %v1417
    %1460 = vmatprep.subr.mxu0 0.0
    %1461 = vmatpush1.msra.mxu0 %v1416
    %1462 = vmatprep.subr.mxu0 0.0
    %1463 = vmatpush1.msra.mxu0 %v1415
    %1464 = vmatprep.subr.mxu0 0.0
    %1465 = vmatpush2.msra.mxu0 0.0
    %1466 = vmatprep.subr.mxu0 0.0
    %1467 = vmatpush2.msra.mxu0 0.0
    %1468 = vmatprep.subr.mxu0 0.0
    %1469 = vmatpush2.msra.mxu0 0.0
    %1470 = vmatprep.subr.mxu0 0.0
    %1471 = vmatpush2.msra.mxu0 0.0
    %1472 = vmatprep.subr.mxu0 0.0
    %1473 = vmatpush2.msra.mxu0 0.0
    %1474 = vmatprep.subr.mxu0 0.0
    %1475 = vmatpush2.msra.mxu0 0.0
    %1476 = vmatprep.subr.mxu0 0.0
    %1477 = vmatpush2.msra.mxu0 0.0
    %1478 = vmatprep.subr.mxu0 0.0
    %1479 = vmatpush2.msra.mxu0 0.0
    %1480 = vmatprep.subr.mxu0 0.0
    %1481 = vmatpush2.msra.mxu0 0.0
    %1482 = vmatprep.subr.mxu0 0.0
    %1483 = vmatpush2.msra.mxu0 0.0
    %1484 = vmatprep.subr.mxu0 0.0
    %1485 = vmatpush2.msra.mxu0 0.0
    %1486 = vmatprep.subr.mxu0 0.0
    %1487 = vmatpush2.msra.mxu0 0.0
    %1488 = vmatprep.subr.mxu0 0.0
    %1489 = vmatpush2.msra.mxu0 0.0
    %1490 = vmatprep.subr.mxu0 0.0
    %1491 = vmatpush2.msra.mxu0 0.0
    %1492 = vmatprep.subr.mxu0 0.0
    %1493 = vmatpush2.msra.mxu0 0.0
    %1494 = vmatprep.subr.mxu0 0.0
    %1495 = vmatpush2.msra.mxu0 0.0
    %1496 = vmatprep.mubr.f32.mxu0 0.0
    %1497 = vmatmul.mubr.f32.gmra.mxu0 %v1427
    %v1498 = vpop.f32.mrf.mxu0
    %v1499 = vadd.f32 %v1424, %v1498
    %v1500 = vpop.f32.mrf.mxu0
    %1501 = vmatprep.mubr.f32.mxu0 0.0
    %1502 = vmatmul.mubr.f32.gmra.mxu0 %v1430
    %v1503 = vpop.f32.mrf.mxu0
    %v1504 = vadd.f32 %v1424, %v1503
    %v1505 = vpop.f32.mrf.mxu0
    %1506 = vdwg.mxu0
    %v1507 = vmax.f32 %v1499, 0.0
    %v1508 = vmax.f32 %v1504, 0.0
    %v1509 = vld [vmem:[%s25] sm:$0xff]
    %v1510 = vld [vmem:[%s25 + $0x8] sm:$0xff]
    %v1511 = vld [vmem:[%s25 + $0x10] sm:$0xff]
    %v1512 = vld [vmem:[%s25 + $0x18] sm:$0xff]
    %v1513 = vld [vmem:[%s25 + $0x20] sm:$0xff]
    %v1514 = vld [vmem:[%s25 + $0x28] sm:$0xff]
    %v1515 = vld [vmem:[%s25 + $0x30] sm:$0xff]
    %v1516 = vld [vmem:[%s25 + $0x38] sm:$0xff]
    %vm1517 = vcmask 523264
    %v1519 = vsel %vm1517, %v1507, 0
    %v1522 = vsel %vm1517, %v1508, 0
    %1524 = vmatprep.subr.mxu0 0.0
    %1525 = vmatpush1.msra.mxu0 0.0
    %1526 = vmatprep.subr.mxu0 0.0
    %1527 = vmatpush1.msra.mxu0 0.0
    %1528 = vmatprep.subr.mxu0 0.0
    %1529 = vmatpush1.msra.mxu0 0.0
    %1530 = vmatprep.subr.mxu0 0.0
    %1531 = vmatpush1.msra.mxu0 0.0
    %1532 = vmatprep.subr.mxu0 0.0
    %1533 = vmatpush1.msra.mxu0 0.0
    %1534 = vmatprep.subr.mxu0 0.0
    %1535 = vmatpush1.msra.mxu0 0.0
    %1536 = vmatprep.subr.mxu0 0.0
    %1537 = vmatpush1.msra.mxu0 0.0
    %1538 = vmatprep.subr.mxu0 0.0
    %1539 = vmatpush1.msra.mxu0 0.0
    %1540 = vmatprep.subr.mxu0 0.0
    %1541 = vmatpush1.msra.mxu0 %v1516
    %1542 = vmatprep.subr.mxu0 0.0
    %1543 = vmatpush1.msra.mxu0 %v1515
    %1544 = vmatprep.subr.mxu0 0.0
    %1545 = vmatpush1.msra.mxu0 %v1514
    %1546 = vmatprep.subr.mxu0 0.0
    %1547 = vmatpush1.msra.mxu0 %v1513
    %1548 = vmatprep.subr.mxu0 0.0
    %1549 = vmatpush1.msra.mxu0 %v1512
    %1550 = vmatprep.subr.mxu0 0.0
    %1551 = vmatpush1.msra.mxu0 %v1511
    %1552 = vmatprep.subr.mxu0 0.0
    %1553 = vmatpush1.msra.mxu0 %v1510
    %1554 = vmatprep.subr.mxu0 0.0
    %1555 = vmatpush1.msra.mxu0 %v1509
    %1556 = vmatprep.subr.mxu0 0.0
    %1557 = vmatpush2.msra.mxu0 0.0
    %1558 = vmatprep.subr.mxu0 0.0
    %1559 = vmatpush2.msra.mxu0 0.0
    %1560 = vmatprep.subr.mxu0 0.0
    %1561 = vmatpush2.msra.mxu0 0.0
    %1562 = vmatprep.subr.mxu0 0.0
    %1563 = vmatpush2.msra.mxu0 0.0
    %1564 = vmatprep.subr.mxu0 0.0
    %1565 = vmatpush2.msra.mxu0 0.0
    %1566 = vmatprep.subr.mxu0 0.0
    %1567 = vmatpush2.msra.mxu0 0.0
    %1568 = vmatprep.subr.mxu0 0.0
    %1569 = vmatpush2.msra.mxu0 0.0
    %1570 = vmatprep.subr.mxu0 0.0
    %1571 = vmatpush2.msra.mxu0 0.0
    %1572 = vmatprep.subr.mxu0 0.0
    %1573 = vmatpush2.msra.mxu0 0.0
    %1574 = vmatprep.subr.mxu0 0.0
    %1575 = vmatpush2.msra.mxu0 0.0
    %1576 = vmatprep.subr.mxu0 0.0
    %1577 = vmatpush2.msra.mxu0 0.0
    %1578 = vmatprep.subr.mxu0 0.0
    %1579 = vmatpush2.msra.mxu0 0.0
    %1580 = vmatprep.subr.mxu0 0.0
    %1581 = vmatpush2.msra.mxu0 0.0
    %1582 = vmatprep.subr.mxu0 0.0
    %1583 = vmatpush2.msra.mxu0 0.0
    %1584 = vmatprep.subr.mxu0 0.0
    %1585 = vmatpush2.msra.mxu0 0.0
    %1586 = vmatprep.subr.mxu0 0.0
    %1587 = vmatpush2.msra.mxu0 0.0
    %1588 = vmatprep.mubr.f32.mxu0 0.0
    %1589 = vmatmul.mubr.f32.gmra.mxu0 %v1519
    %v1590 = vpop.f32.mrf.mxu0
    %v1591 = vadd.f32 0.0, %v1590
    %v1592 = vpop.f32.mrf.mxu0
    %1593 = vmatprep.mubr.f32.mxu0 0.0
    %1594 = vmatmul.mubr.f32.gmra.mxu0 %v1522
    %v1595 = vpop.f32.mrf.mxu0
    %v1596 = vadd.f32 0.0, %v1595
    %v1597 = vpop.f32.mrf.mxu0
    %1598 = vdwg.mxu0
    %v1599 = vadd.f32 %v1395, %v1591
    %v1600 = vadd.f32 %v1396, %v1596
    %v1601 = vld [vmem:[%s27] sm:$0x1]
    %v1603 = vlaneseq
    %v1604 = vshrl.u32 %v1603, 7
    %v1605 = vsub.s32 0, %v1604
    %v1606 = vrot.slane %v1601, %v1605
    %v1608 = vadd.f32 %v1599, %v1606
    %v1609 = vadd.f32 %v1600, %v1606
    %s1610 = sld [smem:[#allocation2 + $0x2]]
    %v1611 = vmul.f32 %v1608, %v1608
    %v1612 = vmul.f32 %v1609, %v1609
    %v1613 = vsel %vm146, %v1611, 0.0
    %1614 = vadd.xlane.f32.xlu0 %v1613
    %v1615 = vpop.xlane.xlu0 %1614
    %v1616 = vsel %vm146, %v1612, 0.0
    %1617 = vadd.xlane.f32.xlu0 %v1616
    %v1618 = vpop.xlane.xlu0 %1617
    %v1619 = vmax.f32 %v1615, 1e-10
    %v1620 = vmax.f32 %v1618, 1e-10
    %v1621 = vrsqrt.pop %v1619
    %v1622 = vrsqrt.pop %v1620
    %v1623 = vstv %s1610
    %v1624 = vmul.f32 %v1623, %v1621
    %v1625 = vmul.f32 %v1623, %v1622
    %v1626 = vmul.f32 %v1608, %v1624
    %v1627 = vmul.f32 %v1609, %v1625
    %s1628 = scalar_lea.vmem %s13, 32
    %v1629 = vld [vmem:[%s1628] sm:$0xff]
    %v1630 = vld [vmem:[%s1628 + $0x8] sm:$0xff]
    %v1631 = vld [vmem:[%s1628 + $0x10] sm:$0xff]
    %v1632 = vld [vmem:[%s1628 + $0x18] sm:$0xff]
    %s1633 = scalar_lea.vmem %s15, 1
    %v1634 = vld [vmem:[%s1633] sm:$0x1]
    %v1636 = vlaneseq
    %v1637 = vshrl.u32 %v1636, 7
    %v1638 = vsub.s32 0, %v1637
    %v1639 = vrot.slane %v1634, %v1638
    %v1642 = vsel %vm146, %v1626, 0
    %v1645 = vsel %vm146, %v1627, 0
    %1647 = vmatprep.subr.mxu0 0.0
    %1648 = vmatpush1.msra.mxu0 0.0
    %1649 = vmatprep.subr.mxu0 0.0
    %1650 = vmatpush1.msra.mxu0 0.0
    %1651 = vmatprep.subr.mxu0 0.0
    %1652 = vmatpush1.msra.mxu0 0.0
    %1653 = vmatprep.subr.mxu0 0.0
    %1654 = vmatpush1.msra.mxu0 0.0
    %1655 = vmatprep.subr.mxu0 0.0
    %1656 = vmatpush1.msra.mxu0 0.0
    %1657 = vmatprep.subr.mxu0 0.0
    %1658 = vmatpush1.msra.mxu0 0.0
    %1659 = vmatprep.subr.mxu0 0.0
    %1660 = vmatpush1.msra.mxu0 0.0
    %1661 = vmatprep.subr.mxu0 0.0
    %1662 = vmatpush1.msra.mxu0 0.0
    %1663 = vmatprep.subr.mxu0 0.0
    %1664 = vmatpush1.msra.mxu0 0.0
    %1665 = vmatprep.subr.mxu0 0.0
    %1666 = vmatpush1.msra.mxu0 0.0
    %1667 = vmatprep.subr.mxu0 0.0
    %1668 = vmatpush1.msra.mxu0 0.0
    %1669 = vmatprep.subr.mxu0 0.0
    %1670 = vmatpush1.msra.mxu0 0.0
    %1671 = vmatprep.subr.mxu0 0.0
    %1672 = vmatpush1.msra.mxu0 %v1632
    %1673 = vmatprep.subr.mxu0 0.0
    %1674 = vmatpush1.msra.mxu0 %v1631
    %1675 = vmatprep.subr.mxu0 0.0
    %1676 = vmatpush1.msra.mxu0 %v1630
    %1677 = vmatprep.subr.mxu0 0.0
    %1678 = vmatpush1.msra.mxu0 %v1629
    %1679 = vmatprep.subr.mxu0 0.0
    %1680 = vmatpush2.msra.mxu0 0.0
    %1681 = vmatprep.subr.mxu0 0.0
    %1682 = vmatpush2.msra.mxu0 0.0
    %1683 = vmatprep.subr.mxu0 0.0
    %1684 = vmatpush2.msra.mxu0 0.0
    %1685 = vmatprep.subr.mxu0 0.0
    %1686 = vmatpush2.msra.mxu0 0.0
    %1687 = vmatprep.subr.mxu0 0.0
    %1688 = vmatpush2.msra.mxu0 0.0
    %1689 = vmatprep.subr.mxu0 0.0
    %1690 = vmatpush2.msra.mxu0 0.0
    %1691 = vmatprep.subr.mxu0 0.0
    %1692 = vmatpush2.msra.mxu0 0.0
    %1693 = vmatprep.subr.mxu0 0.0
    %1694 = vmatpush2.msra.mxu0 0.0
    %1695 = vmatprep.subr.mxu0 0.0
    %1696 = vmatpush2.msra.mxu0 0.0
    %1697 = vmatprep.subr.mxu0 0.0
    %1698 = vmatpush2.msra.mxu0 0.0
    %1699 = vmatprep.subr.mxu0 0.0
    %1700 = vmatpush2.msra.mxu0 0.0
    %1701 = vmatprep.subr.mxu0 0.0
    %1702 = vmatpush2.msra.mxu0 0.0
    %1703 = vmatprep.subr.mxu0 0.0
    %1704 = vmatpush2.msra.mxu0 0.0
    %1705 = vmatprep.subr.mxu0 0.0
    %1706 = vmatpush2.msra.mxu0 0.0
    %1707 = vmatprep.subr.mxu0 0.0
    %1708 = vmatpush2.msra.mxu0 0.0
    %1709 = vmatprep.subr.mxu0 0.0
    %1710 = vmatpush2.msra.mxu0 0.0
    %1711 = vmatprep.mubr.f32.mxu0 0.0
    %1712 = vmatmul.mubr.f32.gmra.mxu0 %v1642
    %v1713 = vpop.f32.mrf.mxu0
    %v1714 = vadd.f32 %v1639, %v1713
    %v1715 = vpop.f32.mrf.mxu0
    %1716 = vmatprep.mubr.f32.mxu0 0.0
    %1717 = vmatmul.mubr.f32.gmra.mxu0 %v1645
    %v1718 = vpop.f32.mrf.mxu0
    %v1719 = vadd.f32 %v1639, %v1718
    %v1720 = vpop.f32.mrf.mxu0
    %1721 = vdwg.mxu0
    %s1722 = scalar_lea.vmem %s17, 32
    %v1723 = vld [vmem:[%s1722] sm:$0xff]
    %v1724 = vld [vmem:[%s1722 + $0x8] sm:$0xff]
    %v1725 = vld [vmem:[%s1722 + $0x10] sm:$0xff]
    %v1726 = vld [vmem:[%s1722 + $0x18] sm:$0xff]
    %1729 = vrot.lane.b32.xlu0 %v1714, 96
    %v1730 = vpop.permute.xlu0 %1729
    %1731 = vrot.lane.b32.xlu0 %v1719, 96
    %v1732 = vpop.permute.xlu0 %1731
    %v1733 = vsel %vm264, %v1714, 0
    %v1735 = vsel %vm264, %v1719, 0
    %v1737 = vsel %vm264, %v1730, 0
    %v1739 = vsel %vm264, %v1732, 0
    %1741 = vmatprep.subr.mxu0 0.0
    %1742 = vmatpush1.xpose.msra.mxu0 0.0
    %1743 = vmatprep.subr.mxu0 0.0
    %1744 = vmatpush1.xpose.msra.mxu0 0.0
    %1745 = vmatprep.subr.mxu0 0.0
    %1746 = vmatpush1.xpose.msra.mxu0 0.0
    %1747 = vmatprep.subr.mxu0 0.0
    %1748 = vmatpush1.xpose.msra.mxu0 0.0
    %1749 = vmatprep.subr.mxu0 0.0
    %1750 = vmatpush1.xpose.msra.mxu0 0.0
    %1751 = vmatprep.subr.mxu0 0.0
    %1752 = vmatpush1.xpose.msra.mxu0 0.0
    %1753 = vmatprep.subr.mxu0 0.0
    %1754 = vmatpush1.xpose.msra.mxu0 0.0
    %1755 = vmatprep.subr.mxu0 0.0
    %1756 = vmatpush1.xpose.msra.mxu0 0.0
    %1757 = vmatprep.subr.mxu0 0.0
    %1758 = vmatpush1.xpose.msra.mxu0 0.0
    %1759 = vmatprep.subr.mxu0 0.0
    %1760 = vmatpush1.xpose.msra.mxu0 0.0
    %1761 = vmatprep.subr.mxu0 0.0
    %1762 = vmatpush1.xpose.msra.mxu0 0.0
    %1763 = vmatprep.subr.mxu0 0.0
    %1764 = vmatpush1.xpose.msra.mxu0 0.0
    %1765 = vmatprep.subr.mxu0 0.0
    %1766 = vmatpush1.xpose.msra.mxu0 0.0
    %1767 = vmatprep.subr.mxu0 0.0
    %1768 = vmatpush1.xpose.msra.mxu0 0.0
    %1769 = vmatprep.subr.mxu0 0.0
    %1770 = vmatpush1.xpose.msra.mxu0 %v1739
    %1771 = vmatprep.subr.mxu0 0.0
    %1772 = vmatpush1.xpose.msra.mxu0 %v1737
    %1773 = vmatprep.subr.mxu0 0.0
    %1774 = vmatpush2.xpose.msra.mxu0 0.0
    %1775 = vmatprep.subr.mxu0 0.0
    %1776 = vmatpush2.xpose.msra.mxu0 0.0
    %1777 = vmatprep.subr.mxu0 0.0
    %1778 = vmatpush2.xpose.msra.mxu0 0.0
    %1779 = vmatprep.subr.mxu0 0.0
    %1780 = vmatpush2.xpose.msra.mxu0 0.0
    %1781 = vmatprep.subr.mxu0 0.0
    %1782 = vmatpush2.xpose.msra.mxu0 0.0
    %1783 = vmatprep.subr.mxu0 0.0
    %1784 = vmatpush2.xpose.msra.mxu0 0.0
    %1785 = vmatprep.subr.mxu0 0.0
    %1786 = vmatpush2.xpose.msra.mxu0 0.0
    %1787 = vmatprep.subr.mxu0 0.0
    %1788 = vmatpush2.xpose.msra.mxu0 0.0
    %1789 = vmatprep.subr.mxu0 0.0
    %1790 = vmatpush2.xpose.msra.mxu0 0.0
    %1791 = vmatprep.subr.mxu0 0.0
    %1792 = vmatpush2.xpose.msra.mxu0 0.0
    %1793 = vmatprep.subr.mxu0 0.0
    %1794 = vmatpush2.xpose.msra.mxu0 0.0
    %1795 = vmatprep.subr.mxu0 0.0
    %1796 = vmatpush2.xpose.msra.mxu0 0.0
    %1797 = vmatprep.subr.mxu0 0.0
    %1798 = vmatpush2.xpose.msra.mxu0 0.0
    %1799 = vmatprep.subr.mxu0 0.0
    %1800 = vmatpush2.xpose.msra.mxu0 0.0
    %1801 = vmatprep.subr.mxu0 0.0
    %1802 = vmatpush2.xpose.msra.mxu0 0.0
    %1803 = vmatprep.subr.mxu0 0.0
    %1804 = vmatpush2.xpose.msra.mxu0 0.0
    %1805 = vmatprep.mubr.f32.mxu0 0.0
    %1806 = vmatmul.mubr.f32.gmra.mxu0 %v1733
    %v1807 = vpop.f32.mrf.mxu0
    %v1808 = vadd.f32 %v135, %v1807
    %v1809 = vpop.f32.mrf.mxu0
    %1810 = vmatprep.mubr.f32.mxu0 0.0
    %1811 = vmatmul.mubr.f32.gmra.mxu0 %v1735
    %v1812 = vpop.f32.mrf.mxu0
    %v1813 = vadd.f32 %v136, %v1812
    %v1814 = vpop.f32.mrf.mxu0
    %1815 = vdwg.mxu0
    %v1816 = vsel %vm348, %v1808, -inf
    %1817 = vmax.xlane.f32.xlu0 %v1816
    %v1818 = vpop.xlane.xlu0 %1817
    %v1819 = vsel %vm348, %v1813, -inf
    %1820 = vmax.xlane.f32.xlu0 %v1819
    %v1821 = vpop.xlane.xlu0 %1820
    %v1822 = vsub.f32 %v1808, %v1818
    %v1823 = vsub.f32 %v1813, %v1821
    %v1824 = vmul.f32 %v1822, 1.442695
    %v1825 = vpow.pop %v1824
    %v1826 = vmul.f32 %v1823, 1.442695
    %v1827 = vpow.pop %v1826
    %v1828 = vsel %vm348, %v1825, 0.0
    %1829 = vadd.xlane.f32.xlu0 %v1828
    %v1830 = vpop.xlane.xlu0 %1829
    %v1831 = vsel %vm348, %v1827, 0.0
    %1832 = vadd.xlane.f32.xlu0 %v1831
    %v1833 = vpop.xlane.xlu0 %1832
    %v1834 = vrcp.pop %v1830
    %v1835 = vrcp.pop %v1833
    %v1836 = vmul.f32 %v1825, %v1834
    %v1837 = vmul.f32 %v1827, %v1835
    %1838 = vrot.lane.b32.xlu0 %v1714, 64
    %v1839 = vpop.permute.xlu0 %1838
    %1840 = vrot.lane.b32.xlu0 %v1719, 64
    %v1841 = vpop.permute.xlu0 %1840
    %v1845 = vsel %vm348, %v1836, 0
    %v1848 = vsel %vm348, %v1837, 0
    %1850 = vmatprep.subr.mxu0 0.0
    %1851 = vmatpush1.msra.mxu0 0.0
    %1852 = vmatprep.subr.mxu0 0.0
    %1853 = vmatpush1.msra.mxu0 0.0
    %1854 = vmatprep.subr.mxu0 0.0
    %1855 = vmatpush1.msra.mxu0 0.0
    %1856 = vmatprep.subr.mxu0 0.0
    %1857 = vmatpush1.msra.mxu0 0.0
    %1858 = vmatprep.subr.mxu0 0.0
    %1859 = vmatpush1.msra.mxu0 0.0
    %1860 = vmatprep.subr.mxu0 0.0
    %1861 = vmatpush1.msra.mxu0 0.0
    %1862 = vmatprep.subr.mxu0 0.0
    %1863 = vmatpush1.msra.mxu0 0.0
    %1864 = vmatprep.subr.mxu0 0.0
    %1865 = vmatpush1.msra.mxu0 0.0
    %1866 = vmatprep.subr.mxu0 0.0
    %1867 = vmatpush1.msra.mxu0 0.0
    %1868 = vmatprep.subr.mxu0 0.0
    %1869 = vmatpush1.msra.mxu0 0.0
    %1870 = vmatprep.subr.mxu0 0.0
    %1871 = vmatpush1.msra.mxu0 0.0
    %1872 = vmatprep.subr.mxu0 0.0
    %1873 = vmatpush1.msra.mxu0 0.0
    %1874 = vmatprep.subr.mxu0 0.0
    %1875 = vmatpush1.msra.mxu0 0.0
    %1876 = vmatprep.subr.mxu0 0.0
    %1877 = vmatpush1.msra.mxu0 0.0
    %1878 = vmatprep.subr.mxu0 0.0
    %1879 = vmatpush1.msra.mxu0 %v1841
    %1880 = vmatprep.subr.mxu0 0.0
    %1881 = vmatpush1.msra.mxu0 %v1839
    %1882 = vmatprep.subr.mxu0 0.0
    %1883 = vmatpush2.msra.mxu0 0.0
    %1884 = vmatprep.subr.mxu0 0.0
    %1885 = vmatpush2.msra.mxu0 0.0
    %1886 = vmatprep.subr.mxu0 0.0
    %1887 = vmatpush2.msra.mxu0 0.0
    %1888 = vmatprep.subr.mxu0 0.0
    %1889 = vmatpush2.msra.mxu0 0.0
    %1890 = vmatprep.subr.mxu0 0.0
    %1891 = vmatpush2.msra.mxu0 0.0
    %1892 = vmatprep.subr.mxu0 0.0
    %1893 = vmatpush2.msra.mxu0 0.0
    %1894 = vmatprep.subr.mxu0 0.0
    %1895 = vmatpush2.msra.mxu0 0.0
    %1896 = vmatprep.subr.mxu0 0.0
    %1897 = vmatpush2.msra.mxu0 0.0
    %1898 = vmatprep.subr.mxu0 0.0
    %1899 = vmatpush2.msra.mxu0 0.0
    %1900 = vmatprep.subr.mxu0 0.0
    %1901 = vmatpush2.msra.mxu0 0.0
    %1902 = vmatprep.subr.mxu0 0.0
    %1903 = vmatpush2.msra.mxu0 0.0
    %1904 = vmatprep.subr.mxu0 0.0
    %1905 = vmatpush2.msra.mxu0 0.0
    %1906 = vmatprep.subr.mxu0 0.0
    %1907 = vmatpush2.msra.mxu0 0.0
    %1908 = vmatprep.subr.mxu0 0.0
    %1909 = vmatpush2.msra.mxu0 0.0
    %1910 = vmatprep.subr.mxu0 0.0
    %1911 = vmatpush2.msra.mxu0 0.0
    %1912 = vmatprep.subr.mxu0 0.0
    %1913 = vmatpush2.msra.mxu0 0.0
    %1914 = vmatprep.mubr.f32.mxu0 0.0
    %1915 = vmatmul.mubr.f32.gmra.mxu0 %v1845
    %v1916 = vpop.f32.mrf.mxu0
    %v1917 = vadd.f32 0.0, %v1916
    %v1918 = vpop.f32.mrf.mxu0
    %1919 = vmatprep.mubr.f32.mxu0 0.0
    %1920 = vmatmul.mubr.f32.gmra.mxu0 %v1848
    %v1921 = vpop.f32.mrf.mxu0
    %v1922 = vadd.f32 0.0, %v1921
    %v1923 = vpop.f32.mrf.mxu0
    %1924 = vdwg.mxu0
    %1925 = vrot.lane.b32.xlu0 %v1714, 120
    %v1926 = vpop.permute.xlu0 %1925
    %1927 = vrot.lane.b32.xlu0 %v1719, 120
    %v1928 = vpop.permute.xlu0 %1927
    %1929 = vrot.lane.b32.xlu0 %v1714, 88
    %v1930 = vpop.permute.xlu0 %1929
    %1931 = vrot.lane.b32.xlu0 %v1719, 88
    %v1932 = vpop.permute.xlu0 %1931
    %v1933 = vsel %vm264, %v1926, 0
    %v1935 = vsel %vm264, %v1928, 0
    %v1937 = vsel %vm264, %v1930, 0
    %v1939 = vsel %vm264, %v1932, 0
    %1941 = vmatprep.subr.mxu0 0.0
    %1942 = vmatpush1.xpose.msra.mxu0 0.0
    %1943 = vmatprep.subr.mxu0 0.0
    %1944 = vmatpush1.xpose.msra.mxu0 0.0
    %1945 = vmatprep.subr.mxu0 0.0
    %1946 = vmatpush1.xpose.msra.mxu0 0.0
    %1947 = vmatprep.subr.mxu0 0.0
    %1948 = vmatpush1.xpose.msra.mxu0 0.0
    %1949 = vmatprep.subr.mxu0 0.0
    %1950 = vmatpush1.xpose.msra.mxu0 0.0
    %1951 = vmatprep.subr.mxu0 0.0
    %1952 = vmatpush1.xpose.msra.mxu0 0.0
    %1953 = vmatprep.subr.mxu0 0.0
    %1954 = vmatpush1.xpose.msra.mxu0 0.0
    %1955 = vmatprep.subr.mxu0 0.0
    %1956 = vmatpush1.xpose.msra.mxu0 0.0
    %1957 = vmatprep.subr.mxu0 0.0
    %1958 = vmatpush1.xpose.msra.mxu0 0.0
    %1959 = vmatprep.subr.mxu0 0.0
    %1960 = vmatpush1.xpose.msra.mxu0 0.0
    %1961 = vmatprep.subr.mxu0 0.0
    %1962 = vmatpush1.xpose.msra.mxu0 0.0
    %1963 = vmatprep.subr.mxu0 0.0
    %1964 = vmatpush1.xpose.msra.mxu0 0.0
    %1965 = vmatprep.subr.mxu0 0.0
    %1966 = vmatpush1.xpose.msra.mxu0 0.0
    %1967 = vmatprep.subr.mxu0 0.0
    %1968 = vmatpush1.xpose.msra.mxu0 0.0
    %1969 = vmatprep.subr.mxu0 0.0
    %1970 = vmatpush1.xpose.msra.mxu0 %v1939
    %1971 = vmatprep.subr.mxu0 0.0
    %1972 = vmatpush1.xpose.msra.mxu0 %v1937
    %1973 = vmatprep.subr.mxu0 0.0
    %1974 = vmatpush2.xpose.msra.mxu0 0.0
    %1975 = vmatprep.subr.mxu0 0.0
    %1976 = vmatpush2.xpose.msra.mxu0 0.0
    %1977 = vmatprep.subr.mxu0 0.0
    %1978 = vmatpush2.xpose.msra.mxu0 0.0
    %1979 = vmatprep.subr.mxu0 0.0
    %1980 = vmatpush2.xpose.msra.mxu0 0.0
    %1981 = vmatprep.subr.mxu0 0.0
    %1982 = vmatpush2.xpose.msra.mxu0 0.0
    %1983 = vmatprep.subr.mxu0 0.0
    %1984 = vmatpush2.xpose.msra.mxu0 0.0
    %1985 = vmatprep.subr.mxu0 0.0
    %1986 = vmatpush2.xpose.msra.mxu0 0.0
    %1987 = vmatprep.subr.mxu0 0.0
    %1988 = vmatpush2.xpose.msra.mxu0 0.0
    %1989 = vmatprep.subr.mxu0 0.0
    %1990 = vmatpush2.xpose.msra.mxu0 0.0
    %1991 = vmatprep.subr.mxu0 0.0
    %1992 = vmatpush2.xpose.msra.mxu0 0.0
    %1993 = vmatprep.subr.mxu0 0.0
    %1994 = vmatpush2.xpose.msra.mxu0 0.0
    %1995 = vmatprep.subr.mxu0 0.0
    %1996 = vmatpush2.xpose.msra.mxu0 0.0
    %1997 = vmatprep.subr.mxu0 0.0
    %1998 = vmatpush2.xpose.msra.mxu0 0.0
    %1999 = vmatprep.subr.mxu0 0.0
    %2000 = vmatpush2.xpose.msra.mxu0 0.0
    %2001 = vmatprep.subr.mxu0 0.0
    %2002 = vmatpush2.xpose.msra.mxu0 0.0
    %2003 = vmatprep.subr.mxu0 0.0
    %2004 = vmatpush2.xpose.msra.mxu0 0.0
    %2005 = vmatprep.mubr.f32.mxu0 0.0
    %2006 = vmatmul.mubr.f32.gmra.mxu0 %v1933
    %v2007 = vpop.f32.mrf.mxu0
    %v2008 = vadd.f32 %v135, %v2007
    %v2009 = vpop.f32.mrf.mxu0
    %2010 = vmatprep.mubr.f32.mxu0 0.0
    %2011 = vmatmul.mubr.f32.gmra.mxu0 %v1935
    %v2012 = vpop.f32.mrf.mxu0
    %v2013 = vadd.f32 %v136, %v2012
    %v2014 = vpop.f32.mrf.mxu0
    %2015 = vdwg.mxu0
    %v2016 = vsel %vm348, %v2008, -inf
    %2017 = vmax.xlane.f32.xlu0 %v2016
    %v2018 = vpop.xlane.xlu0 %2017
    %v2019 = vsel %vm348, %v2013, -inf
    %2020 = vmax.xlane.f32.xlu0 %v2019
    %v2021 = vpop.xlane.xlu0 %2020
    %v2022 = vsub.f32 %v2008, %v2018
    %v2023 = vsub.f32 %v2013, %v2021
    %v2024 = vmul.f32 %v2022, 1.442695
    %v2025 = vpow.pop %v2024
    %v2026 = vmul.f32 %v2023, 1.442695
    %v2027 = vpow.pop %v2026
    %v2028 = vsel %vm348, %v2025, 0.0
    %2029 = vadd.xlane.f32.xlu0 %v2028
    %v2030 = vpop.xlane.xlu0 %2029
    %v2031 = vsel %vm348, %v2027, 0.0
    %2032 = vadd.xlane.f32.xlu0 %v2031
    %v2033 = vpop.xlane.xlu0 %2032
    %v2034 = vrcp.pop %v2030
    %v2035 = vrcp.pop %v2033
    %v2036 = vmul.f32 %v2025, %v2034
    %v2037 = vmul.f32 %v2027, %v2035
    %2038 = vrot.lane.b32.xlu0 %v1714, 56
    %v2039 = vpop.permute.xlu0 %2038
    %2040 = vrot.lane.b32.xlu0 %v1719, 56
    %v2041 = vpop.permute.xlu0 %2040
    %v2045 = vsel %vm348, %v2036, 0
    %v2048 = vsel %vm348, %v2037, 0
    %2050 = vmatprep.subr.mxu0 0.0
    %2051 = vmatpush1.msra.mxu0 0.0
    %2052 = vmatprep.subr.mxu0 0.0
    %2053 = vmatpush1.msra.mxu0 0.0
    %2054 = vmatprep.subr.mxu0 0.0
    %2055 = vmatpush1.msra.mxu0 0.0
    %2056 = vmatprep.subr.mxu0 0.0
    %2057 = vmatpush1.msra.mxu0 0.0
    %2058 = vmatprep.subr.mxu0 0.0
    %2059 = vmatpush1.msra.mxu0 0.0
    %2060 = vmatprep.subr.mxu0 0.0
    %2061 = vmatpush1.msra.mxu0 0.0
    %2062 = vmatprep.subr.mxu0 0.0
    %2063 = vmatpush1.msra.mxu0 0.0
    %2064 = vmatprep.subr.mxu0 0.0
    %2065 = vmatpush1.msra.mxu0 0.0
    %2066 = vmatprep.subr.mxu0 0.0
    %2067 = vmatpush1.msra.mxu0 0.0
    %2068 = vmatprep.subr.mxu0 0.0
    %2069 = vmatpush1.msra.mxu0 0.0
    %2070 = vmatprep.subr.mxu0 0.0
    %2071 = vmatpush1.msra.mxu0 0.0
    %2072 = vmatprep.subr.mxu0 0.0
    %2073 = vmatpush1.msra.mxu0 0.0
    %2074 = vmatprep.subr.mxu0 0.0
    %2075 = vmatpush1.msra.mxu0 0.0
    %2076 = vmatprep.subr.mxu0 0.0
    %2077 = vmatpush1.msra.mxu0 0.0
    %2078 = vmatprep.subr.mxu0 0.0
    %2079 = vmatpush1.msra.mxu0 %v2041
    %2080 = vmatprep.subr.mxu0 0.0
    %2081 = vmatpush1.msra.mxu0 %v2039
    %2082 = vmatprep.subr.mxu0 0.0
    %2083 = vmatpush2.msra.mxu0 0.0
    %2084 = vmatprep.subr.mxu0 0.0
    %2085 = vmatpush2.msra.mxu0 0.0
    %2086 = vmatprep.subr.mxu0 0.0
    %2087 = vmatpush2.msra.mxu0 0.0
    %2088 = vmatprep.subr.mxu0 0.0
    %2089 = vmatpush2.msra.mxu0 0.0
    %2090 = vmatprep.subr.mxu0 0.0
    %2091 = vmatpush2.msra.mxu0 0.0
    %2092 = vmatprep.subr.mxu0 0.0
    %2093 = vmatpush2.msra.mxu0 0.0
    %2094 = vmatprep.subr.mxu0 0.0
    %2095 = vmatpush2.msra.mxu0 0.0
    %2096 = vmatprep.subr.mxu0 0.0
    %2097 = vmatpush2.msra.mxu0 0.0
    %2098 = vmatprep.subr.mxu0 0.0
    %2099 = vmatpush2.msra.mxu0 0.0
    %2100 = vmatprep.subr.mxu0 0.0
    %2101 = vmatpush2.msra.mxu0 0.0
    %2102 = vmatprep.subr.mxu0 0.0
    %2103 = vmatpush2.msra.mxu0 0.0
    %2104 = vmatprep.subr.mxu0 0.0
    %2105 = vmatpush2.msra.mxu0 0.0
    %2106 = vmatprep.subr.mxu0 0.0
    %2107 = vmatpush2.msra.mxu0 0.0
    %2108 = vmatprep.subr.mxu0 0.0
    %2109 = vmatpush2.msra.mxu0 0.0
    %2110 = vmatprep.subr.mxu0 0.0
    %2111 = vmatpush2.msra.mxu0 0.0
    %2112 = vmatprep.subr.mxu0 0.0
    %2113 = vmatpush2.msra.mxu0 0.0
    %2114 = vmatprep.mubr.f32.mxu0 0.0
    %2115 = vmatmul.mubr.f32.gmra.mxu0 %v2045
    %v2116 = vpop.f32.mrf.mxu0
    %v2117 = vadd.f32 0.0, %v2116
    %v2118 = vpop.f32.mrf.mxu0
    %2119 = vmatprep.mubr.f32.mxu0 0.0
    %2120 = vmatmul.mubr.f32.gmra.mxu0 %v2048
    %v2121 = vpop.f32.mrf.mxu0
    %v2122 = vadd.f32 0.0, %v2121
    %v2123 = vpop.f32.mrf.mxu0
    %2124 = vdwg.mxu0
    %v2126 = vsel %vm264, %v2117, 0
    %v2129 = vsel %vm264, %v2122, 0
    %2131 = vmatprep.subr.mxu0 0.0
    %2132 = vmatpush1.msra.mxu0 0.0
    %2133 = vmatprep.subr.mxu0 0.0
    %2134 = vmatpush1.msra.mxu0 0.0
    %2135 = vmatprep.subr.mxu0 0.0
    %2136 = vmatpush1.msra.mxu0 0.0
    %2137 = vmatprep.subr.mxu0 0.0
    %2138 = vmatpush1.msra.mxu0 0.0
    %2139 = vmatprep.subr.mxu0 0.0
    %2140 = vmatpush1.msra.mxu0 0.0
    %2141 = vmatprep.subr.mxu0 0.0
    %2142 = vmatpush1.msra.mxu0 0.0
    %2143 = vmatprep.subr.mxu0 0.0
    %2144 = vmatpush1.msra.mxu0 0.0
    %2145 = vmatprep.subr.mxu0 0.0
    %2146 = vmatpush1.msra.mxu0 0.0
    %2147 = vmatprep.subr.mxu0 0.0
    %2148 = vmatpush1.msra.mxu0 0.0
    %2149 = vmatprep.subr.mxu0 0.0
    %2150 = vmatpush1.msra.mxu0 0.0
    %2151 = vmatprep.subr.mxu0 0.0
    %2152 = vmatpush1.msra.mxu0 0.0
    %2153 = vmatprep.subr.mxu0 0.0
    %2154 = vmatpush1.msra.mxu0 0.0
    %2155 = vmatprep.subr.mxu0 0.0
    %2156 = vmatpush1.msra.mxu0 0.0
    %2157 = vmatprep.subr.mxu0 0.0
    %2158 = vmatpush1.msra.mxu0 0.0
    %2159 = vmatprep.subr.mxu0 0.0
    %2160 = vmatpush1.msra.mxu0 0.0
    %2161 = vmatprep.subr.mxu0 0.0
    %2162 = vmatpush1.msra.mxu0 %v1724
    %2163 = vmatprep.subr.mxu0 0.0
    %2164 = vmatpush2.msra.mxu0 0.0
    %2165 = vmatprep.subr.mxu0 0.0
    %2166 = vmatpush2.msra.mxu0 0.0
    %2167 = vmatprep.subr.mxu0 0.0
    %2168 = vmatpush2.msra.mxu0 0.0
    %2169 = vmatprep.subr.mxu0 0.0
    %2170 = vmatpush2.msra.mxu0 0.0
    %2171 = vmatprep.subr.mxu0 0.0
    %2172 = vmatpush2.msra.mxu0 0.0
    %2173 = vmatprep.subr.mxu0 0.0
    %2174 = vmatpush2.msra.mxu0 0.0
    %2175 = vmatprep.subr.mxu0 0.0
    %2176 = vmatpush2.msra.mxu0 0.0
    %2177 = vmatprep.subr.mxu0 0.0
    %2178 = vmatpush2.msra.mxu0 0.0
    %2179 = vmatprep.subr.mxu0 0.0
    %2180 = vmatpush2.msra.mxu0 0.0
    %2181 = vmatprep.subr.mxu0 0.0
    %2182 = vmatpush2.msra.mxu0 0.0
    %2183 = vmatprep.subr.mxu0 0.0
    %2184 = vmatpush2.msra.mxu0 0.0
    %2185 = vmatprep.subr.mxu0 0.0
    %2186 = vmatpush2.msra.mxu0 0.0
    %2187 = vmatprep.subr.mxu0 0.0
    %2188 = vmatpush2.msra.mxu0 0.0
    %2189 = vmatprep.subr.mxu0 0.0
    %2190 = vmatpush2.msra.mxu0 0.0
    %2191 = vmatprep.subr.mxu0 0.0
    %2192 = vmatpush2.msra.mxu0 0.0
    %2193 = vmatprep.subr.mxu0 0.0
    %2194 = vmatpush2.msra.mxu0 0.0
    %2195 = vmatprep.mubr.f32.mxu0 0.0
    %2196 = vmatmul.mubr.f32.gmra.mxu0 %v2126
    %v2197 = vpop.f32.mrf.mxu0
    %v2198 = vadd.f32 0.0, %v2197
    %v2199 = vpop.f32.mrf.mxu0
    %2200 = vmatprep.mubr.f32.mxu0 0.0
    %2201 = vmatmul.mubr.f32.gmra.mxu0 %v2129
    %v2202 = vpop.f32.mrf.mxu0
    %v2203 = vadd.f32 0.0, %v2202
    %v2204 = vpop.f32.mrf.mxu0
    %2205 = vdwg.mxu0
    %v2207 = vsel %vm264, %v1917, 0
    %v2210 = vsel %vm264, %v1922, 0
    %2212 = vmatprep.subr.mxu0 0.0
    %2213 = vmatpush1.msra.mxu0 0.0
    %2214 = vmatprep.subr.mxu0 0.0
    %2215 = vmatpush1.msra.mxu0 0.0
    %2216 = vmatprep.subr.mxu0 0.0
    %2217 = vmatpush1.msra.mxu0 0.0
    %2218 = vmatprep.subr.mxu0 0.0
    %2219 = vmatpush1.msra.mxu0 0.0
    %2220 = vmatprep.subr.mxu0 0.0
    %2221 = vmatpush1.msra.mxu0 0.0
    %2222 = vmatprep.subr.mxu0 0.0
    %2223 = vmatpush1.msra.mxu0 0.0
    %2224 = vmatprep.subr.mxu0 0.0
    %2225 = vmatpush1.msra.mxu0 0.0
    %2226 = vmatprep.subr.mxu0 0.0
    %2227 = vmatpush1.msra.mxu0 0.0
    %2228 = vmatprep.subr.mxu0 0.0
    %2229 = vmatpush1.msra.mxu0 0.0
    %2230 = vmatprep.subr.mxu0 0.0
    %2231 = vmatpush1.msra.mxu0 0.0
    %2232 = vmatprep.subr.mxu0 0.0
    %2233 = vmatpush1.msra.mxu0 0.0
    %2234 = vmatprep.subr.mxu0 0.0
    %2235 = vmatpush1.msra.mxu0 0.0
    %2236 = vmatprep.subr.mxu0 0.0
    %2237 = vmatpush1.msra.mxu0 0.0
    %2238 = vmatprep.subr.mxu0 0.0
    %2239 = vmatpush1.msra.mxu0 0.0
    %2240 = vmatprep.subr.mxu0 0.0
    %2241 = vmatpush1.msra.mxu0 0.0
    %2242 = vmatprep.subr.mxu0 0.0
    %2243 = vmatpush1.msra.mxu0 %v1723
    %2244 = vmatprep.subr.mxu0 0.0
    %2245 = vmatpush2.msra.mxu0 0.0
    %2246 = vmatprep.subr.mxu0 0.0
    %2247 = vmatpush2.msra.mxu0 0.0
    %2248 = vmatprep.subr.mxu0 0.0
    %2249 = vmatpush2.msra.mxu0 0.0
    %2250 = vmatprep.subr.mxu0 0.0
    %2251 = vmatpush2.msra.mxu0 0.0
    %2252 = vmatprep.subr.mxu0 0.0
    %2253 = vmatpush2.msra.mxu0 0.0
    %2254 = vmatprep.subr.mxu0 0.0
    %2255 = vmatpush2.msra.mxu0 0.0
    %2256 = vmatprep.subr.mxu0 0.0
    %2257 = vmatpush2.msra.mxu0 0.0
    %2258 = vmatprep.subr.mxu0 0.0
    %2259 = vmatpush2.msra.mxu0 0.0
    %2260 = vmatprep.subr.mxu0 0.0
    %2261 = vmatpush2.msra.mxu0 0.0
    %2262 = vmatprep.subr.mxu0 0.0
    %2263 = vmatpush2.msra.mxu0 0.0
    %2264 = vmatprep.subr.mxu0 0.0
    %2265 = vmatpush2.msra.mxu0 0.0
    %2266 = vmatprep.subr.mxu0 0.0
    %2267 = vmatpush2.msra.mxu0 0.0
    %2268 = vmatprep.subr.mxu0 0.0
    %2269 = vmatpush2.msra.mxu0 0.0
    %2270 = vmatprep.subr.mxu0 0.0
    %2271 = vmatpush2.msra.mxu0 0.0
    %2272 = vmatprep.subr.mxu0 0.0
    %2273 = vmatpush2.msra.mxu0 0.0
    %2274 = vmatprep.subr.mxu0 0.0
    %2275 = vmatpush2.msra.mxu0 0.0
    %2276 = vmatprep.mubr.f32.mxu0 0.0
    %2277 = vmatmul.mubr.f32.gmra.mxu0 %v2207
    %v2278 = vpop.f32.mrf.mxu0
    %v2279 = vadd.f32 %v2198, %v2278
    %v2280 = vpop.f32.mrf.mxu0
    %2281 = vmatprep.mubr.f32.mxu0 0.0
    %2282 = vmatmul.mubr.f32.gmra.mxu0 %v2210
    %v2283 = vpop.f32.mrf.mxu0
    %v2284 = vadd.f32 %v2203, %v2283
    %v2285 = vpop.f32.mrf.mxu0
    %2286 = vdwg.mxu0
    %2287 = vrot.lane.b32.xlu0 %v1714, 112
    %v2288 = vpop.permute.xlu0 %2287
    %2289 = vrot.lane.b32.xlu0 %v1719, 112
    %v2290 = vpop.permute.xlu0 %2289
    %2291 = vrot.lane.b32.xlu0 %v1714, 80
    %v2292 = vpop.permute.xlu0 %2291
    %2293 = vrot.lane.b32.xlu0 %v1719, 80
    %v2294 = vpop.permute.xlu0 %2293
    %v2295 = vsel %vm264, %v2288, 0
    %v2297 = vsel %vm264, %v2290, 0
    %v2299 = vsel %vm264, %v2292, 0
    %v2301 = vsel %vm264, %v2294, 0
    %2303 = vmatprep.subr.mxu0 0.0
    %2304 = vmatpush1.xpose.msra.mxu0 0.0
    %2305 = vmatprep.subr.mxu0 0.0
    %2306 = vmatpush1.xpose.msra.mxu0 0.0
    %2307 = vmatprep.subr.mxu0 0.0
    %2308 = vmatpush1.xpose.msra.mxu0 0.0
    %2309 = vmatprep.subr.mxu0 0.0
    %2310 = vmatpush1.xpose.msra.mxu0 0.0
    %2311 = vmatprep.subr.mxu0 0.0
    %2312 = vmatpush1.xpose.msra.mxu0 0.0
    %2313 = vmatprep.subr.mxu0 0.0
    %2314 = vmatpush1.xpose.msra.mxu0 0.0
    %2315 = vmatprep.subr.mxu0 0.0
    %2316 = vmatpush1.xpose.msra.mxu0 0.0
    %2317 = vmatprep.subr.mxu0 0.0
    %2318 = vmatpush1.xpose.msra.mxu0 0.0
    %2319 = vmatprep.subr.mxu0 0.0
    %2320 = vmatpush1.xpose.msra.mxu0 0.0
    %2321 = vmatprep.subr.mxu0 0.0
    %2322 = vmatpush1.xpose.msra.mxu0 0.0
    %2323 = vmatprep.subr.mxu0 0.0
    %2324 = vmatpush1.xpose.msra.mxu0 0.0
    %2325 = vmatprep.subr.mxu0 0.0
    %2326 = vmatpush1.xpose.msra.mxu0 0.0
    %2327 = vmatprep.subr.mxu0 0.0
    %2328 = vmatpush1.xpose.msra.mxu0 0.0
    %2329 = vmatprep.subr.mxu0 0.0
    %2330 = vmatpush1.xpose.msra.mxu0 0.0
    %2331 = vmatprep.subr.mxu0 0.0
    %2332 = vmatpush1.xpose.msra.mxu0 %v2301
    %2333 = vmatprep.subr.mxu0 0.0
    %2334 = vmatpush1.xpose.msra.mxu0 %v2299
    %2335 = vmatprep.subr.mxu0 0.0
    %2336 = vmatpush2.xpose.msra.mxu0 0.0
    %2337 = vmatprep.subr.mxu0 0.0
    %2338 = vmatpush2.xpose.msra.mxu0 0.0
    %2339 = vmatprep.subr.mxu0 0.0
    %2340 = vmatpush2.xpose.msra.mxu0 0.0
    %2341 = vmatprep.subr.mxu0 0.0
    %2342 = vmatpush2.xpose.msra.mxu0 0.0
    %2343 = vmatprep.subr.mxu0 0.0
    %2344 = vmatpush2.xpose.msra.mxu0 0.0
    %2345 = vmatprep.subr.mxu0 0.0
    %2346 = vmatpush2.xpose.msra.mxu0 0.0
    %2347 = vmatprep.subr.mxu0 0.0
    %2348 = vmatpush2.xpose.msra.mxu0 0.0
    %2349 = vmatprep.subr.mxu0 0.0
    %2350 = vmatpush2.xpose.msra.mxu0 0.0
    %2351 = vmatprep.subr.mxu0 0.0
    %2352 = vmatpush2.xpose.msra.mxu0 0.0
    %2353 = vmatprep.subr.mxu0 0.0
    %2354 = vmatpush2.xpose.msra.mxu0 0.0
    %2355 = vmatprep.subr.mxu0 0.0
    %2356 = vmatpush2.xpose.msra.mxu0 0.0
    %2357 = vmatprep.subr.mxu0 0.0
    %2358 = vmatpush2.xpose.msra.mxu0 0.0
    %2359 = vmatprep.subr.mxu0 0.0
    %2360 = vmatpush2.xpose.msra.mxu0 0.0
    %2361 = vmatprep.subr.mxu0 0.0
    %2362 = vmatpush2.xpose.msra.mxu0 0.0
    %2363 = vmatprep.subr.mxu0 0.0
    %2364 = vmatpush2.xpose.msra.mxu0 0.0
    %2365 = vmatprep.subr.mxu0 0.0
    %2366 = vmatpush2.xpose.msra.mxu0 0.0
    %2367 = vmatprep.mubr.f32.mxu0 0.0
    %2368 = vmatmul.mubr.f32.gmra.mxu0 %v2295
    %v2369 = vpop.f32.mrf.mxu0
    %v2370 = vadd.f32 %v135, %v2369
    %v2371 = vpop.f32.mrf.mxu0
    %2372 = vmatprep.mubr.f32.mxu0 0.0
    %2373 = vmatmul.mubr.f32.gmra.mxu0 %v2297
    %v2374 = vpop.f32.mrf.mxu0
    %v2375 = vadd.f32 %v136, %v2374
    %v2376 = vpop.f32.mrf.mxu0
    %2377 = vdwg.mxu0
    %v2378 = vsel %vm348, %v2370, -inf
    %2379 = vmax.xlane.f32.xlu0 %v2378
    %v2380 = vpop.xlane.xlu0 %2379
    %v2381 = vsel %vm348, %v2375, -inf
    %2382 = vmax.xlane.f32.xlu0 %v2381
    %v2383 = vpop.xlane.xlu0 %2382
    %v2384 = vsub.f32 %v2370, %v2380
    %v2385 = vsub.f32 %v2375, %v2383
    %v2386 = vmul.f32 %v2384, 1.442695
    %v2387 = vpow.pop %v2386
    %v2388 = vmul.f32 %v2385, 1.442695
    %v2389 = vpow.pop %v2388
    %v2390 = vsel %vm348, %v2387, 0.0
    %2391 = vadd.xlane.f32.xlu0 %v2390
    %v2392 = vpop.xlane.xlu0 %2391
    %v2393 = vsel %vm348, %v2389, 0.0
    %2394 = vadd.xlane.f32.xlu0 %v2393
    %v2395 = vpop.xlane.xlu0 %2394
    %v2396 = vrcp.pop %v2392
    %v2397 = vrcp.pop %v2395
    %v2398 = vmul.f32 %v2387, %v2396
    %v2399 = vmul.f32 %v2389, %v2397
    %2400 = vrot.lane.b32.xlu0 %v1714, 48
    %v2401 = vpop.permute.xlu0 %2400
    %2402 = vrot.lane.b32.xlu0 %v1719, 48
    %v2403 = vpop.permute.xlu0 %2402
    %v2407 = vsel %vm348, %v2398, 0
    %v2410 = vsel %vm348, %v2399, 0
    %2412 = vmatprep.subr.mxu0 0.0
    %2413 = vmatpush1.msra.mxu0 0.0
    %2414 = vmatprep.subr.mxu0 0.0
    %2415 = vmatpush1.msra.mxu0 0.0
    %2416 = vmatprep.subr.mxu0 0.0
    %2417 = vmatpush1.msra.mxu0 0.0
    %2418 = vmatprep.subr.mxu0 0.0
    %2419 = vmatpush1.msra.mxu0 0.0
    %2420 = vmatprep.subr.mxu0 0.0
    %2421 = vmatpush1.msra.mxu0 0.0
    %2422 = vmatprep.subr.mxu0 0.0
    %2423 = vmatpush1.msra.mxu0 0.0
    %2424 = vmatprep.subr.mxu0 0.0
    %2425 = vmatpush1.msra.mxu0 0.0
    %2426 = vmatprep.subr.mxu0 0.0
    %2427 = vmatpush1.msra.mxu0 0.0
    %2428 = vmatprep.subr.mxu0 0.0
    %2429 = vmatpush1.msra.mxu0 0.0
    %2430 = vmatprep.subr.mxu0 0.0
    %2431 = vmatpush1.msra.mxu0 0.0
    %2432 = vmatprep.subr.mxu0 0.0
    %2433 = vmatpush1.msra.mxu0 0.0
    %2434 = vmatprep.subr.mxu0 0.0
    %2435 = vmatpush1.msra.mxu0 0.0
    %2436 = vmatprep.subr.mxu0 0.0
    %2437 = vmatpush1.msra.mxu0 0.0
    %2438 = vmatprep.subr.mxu0 0.0
    %2439 = vmatpush1.msra.mxu0 0.0
    %2440 = vmatprep.subr.mxu0 0.0
    %2441 = vmatpush1.msra.mxu0 %v2403
    %2442 = vmatprep.subr.mxu0 0.0
    %2443 = vmatpush1.msra.mxu0 %v2401
    %2444 = vmatprep.subr.mxu0 0.0
    %2445 = vmatpush2.msra.mxu0 0.0
    %2446 = vmatprep.subr.mxu0 0.0
    %2447 = vmatpush2.msra.mxu0 0.0
    %2448 = vmatprep.subr.mxu0 0.0
    %2449 = vmatpush2.msra.mxu0 0.0
    %2450 = vmatprep.subr.mxu0 0.0
    %2451 = vmatpush2.msra.mxu0 0.0
    %2452 = vmatprep.subr.mxu0 0.0
    %2453 = vmatpush2.msra.mxu0 0.0
    %2454 = vmatprep.subr.mxu0 0.0
    %2455 = vmatpush2.msra.mxu0 0.0
    %2456 = vmatprep.subr.mxu0 0.0
    %2457 = vmatpush2.msra.mxu0 0.0
    %2458 = vmatprep.subr.mxu0 0.0
    %2459 = vmatpush2.msra.mxu0 0.0
    %2460 = vmatprep.subr.mxu0 0.0
    %2461 = vmatpush2.msra.mxu0 0.0
    %2462 = vmatprep.subr.mxu0 0.0
    %2463 = vmatpush2.msra.mxu0 0.0
    %2464 = vmatprep.subr.mxu0 0.0
    %2465 = vmatpush2.msra.mxu0 0.0
    %2466 = vmatprep.subr.mxu0 0.0
    %2467 = vmatpush2.msra.mxu0 0.0
    %2468 = vmatprep.subr.mxu0 0.0
    %2469 = vmatpush2.msra.mxu0 0.0
    %2470 = vmatprep.subr.mxu0 0.0
    %2471 = vmatpush2.msra.mxu0 0.0
    %2472 = vmatprep.subr.mxu0 0.0
    %2473 = vmatpush2.msra.mxu0 0.0
    %2474 = vmatprep.subr.mxu0 0.0
    %2475 = vmatpush2.msra.mxu0 0.0
    %2476 = vmatprep.mubr.f32.mxu0 0.0
    %2477 = vmatmul.mubr.f32.gmra.mxu0 %v2407
    %v2478 = vpop.f32.mrf.mxu0
    %v2479 = vadd.f32 0.0, %v2478
    %v2480 = vpop.f32.mrf.mxu0
    %2481 = vmatprep.mubr.f32.mxu0 0.0
    %2482 = vmatmul.mubr.f32.gmra.mxu0 %v2410
    %v2483 = vpop.f32.mrf.mxu0
    %v2484 = vadd.f32 0.0, %v2483
    %v2485 = vpop.f32.mrf.mxu0
    %2486 = vdwg.mxu0
    %v2488 = vsel %vm264, %v2479, 0
    %v2491 = vsel %vm264, %v2484, 0
    %2493 = vmatprep.subr.mxu0 0.0
    %2494 = vmatpush1.msra.mxu0 0.0
    %2495 = vmatprep.subr.mxu0 0.0
    %2496 = vmatpush1.msra.mxu0 0.0
    %2497 = vmatprep.subr.mxu0 0.0
    %2498 = vmatpush1.msra.mxu0 0.0
    %2499 = vmatprep.subr.mxu0 0.0
    %2500 = vmatpush1.msra.mxu0 0.0
    %2501 = vmatprep.subr.mxu0 0.0
    %2502 = vmatpush1.msra.mxu0 0.0
    %2503 = vmatprep.subr.mxu0 0.0
    %2504 = vmatpush1.msra.mxu0 0.0
    %2505 = vmatprep.subr.mxu0 0.0
    %2506 = vmatpush1.msra.mxu0 0.0
    %2507 = vmatprep.subr.mxu0 0.0
    %2508 = vmatpush1.msra.mxu0 0.0
    %2509 = vmatprep.subr.mxu0 0.0
    %2510 = vmatpush1.msra.mxu0 0.0
    %2511 = vmatprep.subr.mxu0 0.0
    %2512 = vmatpush1.msra.mxu0 0.0
    %2513 = vmatprep.subr.mxu0 0.0
    %2514 = vmatpush1.msra.mxu0 0.0
    %2515 = vmatprep.subr.mxu0 0.0
    %2516 = vmatpush1.msra.mxu0 0.0
    %2517 = vmatprep.subr.mxu0 0.0
    %2518 = vmatpush1.msra.mxu0 0.0
    %2519 = vmatprep.subr.mxu0 0.0
    %2520 = vmatpush1.msra.mxu0 0.0
    %2521 = vmatprep.subr.mxu0 0.0
    %2522 = vmatpush1.msra.mxu0 0.0
    %2523 = vmatprep.subr.mxu0 0.0
    %2524 = vmatpush1.msra.mxu0 %v1725
    %2525 = vmatprep.subr.mxu0 0.0
    %2526 = vmatpush2.msra.mxu0 0.0
    %2527 = vmatprep.subr.mxu0 0.0
    %2528 = vmatpush2.msra.mxu0 0.0
    %2529 = vmatprep.subr.mxu0 0.0
    %2530 = vmatpush2.msra.mxu0 0.0
    %2531 = vmatprep.subr.mxu0 0.0
    %2532 = vmatpush2.msra.mxu0 0.0
    %2533 = vmatprep.subr.mxu0 0.0
    %2534 = vmatpush2.msra.mxu0 0.0
    %2535 = vmatprep.subr.mxu0 0.0
    %2536 = vmatpush2.msra.mxu0 0.0
    %2537 = vmatprep.subr.mxu0 0.0
    %2538 = vmatpush2.msra.mxu0 0.0
    %2539 = vmatprep.subr.mxu0 0.0
    %2540 = vmatpush2.msra.mxu0 0.0
    %2541 = vmatprep.subr.mxu0 0.0
    %2542 = vmatpush2.msra.mxu0 0.0
    %2543 = vmatprep.subr.mxu0 0.0
    %2544 = vmatpush2.msra.mxu0 0.0
    %2545 = vmatprep.subr.mxu0 0.0
    %2546 = vmatpush2.msra.mxu0 0.0
    %2547 = vmatprep.subr.mxu0 0.0
    %2548 = vmatpush2.msra.mxu0 0.0
    %2549 = vmatprep.subr.mxu0 0.0
    %2550 = vmatpush2.msra.mxu0 0.0
    %2551 = vmatprep.subr.mxu0 0.0
    %2552 = vmatpush2.msra.mxu0 0.0
    %2553 = vmatprep.subr.mxu0 0.0
    %2554 = vmatpush2.msra.mxu0 0.0
    %2555 = vmatprep.subr.mxu0 0.0
    %2556 = vmatpush2.msra.mxu0 0.0
    %2557 = vmatprep.mubr.f32.mxu0 0.0
    %2558 = vmatmul.mubr.f32.gmra.mxu0 %v2488
    %v2559 = vpop.f32.mrf.mxu0
    %v2560 = vadd.f32 0.0, %v2559
    %v2561 = vpop.f32.mrf.mxu0
    %2562 = vmatprep.mubr.f32.mxu0 0.0
    %2563 = vmatmul.mubr.f32.gmra.mxu0 %v2491
    %v2564 = vpop.f32.mrf.mxu0
    %v2565 = vadd.f32 0.0, %v2564
    %v2566 = vpop.f32.mrf.mxu0
    %2567 = vdwg.mxu0
    %v2568 = vadd.f32 %v2279, %v2560
    %v2569 = vadd.f32 %v2284, %v2565
    %2570 = vrot.lane.b32.xlu0 %v1714, 104
    %v2571 = vpop.permute.xlu0 %2570
    %2572 = vrot.lane.b32.xlu0 %v1719, 104
    %v2573 = vpop.permute.xlu0 %2572
    %2574 = vrot.lane.b32.xlu0 %v1714, 72
    %v2575 = vpop.permute.xlu0 %2574
    %2576 = vrot.lane.b32.xlu0 %v1719, 72
    %v2577 = vpop.permute.xlu0 %2576
    %v2578 = vsel %vm264, %v2571, 0
    %v2580 = vsel %vm264, %v2573, 0
    %v2582 = vsel %vm264, %v2575, 0
    %v2584 = vsel %vm264, %v2577, 0
    %2586 = vmatprep.subr.mxu0 0.0
    %2587 = vmatpush1.xpose.msra.mxu0 0.0
    %2588 = vmatprep.subr.mxu0 0.0
    %2589 = vmatpush1.xpose.msra.mxu0 0.0
    %2590 = vmatprep.subr.mxu0 0.0
    %2591 = vmatpush1.xpose.msra.mxu0 0.0
    %2592 = vmatprep.subr.mxu0 0.0
    %2593 = vmatpush1.xpose.msra.mxu0 0.0
    %2594 = vmatprep.subr.mxu0 0.0
    %2595 = vmatpush1.xpose.msra.mxu0 0.0
    %2596 = vmatprep.subr.mxu0 0.0
    %2597 = vmatpush1.xpose.msra.mxu0 0.0
    %2598 = vmatprep.subr.mxu0 0.0
    %2599 = vmatpush1.xpose.msra.mxu0 0.0
    %2600 = vmatprep.subr.mxu0 0.0
    %2601 = vmatpush1.xpose.msra.mxu0 0.0
    %2602 = vmatprep.subr.mxu0 0.0
    %2603 = vmatpush1.xpose.msra.mxu0 0.0
    %2604 = vmatprep.subr.mxu0 0.0
    %2605 = vmatpush1.xpose.msra.mxu0 0.0
    %2606 = vmatprep.subr.mxu0 0.0
    %2607 = vmatpush1.xpose.msra.mxu0 0.0
    %2608 = vmatprep.subr.mxu0 0.0
    %2609 = vmatpush1.xpose.msra.mxu0 0.0
    %2610 = vmatprep.subr.mxu0 0.0
    %2611 = vmatpush1.xpose.msra.mxu0 0.0
    %2612 = vmatprep.subr.mxu0 0.0
    %2613 = vmatpush1.xpose.msra.mxu0 0.0
    %2614 = vmatprep.subr.mxu0 0.0
    %2615 = vmatpush1.xpose.msra.mxu0 %v2584
    %2616 = vmatprep.subr.mxu0 0.0
    %2617 = vmatpush1.xpose.msra.mxu0 %v2582
    %2618 = vmatprep.subr.mxu0 0.0
    %2619 = vmatpush2.xpose.msra.mxu0 0.0
    %2620 = vmatprep.subr.mxu0 0.0
    %2621 = vmatpush2.xpose.msra.mxu0 0.0
    %2622 = vmatprep.subr.mxu0 0.0
    %2623 = vmatpush2.xpose.msra.mxu0 0.0
    %2624 = vmatprep.subr.mxu0 0.0
    %2625 = vmatpush2.xpose.msra.mxu0 0.0
    %2626 = vmatprep.subr.mxu0 0.0
    %2627 = vmatpush2.xpose.msra.mxu0 0.0
    %2628 = vmatprep.subr.mxu0 0.0
    %2629 = vmatpush2.xpose.msra.mxu0 0.0
    %2630 = vmatprep.subr.mxu0 0.0
    %2631 = vmatpush2.xpose.msra.mxu0 0.0
    %2632 = vmatprep.subr.mxu0 0.0
    %2633 = vmatpush2.xpose.msra.mxu0 0.0
    %2634 = vmatprep.subr.mxu0 0.0
    %2635 = vmatpush2.xpose.msra.mxu0 0.0
    %2636 = vmatprep.subr.mxu0 0.0
    %2637 = vmatpush2.xpose.msra.mxu0 0.0
    %2638 = vmatprep.subr.mxu0 0.0
    %2639 = vmatpush2.xpose.msra.mxu0 0.0
    %2640 = vmatprep.subr.mxu0 0.0
    %2641 = vmatpush2.xpose.msra.mxu0 0.0
    %2642 = vmatprep.subr.mxu0 0.0
    %2643 = vmatpush2.xpose.msra.mxu0 0.0
    %2644 = vmatprep.subr.mxu0 0.0
    %2645 = vmatpush2.xpose.msra.mxu0 0.0
    %2646 = vmatprep.subr.mxu0 0.0
    %2647 = vmatpush2.xpose.msra.mxu0 0.0
    %2648 = vmatprep.subr.mxu0 0.0
    %2649 = vmatpush2.xpose.msra.mxu0 0.0
    %2650 = vmatprep.mubr.f32.mxu0 0.0
    %2651 = vmatmul.mubr.f32.gmra.mxu0 %v2578
    %v2652 = vpop.f32.mrf.mxu0
    %v2653 = vadd.f32 %v135, %v2652
    %v2654 = vpop.f32.mrf.mxu0
    %2655 = vmatprep.mubr.f32.mxu0 0.0
    %2656 = vmatmul.mubr.f32.gmra.mxu0 %v2580
    %v2657 = vpop.f32.mrf.mxu0
    %v2658 = vadd.f32 %v136, %v2657
    %v2659 = vpop.f32.mrf.mxu0
    %2660 = vdwg.mxu0
    %v2661 = vsel %vm348, %v2653, -inf
    %2662 = vmax.xlane.f32.xlu0 %v2661
    %v2663 = vpop.xlane.xlu0 %2662
    %v2664 = vsel %vm348, %v2658, -inf
    %2665 = vmax.xlane.f32.xlu0 %v2664
    %v2666 = vpop.xlane.xlu0 %2665
    %v2667 = vsub.f32 %v2653, %v2663
    %v2668 = vsub.f32 %v2658, %v2666
    %v2669 = vmul.f32 %v2667, 1.442695
    %v2670 = vpow.pop %v2669
    %v2671 = vmul.f32 %v2668, 1.442695
    %v2672 = vpow.pop %v2671
    %v2673 = vsel %vm348, %v2670, 0.0
    %2674 = vadd.xlane.f32.xlu0 %v2673
    %v2675 = vpop.xlane.xlu0 %2674
    %v2676 = vsel %vm348, %v2672, 0.0
    %2677 = vadd.xlane.f32.xlu0 %v2676
    %v2678 = vpop.xlane.xlu0 %2677
    %v2679 = vrcp.pop %v2675
    %v2680 = vrcp.pop %v2678
    %v2681 = vmul.f32 %v2670, %v2679
    %v2682 = vmul.f32 %v2672, %v2680
    %2683 = vrot.lane.b32.xlu0 %v1714, 40
    %v2684 = vpop.permute.xlu0 %2683
    %2685 = vrot.lane.b32.xlu0 %v1719, 40
    %v2686 = vpop.permute.xlu0 %2685
    %v2690 = vsel %vm348, %v2681, 0
    %v2693 = vsel %vm348, %v2682, 0
    %2695 = vmatprep.subr.mxu0 0.0
    %2696 = vmatpush1.msra.mxu0 0.0
    %2697 = vmatprep.subr.mxu0 0.0
    %2698 = vmatpush1.msra.mxu0 0.0
    %2699 = vmatprep.subr.mxu0 0.0
    %2700 = vmatpush1.msra.mxu0 0.0
    %2701 = vmatprep.subr.mxu0 0.0
    %2702 = vmatpush1.msra.mxu0 0.0
    %2703 = vmatprep.subr.mxu0 0.0
    %2704 = vmatpush1.msra.mxu0 0.0
    %2705 = vmatprep.subr.mxu0 0.0
    %2706 = vmatpush1.msra.mxu0 0.0
    %2707 = vmatprep.subr.mxu0 0.0
    %2708 = vmatpush1.msra.mxu0 0.0
    %2709 = vmatprep.subr.mxu0 0.0
    %2710 = vmatpush1.msra.mxu0 0.0
    %2711 = vmatprep.subr.mxu0 0.0
    %2712 = vmatpush1.msra.mxu0 0.0
    %2713 = vmatprep.subr.mxu0 0.0
    %2714 = vmatpush1.msra.mxu0 0.0
    %2715 = vmatprep.subr.mxu0 0.0
    %2716 = vmatpush1.msra.mxu0 0.0
    %2717 = vmatprep.subr.mxu0 0.0
    %2718 = vmatpush1.msra.mxu0 0.0
    %2719 = vmatprep.subr.mxu0 0.0
    %2720 = vmatpush1.msra.mxu0 0.0
    %2721 = vmatprep.subr.mxu0 0.0
    %2722 = vmatpush1.msra.mxu0 0.0
    %2723 = vmatprep.subr.mxu0 0.0
    %2724 = vmatpush1.msra.mxu0 %v2686
    %2725 = vmatprep.subr.mxu0 0.0
    %2726 = vmatpush1.msra.mxu0 %v2684
    %2727 = vmatprep.subr.mxu0 0.0
    %2728 = vmatpush2.msra.mxu0 0.0
    %2729 = vmatprep.subr.mxu0 0.0
    %2730 = vmatpush2.msra.mxu0 0.0
    %2731 = vmatprep.subr.mxu0 0.0
    %2732 = vmatpush2.msra.mxu0 0.0
    %2733 = vmatprep.subr.mxu0 0.0
    %2734 = vmatpush2.msra.mxu0 0.0
    %2735 = vmatprep.subr.mxu0 0.0
    %2736 = vmatpush2.msra.mxu0 0.0
    %2737 = vmatprep.subr.mxu0 0.0
    %2738 = vmatpush2.msra.mxu0 0.0
    %2739 = vmatprep.subr.mxu0 0.0
    %2740 = vmatpush2.msra.mxu0 0.0
    %2741 = vmatprep.subr.mxu0 0.0
    %2742 = vmatpush2.msra.mxu0 0.0
    %2743 = vmatprep.subr.mxu0 0.0
    %2744 = vmatpush2.msra.mxu0 0.0
    %2745 = vmatprep.subr.mxu0 0.0
    %2746 = vmatpush2.msra.mxu0 0.0
    %2747 = vmatprep.subr.mxu0 0.0
    %2748 = vmatpush2.msra.mxu0 0.0
    %2749 = vmatprep.subr.mxu0 0.0
    %2750 = vmatpush2.msra.mxu0 0.0
    %2751 = vmatprep.subr.mxu0 0.0
    %2752 = vmatpush2.msra.mxu0 0.0
    %2753 = vmatprep.subr.mxu0 0.0
    %2754 = vmatpush2.msra.mxu0 0.0
    %2755 = vmatprep.subr.mxu0 0.0
    %2756 = vmatpush2.msra.mxu0 0.0
    %2757 = vmatprep.subr.mxu0 0.0
    %2758 = vmatpush2.msra.mxu0 0.0
    %2759 = vmatprep.mubr.f32.mxu0 0.0
    %2760 = vmatmul.mubr.f32.gmra.mxu0 %v2690
    %v2761 = vpop.f32.mrf.mxu0
    %v2762 = vadd.f32 0.0, %v2761
    %v2763 = vpop.f32.mrf.mxu0
    %2764 = vmatprep.mubr.f32.mxu0 0.0
    %2765 = vmatmul.mubr.f32.gmra.mxu0 %v2693
    %v2766 = vpop.f32.mrf.mxu0
    %v2767 = vadd.f32 0.0, %v2766
    %v2768 = vpop.f32.mrf.mxu0
    %2769 = vdwg.mxu0
    %v2771 = vsel %vm264, %v2762, 0
    %v2774 = vsel %vm264, %v2767, 0
    %2776 = vmatprep.subr.mxu0 0.0
    %2777 = vmatpush1.msra.mxu0 0.0
    %2778 = vmatprep.subr.mxu0 0.0
    %2779 = vmatpush1.msra.mxu0 0.0
    %2780 = vmatprep.subr.mxu0 0.0
    %2781 = vmatpush1.msra.mxu0 0.0
    %2782 = vmatprep.subr.mxu0 0.0
    %2783 = vmatpush1.msra.mxu0 0.0
    %2784 = vmatprep.subr.mxu0 0.0
    %2785 = vmatpush1.msra.mxu0 0.0
    %2786 = vmatprep.subr.mxu0 0.0
    %2787 = vmatpush1.msra.mxu0 0.0
    %2788 = vmatprep.subr.mxu0 0.0
    %2789 = vmatpush1.msra.mxu0 0.0
    %2790 = vmatprep.subr.mxu0 0.0
    %2791 = vmatpush1.msra.mxu0 0.0
    %2792 = vmatprep.subr.mxu0 0.0
    %2793 = vmatpush1.msra.mxu0 0.0
    %2794 = vmatprep.subr.mxu0 0.0
    %2795 = vmatpush1.msra.mxu0 0.0
    %2796 = vmatprep.subr.mxu0 0.0
    %2797 = vmatpush1.msra.mxu0 0.0
    %2798 = vmatprep.subr.mxu0 0.0
    %2799 = vmatpush1.msra.mxu0 0.0
    %2800 = vmatprep.subr.mxu0 0.0
    %2801 = vmatpush1.msra.mxu0 0.0
    %2802 = vmatprep.subr.mxu0 0.0
    %2803 = vmatpush1.msra.mxu0 0.0
    %2804 = vmatprep.subr.mxu0 0.0
    %2805 = vmatpush1.msra.mxu0 0.0
    %2806 = vmatprep.subr.mxu0 0.0
    %2807 = vmatpush1.msra.mxu0 %v1726
    %2808 = vmatprep.subr.mxu0 0.0
    %2809 = vmatpush2.msra.mxu0 0.0
    %2810 = vmatprep.subr.mxu0 0.0
    %2811 = vmatpush2.msra.mxu0 0.0
    %2812 = vmatprep.subr.mxu0 0.0
    %2813 = vmatpush2.msra.mxu0 0.0
    %2814 = vmatprep.subr.mxu0 0.0
    %2815 = vmatpush2.msra.mxu0 0.0
    %2816 = vmatprep.subr.mxu0 0.0
    %2817 = vmatpush2.msra.mxu0 0.0
    %2818 = vmatprep.subr.mxu0 0.0
    %2819 = vmatpush2.msra.mxu0 0.0
    %2820 = vmatprep.subr.mxu0 0.0
    %2821 = vmatpush2.msra.mxu0 0.0
    %2822 = vmatprep.subr.mxu0 0.0
    %2823 = vmatpush2.msra.mxu0 0.0
    %2824 = vmatprep.subr.mxu0 0.0
    %2825 = vmatpush2.msra.mxu0 0.0
    %2826 = vmatprep.subr.mxu0 0.0
    %2827 = vmatpush2.msra.mxu0 0.0
    %2828 = vmatprep.subr.mxu0 0.0
    %2829 = vmatpush2.msra.mxu0 0.0
    %2830 = vmatprep.subr.mxu0 0.0
    %2831 = vmatpush2.msra.mxu0 0.0
    %2832 = vmatprep.subr.mxu0 0.0
    %2833 = vmatpush2.msra.mxu0 0.0
    %2834 = vmatprep.subr.mxu0 0.0
    %2835 = vmatpush2.msra.mxu0 0.0
    %2836 = vmatprep.subr.mxu0 0.0
    %2837 = vmatpush2.msra.mxu0 0.0
    %2838 = vmatprep.subr.mxu0 0.0
    %2839 = vmatpush2.msra.mxu0 0.0
    %2840 = vmatprep.mubr.f32.mxu0 0.0
    %2841 = vmatmul.mubr.f32.gmra.mxu0 %v2771
    %v2842 = vpop.f32.mrf.mxu0
    %v2843 = vadd.f32 0.0, %v2842
    %v2844 = vpop.f32.mrf.mxu0
    %2845 = vmatprep.mubr.f32.mxu0 0.0
    %2846 = vmatmul.mubr.f32.gmra.mxu0 %v2774
    %v2847 = vpop.f32.mrf.mxu0
    %v2848 = vadd.f32 0.0, %v2847
    %v2849 = vpop.f32.mrf.mxu0
    %2850 = vdwg.mxu0
    %v2851 = vadd.f32 %v2568, %v2843
    %v2852 = vadd.f32 %v2569, %v2848
    %v2853 = vadd.f32 %v1608, %v2851
    %v2854 = vadd.f32 %v1609, %v2852
    %s2855 = scalar_lea.vmem %s19, 1
    %v2856 = vld [vmem:[%s2855] sm:$0x1]
    %v2858 = vlaneseq
    %v2859 = vshrl.u32 %v2858, 7
    %v2860 = vsub.s32 0, %v2859
    %v2861 = vrot.slane %v2856, %v2860
    %v2863 = vadd.f32 %v2853, %v2861
    %v2864 = vadd.f32 %v2854, %v2861
    %s2865 = sld [smem:[#allocation2 + $0x3]]
    %v2866 = vmul.f32 %v2863, %v2863
    %v2867 = vmul.f32 %v2864, %v2864
    %v2868 = vsel %vm146, %v2866, 0.0
    %2869 = vadd.xlane.f32.xlu0 %v2868
    %v2870 = vpop.xlane.xlu0 %2869
    %v2871 = vsel %vm146, %v2867, 0.0
    %2872 = vadd.xlane.f32.xlu0 %v2871
    %v2873 = vpop.xlane.xlu0 %2872
    %v2874 = vmax.f32 %v2870, 1e-10
    %v2875 = vmax.f32 %v2873, 1e-10
    %v2876 = vrsqrt.pop %v2874
    %v2877 = vrsqrt.pop %v2875
    %v2878 = vstv %s2865
    %v2879 = vmul.f32 %v2878, %v2876
    %v2880 = vmul.f32 %v2878, %v2877
    %v2881 = vmul.f32 %v2863, %v2879
    %v2882 = vmul.f32 %v2864, %v2880
    %s2883 = scalar_lea.vmem %s21, 32
    %v2884 = vld [vmem:[%s2883] sm:$0xff]
    %v2885 = vld [vmem:[%s2883 + $0x8] sm:$0xff]
    %v2886 = vld [vmem:[%s2883 + $0x10] sm:$0xff]
    %v2887 = vld [vmem:[%s2883 + $0x18] sm:$0xff]
    %s2888 = scalar_lea.vmem %s23, 1
    %v2889 = vld [vmem:[%s2888] sm:$0x1]
    %v2891 = vlaneseq
    %v2892 = vshrl.u32 %v2891, 7
    %v2893 = vsub.s32 0, %v2892
    %v2894 = vrot.slane %v2889, %v2893
    %v2897 = vsel %vm146, %v2881, 0
    %v2900 = vsel %vm146, %v2882, 0
    %2902 = vmatprep.subr.mxu0 0.0
    %2903 = vmatpush1.msra.mxu0 0.0
    %2904 = vmatprep.subr.mxu0 0.0
    %2905 = vmatpush1.msra.mxu0 0.0
    %2906 = vmatprep.subr.mxu0 0.0
    %2907 = vmatpush1.msra.mxu0 0.0
    %2908 = vmatprep.subr.mxu0 0.0
    %2909 = vmatpush1.msra.mxu0 0.0
    %2910 = vmatprep.subr.mxu0 0.0
    %2911 = vmatpush1.msra.mxu0 0.0
    %2912 = vmatprep.subr.mxu0 0.0
    %2913 = vmatpush1.msra.mxu0 0.0
    %2914 = vmatprep.subr.mxu0 0.0
    %2915 = vmatpush1.msra.mxu0 0.0
    %2916 = vmatprep.subr.mxu0 0.0
    %2917 = vmatpush1.msra.mxu0 0.0
    %2918 = vmatprep.subr.mxu0 0.0
    %2919 = vmatpush1.msra.mxu0 0.0
    %2920 = vmatprep.subr.mxu0 0.0
    %2921 = vmatpush1.msra.mxu0 0.0
    %2922 = vmatprep.subr.mxu0 0.0
    %2923 = vmatpush1.msra.mxu0 0.0
    %2924 = vmatprep.subr.mxu0 0.0
    %2925 = vmatpush1.msra.mxu0 0.0
    %2926 = vmatprep.subr.mxu0 0.0
    %2927 = vmatpush1.msra.mxu0 %v2887
    %2928 = vmatprep.subr.mxu0 0.0
    %2929 = vmatpush1.msra.mxu0 %v2886
    %2930 = vmatprep.subr.mxu0 0.0
    %2931 = vmatpush1.msra.mxu0 %v2885
    %2932 = vmatprep.subr.mxu0 0.0
    %2933 = vmatpush1.msra.mxu0 %v2884
    %2934 = vmatprep.subr.mxu0 0.0
    %2935 = vmatpush2.msra.mxu0 0.0
    %2936 = vmatprep.subr.mxu0 0.0
    %2937 = vmatpush2.msra.mxu0 0.0
    %2938 = vmatprep.subr.mxu0 0.0
    %2939 = vmatpush2.msra.mxu0 0.0
    %2940 = vmatprep.subr.mxu0 0.0
    %2941 = vmatpush2.msra.mxu0 0.0
    %2942 = vmatprep.subr.mxu0 0.0
    %2943 = vmatpush2.msra.mxu0 0.0
    %2944 = vmatprep.subr.mxu0 0.0
    %2945 = vmatpush2.msra.mxu0 0.0
    %2946 = vmatprep.subr.mxu0 0.0
    %2947 = vmatpush2.msra.mxu0 0.0
    %2948 = vmatprep.subr.mxu0 0.0
    %2949 = vmatpush2.msra.mxu0 0.0
    %2950 = vmatprep.subr.mxu0 0.0
    %2951 = vmatpush2.msra.mxu0 0.0
    %2952 = vmatprep.subr.mxu0 0.0
    %2953 = vmatpush2.msra.mxu0 0.0
    %2954 = vmatprep.subr.mxu0 0.0
    %2955 = vmatpush2.msra.mxu0 0.0
    %2956 = vmatprep.subr.mxu0 0.0
    %2957 = vmatpush2.msra.mxu0 0.0
    %2958 = vmatprep.subr.mxu0 0.0
    %2959 = vmatpush2.msra.mxu0 0.0
    %2960 = vmatprep.subr.mxu0 0.0
    %2961 = vmatpush2.msra.mxu0 0.0
    %2962 = vmatprep.subr.mxu0 0.0
    %2963 = vmatpush2.msra.mxu0 0.0
    %2964 = vmatprep.subr.mxu0 0.0
    %2965 = vmatpush2.msra.mxu0 0.0
    %2966 = vmatprep.mubr.f32.mxu0 0.0
    %2967 = vmatmul.mubr.f32.gmra.mxu0 %v2897
    %v2968 = vpop.f32.mrf.mxu0
    %v2969 = vadd.f32 %v2894, %v2968
    %v2970 = vpop.f32.mrf.mxu0
    %2971 = vmatprep.mubr.f32.mxu0 0.0
    %2972 = vmatmul.mubr.f32.gmra.mxu0 %v2900
    %v2973 = vpop.f32.mrf.mxu0
    %v2974 = vadd.f32 %v2894, %v2973
    %v2975 = vpop.f32.mrf.mxu0
    %2976 = vdwg.mxu0
    %v2977 = vmax.f32 %v2969, 0.0
    %v2978 = vmax.f32 %v2974, 0.0
    %s2979 = scalar_lea.vmem %s25, 64
    %v2980 = vld [vmem:[%s2979] sm:$0xff]
    %v2981 = vld [vmem:[%s2979 + $0x8] sm:$0xff]
    %v2982 = vld [vmem:[%s2979 + $0x10] sm:$0xff]
    %v2983 = vld [vmem:[%s2979 + $0x18] sm:$0xff]
    %v2984 = vld [vmem:[%s2979 + $0x20] sm:$0xff]
    %v2985 = vld [vmem:[%s2979 + $0x28] sm:$0xff]
    %v2986 = vld [vmem:[%s2979 + $0x30] sm:$0xff]
    %v2987 = vld [vmem:[%s2979 + $0x38] sm:$0xff]
    %v2989 = vsel %vm1517, %v2977, 0
    %v2992 = vsel %vm1517, %v2978, 0
    %2994 = vmatprep.subr.mxu0 0.0
    %2995 = vmatpush1.msra.mxu0 0.0
    %2996 = vmatprep.subr.mxu0 0.0
    %2997 = vmatpush1.msra.mxu0 0.0
    %2998 = vmatprep.subr.mxu0 0.0
    %2999 = vmatpush1.msra.mxu0 0.0
    %3000 = vmatprep.subr.mxu0 0.0
    %3001 = vmatpush1.msra.mxu0 0.0
    %3002 = vmatprep.subr.mxu0 0.0
    %3003 = vmatpush1.msra.mxu0 0.0
    %3004 = vmatprep.subr.mxu0 0.0
    %3005 = vmatpush1.msra.mxu0 0.0
    %3006 = vmatprep.subr.mxu0 0.0
    %3007 = vmatpush1.msra.mxu0 0.0
    %3008 = vmatprep.subr.mxu0 0.0
    %3009 = vmatpush1.msra.mxu0 0.0
    %3010 = vmatprep.subr.mxu0 0.0
    %3011 = vmatpush1.msra.mxu0 %v2987
    %3012 = vmatprep.subr.mxu0 0.0
    %3013 = vmatpush1.msra.mxu0 %v2986
    %3014 = vmatprep.subr.mxu0 0.0
    %3015 = vmatpush1.msra.mxu0 %v2985
    %3016 = vmatprep.subr.mxu0 0.0
    %3017 = vmatpush1.msra.mxu0 %v2984
    %3018 = vmatprep.subr.mxu0 0.0
    %3019 = vmatpush1.msra.mxu0 %v2983
    %3020 = vmatprep.subr.mxu0 0.0
    %3021 = vmatpush1.msra.mxu0 %v2982
    %3022 = vmatprep.subr.mxu0 0.0
    %3023 = vmatpush1.msra.mxu0 %v2981
    %3024 = vmatprep.subr.mxu0 0.0
    %3025 = vmatpush1.msra.mxu0 %v2980
    %3026 = vmatprep.subr.mxu0 0.0
    %3027 = vmatpush2.msra.mxu0 0.0
    %3028 = vmatprep.subr.mxu0 0.0
    %3029 = vmatpush2.msra.mxu0 0.0
    %3030 = vmatprep.subr.mxu0 0.0
    %3031 = vmatpush2.msra.mxu0 0.0
    %3032 = vmatprep.subr.mxu0 0.0
    %3033 = vmatpush2.msra.mxu0 0.0
    %3034 = vmatprep.subr.mxu0 0.0
    %3035 = vmatpush2.msra.mxu0 0.0
    %3036 = vmatprep.subr.mxu0 0.0
    %3037 = vmatpush2.msra.mxu0 0.0
    %3038 = vmatprep.subr.mxu0 0.0
    %3039 = vmatpush2.msra.mxu0 0.0
    %3040 = vmatprep.subr.mxu0 0.0
    %3041 = vmatpush2.msra.mxu0 0.0
    %3042 = vmatprep.subr.mxu0 0.0
    %3043 = vmatpush2.msra.mxu0 0.0
    %3044 = vmatprep.subr.mxu0 0.0
    %3045 = vmatpush2.msra.mxu0 0.0
    %3046 = vmatprep.subr.mxu0 0.0
    %3047 = vmatpush2.msra.mxu0 0.0
    %3048 = vmatprep.subr.mxu0 0.0
    %3049 = vmatpush2.msra.mxu0 0.0
    %3050 = vmatprep.subr.mxu0 0.0
    %3051 = vmatpush2.msra.mxu0 0.0
    %3052 = vmatprep.subr.mxu0 0.0
    %3053 = vmatpush2.msra.mxu0 0.0
    %3054 = vmatprep.subr.mxu0 0.0
    %3055 = vmatpush2.msra.mxu0 0.0
    %3056 = vmatprep.subr.mxu0 0.0
    %3057 = vmatpush2.msra.mxu0 0.0
    %3058 = vmatprep.mubr.f32.mxu0 0.0
    %3059 = vmatmul.mubr.f32.gmra.mxu0 %v2989
    %v3060 = vpop.f32.mrf.mxu0
    %v3061 = vadd.f32 0.0, %v3060
    %v3062 = vpop.f32.mrf.mxu0
    %3063 = vmatprep.mubr.f32.mxu0 0.0
    %3064 = vmatmul.mubr.f32.gmra.mxu0 %v2992
    %v3065 = vpop.f32.mrf.mxu0
    %v3066 = vadd.f32 0.0, %v3065
    %v3067 = vpop.f32.mrf.mxu0
    %3068 = vdwg.mxu0
    %v3069 = vadd.f32 %v2863, %v3061
    %v3070 = vadd.f32 %v2864, %v3066
    %s3071 = scalar_lea.vmem %s27, 1
    %v3072 = vld [vmem:[%s3071] sm:$0x1]
    %v3074 = vlaneseq
    %v3075 = vshrl.u32 %v3074, 7
    %v3076 = vsub.s32 0, %v3075
    %v3077 = vrot.slane %v3072, %v3076
    %v3079 = vadd.f32 %v3069, %v3077
    %v3080 = vadd.f32 %v3070, %v3077
    %s3081 = sld [smem:[#allocation2 + $0x4]]
    %v3082 = vmul.f32 %v3079, %v3079
    %v3083 = vmul.f32 %v3080, %v3080
    %v3084 = vsel %vm146, %v3082, 0.0
    %3085 = vadd.xlane.f32.xlu0 %v3084
    %v3086 = vpop.xlane.xlu0 %3085
    %v3087 = vsel %vm146, %v3083, 0.0
    %3088 = vadd.xlane.f32.xlu0 %v3087
    %v3089 = vpop.xlane.xlu0 %3088
    %v3090 = vmax.f32 %v3086, 1e-10
    %v3091 = vmax.f32 %v3089, 1e-10
    %v3092 = vrsqrt.pop %v3090
    %v3093 = vrsqrt.pop %v3091
    %v3094 = vstv %s3081
    %v3095 = vmul.f32 %v3094, %v3092
    %v3096 = vmul.f32 %v3094, %v3093
    %v3097 = vmul.f32 %v3079, %v3095
    %v3098 = vmul.f32 %v3080, %v3096
    %v3099 = vld [vmem:[%s3] sm:$0xff]
    %v3100 = vld [vmem:[%s3 + $0x8] sm:$0xff]
    %s3101 = sld [smem:[#allocation2 + $0x5]]
    %v3102 = vmul.f32 %v3099, %v3099
    %v3103 = vmul.f32 %v3100, %v3100
    %v3104 = vsel %vm146, %v3102, 0.0
    %3105 = vadd.xlane.f32.xlu0 %v3104
    %v3106 = vpop.xlane.xlu0 %3105
    %v3107 = vsel %vm146, %v3103, 0.0
    %3108 = vadd.xlane.f32.xlu0 %v3107
    %v3109 = vpop.xlane.xlu0 %3108
    %v3110 = vmax.f32 %v3106, 1e-10
    %v3111 = vmax.f32 %v3109, 1e-10
    %v3112 = vrsqrt.pop %v3110
    %v3113 = vrsqrt.pop %v3111
    %v3114 = vstv %s3101
    %v3115 = vmul.f32 %v3114, %v3112
    %v3116 = vmul.f32 %v3114, %v3113
    %v3117 = vmul.f32 %v3099, %v3115
    %v3118 = vmul.f32 %v3100, %v3116
    %v3119 = vld [vmem:[%s29] sm:$0xff]
    %v3120 = vld [vmem:[%s29 + $0x8] sm:$0xff]
    %v3121 = vld [vmem:[%s29 + $0x10] sm:$0xff]
    %v3122 = vld [vmem:[%s29 + $0x18] sm:$0xff]
    %v3123 = vld [vmem:[%s31] sm:$0x1]
    %v3125 = vlaneseq
    %v3126 = vshrl.u32 %v3125, 7
    %v3127 = vsub.s32 0, %v3126
    %v3128 = vrot.slane %v3123, %v3127
    %v3131 = vsel %vm146, %v3117, 0
    %v3134 = vsel %vm146, %v3118, 0
    %3136 = vmatprep.subr.mxu0 0.0
    %3137 = vmatpush1.msra.mxu0 0.0
    %3138 = vmatprep.subr.mxu0 0.0
    %3139 = vmatpush1.msra.mxu0 0.0
    %3140 = vmatprep.subr.mxu0 0.0
    %3141 = vmatpush1.msra.mxu0 0.0
    %3142 = vmatprep.subr.mxu0 0.0
    %3143 = vmatpush1.msra.mxu0 0.0
    %3144 = vmatprep.subr.mxu0 0.0
    %3145 = vmatpush1.msra.mxu0 0.0
    %3146 = vmatprep.subr.mxu0 0.0
    %3147 = vmatpush1.msra.mxu0 0.0
    %3148 = vmatprep.subr.mxu0 0.0
    %3149 = vmatpush1.msra.mxu0 0.0
    %3150 = vmatprep.subr.mxu0 0.0
    %3151 = vmatpush1.msra.mxu0 0.0
    %3152 = vmatprep.subr.mxu0 0.0
    %3153 = vmatpush1.msra.mxu0 0.0
    %3154 = vmatprep.subr.mxu0 0.0
    %3155 = vmatpush1.msra.mxu0 0.0
    %3156 = vmatprep.subr.mxu0 0.0
    %3157 = vmatpush1.msra.mxu0 0.0
    %3158 = vmatprep.subr.mxu0 0.0
    %3159 = vmatpush1.msra.mxu0 0.0
    %3160 = vmatprep.subr.mxu0 0.0
    %3161 = vmatpush1.msra.mxu0 %v3122
    %3162 = vmatprep.subr.mxu0 0.0
    %3163 = vmatpush1.msra.mxu0 %v3121
    %3164 = vmatprep.subr.mxu0 0.0
    %3165 = vmatpush1.msra.mxu0 %v3120
    %3166 = vmatprep.subr.mxu0 0.0
    %3167 = vmatpush1.msra.mxu0 %v3119
    %3168 = vmatprep.subr.mxu0 0.0
    %3169 = vmatpush2.msra.mxu0 0.0
    %3170 = vmatprep.subr.mxu0 0.0
    %3171 = vmatpush2.msra.mxu0 0.0
    %3172 = vmatprep.subr.mxu0 0.0
    %3173 = vmatpush2.msra.mxu0 0.0
    %3174 = vmatprep.subr.mxu0 0.0
    %3175 = vmatpush2.msra.mxu0 0.0
    %3176 = vmatprep.subr.mxu0 0.0
    %3177 = vmatpush2.msra.mxu0 0.0
    %3178 = vmatprep.subr.mxu0 0.0
    %3179 = vmatpush2.msra.mxu0 0.0
    %3180 = vmatprep.subr.mxu0 0.0
    %3181 = vmatpush2.msra.mxu0 0.0
    %3182 = vmatprep.subr.mxu0 0.0
    %3183 = vmatpush2.msra.mxu0 0.0
    %3184 = vmatprep.subr.mxu0 0.0
    %3185 = vmatpush2.msra.mxu0 0.0
    %3186 = vmatprep.subr.mxu0 0.0
    %3187 = vmatpush2.msra.mxu0 0.0
    %3188 = vmatprep.subr.mxu0 0.0
    %3189 = vmatpush2.msra.mxu0 0.0
    %3190 = vmatprep.subr.mxu0 0.0
    %3191 = vmatpush2.msra.mxu0 0.0
    %3192 = vmatprep.subr.mxu0 0.0
    %3193 = vmatpush2.msra.mxu0 0.0
    %3194 = vmatprep.subr.mxu0 0.0
    %3195 = vmatpush2.msra.mxu0 0.0
    %3196 = vmatprep.subr.mxu0 0.0
    %3197 = vmatpush2.msra.mxu0 0.0
    %3198 = vmatprep.subr.mxu0 0.0
    %3199 = vmatpush2.msra.mxu0 0.0
    %3200 = vmatprep.mubr.f32.mxu0 0.0
    %3201 = vmatmul.mubr.f32.gmra.mxu0 %v3131
    %v3202 = vpop.f32.mrf.mxu0
    %v3203 = vadd.f32 %v3128, %v3202
    %v3204 = vpop.f32.mrf.mxu0
    %3205 = vmatprep.mubr.f32.mxu0 0.0
    %3206 = vmatmul.mubr.f32.gmra.mxu0 %v3134
    %v3207 = vpop.f32.mrf.mxu0
    %v3208 = vadd.f32 %v3128, %v3207
    %v3209 = vpop.f32.mrf.mxu0
    %3210 = vdwg.mxu0
    %v3211 = vld [vmem:[%s33] sm:$0xff]
    %v3212 = vld [vmem:[%s33 + $0x8] sm:$0xff]
    %v3213 = vld [vmem:[%s33 + $0x10] sm:$0xff]
    %v3214 = vld [vmem:[%s33 + $0x18] sm:$0xff]
    %3217 = vrot.lane.b32.xlu0 %v3203, 96
    %v3218 = vpop.permute.xlu0 %3217
    %3219 = vrot.lane.b32.xlu0 %v3208, 96
    %v3220 = vpop.permute.xlu0 %3219
    %v3221 = vsel %vm264, %v3203, 0
    %v3223 = vsel %vm264, %v3208, 0
    %v3225 = vsel %vm264, %v3218, 0
    %v3227 = vsel %vm264, %v3220, 0
    %3229 = vmatprep.subr.mxu0 0.0
    %3230 = vmatpush1.xpose.msra.mxu0 0.0
    %3231 = vmatprep.subr.mxu0 0.0
    %3232 = vmatpush1.xpose.msra.mxu0 0.0
    %3233 = vmatprep.subr.mxu0 0.0
    %3234 = vmatpush1.xpose.msra.mxu0 0.0
    %3235 = vmatprep.subr.mxu0 0.0
    %3236 = vmatpush1.xpose.msra.mxu0 0.0
    %3237 = vmatprep.subr.mxu0 0.0
    %3238 = vmatpush1.xpose.msra.mxu0 0.0
    %3239 = vmatprep.subr.mxu0 0.0
    %3240 = vmatpush1.xpose.msra.mxu0 0.0
    %3241 = vmatprep.subr.mxu0 0.0
    %3242 = vmatpush1.xpose.msra.mxu0 0.0
    %3243 = vmatprep.subr.mxu0 0.0
    %3244 = vmatpush1.xpose.msra.mxu0 0.0
    %3245 = vmatprep.subr.mxu0 0.0
    %3246 = vmatpush1.xpose.msra.mxu0 0.0
    %3247 = vmatprep.subr.mxu0 0.0
    %3248 = vmatpush1.xpose.msra.mxu0 0.0
    %3249 = vmatprep.subr.mxu0 0.0
    %3250 = vmatpush1.xpose.msra.mxu0 0.0
    %3251 = vmatprep.subr.mxu0 0.0
    %3252 = vmatpush1.xpose.msra.mxu0 0.0
    %3253 = vmatprep.subr.mxu0 0.0
    %3254 = vmatpush1.xpose.msra.mxu0 0.0
    %3255 = vmatprep.subr.mxu0 0.0
    %3256 = vmatpush1.xpose.msra.mxu0 0.0
    %3257 = vmatprep.subr.mxu0 0.0
    %3258 = vmatpush1.xpose.msra.mxu0 %v3227
    %3259 = vmatprep.subr.mxu0 0.0
    %3260 = vmatpush1.xpose.msra.mxu0 %v3225
    %3261 = vmatprep.subr.mxu0 0.0
    %3262 = vmatpush2.xpose.msra.mxu0 0.0
    %3263 = vmatprep.subr.mxu0 0.0
    %3264 = vmatpush2.xpose.msra.mxu0 0.0
    %3265 = vmatprep.subr.mxu0 0.0
    %3266 = vmatpush2.xpose.msra.mxu0 0.0
    %3267 = vmatprep.subr.mxu0 0.0
    %3268 = vmatpush2.xpose.msra.mxu0 0.0
    %3269 = vmatprep.subr.mxu0 0.0
    %3270 = vmatpush2.xpose.msra.mxu0 0.0
    %3271 = vmatprep.subr.mxu0 0.0
    %3272 = vmatpush2.xpose.msra.mxu0 0.0
    %3273 = vmatprep.subr.mxu0 0.0
    %3274 = vmatpush2.xpose.msra.mxu0 0.0
    %3275 = vmatprep.subr.mxu0 0.0
    %3276 = vmatpush2.xpose.msra.mxu0 0.0
    %3277 = vmatprep.subr.mxu0 0.0
    %3278 = vmatpush2.xpose.msra.mxu0 0.0
    %3279 = vmatprep.subr.mxu0 0.0
    %3280 = vmatpush2.xpose.msra.mxu0 0.0
    %3281 = vmatprep.subr.mxu0 0.0
    %3282 = vmatpush2.xpose.msra.mxu0 0.0
    %3283 = vmatprep.subr.mxu0 0.0
    %3284 = vmatpush2.xpose.msra.mxu0 0.0
    %3285 = vmatprep.subr.mxu0 0.0
    %3286 = vmatpush2.xpose.msra.mxu0 0.0
    %3287 = vmatprep.subr.mxu0 0.0
    %3288 = vmatpush2.xpose.msra.mxu0 0.0
    %3289 = vmatprep.subr.mxu0 0.0
    %3290 = vmatpush2.xpose.msra.mxu0 0.0
    %3291 = vmatprep.subr.mxu0 0.0
    %3292 = vmatpush2.xpose.msra.mxu0 0.0
    %3293 = vmatprep.mubr.f32.mxu0 0.0
    %3294 = vmatmul.mubr.f32.gmra.mxu0 %v3221
    %v3295 = vpop.f32.mrf.mxu0
    %v3296 = vadd.f32 %v139, %v3295
    %v3297 = vpop.f32.mrf.mxu0
    %3298 = vmatprep.mubr.f32.mxu0 0.0
    %3299 = vmatmul.mubr.f32.gmra.mxu0 %v3223
    %v3300 = vpop.f32.mrf.mxu0
    %v3301 = vadd.f32 %v140, %v3300
    %v3302 = vpop.f32.mrf.mxu0
    %3303 = vdwg.mxu0
    %v3304 = vsel %vm348, %v3296, -inf
    %3305 = vmax.xlane.f32.xlu0 %v3304
    %v3306 = vpop.xlane.xlu0 %3305
    %v3307 = vsel %vm348, %v3301, -inf
    %3308 = vmax.xlane.f32.xlu0 %v3307
    %v3309 = vpop.xlane.xlu0 %3308
    %v3310 = vsub.f32 %v3296, %v3306
    %v3311 = vsub.f32 %v3301, %v3309
    %v3312 = vmul.f32 %v3310, 1.442695
    %v3313 = vpow.pop %v3312
    %v3314 = vmul.f32 %v3311, 1.442695
    %v3315 = vpow.pop %v3314
    %v3316 = vsel %vm348, %v3313, 0.0
    %3317 = vadd.xlane.f32.xlu0 %v3316
    %v3318 = vpop.xlane.xlu0 %3317
    %v3319 = vsel %vm348, %v3315, 0.0
    %3320 = vadd.xlane.f32.xlu0 %v3319
    %v3321 = vpop.xlane.xlu0 %3320
    %v3322 = vrcp.pop %v3318
    %v3323 = vrcp.pop %v3321
    %v3324 = vmul.f32 %v3313, %v3322
    %v3325 = vmul.f32 %v3315, %v3323
    %3326 = vrot.lane.b32.xlu0 %v3203, 64
    %v3327 = vpop.permute.xlu0 %3326
    %3328 = vrot.lane.b32.xlu0 %v3208, 64
    %v3329 = vpop.permute.xlu0 %3328
    %v3333 = vsel %vm348, %v3324, 0
    %v3336 = vsel %vm348, %v3325, 0
    %3338 = vmatprep.subr.mxu0 0.0
    %3339 = vmatpush1.msra.mxu0 0.0
    %3340 = vmatprep.subr.mxu0 0.0
    %3341 = vmatpush1.msra.mxu0 0.0
    %3342 = vmatprep.subr.mxu0 0.0
    %3343 = vmatpush1.msra.mxu0 0.0
    %3344 = vmatprep.subr.mxu0 0.0
    %3345 = vmatpush1.msra.mxu0 0.0
    %3346 = vmatprep.subr.mxu0 0.0
    %3347 = vmatpush1.msra.mxu0 0.0
    %3348 = vmatprep.subr.mxu0 0.0
    %3349 = vmatpush1.msra.mxu0 0.0
    %3350 = vmatprep.subr.mxu0 0.0
    %3351 = vmatpush1.msra.mxu0 0.0
    %3352 = vmatprep.subr.mxu0 0.0
    %3353 = vmatpush1.msra.mxu0 0.0
    %3354 = vmatprep.subr.mxu0 0.0
    %3355 = vmatpush1.msra.mxu0 0.0
    %3356 = vmatprep.subr.mxu0 0.0
    %3357 = vmatpush1.msra.mxu0 0.0
    %3358 = vmatprep.subr.mxu0 0.0
    %3359 = vmatpush1.msra.mxu0 0.0
    %3360 = vmatprep.subr.mxu0 0.0
    %3361 = vmatpush1.msra.mxu0 0.0
    %3362 = vmatprep.subr.mxu0 0.0
    %3363 = vmatpush1.msra.mxu0 0.0
    %3364 = vmatprep.subr.mxu0 0.0
    %3365 = vmatpush1.msra.mxu0 0.0
    %3366 = vmatprep.subr.mxu0 0.0
    %3367 = vmatpush1.msra.mxu0 %v3329
    %3368 = vmatprep.subr.mxu0 0.0
    %3369 = vmatpush1.msra.mxu0 %v3327
    %3370 = vmatprep.subr.mxu0 0.0
    %3371 = vmatpush2.msra.mxu0 0.0
    %3372 = vmatprep.subr.mxu0 0.0
    %3373 = vmatpush2.msra.mxu0 0.0
    %3374 = vmatprep.subr.mxu0 0.0
    %3375 = vmatpush2.msra.mxu0 0.0
    %3376 = vmatprep.subr.mxu0 0.0
    %3377 = vmatpush2.msra.mxu0 0.0
    %3378 = vmatprep.subr.mxu0 0.0
    %3379 = vmatpush2.msra.mxu0 0.0
    %3380 = vmatprep.subr.mxu0 0.0
    %3381 = vmatpush2.msra.mxu0 0.0
    %3382 = vmatprep.subr.mxu0 0.0
    %3383 = vmatpush2.msra.mxu0 0.0
    %3384 = vmatprep.subr.mxu0 0.0
    %3385 = vmatpush2.msra.mxu0 0.0
    %3386 = vmatprep.subr.mxu0 0.0
    %3387 = vmatpush2.msra.mxu0 0.0
    %3388 = vmatprep.subr.mxu0 0.0
    %3389 = vmatpush2.msra.mxu0 0.0
    %3390 = vmatprep.subr.mxu0 0.0
    %3391 = vmatpush2.msra.mxu0 0.0
    %3392 = vmatprep.subr.mxu0 0.0
    %3393 = vmatpush2.msra.mxu0 0.0
    %3394 = vmatprep.subr.mxu0 0.0
    %3395 = vmatpush2.msra.mxu0 0.0
    %3396 = vmatprep.subr.mxu0 0.0
    %3397 = vmatpush2.msra.mxu0 0.0
    %3398 = vmatprep.subr.mxu0 0.0
    %3399 = vmatpush2.msra.mxu0 0.0
    %3400 = vmatprep.subr.mxu0 0.0
    %3401 = vmatpush2.msra.mxu0 0.0
    %3402 = vmatprep.mubr.f32.mxu0 0.0
    %3403 = vmatmul.mubr.f32.gmra.mxu0 %v3333
    %v3404 = vpop.f32.mrf.mxu0
    %v3405 = vadd.f32 0.0, %v3404
    %v3406 = vpop.f32.mrf.mxu0
    %3407 = vmatprep.mubr.f32.mxu0 0.0
    %3408 = vmatmul.mubr.f32.gmra.mxu0 %v3336
    %v3409 = vpop.f32.mrf.mxu0
    %v3410 = vadd.f32 0.0, %v3409
    %v3411 = vpop.f32.mrf.mxu0
    %3412 = vdwg.mxu0
    %3413 = vrot.lane.b32.xlu0 %v3203, 120
    %v3414 = vpop.permute.xlu0 %3413
    %3415 = vrot.lane.b32.xlu0 %v3208, 120
    %v3416 = vpop.permute.xlu0 %3415
    %3417 = vrot.lane.b32.xlu0 %v3203, 88
    %v3418 = vpop.permute.xlu0 %3417
    %3419 = vrot.lane.b32.xlu0 %v3208, 88
    %v3420 = vpop.permute.xlu0 %3419
    %v3421 = vsel %vm264, %v3414, 0
    %v3423 = vsel %vm264, %v3416, 0
    %v3425 = vsel %vm264, %v3418, 0
    %v3427 = vsel %vm264, %v3420, 0
    %3429 = vmatprep.subr.mxu0 0.0
    %3430 = vmatpush1.xpose.msra.mxu0 0.0
    %3431 = vmatprep.subr.mxu0 0.0
    %3432 = vmatpush1.xpose.msra.mxu0 0.0
    %3433 = vmatprep.subr.mxu0 0.0
    %3434 = vmatpush1.xpose.msra.mxu0 0.0
    %3435 = vmatprep.subr.mxu0 0.0
    %3436 = vmatpush1.xpose.msra.mxu0 0.0
    %3437 = vmatprep.subr.mxu0 0.0
    %3438 = vmatpush1.xpose.msra.mxu0 0.0
    %3439 = vmatprep.subr.mxu0 0.0
    %3440 = vmatpush1.xpose.msra.mxu0 0.0
    %3441 = vmatprep.subr.mxu0 0.0
    %3442 = vmatpush1.xpose.msra.mxu0 0.0
    %3443 = vmatprep.subr.mxu0 0.0
    %3444 = vmatpush1.xpose.msra.mxu0 0.0
    %3445 = vmatprep.subr.mxu0 0.0
    %3446 = vmatpush1.xpose.msra.mxu0 0.0
    %3447 = vmatprep.subr.mxu0 0.0
    %3448 = vmatpush1.xpose.msra.mxu0 0.0
    %3449 = vmatprep.subr.mxu0 0.0
    %3450 = vmatpush1.xpose.msra.mxu0 0.0
    %3451 = vmatprep.subr.mxu0 0.0
    %3452 = vmatpush1.xpose.msra.mxu0 0.0
    %3453 = vmatprep.subr.mxu0 0.0
    %3454 = vmatpush1.xpose.msra.mxu0 0.0
    %3455 = vmatprep.subr.mxu0 0.0
    %3456 = vmatpush1.xpose.msra.mxu0 0.0
    %3457 = vmatprep.subr.mxu0 0.0
    %3458 = vmatpush1.xpose.msra.mxu0 %v3427
    %3459 = vmatprep.subr.mxu0 0.0
    %3460 = vmatpush1.xpose.msra.mxu0 %v3425
    %3461 = vmatprep.subr.mxu0 0.0
    %3462 = vmatpush2.xpose.msra.mxu0 0.0
    %3463 = vmatprep.subr.mxu0 0.0
    %3464 = vmatpush2.xpose.msra.mxu0 0.0
    %3465 = vmatprep.subr.mxu0 0.0
    %3466 = vmatpush2.xpose.msra.mxu0 0.0
    %3467 = vmatprep.subr.mxu0 0.0
    %3468 = vmatpush2.xpose.msra.mxu0 0.0
    %3469 = vmatprep.subr.mxu0 0.0
    %3470 = vmatpush2.xpose.msra.mxu0 0.0
    %3471 = vmatprep.subr.mxu0 0.0
    %3472 = vmatpush2.xpose.msra.mxu0 0.0
    %3473 = vmatprep.subr.mxu0 0.0
    %3474 = vmatpush2.xpose.msra.mxu0 0.0
    %3475 = vmatprep.subr.mxu0 0.0
    %3476 = vmatpush2.xpose.msra.mxu0 0.0
    %3477 = vmatprep.subr.mxu0 0.0
    %3478 = vmatpush2.xpose.msra.mxu0 0.0
    %3479 = vmatprep.subr.mxu0 0.0
    %3480 = vmatpush2.xpose.msra.mxu0 0.0
    %3481 = vmatprep.subr.mxu0 0.0
    %3482 = vmatpush2.xpose.msra.mxu0 0.0
    %3483 = vmatprep.subr.mxu0 0.0
    %3484 = vmatpush2.xpose.msra.mxu0 0.0
    %3485 = vmatprep.subr.mxu0 0.0
    %3486 = vmatpush2.xpose.msra.mxu0 0.0
    %3487 = vmatprep.subr.mxu0 0.0
    %3488 = vmatpush2.xpose.msra.mxu0 0.0
    %3489 = vmatprep.subr.mxu0 0.0
    %3490 = vmatpush2.xpose.msra.mxu0 0.0
    %3491 = vmatprep.subr.mxu0 0.0
    %3492 = vmatpush2.xpose.msra.mxu0 0.0
    %3493 = vmatprep.mubr.f32.mxu0 0.0
    %3494 = vmatmul.mubr.f32.gmra.mxu0 %v3421
    %v3495 = vpop.f32.mrf.mxu0
    %v3496 = vadd.f32 %v139, %v3495
    %v3497 = vpop.f32.mrf.mxu0
    %3498 = vmatprep.mubr.f32.mxu0 0.0
    %3499 = vmatmul.mubr.f32.gmra.mxu0 %v3423
    %v3500 = vpop.f32.mrf.mxu0
    %v3501 = vadd.f32 %v140, %v3500
    %v3502 = vpop.f32.mrf.mxu0
    %3503 = vdwg.mxu0
    %v3504 = vsel %vm348, %v3496, -inf
    %3505 = vmax.xlane.f32.xlu0 %v3504
    %v3506 = vpop.xlane.xlu0 %3505
    %v3507 = vsel %vm348, %v3501, -inf
    %3508 = vmax.xlane.f32.xlu0 %v3507
    %v3509 = vpop.xlane.xlu0 %3508
    %v3510 = vsub.f32 %v3496, %v3506
    %v3511 = vsub.f32 %v3501, %v3509
    %v3512 = vmul.f32 %v3510, 1.442695
    %v3513 = vpow.pop %v3512
    %v3514 = vmul.f32 %v3511, 1.442695
    %v3515 = vpow.pop %v3514
    %v3516 = vsel %vm348, %v3513, 0.0
    %3517 = vadd.xlane.f32.xlu0 %v3516
    %v3518 = vpop.xlane.xlu0 %3517
    %v3519 = vsel %vm348, %v3515, 0.0
    %3520 = vadd.xlane.f32.xlu0 %v3519
    %v3521 = vpop.xlane.xlu0 %3520
    %v3522 = vrcp.pop %v3518
    %v3523 = vrcp.pop %v3521
    %v3524 = vmul.f32 %v3513, %v3522
    %v3525 = vmul.f32 %v3515, %v3523
    %3526 = vrot.lane.b32.xlu0 %v3203, 56
    %v3527 = vpop.permute.xlu0 %3526
    %3528 = vrot.lane.b32.xlu0 %v3208, 56
    %v3529 = vpop.permute.xlu0 %3528
    %v3533 = vsel %vm348, %v3524, 0
    %v3536 = vsel %vm348, %v3525, 0
    %3538 = vmatprep.subr.mxu0 0.0
    %3539 = vmatpush1.msra.mxu0 0.0
    %3540 = vmatprep.subr.mxu0 0.0
    %3541 = vmatpush1.msra.mxu0 0.0
    %3542 = vmatprep.subr.mxu0 0.0
    %3543 = vmatpush1.msra.mxu0 0.0
    %3544 = vmatprep.subr.mxu0 0.0
    %3545 = vmatpush1.msra.mxu0 0.0
    %3546 = vmatprep.subr.mxu0 0.0
    %3547 = vmatpush1.msra.mxu0 0.0
    %3548 = vmatprep.subr.mxu0 0.0
    %3549 = vmatpush1.msra.mxu0 0.0
    %3550 = vmatprep.subr.mxu0 0.0
    %3551 = vmatpush1.msra.mxu0 0.0
    %3552 = vmatprep.subr.mxu0 0.0
    %3553 = vmatpush1.msra.mxu0 0.0
    %3554 = vmatprep.subr.mxu0 0.0
    %3555 = vmatpush1.msra.mxu0 0.0
    %3556 = vmatprep.subr.mxu0 0.0
    %3557 = vmatpush1.msra.mxu0 0.0
    %3558 = vmatprep.subr.mxu0 0.0
    %3559 = vmatpush1.msra.mxu0 0.0
    %3560 = vmatprep.subr.mxu0 0.0
    %3561 = vmatpush1.msra.mxu0 0.0
    %3562 = vmatprep.subr.mxu0 0.0
    %3563 = vmatpush1.msra.mxu0 0.0
    %3564 = vmatprep.subr.mxu0 0.0
    %3565 = vmatpush1.msra.mxu0 0.0
    %3566 = vmatprep.subr.mxu0 0.0
    %3567 = vmatpush1.msra.mxu0 %v3529
    %3568 = vmatprep.subr.mxu0 0.0
    %3569 = vmatpush1.msra.mxu0 %v3527
    %3570 = vmatprep.subr.mxu0 0.0
    %3571 = vmatpush2.msra.mxu0 0.0
    %3572 = vmatprep.subr.mxu0 0.0
    %3573 = vmatpush2.msra.mxu0 0.0
    %3574 = vmatprep.subr.mxu0 0.0
    %3575 = vmatpush2.msra.mxu0 0.0
    %3576 = vmatprep.subr.mxu0 0.0
    %3577 = vmatpush2.msra.mxu0 0.0
    %3578 = vmatprep.subr.mxu0 0.0
    %3579 = vmatpush2.msra.mxu0 0.0
    %3580 = vmatprep.subr.mxu0 0.0
    %3581 = vmatpush2.msra.mxu0 0.0
    %3582 = vmatprep.subr.mxu0 0.0
    %3583 = vmatpush2.msra.mxu0 0.0
    %3584 = vmatprep.subr.mxu0 0.0
    %3585 = vmatpush2.msra.mxu0 0.0
    %3586 = vmatprep.subr.mxu0 0.0
    %3587 = vmatpush2.msra.mxu0 0.0
    %3588 = vmatprep.subr.mxu0 0.0
    %3589 = vmatpush2.msra.mxu0 0.0
    %3590 = vmatprep.subr.mxu0 0.0
    %3591 = vmatpush2.msra.mxu0 0.0
    %3592 = vmatprep.subr.mxu0 0.0
    %3593 = vmatpush2.msra.mxu0 0.0
    %3594 = vmatprep.subr.mxu0 0.0
    %3595 = vmatpush2.msra.mxu0 0.0
    %3596 = vmatprep.subr.mxu0 0.0
    %3597 = vmatpush2.msra.mxu0 0.0
    %3598 = vmatprep.subr.mxu0 0.0
    %3599 = vmatpush2.msra.mxu0 0.0
    %3600 = vmatprep.subr.mxu0 0.0
    %3601 = vmatpush2.msra.mxu0 0.0
    %3602 = vmatprep.mubr.f32.mxu0 0.0
    %3603 = vmatmul.mubr.f32.gmra.mxu0 %v3533
    %v3604 = vpop.f32.mrf.mxu0
    %v3605 = vadd.f32 0.0, %v3604
    %v3606 = vpop.f32.mrf.mxu0
    %3607 = vmatprep.mubr.f32.mxu0 0.0
    %3608 = vmatmul.mubr.f32.gmra.mxu0 %v3536
    %v3609 = vpop.f32.mrf.mxu0
    %v3610 = vadd.f32 0.0, %v3609
    %v3611 = vpop.f32.mrf.mxu0
    %3612 = vdwg.mxu0
    %v3614 = vsel %vm264, %v3605, 0
    %v3617 = vsel %vm264, %v3610, 0
    %3619 = vmatprep.subr.mxu0 0.0
    %3620 = vmatpush1.msra.mxu0 0.0
    %3621 = vmatprep.subr.mxu0 0.0
    %3622 = vmatpush1.msra.mxu0 0.0
    %3623 = vmatprep.subr.mxu0 0.0
    %3624 = vmatpush1.msra.mxu0 0.0
    %3625 = vmatprep.subr.mxu0 0.0
    %3626 = vmatpush1.msra.mxu0 0.0
    %3627 = vmatprep.subr.mxu0 0.0
    %3628 = vmatpush1.msra.mxu0 0.0
    %3629 = vmatprep.subr.mxu0 0.0
    %3630 = vmatpush1.msra.mxu0 0.0
    %3631 = vmatprep.subr.mxu0 0.0
    %3632 = vmatpush1.msra.mxu0 0.0
    %3633 = vmatprep.subr.mxu0 0.0
    %3634 = vmatpush1.msra.mxu0 0.0
    %3635 = vmatprep.subr.mxu0 0.0
    %3636 = vmatpush1.msra.mxu0 0.0
    %3637 = vmatprep.subr.mxu0 0.0
    %3638 = vmatpush1.msra.mxu0 0.0
    %3639 = vmatprep.subr.mxu0 0.0
    %3640 = vmatpush1.msra.mxu0 0.0
    %3641 = vmatprep.subr.mxu0 0.0
    %3642 = vmatpush1.msra.mxu0 0.0
    %3643 = vmatprep.subr.mxu0 0.0
    %3644 = vmatpush1.msra.mxu0 0.0
    %3645 = vmatprep.subr.mxu0 0.0
    %3646 = vmatpush1.msra.mxu0 0.0
    %3647 = vmatprep.subr.mxu0 0.0
    %3648 = vmatpush1.msra.mxu0 0.0
    %3649 = vmatprep.subr.mxu0 0.0
    %3650 = vmatpush1.msra.mxu0 %v3212
    %3651 = vmatprep.subr.mxu0 0.0
    %3652 = vmatpush2.msra.mxu0 0.0
    %3653 = vmatprep.subr.mxu0 0.0
    %3654 = vmatpush2.msra.mxu0 0.0
    %3655 = vmatprep.subr.mxu0 0.0
    %3656 = vmatpush2.msra.mxu0 0.0
    %3657 = vmatprep.subr.mxu0 0.0
    %3658 = vmatpush2.msra.mxu0 0.0
    %3659 = vmatprep.subr.mxu0 0.0
    %3660 = vmatpush2.msra.mxu0 0.0
    %3661 = vmatprep.subr.mxu0 0.0
    %3662 = vmatpush2.msra.mxu0 0.0
    %3663 = vmatprep.subr.mxu0 0.0
    %3664 = vmatpush2.msra.mxu0 0.0
    %3665 = vmatprep.subr.mxu0 0.0
    %3666 = vmatpush2.msra.mxu0 0.0
    %3667 = vmatprep.subr.mxu0 0.0
    %3668 = vmatpush2.msra.mxu0 0.0
    %3669 = vmatprep.subr.mxu0 0.0
    %3670 = vmatpush2.msra.mxu0 0.0
    %3671 = vmatprep.subr.mxu0 0.0
    %3672 = vmatpush2.msra.mxu0 0.0
    %3673 = vmatprep.subr.mxu0 0.0
    %3674 = vmatpush2.msra.mxu0 0.0
    %3675 = vmatprep.subr.mxu0 0.0
    %3676 = vmatpush2.msra.mxu0 0.0
    %3677 = vmatprep.subr.mxu0 0.0
    %3678 = vmatpush2.msra.mxu0 0.0
    %3679 = vmatprep.subr.mxu0 0.0
    %3680 = vmatpush2.msra.mxu0 0.0
    %3681 = vmatprep.subr.mxu0 0.0
    %3682 = vmatpush2.msra.mxu0 0.0
    %3683 = vmatprep.mubr.f32.mxu0 0.0
    %3684 = vmatmul.mubr.f32.gmra.mxu0 %v3614
    %v3685 = vpop.f32.mrf.mxu0
    %v3686 = vadd.f32 0.0, %v3685
    %v3687 = vpop.f32.mrf.mxu0
    %3688 = vmatprep.mubr.f32.mxu0 0.0
    %3689 = vmatmul.mubr.f32.gmra.mxu0 %v3617
    %v3690 = vpop.f32.mrf.mxu0
    %v3691 = vadd.f32 0.0, %v3690
    %v3692 = vpop.f32.mrf.mxu0
    %3693 = vdwg.mxu0
    %v3695 = vsel %vm264, %v3405, 0
    %v3698 = vsel %vm264, %v3410, 0
    %3700 = vmatprep.subr.mxu0 0.0
    %3701 = vmatpush1.msra.mxu0 0.0
    %3702 = vmatprep.subr.mxu0 0.0
    %3703 = vmatpush1.msra.mxu0 0.0
    %3704 = vmatprep.subr.mxu0 0.0
    %3705 = vmatpush1.msra.mxu0 0.0
    %3706 = vmatprep.subr.mxu0 0.0
    %3707 = vmatpush1.msra.mxu0 0.0
    %3708 = vmatprep.subr.mxu0 0.0
    %3709 = vmatpush1.msra.mxu0 0.0
    %3710 = vmatprep.subr.mxu0 0.0
    %3711 = vmatpush1.msra.mxu0 0.0
    %3712 = vmatprep.subr.mxu0 0.0
    %3713 = vmatpush1.msra.mxu0 0.0
    %3714 = vmatprep.subr.mxu0 0.0
    %3715 = vmatpush1.msra.mxu0 0.0
    %3716 = vmatprep.subr.mxu0 0.0
    %3717 = vmatpush1.msra.mxu0 0.0
    %3718 = vmatprep.subr.mxu0 0.0
    %3719 = vmatpush1.msra.mxu0 0.0
    %3720 = vmatprep.subr.mxu0 0.0
    %3721 = vmatpush1.msra.mxu0 0.0
    %3722 = vmatprep.subr.mxu0 0.0
    %3723 = vmatpush1.msra.mxu0 0.0
    %3724 = vmatprep.subr.mxu0 0.0
    %3725 = vmatpush1.msra.mxu0 0.0
    %3726 = vmatprep.subr.mxu0 0.0
    %3727 = vmatpush1.msra.mxu0 0.0
    %3728 = vmatprep.subr.mxu0 0.0
    %3729 = vmatpush1.msra.mxu0 0.0
    %3730 = vmatprep.subr.mxu0 0.0
    %3731 = vmatpush1.msra.mxu0 %v3211
    %3732 = vmatprep.subr.mxu0 0.0
    %3733 = vmatpush2.msra.mxu0 0.0
    %3734 = vmatprep.subr.mxu0 0.0
    %3735 = vmatpush2.msra.mxu0 0.0
    %3736 = vmatprep.subr.mxu0 0.0
    %3737 = vmatpush2.msra.mxu0 0.0
    %3738 = vmatprep.subr.mxu0 0.0
    %3739 = vmatpush2.msra.mxu0 0.0
    %3740 = vmatprep.subr.mxu0 0.0
    %3741 = vmatpush2.msra.mxu0 0.0
    %3742 = vmatprep.subr.mxu0 0.0
    %3743 = vmatpush2.msra.mxu0 0.0
    %3744 = vmatprep.subr.mxu0 0.0
    %3745 = vmatpush2.msra.mxu0 0.0
    %3746 = vmatprep.subr.mxu0 0.0
    %3747 = vmatpush2.msra.mxu0 0.0
    %3748 = vmatprep.subr.mxu0 0.0
    %3749 = vmatpush2.msra.mxu0 0.0
    %3750 = vmatprep.subr.mxu0 0.0
    %3751 = vmatpush2.msra.mxu0 0.0
    %3752 = vmatprep.subr.mxu0 0.0
    %3753 = vmatpush2.msra.mxu0 0.0
    %3754 = vmatprep.subr.mxu0 0.0
    %3755 = vmatpush2.msra.mxu0 0.0
    %3756 = vmatprep.subr.mxu0 0.0
    %3757 = vmatpush2.msra.mxu0 0.0
    %3758 = vmatprep.subr.mxu0 0.0
    %3759 = vmatpush2.msra.mxu0 0.0
    %3760 = vmatprep.subr.mxu0 0.0
    %3761 = vmatpush2.msra.mxu0 0.0
    %3762 = vmatprep.subr.mxu0 0.0
    %3763 = vmatpush2.msra.mxu0 0.0
    %3764 = vmatprep.mubr.f32.mxu0 0.0
    %3765 = vmatmul.mubr.f32.gmra.mxu0 %v3695
    %v3766 = vpop.f32.mrf.mxu0
    %v3767 = vadd.f32 %v3686, %v3766
    %v3768 = vpop.f32.mrf.mxu0
    %3769 = vmatprep.mubr.f32.mxu0 0.0
    %3770 = vmatmul.mubr.f32.gmra.mxu0 %v3698
    %v3771 = vpop.f32.mrf.mxu0
    %v3772 = vadd.f32 %v3691, %v3771
    %v3773 = vpop.f32.mrf.mxu0
    %3774 = vdwg.mxu0
    %3775 = vrot.lane.b32.xlu0 %v3203, 112
    %v3776 = vpop.permute.xlu0 %3775
    %3777 = vrot.lane.b32.xlu0 %v3208, 112
    %v3778 = vpop.permute.xlu0 %3777
    %3779 = vrot.lane.b32.xlu0 %v3203, 80
    %v3780 = vpop.permute.xlu0 %3779
    %3781 = vrot.lane.b32.xlu0 %v3208, 80
    %v3782 = vpop.permute.xlu0 %3781
    %v3783 = vsel %vm264, %v3776, 0
    %v3785 = vsel %vm264, %v3778, 0
    %v3787 = vsel %vm264, %v3780, 0
    %v3789 = vsel %vm264, %v3782, 0
    %3791 = vmatprep.subr.mxu0 0.0
    %3792 = vmatpush1.xpose.msra.mxu0 0.0
    %3793 = vmatprep.subr.mxu0 0.0
    %3794 = vmatpush1.xpose.msra.mxu0 0.0
    %3795 = vmatprep.subr.mxu0 0.0
    %3796 = vmatpush1.xpose.msra.mxu0 0.0
    %3797 = vmatprep.subr.mxu0 0.0
    %3798 = vmatpush1.xpose.msra.mxu0 0.0
    %3799 = vmatprep.subr.mxu0 0.0
    %3800 = vmatpush1.xpose.msra.mxu0 0.0
    %3801 = vmatprep.subr.mxu0 0.0
    %3802 = vmatpush1.xpose.msra.mxu0 0.0
    %3803 = vmatprep.subr.mxu0 0.0
    %3804 = vmatpush1.xpose.msra.mxu0 0.0
    %3805 = vmatprep.subr.mxu0 0.0
    %3806 = vmatpush1.xpose.msra.mxu0 0.0
    %3807 = vmatprep.subr.mxu0 0.0
    %3808 = vmatpush1.xpose.msra.mxu0 0.0
    %3809 = vmatprep.subr.mxu0 0.0
    %3810 = vmatpush1.xpose.msra.mxu0 0.0
    %3811 = vmatprep.subr.mxu0 0.0
    %3812 = vmatpush1.xpose.msra.mxu0 0.0
    %3813 = vmatprep.subr.mxu0 0.0
    %3814 = vmatpush1.xpose.msra.mxu0 0.0
    %3815 = vmatprep.subr.mxu0 0.0
    %3816 = vmatpush1.xpose.msra.mxu0 0.0
    %3817 = vmatprep.subr.mxu0 0.0
    %3818 = vmatpush1.xpose.msra.mxu0 0.0
    %3819 = vmatprep.subr.mxu0 0.0
    %3820 = vmatpush1.xpose.msra.mxu0 %v3789
    %3821 = vmatprep.subr.mxu0 0.0
    %3822 = vmatpush1.xpose.msra.mxu0 %v3787
    %3823 = vmatprep.subr.mxu0 0.0
    %3824 = vmatpush2.xpose.msra.mxu0 0.0
    %3825 = vmatprep.subr.mxu0 0.0
    %3826 = vmatpush2.xpose.msra.mxu0 0.0
    %3827 = vmatprep.subr.mxu0 0.0
    %3828 = vmatpush2.xpose.msra.mxu0 0.0
    %3829 = vmatprep.subr.mxu0 0.0
    %3830 = vmatpush2.xpose.msra.mxu0 0.0
    %3831 = vmatprep.subr.mxu0 0.0
    %3832 = vmatpush2.xpose.msra.mxu0 0.0
    %3833 = vmatprep.subr.mxu0 0.0
    %3834 = vmatpush2.xpose.msra.mxu0 0.0
    %3835 = vmatprep.subr.mxu0 0.0
    %3836 = vmatpush2.xpose.msra.mxu0 0.0
    %3837 = vmatprep.subr.mxu0 0.0
    %3838 = vmatpush2.xpose.msra.mxu0 0.0
    %3839 = vmatprep.subr.mxu0 0.0
    %3840 = vmatpush2.xpose.msra.mxu0 0.0
    %3841 = vmatprep.subr.mxu0 0.0
    %3842 = vmatpush2.xpose.msra.mxu0 0.0
    %3843 = vmatprep.subr.mxu0 0.0
    %3844 = vmatpush2.xpose.msra.mxu0 0.0
    %3845 = vmatprep.subr.mxu0 0.0
    %3846 = vmatpush2.xpose.msra.mxu0 0.0
    %3847 = vmatprep.subr.mxu0 0.0
    %3848 = vmatpush2.xpose.msra.mxu0 0.0
    %3849 = vmatprep.subr.mxu0 0.0
    %3850 = vmatpush2.xpose.msra.mxu0 0.0
    %3851 = vmatprep.subr.mxu0 0.0
    %3852 = vmatpush2.xpose.msra.mxu0 0.0
    %3853 = vmatprep.subr.mxu0 0.0
    %3854 = vmatpush2.xpose.msra.mxu0 0.0
    %3855 = vmatprep.mubr.f32.mxu0 0.0
    %3856 = vmatmul.mubr.f32.gmra.mxu0 %v3783
    %v3857 = vpop.f32.mrf.mxu0
    %v3858 = vadd.f32 %v139, %v3857
    %v3859 = vpop.f32.mrf.mxu0
    %3860 = vmatprep.mubr.f32.mxu0 0.0
    %3861 = vmatmul.mubr.f32.gmra.mxu0 %v3785
    %v3862 = vpop.f32.mrf.mxu0
    %v3863 = vadd.f32 %v140, %v3862
    %v3864 = vpop.f32.mrf.mxu0
    %3865 = vdwg.mxu0
    %v3866 = vsel %vm348, %v3858, -inf
    %3867 = vmax.xlane.f32.xlu0 %v3866
    %v3868 = vpop.xlane.xlu0 %3867
    %v3869 = vsel %vm348, %v3863, -inf
    %3870 = vmax.xlane.f32.xlu0 %v3869
    %v3871 = vpop.xlane.xlu0 %3870
    %v3872 = vsub.f32 %v3858, %v3868
    %v3873 = vsub.f32 %v3863, %v3871
    %v3874 = vmul.f32 %v3872, 1.442695
    %v3875 = vpow.pop %v3874
    %v3876 = vmul.f32 %v3873, 1.442695
    %v3877 = vpow.pop %v3876
    %v3878 = vsel %vm348, %v3875, 0.0
    %3879 = vadd.xlane.f32.xlu0 %v3878
    %v3880 = vpop.xlane.xlu0 %3879
    %v3881 = vsel %vm348, %v3877, 0.0
    %3882 = vadd.xlane.f32.xlu0 %v3881
    %v3883 = vpop.xlane.xlu0 %3882
    %v3884 = vrcp.pop %v3880
    %v3885 = vrcp.pop %v3883
    %v3886 = vmul.f32 %v3875, %v3884
    %v3887 = vmul.f32 %v3877, %v3885
    %3888 = vrot.lane.b32.xlu0 %v3203, 48
    %v3889 = vpop.permute.xlu0 %3888
    %3890 = vrot.lane.b32.xlu0 %v3208, 48
    %v3891 = vpop.permute.xlu0 %3890
    %v3895 = vsel %vm348, %v3886, 0
    %v3898 = vsel %vm348, %v3887, 0
    %3900 = vmatprep.subr.mxu0 0.0
    %3901 = vmatpush1.msra.mxu0 0.0
    %3902 = vmatprep.subr.mxu0 0.0
    %3903 = vmatpush1.msra.mxu0 0.0
    %3904 = vmatprep.subr.mxu0 0.0
    %3905 = vmatpush1.msra.mxu0 0.0
    %3906 = vmatprep.subr.mxu0 0.0
    %3907 = vmatpush1.msra.mxu0 0.0
    %3908 = vmatprep.subr.mxu0 0.0
    %3909 = vmatpush1.msra.mxu0 0.0
    %3910 = vmatprep.subr.mxu0 0.0
    %3911 = vmatpush1.msra.mxu0 0.0
    %3912 = vmatprep.subr.mxu0 0.0
    %3913 = vmatpush1.msra.mxu0 0.0
    %3914 = vmatprep.subr.mxu0 0.0
    %3915 = vmatpush1.msra.mxu0 0.0
    %3916 = vmatprep.subr.mxu0 0.0
    %3917 = vmatpush1.msra.mxu0 0.0
    %3918 = vmatprep.subr.mxu0 0.0
    %3919 = vmatpush1.msra.mxu0 0.0
    %3920 = vmatprep.subr.mxu0 0.0
    %3921 = vmatpush1.msra.mxu0 0.0
    %3922 = vmatprep.subr.mxu0 0.0
    %3923 = vmatpush1.msra.mxu0 0.0
    %3924 = vmatprep.subr.mxu0 0.0
    %3925 = vmatpush1.msra.mxu0 0.0
    %3926 = vmatprep.subr.mxu0 0.0
    %3927 = vmatpush1.msra.mxu0 0.0
    %3928 = vmatprep.subr.mxu0 0.0
    %3929 = vmatpush1.msra.mxu0 %v3891
    %3930 = vmatprep.subr.mxu0 0.0
    %3931 = vmatpush1.msra.mxu0 %v3889
    %3932 = vmatprep.subr.mxu0 0.0
    %3933 = vmatpush2.msra.mxu0 0.0
    %3934 = vmatprep.subr.mxu0 0.0
    %3935 = vmatpush2.msra.mxu0 0.0
    %3936 = vmatprep.subr.mxu0 0.0
    %3937 = vmatpush2.msra.mxu0 0.0
    %3938 = vmatprep.subr.mxu0 0.0
    %3939 = vmatpush2.msra.mxu0 0.0
    %3940 = vmatprep.subr.mxu0 0.0
    %3941 = vmatpush2.msra.mxu0 0.0
    %3942 = vmatprep.subr.mxu0 0.0
    %3943 = vmatpush2.msra.mxu0 0.0
    %3944 = vmatprep.subr.mxu0 0.0
    %3945 = vmatpush2.msra.mxu0 0.0
    %3946 = vmatprep.subr.mxu0 0.0
    %3947 = vmatpush2.msra.mxu0 0.0
    %3948 = vmatprep.subr.mxu0 0.0
    %3949 = vmatpush2.msra.mxu0 0.0
    %3950 = vmatprep.subr.mxu0 0.0
    %3951 = vmatpush2.msra.mxu0 0.0
    %3952 = vmatprep.subr.mxu0 0.0
    %3953 = vmatpush2.msra.mxu0 0.0
    %3954 = vmatprep.subr.mxu0 0.0
    %3955 = vmatpush2.msra.mxu0 0.0
    %3956 = vmatprep.subr.mxu0 0.0
    %3957 = vmatpush2.msra.mxu0 0.0
    %3958 = vmatprep.subr.mxu0 0.0
    %3959 = vmatpush2.msra.mxu0 0.0
    %3960 = vmatprep.subr.mxu0 0.0
    %3961 = vmatpush2.msra.mxu0 0.0
    %3962 = vmatprep.subr.mxu0 0.0
    %3963 = vmatpush2.msra.mxu0 0.0
    %3964 = vmatprep.mubr.f32.mxu0 0.0
    %3965 = vmatmul.mubr.f32.gmra.mxu0 %v3895
    %v3966 = vpop.f32.mrf.mxu0
    %v3967 = vadd.f32 0.0, %v3966
    %v3968 = vpop.f32.mrf.mxu0
    %3969 = vmatprep.mubr.f32.mxu0 0.0
    %3970 = vmatmul.mubr.f32.gmra.mxu0 %v3898
    %v3971 = vpop.f32.mrf.mxu0
    %v3972 = vadd.f32 0.0, %v3971
    %v3973 = vpop.f32.mrf.mxu0
    %3974 = vdwg.mxu0
    %v3976 = vsel %vm264, %v3967, 0
    %v3979 = vsel %vm264, %v3972, 0
    %3981 = vmatprep.subr.mxu0 0.0
    %3982 = vmatpush1.msra.mxu0 0.0
    %3983 = vmatprep.subr.mxu0 0.0
    %3984 = vmatpush1.msra.mxu0 0.0
    %3985 = vmatprep.subr.mxu0 0.0
    %3986 = vmatpush1.msra.mxu0 0.0
    %3987 = vmatprep.subr.mxu0 0.0
    %3988 = vmatpush1.msra.mxu0 0.0
    %3989 = vmatprep.subr.mxu0 0.0
    %3990 = vmatpush1.msra.mxu0 0.0
    %3991 = vmatprep.subr.mxu0 0.0
    %3992 = vmatpush1.msra.mxu0 0.0
    %3993 = vmatprep.subr.mxu0 0.0
    %3994 = vmatpush1.msra.mxu0 0.0
    %3995 = vmatprep.subr.mxu0 0.0
    %3996 = vmatpush1.msra.mxu0 0.0
    %3997 = vmatprep.subr.mxu0 0.0
    %3998 = vmatpush1.msra.mxu0 0.0
    %3999 = vmatprep.subr.mxu0 0.0
    %4000 = vmatpush1.msra.mxu0 0.0
    %4001 = vmatprep.subr.mxu0 0.0
    %4002 = vmatpush1.msra.mxu0 0.0
    %4003 = vmatprep.subr.mxu0 0.0
    %4004 = vmatpush1.msra.mxu0 0.0
    %4005 = vmatprep.subr.mxu0 0.0
    %4006 = vmatpush1.msra.mxu0 0.0
    %4007 = vmatprep.subr.mxu0 0.0
    %4008 = vmatpush1.msra.mxu0 0.0
    %4009 = vmatprep.subr.mxu0 0.0
    %4010 = vmatpush1.msra.mxu0 0.0
    %4011 = vmatprep.subr.mxu0 0.0
    %4012 = vmatpush1.msra.mxu0 %v3213
    %4013 = vmatprep.subr.mxu0 0.0
    %4014 = vmatpush2.msra.mxu0 0.0
    %4015 = vmatprep.subr.mxu0 0.0
    %4016 = vmatpush2.msra.mxu0 0.0
    %4017 = vmatprep.subr.mxu0 0.0
    %4018 = vmatpush2.msra.mxu0 0.0
    %4019 = vmatprep.subr.mxu0 0.0
    %4020 = vmatpush2.msra.mxu0 0.0
    %4021 = vmatprep.subr.mxu0 0.0
    %4022 = vmatpush2.msra.mxu0 0.0
    %4023 = vmatprep.subr.mxu0 0.0
    %4024 = vmatpush2.msra.mxu0 0.0
    %4025 = vmatprep.subr.mxu0 0.0
    %4026 = vmatpush2.msra.mxu0 0.0
    %4027 = vmatprep.subr.mxu0 0.0
    %4028 = vmatpush2.msra.mxu0 0.0
    %4029 = vmatprep.subr.mxu0 0.0
    %4030 = vmatpush2.msra.mxu0 0.0
    %4031 = vmatprep.subr.mxu0 0.0
    %4032 = vmatpush2.msra.mxu0 0.0
    %4033 = vmatprep.subr.mxu0 0.0
    %4034 = vmatpush2.msra.mxu0 0.0
    %4035 = vmatprep.subr.mxu0 0.0
    %4036 = vmatpush2.msra.mxu0 0.0
    %4037 = vmatprep.subr.mxu0 0.0
    %4038 = vmatpush2.msra.mxu0 0.0
    %4039 = vmatprep.subr.mxu0 0.0
    %4040 = vmatpush2.msra.mxu0 0.0
    %4041 = vmatprep.subr.mxu0 0.0
    %4042 = vmatpush2.msra.mxu0 0.0
    %4043 = vmatprep.subr.mxu0 0.0
    %4044 = vmatpush2.msra.mxu0 0.0
    %4045 = vmatprep.mubr.f32.mxu0 0.0
    %4046 = vmatmul.mubr.f32.gmra.mxu0 %v3976
    %v4047 = vpop.f32.mrf.mxu0
    %v4048 = vadd.f32 0.0, %v4047
    %v4049 = vpop.f32.mrf.mxu0
    %4050 = vmatprep.mubr.f32.mxu0 0.0
    %4051 = vmatmul.mubr.f32.gmra.mxu0 %v3979
    %v4052 = vpop.f32.mrf.mxu0
    %v4053 = vadd.f32 0.0, %v4052
    %v4054 = vpop.f32.mrf.mxu0
    %4055 = vdwg.mxu0
    %v4056 = vadd.f32 %v3767, %v4048
    %v4057 = vadd.f32 %v3772, %v4053
    %4058 = vrot.lane.b32.xlu0 %v3203, 104
    %v4059 = vpop.permute.xlu0 %4058
    %4060 = vrot.lane.b32.xlu0 %v3208, 104
    %v4061 = vpop.permute.xlu0 %4060
    %4062 = vrot.lane.b32.xlu0 %v3203, 72
    %v4063 = vpop.permute.xlu0 %4062
    %4064 = vrot.lane.b32.xlu0 %v3208, 72
    %v4065 = vpop.permute.xlu0 %4064
    %v4066 = vsel %vm264, %v4059, 0
    %v4068 = vsel %vm264, %v4061, 0
    %v4070 = vsel %vm264, %v4063, 0
    %v4072 = vsel %vm264, %v4065, 0
    %4074 = vmatprep.subr.mxu0 0.0
    %4075 = vmatpush1.xpose.msra.mxu0 0.0
    %4076 = vmatprep.subr.mxu0 0.0
    %4077 = vmatpush1.xpose.msra.mxu0 0.0
    %4078 = vmatprep.subr.mxu0 0.0
    %4079 = vmatpush1.xpose.msra.mxu0 0.0
    %4080 = vmatprep.subr.mxu0 0.0
    %4081 = vmatpush1.xpose.msra.mxu0 0.0
    %4082 = vmatprep.subr.mxu0 0.0
    %4083 = vmatpush1.xpose.msra.mxu0 0.0
    %4084 = vmatprep.subr.mxu0 0.0
    %4085 = vmatpush1.xpose.msra.mxu0 0.0
    %4086 = vmatprep.subr.mxu0 0.0
    %4087 = vmatpush1.xpose.msra.mxu0 0.0
    %4088 = vmatprep.subr.mxu0 0.0
    %4089 = vmatpush1.xpose.msra.mxu0 0.0
    %4090 = vmatprep.subr.mxu0 0.0
    %4091 = vmatpush1.xpose.msra.mxu0 0.0
    %4092 = vmatprep.subr.mxu0 0.0
    %4093 = vmatpush1.xpose.msra.mxu0 0.0
    %4094 = vmatprep.subr.mxu0 0.0
    %4095 = vmatpush1.xpose.msra.mxu0 0.0
    %4096 = vmatprep.subr.mxu0 0.0
    %4097 = vmatpush1.xpose.msra.mxu0 0.0
    %4098 = vmatprep.subr.mxu0 0.0
    %4099 = vmatpush1.xpose.msra.mxu0 0.0
    %4100 = vmatprep.subr.mxu0 0.0
    %4101 = vmatpush1.xpose.msra.mxu0 0.0
    %4102 = vmatprep.subr.mxu0 0.0
    %4103 = vmatpush1.xpose.msra.mxu0 %v4072
    %4104 = vmatprep.subr.mxu0 0.0
    %4105 = vmatpush1.xpose.msra.mxu0 %v4070
    %4106 = vmatprep.subr.mxu0 0.0
    %4107 = vmatpush2.xpose.msra.mxu0 0.0
    %4108 = vmatprep.subr.mxu0 0.0
    %4109 = vmatpush2.xpose.msra.mxu0 0.0
    %4110 = vmatprep.subr.mxu0 0.0
    %4111 = vmatpush2.xpose.msra.mxu0 0.0
    %4112 = vmatprep.subr.mxu0 0.0
    %4113 = vmatpush2.xpose.msra.mxu0 0.0
    %4114 = vmatprep.subr.mxu0 0.0
    %4115 = vmatpush2.xpose.msra.mxu0 0.0
    %4116 = vmatprep.subr.mxu0 0.0
    %4117 = vmatpush2.xpose.msra.mxu0 0.0
    %4118 = vmatprep.subr.mxu0 0.0
    %4119 = vmatpush2.xpose.msra.mxu0 0.0
    %4120 = vmatprep.subr.mxu0 0.0
    %4121 = vmatpush2.xpose.msra.mxu0 0.0
    %4122 = vmatprep.subr.mxu0 0.0
    %4123 = vmatpush2.xpose.msra.mxu0 0.0
    %4124 = vmatprep.subr.mxu0 0.0
    %4125 = vmatpush2.xpose.msra.mxu0 0.0
    %4126 = vmatprep.subr.mxu0 0.0
    %4127 = vmatpush2.xpose.msra.mxu0 0.0
    %4128 = vmatprep.subr.mxu0 0.0
    %4129 = vmatpush2.xpose.msra.mxu0 0.0
    %4130 = vmatprep.subr.mxu0 0.0
    %4131 = vmatpush2.xpose.msra.mxu0 0.0
    %4132 = vmatprep.subr.mxu0 0.0
    %4133 = vmatpush2.xpose.msra.mxu0 0.0
    %4134 = vmatprep.subr.mxu0 0.0
    %4135 = vmatpush2.xpose.msra.mxu0 0.0
    %4136 = vmatprep.subr.mxu0 0.0
    %4137 = vmatpush2.xpose.msra.mxu0 0.0
    %4138 = vmatprep.mubr.f32.mxu0 0.0
    %4139 = vmatmul.mubr.f32.gmra.mxu0 %v4066
    %v4140 = vpop.f32.mrf.mxu0
    %v4141 = vadd.f32 %v139, %v4140
    %v4142 = vpop.f32.mrf.mxu0
    %4143 = vmatprep.mubr.f32.mxu0 0.0
    %4144 = vmatmul.mubr.f32.gmra.mxu0 %v4068
    %v4145 = vpop.f32.mrf.mxu0
    %v4146 = vadd.f32 %v140, %v4145
    %v4147 = vpop.f32.mrf.mxu0
    %4148 = vdwg.mxu0
    %v4149 = vsel %vm348, %v4141, -inf
    %4150 = vmax.xlane.f32.xlu0 %v4149
    %v4151 = vpop.xlane.xlu0 %4150
    %v4152 = vsel %vm348, %v4146, -inf
    %4153 = vmax.xlane.f32.xlu0 %v4152
    %v4154 = vpop.xlane.xlu0 %4153
    %v4155 = vsub.f32 %v4141, %v4151
    %v4156 = vsub.f32 %v4146, %v4154
    %v4157 = vmul.f32 %v4155, 1.442695
    %v4158 = vpow.pop %v4157
    %v4159 = vmul.f32 %v4156, 1.442695
    %v4160 = vpow.pop %v4159
    %v4161 = vsel %vm348, %v4158, 0.0
    %4162 = vadd.xlane.f32.xlu0 %v4161
    %v4163 = vpop.xlane.xlu0 %4162
    %v4164 = vsel %vm348, %v4160, 0.0
    %4165 = vadd.xlane.f32.xlu0 %v4164
    %v4166 = vpop.xlane.xlu0 %4165
    %v4167 = vrcp.pop %v4163
    %v4168 = vrcp.pop %v4166
    %v4169 = vmul.f32 %v4158, %v4167
    %v4170 = vmul.f32 %v4160, %v4168
    %4171 = vrot.lane.b32.xlu0 %v3203, 40
    %v4172 = vpop.permute.xlu0 %4171
    %4173 = vrot.lane.b32.xlu0 %v3208, 40
    %v4174 = vpop.permute.xlu0 %4173
    %v4178 = vsel %vm348, %v4169, 0
    %v4181 = vsel %vm348, %v4170, 0
    %4183 = vmatprep.subr.mxu0 0.0
    %4184 = vmatpush1.msra.mxu0 0.0
    %4185 = vmatprep.subr.mxu0 0.0
    %4186 = vmatpush1.msra.mxu0 0.0
    %4187 = vmatprep.subr.mxu0 0.0
    %4188 = vmatpush1.msra.mxu0 0.0
    %4189 = vmatprep.subr.mxu0 0.0
    %4190 = vmatpush1.msra.mxu0 0.0
    %4191 = vmatprep.subr.mxu0 0.0
    %4192 = vmatpush1.msra.mxu0 0.0
    %4193 = vmatprep.subr.mxu0 0.0
    %4194 = vmatpush1.msra.mxu0 0.0
    %4195 = vmatprep.subr.mxu0 0.0
    %4196 = vmatpush1.msra.mxu0 0.0
    %4197 = vmatprep.subr.mxu0 0.0
    %4198 = vmatpush1.msra.mxu0 0.0
    %4199 = vmatprep.subr.mxu0 0.0
    %4200 = vmatpush1.msra.mxu0 0.0
    %4201 = vmatprep.subr.mxu0 0.0
    %4202 = vmatpush1.msra.mxu0 0.0
    %4203 = vmatprep.subr.mxu0 0.0
    %4204 = vmatpush1.msra.mxu0 0.0
    %4205 = vmatprep.subr.mxu0 0.0
    %4206 = vmatpush1.msra.mxu0 0.0
    %4207 = vmatprep.subr.mxu0 0.0
    %4208 = vmatpush1.msra.mxu0 0.0
    %4209 = vmatprep.subr.mxu0 0.0
    %4210 = vmatpush1.msra.mxu0 0.0
    %4211 = vmatprep.subr.mxu0 0.0
    %4212 = vmatpush1.msra.mxu0 %v4174
    %4213 = vmatprep.subr.mxu0 0.0
    %4214 = vmatpush1.msra.mxu0 %v4172
    %4215 = vmatprep.subr.mxu0 0.0
    %4216 = vmatpush2.msra.mxu0 0.0
    %4217 = vmatprep.subr.mxu0 0.0
    %4218 = vmatpush2.msra.mxu0 0.0
    %4219 = vmatprep.subr.mxu0 0.0
    %4220 = vmatpush2.msra.mxu0 0.0
    %4221 = vmatprep.subr.mxu0 0.0
    %4222 = vmatpush2.msra.mxu0 0.0
    %4223 = vmatprep.subr.mxu0 0.0
    %4224 = vmatpush2.msra.mxu0 0.0
    %4225 = vmatprep.subr.mxu0 0.0
    %4226 = vmatpush2.msra.mxu0 0.0
    %4227 = vmatprep.subr.mxu0 0.0
    %4228 = vmatpush2.msra.mxu0 0.0
    %4229 = vmatprep.subr.mxu0 0.0
    %4230 = vmatpush2.msra.mxu0 0.0
    %4231 = vmatprep.subr.mxu0 0.0
    %4232 = vmatpush2.msra.mxu0 0.0
    %4233 = vmatprep.subr.mxu0 0.0
    %4234 = vmatpush2.msra.mxu0 0.0
    %4235 = vmatprep.subr.mxu0 0.0
    %4236 = vmatpush2.msra.mxu0 0.0
    %4237 = vmatprep.subr.mxu0 0.0
    %4238 = vmatpush2.msra.mxu0 0.0
    %4239 = vmatprep.subr.mxu0 0.0
    %4240 = vmatpush2.msra.mxu0 0.0
    %4241 = vmatprep.subr.mxu0 0.0
    %4242 = vmatpush2.msra.mxu0 0.0
    %4243 = vmatprep.subr.mxu0 0.0
    %4244 = vmatpush2.msra.mxu0 0.0
    %4245 = vmatprep.subr.mxu0 0.0
    %4246 = vmatpush2.msra.mxu0 0.0
    %4247 = vmatprep.mubr.f32.mxu0 0.0
    %4248 = vmatmul.mubr.f32.gmra.mxu0 %v4178
    %v4249 = vpop.f32.mrf.mxu0
    %v4250 = vadd.f32 0.0, %v4249
    %v4251 = vpop.f32.mrf.mxu0
    %4252 = vmatprep.mubr.f32.mxu0 0.0
    %4253 = vmatmul.mubr.f32.gmra.mxu0 %v4181
    %v4254 = vpop.f32.mrf.mxu0
    %v4255 = vadd.f32 0.0, %v4254
    %v4256 = vpop.f32.mrf.mxu0
    %4257 = vdwg.mxu0
    %v4259 = vsel %vm264, %v4250, 0
    %v4262 = vsel %vm264, %v4255, 0
    %4264 = vmatprep.subr.mxu0 0.0
    %4265 = vmatpush1.msra.mxu0 0.0
    %4266 = vmatprep.subr.mxu0 0.0
    %4267 = vmatpush1.msra.mxu0 0.0
    %4268 = vmatprep.subr.mxu0 0.0
    %4269 = vmatpush1.msra.mxu0 0.0
    %4270 = vmatprep.subr.mxu0 0.0
    %4271 = vmatpush1.msra.mxu0 0.0
    %4272 = vmatprep.subr.mxu0 0.0
    %4273 = vmatpush1.msra.mxu0 0.0
    %4274 = vmatprep.subr.mxu0 0.0
    %4275 = vmatpush1.msra.mxu0 0.0
    %4276 = vmatprep.subr.mxu0 0.0
    %4277 = vmatpush1.msra.mxu0 0.0
    %4278 = vmatprep.subr.mxu0 0.0
    %4279 = vmatpush1.msra.mxu0 0.0
    %4280 = vmatprep.subr.mxu0 0.0
    %4281 = vmatpush1.msra.mxu0 0.0
    %4282 = vmatprep.subr.mxu0 0.0
    %4283 = vmatpush1.msra.mxu0 0.0
    %4284 = vmatprep.subr.mxu0 0.0
    %4285 = vmatpush1.msra.mxu0 0.0
    %4286 = vmatprep.subr.mxu0 0.0
    %4287 = vmatpush1.msra.mxu0 0.0
    %4288 = vmatprep.subr.mxu0 0.0
    %4289 = vmatpush1.msra.mxu0 0.0
    %4290 = vmatprep.subr.mxu0 0.0
    %4291 = vmatpush1.msra.mxu0 0.0
    %4292 = vmatprep.subr.mxu0 0.0
    %4293 = vmatpush1.msra.mxu0 0.0
    %4294 = vmatprep.subr.mxu0 0.0
    %4295 = vmatpush1.msra.mxu0 %v3214
    %4296 = vmatprep.subr.mxu0 0.0
    %4297 = vmatpush2.msra.mxu0 0.0
    %4298 = vmatprep.subr.mxu0 0.0
    %4299 = vmatpush2.msra.mxu0 0.0
    %4300 = vmatprep.subr.mxu0 0.0
    %4301 = vmatpush2.msra.mxu0 0.0
    %4302 = vmatprep.subr.mxu0 0.0
    %4303 = vmatpush2.msra.mxu0 0.0
    %4304 = vmatprep.subr.mxu0 0.0
    %4305 = vmatpush2.msra.mxu0 0.0
    %4306 = vmatprep.subr.mxu0 0.0
    %4307 = vmatpush2.msra.mxu0 0.0
    %4308 = vmatprep.subr.mxu0 0.0
    %4309 = vmatpush2.msra.mxu0 0.0
    %4310 = vmatprep.subr.mxu0 0.0
    %4311 = vmatpush2.msra.mxu0 0.0
    %4312 = vmatprep.subr.mxu0 0.0
    %4313 = vmatpush2.msra.mxu0 0.0
    %4314 = vmatprep.subr.mxu0 0.0
    %4315 = vmatpush2.msra.mxu0 0.0
    %4316 = vmatprep.subr.mxu0 0.0
    %4317 = vmatpush2.msra.mxu0 0.0
    %4318 = vmatprep.subr.mxu0 0.0
    %4319 = vmatpush2.msra.mxu0 0.0
    %4320 = vmatprep.subr.mxu0 0.0
    %4321 = vmatpush2.msra.mxu0 0.0
    %4322 = vmatprep.subr.mxu0 0.0
    %4323 = vmatpush2.msra.mxu0 0.0
    %4324 = vmatprep.subr.mxu0 0.0
    %4325 = vmatpush2.msra.mxu0 0.0
    %4326 = vmatprep.subr.mxu0 0.0
    %4327 = vmatpush2.msra.mxu0 0.0
    %4328 = vmatprep.mubr.f32.mxu0 0.0
    %4329 = vmatmul.mubr.f32.gmra.mxu0 %v4259
    %v4330 = vpop.f32.mrf.mxu0
    %v4331 = vadd.f32 0.0, %v4330
    %v4332 = vpop.f32.mrf.mxu0
    %4333 = vmatprep.mubr.f32.mxu0 0.0
    %4334 = vmatmul.mubr.f32.gmra.mxu0 %v4262
    %v4335 = vpop.f32.mrf.mxu0
    %v4336 = vadd.f32 0.0, %v4335
    %v4337 = vpop.f32.mrf.mxu0
    %4338 = vdwg.mxu0
    %v4339 = vadd.f32 %v4056, %v4331
    %v4340 = vadd.f32 %v4057, %v4336
    %v4341 = vadd.f32 %v3099, %v4339
    %v4342 = vadd.f32 %v3100, %v4340
    %v4343 = vld [vmem:[%s35] sm:$0x1]
    %v4345 = vlaneseq
    %v4346 = vshrl.u32 %v4345, 7
    %v4347 = vsub.s32 0, %v4346
    %v4348 = vrot.slane %v4343, %v4347
    %v4350 = vadd.f32 %v4341, %v4348
    %v4351 = vadd.f32 %v4342, %v4348
    %s4352 = sld [smem:[#allocation2 + $0x6]]
    %v4353 = vmul.f32 %v4350, %v4350
    %v4354 = vmul.f32 %v4351, %v4351
    %v4355 = vsel %vm146, %v4353, 0.0
    %4356 = vadd.xlane.f32.xlu0 %v4355
    %v4357 = vpop.xlane.xlu0 %4356
    %v4358 = vsel %vm146, %v4354, 0.0
    %4359 = vadd.xlane.f32.xlu0 %v4358
    %v4360 = vpop.xlane.xlu0 %4359
    %v4361 = vmax.f32 %v4357, 1e-10
    %v4362 = vmax.f32 %v4360, 1e-10
    %v4363 = vrsqrt.pop %v4361
    %v4364 = vrsqrt.pop %v4362
    %v4365 = vstv %s4352
    %v4366 = vmul.f32 %v4365, %v4363
    %v4367 = vmul.f32 %v4365, %v4364
    %v4368 = vmul.f32 %v4350, %v4366
    %v4369 = vmul.f32 %v4351, %v4367
    %v4370 = vld [vmem:[%s37] sm:$0xff]
    %v4371 = vld [vmem:[%s37 + $0x8] sm:$0xff]
    %v4372 = vld [vmem:[%s37 + $0x10] sm:$0xff]
    %v4373 = vld [vmem:[%s37 + $0x18] sm:$0xff]
    %v4374 = vld [vmem:[%s39] sm:$0x1]
    %v4376 = vlaneseq
    %v4377 = vshrl.u32 %v4376, 7
    %v4378 = vsub.s32 0, %v4377
    %v4379 = vrot.slane %v4374, %v4378
    %v4382 = vsel %vm146, %v4368, 0
    %v4385 = vsel %vm146, %v4369, 0
    %4387 = vmatprep.subr.mxu0 0.0
    %4388 = vmatpush1.msra.mxu0 0.0
    %4389 = vmatprep.subr.mxu0 0.0
    %4390 = vmatpush1.msra.mxu0 0.0
    %4391 = vmatprep.subr.mxu0 0.0
    %4392 = vmatpush1.msra.mxu0 0.0
    %4393 = vmatprep.subr.mxu0 0.0
    %4394 = vmatpush1.msra.mxu0 0.0
    %4395 = vmatprep.subr.mxu0 0.0
    %4396 = vmatpush1.msra.mxu0 0.0
    %4397 = vmatprep.subr.mxu0 0.0
    %4398 = vmatpush1.msra.mxu0 0.0
    %4399 = vmatprep.subr.mxu0 0.0
    %4400 = vmatpush1.msra.mxu0 0.0
    %4401 = vmatprep.subr.mxu0 0.0
    %4402 = vmatpush1.msra.mxu0 0.0
    %4403 = vmatprep.subr.mxu0 0.0
    %4404 = vmatpush1.msra.mxu0 0.0
    %4405 = vmatprep.subr.mxu0 0.0
    %4406 = vmatpush1.msra.mxu0 0.0
    %4407 = vmatprep.subr.mxu0 0.0
    %4408 = vmatpush1.msra.mxu0 0.0
    %4409 = vmatprep.subr.mxu0 0.0
    %4410 = vmatpush1.msra.mxu0 0.0
    %4411 = vmatprep.subr.mxu0 0.0
    %4412 = vmatpush1.msra.mxu0 %v4373
    %4413 = vmatprep.subr.mxu0 0.0
    %4414 = vmatpush1.msra.mxu0 %v4372
    %4415 = vmatprep.subr.mxu0 0.0
    %4416 = vmatpush1.msra.mxu0 %v4371
    %4417 = vmatprep.subr.mxu0 0.0
    %4418 = vmatpush1.msra.mxu0 %v4370
    %4419 = vmatprep.subr.mxu0 0.0
    %4420 = vmatpush2.msra.mxu0 0.0
    %4421 = vmatprep.subr.mxu0 0.0
    %4422 = vmatpush2.msra.mxu0 0.0
    %4423 = vmatprep.subr.mxu0 0.0
    %4424 = vmatpush2.msra.mxu0 0.0
    %4425 = vmatprep.subr.mxu0 0.0
    %4426 = vmatpush2.msra.mxu0 0.0
    %4427 = vmatprep.subr.mxu0 0.0
    %4428 = vmatpush2.msra.mxu0 0.0
    %4429 = vmatprep.subr.mxu0 0.0
    %4430 = vmatpush2.msra.mxu0 0.0
    %4431 = vmatprep.subr.mxu0 0.0
    %4432 = vmatpush2.msra.mxu0 0.0
    %4433 = vmatprep.subr.mxu0 0.0
    %4434 = vmatpush2.msra.mxu0 0.0
    %4435 = vmatprep.subr.mxu0 0.0
    %4436 = vmatpush2.msra.mxu0 0.0
    %4437 = vmatprep.subr.mxu0 0.0
    %4438 = vmatpush2.msra.mxu0 0.0
    %4439 = vmatprep.subr.mxu0 0.0
    %4440 = vmatpush2.msra.mxu0 0.0
    %4441 = vmatprep.subr.mxu0 0.0
    %4442 = vmatpush2.msra.mxu0 0.0
    %4443 = vmatprep.subr.mxu0 0.0
    %4444 = vmatpush2.msra.mxu0 0.0
    %4445 = vmatprep.subr.mxu0 0.0
    %4446 = vmatpush2.msra.mxu0 0.0
    %4447 = vmatprep.subr.mxu0 0.0
    %4448 = vmatpush2.msra.mxu0 0.0
    %4449 = vmatprep.subr.mxu0 0.0
    %4450 = vmatpush2.msra.mxu0 0.0
    %4451 = vmatprep.mubr.f32.mxu0 0.0
    %4452 = vmatmul.mubr.f32.gmra.mxu0 %v4382
    %v4453 = vpop.f32.mrf.mxu0
    %v4454 = vadd.f32 %v4379, %v4453
    %v4455 = vpop.f32.mrf.mxu0
    %4456 = vmatprep.mubr.f32.mxu0 0.0
    %4457 = vmatmul.mubr.f32.gmra.mxu0 %v4385
    %v4458 = vpop.f32.mrf.mxu0
    %v4459 = vadd.f32 %v4379, %v4458
    %v4460 = vpop.f32.mrf.mxu0
    %4461 = vdwg.mxu0
    %v4462 = vld [vmem:[%s41] sm:$0xff]
    %v4463 = vld [vmem:[%s41 + $0x8] sm:$0xff]
    %v4464 = vld [vmem:[%s41 + $0x10] sm:$0xff]
    %v4465 = vld [vmem:[%s41 + $0x18] sm:$0xff]
    %v4466 = vld [vmem:[%s43] sm:$0x1]
    %v4468 = vlaneseq
    %v4469 = vshrl.u32 %v4468, 7
    %v4470 = vsub.s32 0, %v4469
    %v4471 = vrot.slane %v4466, %v4470
    %v4474 = vsel %vm146, %v3097, 0
    %v4477 = vsel %vm146, %v3098, 0
    %4479 = vmatprep.subr.mxu0 0.0
    %4480 = vmatpush1.msra.mxu0 0.0
    %4481 = vmatprep.subr.mxu0 0.0
    %4482 = vmatpush1.msra.mxu0 0.0
    %4483 = vmatprep.subr.mxu0 0.0
    %4484 = vmatpush1.msra.mxu0 0.0
    %4485 = vmatprep.subr.mxu0 0.0
    %4486 = vmatpush1.msra.mxu0 0.0
    %4487 = vmatprep.subr.mxu0 0.0
    %4488 = vmatpush1.msra.mxu0 0.0
    %4489 = vmatprep.subr.mxu0 0.0
    %4490 = vmatpush1.msra.mxu0 0.0
    %4491 = vmatprep.subr.mxu0 0.0
    %4492 = vmatpush1.msra.mxu0 0.0
    %4493 = vmatprep.subr.mxu0 0.0
    %4494 = vmatpush1.msra.mxu0 0.0
    %4495 = vmatprep.subr.mxu0 0.0
    %4496 = vmatpush1.msra.mxu0 0.0
    %4497 = vmatprep.subr.mxu0 0.0
    %4498 = vmatpush1.msra.mxu0 0.0
    %4499 = vmatprep.subr.mxu0 0.0
    %4500 = vmatpush1.msra.mxu0 0.0
    %4501 = vmatprep.subr.mxu0 0.0
    %4502 = vmatpush1.msra.mxu0 0.0
    %4503 = vmatprep.subr.mxu0 0.0
    %4504 = vmatpush1.msra.mxu0 %v4465
    %4505 = vmatprep.subr.mxu0 0.0
    %4506 = vmatpush1.msra.mxu0 %v4464
    %4507 = vmatprep.subr.mxu0 0.0
    %4508 = vmatpush1.msra.mxu0 %v4463
    %4509 = vmatprep.subr.mxu0 0.0
    %4510 = vmatpush1.msra.mxu0 %v4462
    %4511 = vmatprep.subr.mxu0 0.0
    %4512 = vmatpush2.msra.mxu0 0.0
    %4513 = vmatprep.subr.mxu0 0.0
    %4514 = vmatpush2.msra.mxu0 0.0
    %4515 = vmatprep.subr.mxu0 0.0
    %4516 = vmatpush2.msra.mxu0 0.0
    %4517 = vmatprep.subr.mxu0 0.0
    %4518 = vmatpush2.msra.mxu0 0.0
    %4519 = vmatprep.subr.mxu0 0.0
    %4520 = vmatpush2.msra.mxu0 0.0
    %4521 = vmatprep.subr.mxu0 0.0
    %4522 = vmatpush2.msra.mxu0 0.0
    %4523 = vmatprep.subr.mxu0 0.0
    %4524 = vmatpush2.msra.mxu0 0.0
    %4525 = vmatprep.subr.mxu0 0.0
    %4526 = vmatpush2.msra.mxu0 0.0
    %4527 = vmatprep.subr.mxu0 0.0
    %4528 = vmatpush2.msra.mxu0 0.0
    %4529 = vmatprep.subr.mxu0 0.0
    %4530 = vmatpush2.msra.mxu0 0.0
    %4531 = vmatprep.subr.mxu0 0.0
    %4532 = vmatpush2.msra.mxu0 0.0
    %4533 = vmatprep.subr.mxu0 0.0
    %4534 = vmatpush2.msra.mxu0 0.0
    %4535 = vmatprep.subr.mxu0 0.0
    %4536 = vmatpush2.msra.mxu0 0.0
    %4537 = vmatprep.subr.mxu0 0.0
    %4538 = vmatpush2.msra.mxu0 0.0
    %4539 = vmatprep.subr.mxu0 0.0
    %4540 = vmatpush2.msra.mxu0 0.0
    %4541 = vmatprep.subr.mxu0 0.0
    %4542 = vmatpush2.msra.mxu0 0.0
    %4543 = vmatprep.mubr.f32.mxu0 0.0
    %4544 = vmatmul.mubr.f32.gmra.mxu0 %v4474
    %v4545 = vpop.f32.mrf.mxu0
    %v4546 = vadd.f32 %v4471, %v4545
    %v4547 = vpop.f32.mrf.mxu0
    %4548 = vmatprep.mubr.f32.mxu0 0.0
    %4549 = vmatmul.mubr.f32.gmra.mxu0 %v4477
    %v4550 = vpop.f32.mrf.mxu0
    %v4551 = vadd.f32 %v4471, %v4550
    %v4552 = vpop.f32.mrf.mxu0
    %4553 = vdwg.mxu0
    %v4554 = vld [vmem:[%s45] sm:$0xff]
    %v4555 = vld [vmem:[%s45 + $0x8] sm:$0xff]
    %v4556 = vld [vmem:[%s45 + $0x10] sm:$0xff]
    %v4557 = vld [vmem:[%s45 + $0x18] sm:$0xff]
    %v4559 = vsel %vm264, %v4454, 0
    %v4562 = vsel %vm264, %v4459, 0
    %v4565 = vsel %vm264, %v4546, 0
    %v4568 = vsel %vm264, %v4551, 0
    %4570 = vmatprep.subr.mxu0 0.0
    %4571 = vmatpush1.xpose.msra.mxu0 0.0
    %4572 = vmatprep.subr.mxu0 0.0
    %4573 = vmatpush1.xpose.msra.mxu0 0.0
    %4574 = vmatprep.subr.mxu0 0.0
    %4575 = vmatpush1.xpose.msra.mxu0 0.0
    %4576 = vmatprep.subr.mxu0 0.0
    %4577 = vmatpush1.xpose.msra.mxu0 0.0
    %4578 = vmatprep.subr.mxu0 0.0
    %4579 = vmatpush1.xpose.msra.mxu0 0.0
    %4580 = vmatprep.subr.mxu0 0.0
    %4581 = vmatpush1.xpose.msra.mxu0 0.0
    %4582 = vmatprep.subr.mxu0 0.0
    %4583 = vmatpush1.xpose.msra.mxu0 0.0
    %4584 = vmatprep.subr.mxu0 0.0
    %4585 = vmatpush1.xpose.msra.mxu0 0.0
    %4586 = vmatprep.subr.mxu0 0.0
    %4587 = vmatpush1.xpose.msra.mxu0 0.0
    %4588 = vmatprep.subr.mxu0 0.0
    %4589 = vmatpush1.xpose.msra.mxu0 0.0
    %4590 = vmatprep.subr.mxu0 0.0
    %4591 = vmatpush1.xpose.msra.mxu0 0.0
    %4592 = vmatprep.subr.mxu0 0.0
    %4593 = vmatpush1.xpose.msra.mxu0 0.0
    %4594 = vmatprep.subr.mxu0 0.0
    %4595 = vmatpush1.xpose.msra.mxu0 0.0
    %4596 = vmatprep.subr.mxu0 0.0
    %4597 = vmatpush1.xpose.msra.mxu0 0.0
    %4598 = vmatprep.subr.mxu0 0.0
    %4599 = vmatpush1.xpose.msra.mxu0 %v4568
    %4600 = vmatprep.subr.mxu0 0.0
    %4601 = vmatpush1.xpose.msra.mxu0 %v4565
    %4602 = vmatprep.subr.mxu0 0.0
    %4603 = vmatpush2.xpose.msra.mxu0 0.0
    %4604 = vmatprep.subr.mxu0 0.0
    %4605 = vmatpush2.xpose.msra.mxu0 0.0
    %4606 = vmatprep.subr.mxu0 0.0
    %4607 = vmatpush2.xpose.msra.mxu0 0.0
    %4608 = vmatprep.subr.mxu0 0.0
    %4609 = vmatpush2.xpose.msra.mxu0 0.0
    %4610 = vmatprep.subr.mxu0 0.0
    %4611 = vmatpush2.xpose.msra.mxu0 0.0
    %4612 = vmatprep.subr.mxu0 0.0
    %4613 = vmatpush2.xpose.msra.mxu0 0.0
    %4614 = vmatprep.subr.mxu0 0.0
    %4615 = vmatpush2.xpose.msra.mxu0 0.0
    %4616 = vmatprep.subr.mxu0 0.0
    %4617 = vmatpush2.xpose.msra.mxu0 0.0
    %4618 = vmatprep.subr.mxu0 0.0
    %4619 = vmatpush2.xpose.msra.mxu0 0.0
    %4620 = vmatprep.subr.mxu0 0.0
    %4621 = vmatpush2.xpose.msra.mxu0 0.0
    %4622 = vmatprep.subr.mxu0 0.0
    %4623 = vmatpush2.xpose.msra.mxu0 0.0
    %4624 = vmatprep.subr.mxu0 0.0
    %4625 = vmatpush2.xpose.msra.mxu0 0.0
    %4626 = vmatprep.subr.mxu0 0.0
    %4627 = vmatpush2.xpose.msra.mxu0 0.0
    %4628 = vmatprep.subr.mxu0 0.0
    %4629 = vmatpush2.xpose.msra.mxu0 0.0
    %4630 = vmatprep.subr.mxu0 0.0
    %4631 = vmatpush2.xpose.msra.mxu0 0.0
    %4632 = vmatprep.subr.mxu0 0.0
    %4633 = vmatpush2.xpose.msra.mxu0 0.0
    %4634 = vmatprep.mubr.f32.mxu0 0.0
    %4635 = vmatmul.mubr.f32.gmra.mxu0 %v4559
    %v4636 = vpop.f32.mrf.mxu0
    %v4637 = vadd.f32 %v137, %v4636
    %v4638 = vpop.f32.mrf.mxu0
    %4639 = vmatprep.mubr.f32.mxu0 0.0
    %4640 = vmatmul.mubr.f32.gmra.mxu0 %v4562
    %v4641 = vpop.f32.mrf.mxu0
    %v4642 = vadd.f32 %v138, %v4641
    %v4643 = vpop.f32.mrf.mxu0
    %4644 = vdwg.mxu0
    %v4645 = vsel %vm348, %v4637, -inf
    %4646 = vmax.xlane.f32.xlu0 %v4645
    %v4647 = vpop.xlane.xlu0 %4646
    %v4648 = vsel %vm348, %v4642, -inf
    %4649 = vmax.xlane.f32.xlu0 %v4648
    %v4650 = vpop.xlane.xlu0 %4649
    %v4651 = vsub.f32 %v4637, %v4647
    %v4652 = vsub.f32 %v4642, %v4650
    %v4653 = vmul.f32 %v4651, 1.442695
    %v4654 = vpow.pop %v4653
    %v4655 = vmul.f32 %v4652, 1.442695
    %v4656 = vpow.pop %v4655
    %v4657 = vsel %vm348, %v4654, 0.0
    %4658 = vadd.xlane.f32.xlu0 %v4657
    %v4659 = vpop.xlane.xlu0 %4658
    %v4660 = vsel %vm348, %v4656, 0.0
    %4661 = vadd.xlane.f32.xlu0 %v4660
    %v4662 = vpop.xlane.xlu0 %4661
    %v4663 = vrcp.pop %v4659
    %v4664 = vrcp.pop %v4662
    %v4665 = vmul.f32 %v4654, %v4663
    %v4666 = vmul.f32 %v4656, %v4664
    %4667 = vrot.lane.b32.xlu0 %v4546, 96
    %v4668 = vpop.permute.xlu0 %4667
    %4669 = vrot.lane.b32.xlu0 %v4551, 96
    %v4670 = vpop.permute.xlu0 %4669
    %v4674 = vsel %vm348, %v4665, 0
    %v4677 = vsel %vm348, %v4666, 0
    %4679 = vmatprep.subr.mxu0 0.0
    %4680 = vmatpush1.msra.mxu0 0.0
    %4681 = vmatprep.subr.mxu0 0.0
    %4682 = vmatpush1.msra.mxu0 0.0
    %4683 = vmatprep.subr.mxu0 0.0
    %4684 = vmatpush1.msra.mxu0 0.0
    %4685 = vmatprep.subr.mxu0 0.0
    %4686 = vmatpush1.msra.mxu0 0.0
    %4687 = vmatprep.subr.mxu0 0.0
    %4688 = vmatpush1.msra.mxu0 0.0
    %4689 = vmatprep.subr.mxu0 0.0
    %4690 = vmatpush1.msra.mxu0 0.0
    %4691 = vmatprep.subr.mxu0 0.0
    %4692 = vmatpush1.msra.mxu0 0.0
    %4693 = vmatprep.subr.mxu0 0.0
    %4694 = vmatpush1.msra.mxu0 0.0
    %4695 = vmatprep.subr.mxu0 0.0
    %4696 = vmatpush1.msra.mxu0 0.0
    %4697 = vmatprep.subr.mxu0 0.0
    %4698 = vmatpush1.msra.mxu0 0.0
    %4699 = vmatprep.subr.mxu0 0.0
    %4700 = vmatpush1.msra.mxu0 0.0
    %4701 = vmatprep.subr.mxu0 0.0
    %4702 = vmatpush1.msra.mxu0 0.0
    %4703 = vmatprep.subr.mxu0 0.0
    %4704 = vmatpush1.msra.mxu0 0.0
    %4705 = vmatprep.subr.mxu0 0.0
    %4706 = vmatpush1.msra.mxu0 0.0
    %4707 = vmatprep.subr.mxu0 0.0
    %4708 = vmatpush1.msra.mxu0 %v4670
    %4709 = vmatprep.subr.mxu0 0.0
    %4710 = vmatpush1.msra.mxu0 %v4668
    %4711 = vmatprep.subr.mxu0 0.0
    %4712 = vmatpush2.msra.mxu0 0.0
    %4713 = vmatprep.subr.mxu0 0.0
    %4714 = vmatpush2.msra.mxu0 0.0
    %4715 = vmatprep.subr.mxu0 0.0
    %4716 = vmatpush2.msra.mxu0 0.0
    %4717 = vmatprep.subr.mxu0 0.0
    %4718 = vmatpush2.msra.mxu0 0.0
    %4719 = vmatprep.subr.mxu0 0.0
    %4720 = vmatpush2.msra.mxu0 0.0
    %4721 = vmatprep.subr.mxu0 0.0
    %4722 = vmatpush2.msra.mxu0 0.0
    %4723 = vmatprep.subr.mxu0 0.0
    %4724 = vmatpush2.msra.mxu0 0.0
    %4725 = vmatprep.subr.mxu0 0.0
    %4726 = vmatpush2.msra.mxu0 0.0
    %4727 = vmatprep.subr.mxu0 0.0
    %4728 = vmatpush2.msra.mxu0 0.0
    %4729 = vmatprep.subr.mxu0 0.0
    %4730 = vmatpush2.msra.mxu0 0.0
    %4731 = vmatprep.subr.mxu0 0.0
    %4732 = vmatpush2.msra.mxu0 0.0
    %4733 = vmatprep.subr.mxu0 0.0
    %4734 = vmatpush2.msra.mxu0 0.0
    %4735 = vmatprep.subr.mxu0 0.0
    %4736 = vmatpush2.msra.mxu0 0.0
    %4737 = vmatprep.subr.mxu0 0.0
    %4738 = vmatpush2.msra.mxu0 0.0
    %4739 = vmatprep.subr.mxu0 0.0
    %4740 = vmatpush2.msra.mxu0 0.0
    %4741 = vmatprep.subr.mxu0 0.0
    %4742 = vmatpush2.msra.mxu0 0.0
    %4743 = vmatprep.mubr.f32.mxu0 0.0
    %4744 = vmatmul.mubr.f32.gmra.mxu0 %v4674
    %v4745 = vpop.f32.mrf.mxu0
    %v4746 = vadd.f32 0.0, %v4745
    %v4747 = vpop.f32.mrf.mxu0
    %4748 = vmatprep.mubr.f32.mxu0 0.0
    %4749 = vmatmul.mubr.f32.gmra.mxu0 %v4677
    %v4750 = vpop.f32.mrf.mxu0
    %v4751 = vadd.f32 0.0, %v4750
    %v4752 = vpop.f32.mrf.mxu0
    %4753 = vdwg.mxu0
    %4754 = vrot.lane.b32.xlu0 %v4454, 120
    %v4755 = vpop.permute.xlu0 %4754
    %4756 = vrot.lane.b32.xlu0 %v4459, 120
    %v4757 = vpop.permute.xlu0 %4756
    %4758 = vrot.lane.b32.xlu0 %v4546, 120
    %v4759 = vpop.permute.xlu0 %4758
    %4760 = vrot.lane.b32.xlu0 %v4551, 120
    %v4761 = vpop.permute.xlu0 %4760
    %v4762 = vsel %vm264, %v4755, 0
    %v4764 = vsel %vm264, %v4757, 0
    %v4766 = vsel %vm264, %v4759, 0
    %v4768 = vsel %vm264, %v4761, 0
    %4770 = vmatprep.subr.mxu0 0.0
    %4771 = vmatpush1.xpose.msra.mxu0 0.0
    %4772 = vmatprep.subr.mxu0 0.0
    %4773 = vmatpush1.xpose.msra.mxu0 0.0
    %4774 = vmatprep.subr.mxu0 0.0
    %4775 = vmatpush1.xpose.msra.mxu0 0.0
    %4776 = vmatprep.subr.mxu0 0.0
    %4777 = vmatpush1.xpose.msra.mxu0 0.0
    %4778 = vmatprep.subr.mxu0 0.0
    %4779 = vmatpush1.xpose.msra.mxu0 0.0
    %4780 = vmatprep.subr.mxu0 0.0
    %4781 = vmatpush1.xpose.msra.mxu0 0.0
    %4782 = vmatprep.subr.mxu0 0.0
    %4783 = vmatpush1.xpose.msra.mxu0 0.0
    %4784 = vmatprep.subr.mxu0 0.0
    %4785 = vmatpush1.xpose.msra.mxu0 0.0
    %4786 = vmatprep.subr.mxu0 0.0
    %4787 = vmatpush1.xpose.msra.mxu0 0.0
    %4788 = vmatprep.subr.mxu0 0.0
    %4789 = vmatpush1.xpose.msra.mxu0 0.0
    %4790 = vmatprep.subr.mxu0 0.0
    %4791 = vmatpush1.xpose.msra.mxu0 0.0
    %4792 = vmatprep.subr.mxu0 0.0
    %4793 = vmatpush1.xpose.msra.mxu0 0.0
    %4794 = vmatprep.subr.mxu0 0.0
    %4795 = vmatpush1.xpose.msra.mxu0 0.0
    %4796 = vmatprep.subr.mxu0 0.0
    %4797 = vmatpush1.xpose.msra.mxu0 0.0
    %4798 = vmatprep.subr.mxu0 0.0
    %4799 = vmatpush1.xpose.msra.mxu0 %v4768
    %4800 = vmatprep.subr.mxu0 0.0
    %4801 = vmatpush1.xpose.msra.mxu0 %v4766
    %4802 = vmatprep.subr.mxu0 0.0
    %4803 = vmatpush2.xpose.msra.mxu0 0.0
    %4804 = vmatprep.subr.mxu0 0.0
    %4805 = vmatpush2.xpose.msra.mxu0 0.0
    %4806 = vmatprep.subr.mxu0 0.0
    %4807 = vmatpush2.xpose.msra.mxu0 0.0
    %4808 = vmatprep.subr.mxu0 0.0
    %4809 = vmatpush2.xpose.msra.mxu0 0.0
    %4810 = vmatprep.subr.mxu0 0.0
    %4811 = vmatpush2.xpose.msra.mxu0 0.0
    %4812 = vmatprep.subr.mxu0 0.0
    %4813 = vmatpush2.xpose.msra.mxu0 0.0
    %4814 = vmatprep.subr.mxu0 0.0
    %4815 = vmatpush2.xpose.msra.mxu0 0.0
    %4816 = vmatprep.subr.mxu0 0.0
    %4817 = vmatpush2.xpose.msra.mxu0 0.0
    %4818 = vmatprep.subr.mxu0 0.0
    %4819 = vmatpush2.xpose.msra.mxu0 0.0
    %4820 = vmatprep.subr.mxu0 0.0
    %4821 = vmatpush2.xpose.msra.mxu0 0.0
    %4822 = vmatprep.subr.mxu0 0.0
    %4823 = vmatpush2.xpose.msra.mxu0 0.0
    %4824 = vmatprep.subr.mxu0 0.0
    %4825 = vmatpush2.xpose.msra.mxu0 0.0
    %4826 = vmatprep.subr.mxu0 0.0
    %4827 = vmatpush2.xpose.msra.mxu0 0.0
    %4828 = vmatprep.subr.mxu0 0.0
    %4829 = vmatpush2.xpose.msra.mxu0 0.0
    %4830 = vmatprep.subr.mxu0 0.0
    %4831 = vmatpush2.xpose.msra.mxu0 0.0
    %4832 = vmatprep.subr.mxu0 0.0
    %4833 = vmatpush2.xpose.msra.mxu0 0.0
    %4834 = vmatprep.mubr.f32.mxu0 0.0
    %4835 = vmatmul.mubr.f32.gmra.mxu0 %v4762
    %v4836 = vpop.f32.mrf.mxu0
    %v4837 = vadd.f32 %v137, %v4836
    %v4838 = vpop.f32.mrf.mxu0
    %4839 = vmatprep.mubr.f32.mxu0 0.0
    %4840 = vmatmul.mubr.f32.gmra.mxu0 %v4764
    %v4841 = vpop.f32.mrf.mxu0
    %v4842 = vadd.f32 %v138, %v4841
    %v4843 = vpop.f32.mrf.mxu0
    %4844 = vdwg.mxu0
    %v4845 = vsel %vm348, %v4837, -inf
    %4846 = vmax.xlane.f32.xlu0 %v4845
    %v4847 = vpop.xlane.xlu0 %4846
    %v4848 = vsel %vm348, %v4842, -inf
    %4849 = vmax.xlane.f32.xlu0 %v4848
    %v4850 = vpop.xlane.xlu0 %4849
    %v4851 = vsub.f32 %v4837, %v4847
    %v4852 = vsub.f32 %v4842, %v4850
    %v4853 = vmul.f32 %v4851, 1.442695
    %v4854 = vpow.pop %v4853
    %v4855 = vmul.f32 %v4852, 1.442695
    %v4856 = vpow.pop %v4855
    %v4857 = vsel %vm348, %v4854, 0.0
    %4858 = vadd.xlane.f32.xlu0 %v4857
    %v4859 = vpop.xlane.xlu0 %4858
    %v4860 = vsel %vm348, %v4856, 0.0
    %4861 = vadd.xlane.f32.xlu0 %v4860
    %v4862 = vpop.xlane.xlu0 %4861
    %v4863 = vrcp.pop %v4859
    %v4864 = vrcp.pop %v4862
    %v4865 = vmul.f32 %v4854, %v4863
    %v4866 = vmul.f32 %v4856, %v4864
    %4867 = vrot.lane.b32.xlu0 %v4546, 88
    %v4868 = vpop.permute.xlu0 %4867
    %4869 = vrot.lane.b32.xlu0 %v4551, 88
    %v4870 = vpop.permute.xlu0 %4869
    %v4874 = vsel %vm348, %v4865, 0
    %v4877 = vsel %vm348, %v4866, 0
    %4879 = vmatprep.subr.mxu0 0.0
    %4880 = vmatpush1.msra.mxu0 0.0
    %4881 = vmatprep.subr.mxu0 0.0
    %4882 = vmatpush1.msra.mxu0 0.0
    %4883 = vmatprep.subr.mxu0 0.0
    %4884 = vmatpush1.msra.mxu0 0.0
    %4885 = vmatprep.subr.mxu0 0.0
    %4886 = vmatpush1.msra.mxu0 0.0
    %4887 = vmatprep.subr.mxu0 0.0
    %4888 = vmatpush1.msra.mxu0 0.0
    %4889 = vmatprep.subr.mxu0 0.0
    %4890 = vmatpush1.msra.mxu0 0.0
    %4891 = vmatprep.subr.mxu0 0.0
    %4892 = vmatpush1.msra.mxu0 0.0
    %4893 = vmatprep.subr.mxu0 0.0
    %4894 = vmatpush1.msra.mxu0 0.0
    %4895 = vmatprep.subr.mxu0 0.0
    %4896 = vmatpush1.msra.mxu0 0.0
    %4897 = vmatprep.subr.mxu0 0.0
    %4898 = vmatpush1.msra.mxu0 0.0
    %4899 = vmatprep.subr.mxu0 0.0
    %4900 = vmatpush1.msra.mxu0 0.0
    %4901 = vmatprep.subr.mxu0 0.0
    %4902 = vmatpush1.msra.mxu0 0.0
    %4903 = vmatprep.subr.mxu0 0.0
    %4904 = vmatpush1.msra.mxu0 0.0
    %4905 = vmatprep.subr.mxu0 0.0
    %4906 = vmatpush1.msra.mxu0 0.0
    %4907 = vmatprep.subr.mxu0 0.0
    %4908 = vmatpush1.msra.mxu0 %v4870
    %4909 = vmatprep.subr.mxu0 0.0
    %4910 = vmatpush1.msra.mxu0 %v4868
    %4911 = vmatprep.subr.mxu0 0.0
    %4912 = vmatpush2.msra.mxu0 0.0
    %4913 = vmatprep.subr.mxu0 0.0
    %4914 = vmatpush2.msra.mxu0 0.0
    %4915 = vmatprep.subr.mxu0 0.0
    %4916 = vmatpush2.msra.mxu0 0.0
    %4917 = vmatprep.subr.mxu0 0.0
    %4918 = vmatpush2.msra.mxu0 0.0
    %4919 = vmatprep.subr.mxu0 0.0
    %4920 = vmatpush2.msra.mxu0 0.0
    %4921 = vmatprep.subr.mxu0 0.0
    %4922 = vmatpush2.msra.mxu0 0.0
    %4923 = vmatprep.subr.mxu0 0.0
    %4924 = vmatpush2.msra.mxu0 0.0
    %4925 = vmatprep.subr.mxu0 0.0
    %4926 = vmatpush2.msra.mxu0 0.0
    %4927 = vmatprep.subr.mxu0 0.0
    %4928 = vmatpush2.msra.mxu0 0.0
    %4929 = vmatprep.subr.mxu0 0.0
    %4930 = vmatpush2.msra.mxu0 0.0
    %4931 = vmatprep.subr.mxu0 0.0
    %4932 = vmatpush2.msra.mxu0 0.0
    %4933 = vmatprep.subr.mxu0 0.0
    %4934 = vmatpush2.msra.mxu0 0.0
    %4935 = vmatprep.subr.mxu0 0.0
    %4936 = vmatpush2.msra.mxu0 0.0
    %4937 = vmatprep.subr.mxu0 0.0
    %4938 = vmatpush2.msra.mxu0 0.0
    %4939 = vmatprep.subr.mxu0 0.0
    %4940 = vmatpush2.msra.mxu0 0.0
    %4941 = vmatprep.subr.mxu0 0.0
    %4942 = vmatpush2.msra.mxu0 0.0
    %4943 = vmatprep.mubr.f32.mxu0 0.0
    %4944 = vmatmul.mubr.f32.gmra.mxu0 %v4874
    %v4945 = vpop.f32.mrf.mxu0
    %v4946 = vadd.f32 0.0, %v4945
    %v4947 = vpop.f32.mrf.mxu0
    %4948 = vmatprep.mubr.f32.mxu0 0.0
    %4949 = vmatmul.mubr.f32.gmra.mxu0 %v4877
    %v4950 = vpop.f32.mrf.mxu0
    %v4951 = vadd.f32 0.0, %v4950
    %v4952 = vpop.f32.mrf.mxu0
    %4953 = vdwg.mxu0
    %v4955 = vsel %vm264, %v4946, 0
    %v4958 = vsel %vm264, %v4951, 0
    %4960 = vmatprep.subr.mxu0 0.0
    %4961 = vmatpush1.msra.mxu0 0.0
    %4962 = vmatprep.subr.mxu0 0.0
    %4963 = vmatpush1.msra.mxu0 0.0
    %4964 = vmatprep.subr.mxu0 0.0
    %4965 = vmatpush1.msra.mxu0 0.0
    %4966 = vmatprep.subr.mxu0 0.0
    %4967 = vmatpush1.msra.mxu0 0.0
    %4968 = vmatprep.subr.mxu0 0.0
    %4969 = vmatpush1.msra.mxu0 0.0
    %4970 = vmatprep.subr.mxu0 0.0
    %4971 = vmatpush1.msra.mxu0 0.0
    %4972 = vmatprep.subr.mxu0 0.0
    %4973 = vmatpush1.msra.mxu0 0.0
    %4974 = vmatprep.subr.mxu0 0.0
    %4975 = vmatpush1.msra.mxu0 0.0
    %4976 = vmatprep.subr.mxu0 0.0
    %4977 = vmatpush1.msra.mxu0 0.0
    %4978 = vmatprep.subr.mxu0 0.0
    %4979 = vmatpush1.msra.mxu0 0.0
    %4980 = vmatprep.subr.mxu0 0.0
    %4981 = vmatpush1.msra.mxu0 0.0
    %4982 = vmatprep.subr.mxu0 0.0
    %4983 = vmatpush1.msra.mxu0 0.0
    %4984 = vmatprep.subr.mxu0 0.0
    %4985 = vmatpush1.msra.mxu0 0.0
    %4986 = vmatprep.subr.mxu0 0.0
    %4987 = vmatpush1.msra.mxu0 0.0
    %4988 = vmatprep.subr.mxu0 0.0
    %4989 = vmatpush1.msra.mxu0 0.0
    %4990 = vmatprep.subr.mxu0 0.0
    %4991 = vmatpush1.msra.mxu0 %v4555
    %4992 = vmatprep.subr.mxu0 0.0
    %4993 = vmatpush2.msra.mxu0 0.0
    %4994 = vmatprep.subr.mxu0 0.0
    %4995 = vmatpush2.msra.mxu0 0.0
    %4996 = vmatprep.subr.mxu0 0.0
    %4997 = vmatpush2.msra.mxu0 0.0
    %4998 = vmatprep.subr.mxu0 0.0
    %4999 = vmatpush2.msra.mxu0 0.0
    %5000 = vmatprep.subr.mxu0 0.0
    %5001 = vmatpush2.msra.mxu0 0.0
    %5002 = vmatprep.subr.mxu0 0.0
    %5003 = vmatpush2.msra.mxu0 0.0
    %5004 = vmatprep.subr.mxu0 0.0
    %5005 = vmatpush2.msra.mxu0 0.0
    %5006 = vmatprep.subr.mxu0 0.0
    %5007 = vmatpush2.msra.mxu0 0.0
    %5008 = vmatprep.subr.mxu0 0.0
    %5009 = vmatpush2.msra.mxu0 0.0
    %5010 = vmatprep.subr.mxu0 0.0
    %5011 = vmatpush2.msra.mxu0 0.0
    %5012 = vmatprep.subr.mxu0 0.0
    %5013 = vmatpush2.msra.mxu0 0.0
    %5014 = vmatprep.subr.mxu0 0.0
    %5015 = vmatpush2.msra.mxu0 0.0
    %5016 = vmatprep.subr.mxu0 0.0
    %5017 = vmatpush2.msra.mxu0 0.0
    %5018 = vmatprep.subr.mxu0 0.0
    %5019 = vmatpush2.msra.mxu0 0.0
    %5020 = vmatprep.subr.mxu0 0.0
    %5021 = vmatpush2.msra.mxu0 0.0
    %5022 = vmatprep.subr.mxu0 0.0
    %5023 = vmatpush2.msra.mxu0 0.0
    %5024 = vmatprep.mubr.f32.mxu0 0.0
    %5025 = vmatmul.mubr.f32.gmra.mxu0 %v4955
    %v5026 = vpop.f32.mrf.mxu0
    %v5027 = vadd.f32 0.0, %v5026
    %v5028 = vpop.f32.mrf.mxu0
    %5029 = vmatprep.mubr.f32.mxu0 0.0
    %5030 = vmatmul.mubr.f32.gmra.mxu0 %v4958
    %v5031 = vpop.f32.mrf.mxu0
    %v5032 = vadd.f32 0.0, %v5031
    %v5033 = vpop.f32.mrf.mxu0
    %5034 = vdwg.mxu0
    %v5036 = vsel %vm264, %v4746, 0
    %v5039 = vsel %vm264, %v4751, 0
    %5041 = vmatprep.subr.mxu0 0.0
    %5042 = vmatpush1.msra.mxu0 0.0
    %5043 = vmatprep.subr.mxu0 0.0
    %5044 = vmatpush1.msra.mxu0 0.0
    %5045 = vmatprep.subr.mxu0 0.0
    %5046 = vmatpush1.msra.mxu0 0.0
    %5047 = vmatprep.subr.mxu0 0.0
    %5048 = vmatpush1.msra.mxu0 0.0
    %5049 = vmatprep.subr.mxu0 0.0
    %5050 = vmatpush1.msra.mxu0 0.0
    %5051 = vmatprep.subr.mxu0 0.0
    %5052 = vmatpush1.msra.mxu0 0.0
    %5053 = vmatprep.subr.mxu0 0.0
    %5054 = vmatpush1.msra.mxu0 0.0
    %5055 = vmatprep.subr.mxu0 0.0
    %5056 = vmatpush1.msra.mxu0 0.0
    %5057 = vmatprep.subr.mxu0 0.0
    %5058 = vmatpush1.msra.mxu0 0.0
    %5059 = vmatprep.subr.mxu0 0.0
    %5060 = vmatpush1.msra.mxu0 0.0
    %5061 = vmatprep.subr.mxu0 0.0
    %5062 = vmatpush1.msra.mxu0 0.0
    %5063 = vmatprep.subr.mxu0 0.0
    %5064 = vmatpush1.msra.mxu0 0.0
    %5065 = vmatprep.subr.mxu0 0.0
    %5066 = vmatpush1.msra.mxu0 0.0
    %5067 = vmatprep.subr.mxu0 0.0
    %5068 = vmatpush1.msra.mxu0 0.0
    %5069 = vmatprep.subr.mxu0 0.0
    %5070 = vmatpush1.msra.mxu0 0.0
    %5071 = vmatprep.subr.mxu0 0.0
    %5072 = vmatpush1.msra.mxu0 %v4554
    %5073 = vmatprep.subr.mxu0 0.0
    %5074 = vmatpush2.msra.mxu0 0.0
    %5075 = vmatprep.subr.mxu0 0.0
    %5076 = vmatpush2.msra.mxu0 0.0
    %5077 = vmatprep.subr.mxu0 0.0
    %5078 = vmatpush2.msra.mxu0 0.0
    %5079 = vmatprep.subr.mxu0 0.0
    %5080 = vmatpush2.msra.mxu0 0.0
    %5081 = vmatprep.subr.mxu0 0.0
    %5082 = vmatpush2.msra.mxu0 0.0
    %5083 = vmatprep.subr.mxu0 0.0
    %5084 = vmatpush2.msra.mxu0 0.0
    %5085 = vmatprep.subr.mxu0 0.0
    %5086 = vmatpush2.msra.mxu0 0.0
    %5087 = vmatprep.subr.mxu0 0.0
    %5088 = vmatpush2.msra.mxu0 0.0
    %5089 = vmatprep.subr.mxu0 0.0
    %5090 = vmatpush2.msra.mxu0 0.0
    %5091 = vmatprep.subr.mxu0 0.0
    %5092 = vmatpush2.msra.mxu0 0.0
    %5093 = vmatprep.subr.mxu0 0.0
    %5094 = vmatpush2.msra.mxu0 0.0
    %5095 = vmatprep.subr.mxu0 0.0
    %5096 = vmatpush2.msra.mxu0 0.0
    %5097 = vmatprep.subr.mxu0 0.0
    %5098 = vmatpush2.msra.mxu0 0.0
    %5099 = vmatprep.subr.mxu0 0.0
    %5100 = vmatpush2.msra.mxu0 0.0
    %5101 = vmatprep.subr.mxu0 0.0
    %5102 = vmatpush2.msra.mxu0 0.0
    %5103 = vmatprep.subr.mxu0 0.0
    %5104 = vmatpush2.msra.mxu0 0.0
    %5105 = vmatprep.mubr.f32.mxu0 0.0
    %5106 = vmatmul.mubr.f32.gmra.mxu0 %v5036
    %v5107 = vpop.f32.mrf.mxu0
    %v5108 = vadd.f32 %v5027, %v5107
    %v5109 = vpop.f32.mrf.mxu0
    %5110 = vmatprep.mubr.f32.mxu0 0.0
    %5111 = vmatmul.mubr.f32.gmra.mxu0 %v5039
    %v5112 = vpop.f32.mrf.mxu0
    %v5113 = vadd.f32 %v5032, %v5112
    %v5114 = vpop.f32.mrf.mxu0
    %5115 = vdwg.mxu0
    %5116 = vrot.lane.b32.xlu0 %v4454, 112
    %v5117 = vpop.permute.xlu0 %5116
    %5118 = vrot.lane.b32.xlu0 %v4459, 112
    %v5119 = vpop.permute.xlu0 %5118
    %5120 = vrot.lane.b32.xlu0 %v4546, 112
    %v5121 = vpop.permute.xlu0 %5120
    %5122 = vrot.lane.b32.xlu0 %v4551, 112
    %v5123 = vpop.permute.xlu0 %5122
    %v5124 = vsel %vm264, %v5117, 0
    %v5126 = vsel %vm264, %v5119, 0
    %v5128 = vsel %vm264, %v5121, 0
    %v5130 = vsel %vm264, %v5123, 0
    %5132 = vmatprep.subr.mxu0 0.0
    %5133 = vmatpush1.xpose.msra.mxu0 0.0
    %5134 = vmatprep.subr.mxu0 0.0
    %5135 = vmatpush1.xpose.msra.mxu0 0.0
    %5136 = vmatprep.subr.mxu0 0.0
    %5137 = vmatpush1.xpose.msra.mxu0 0.0
    %5138 = vmatprep.subr.mxu0 0.0
    %5139 = vmatpush1.xpose.msra.mxu0 0.0
    %5140 = vmatprep.subr.mxu0 0.0
    %5141 = vmatpush1.xpose.msra.mxu0 0.0
    %5142 = vmatprep.subr.mxu0 0.0
    %5143 = vmatpush1.xpose.msra.mxu0 0.0
    %5144 = vmatprep.subr.mxu0 0.0
    %5145 = vmatpush1.xpose.msra.mxu0 0.0
    %5146 = vmatprep.subr.mxu0 0.0
    %5147 = vmatpush1.xpose.msra.mxu0 0.0
    %5148 = vmatprep.subr.mxu0 0.0
    %5149 = vmatpush1.xpose.msra.mxu0 0.0
    %5150 = vmatprep.subr.mxu0 0.0
    %5151 = vmatpush1.xpose.msra.mxu0 0.0
    %5152 = vmatprep.subr.mxu0 0.0
    %5153 = vmatpush1.xpose.msra.mxu0 0.0
    %5154 = vmatprep.subr.mxu0 0.0
    %5155 = vmatpush1.xpose.msra.mxu0 0.0
    %5156 = vmatprep.subr.mxu0 0.0
    %5157 = vmatpush1.xpose.msra.mxu0 0.0
    %5158 = vmatprep.subr.mxu0 0.0
    %5159 = vmatpush1.xpose.msra.mxu0 0.0
    %5160 = vmatprep.subr.mxu0 0.0
    %5161 = vmatpush1.xpose.msra.mxu0 %v5130
    %5162 = vmatprep.subr.mxu0 0.0
    %5163 = vmatpush1.xpose.msra.mxu0 %v5128
    %5164 = vmatprep.subr.mxu0 0.0
    %5165 = vmatpush2.xpose.msra.mxu0 0.0
    %5166 = vmatprep.subr.mxu0 0.0
    %5167 = vmatpush2.xpose.msra.mxu0 0.0
    %5168 = vmatprep.subr.mxu0 0.0
    %5169 = vmatpush2.xpose.msra.mxu0 0.0
    %5170 = vmatprep.subr.mxu0 0.0
    %5171 = vmatpush2.xpose.msra.mxu0 0.0
    %5172 = vmatprep.subr.mxu0 0.0
    %5173 = vmatpush2.xpose.msra.mxu0 0.0
    %5174 = vmatprep.subr.mxu0 0.0
    %5175 = vmatpush2.xpose.msra.mxu0 0.0
    %5176 = vmatprep.subr.mxu0 0.0
    %5177 = vmatpush2.xpose.msra.mxu0 0.0
    %5178 = vmatprep.subr.mxu0 0.0
    %5179 = vmatpush2.xpose.msra.mxu0 0.0
    %5180 = vmatprep.subr.mxu0 0.0
    %5181 = vmatpush2.xpose.msra.mxu0 0.0
    %5182 = vmatprep.subr.mxu0 0.0
    %5183 = vmatpush2.xpose.msra.mxu0 0.0
    %5184 = vmatprep.subr.mxu0 0.0
    %5185 = vmatpush2.xpose.msra.mxu0 0.0
    %5186 = vmatprep.subr.mxu0 0.0
    %5187 = vmatpush2.xpose.msra.mxu0 0.0
    %5188 = vmatprep.subr.mxu0 0.0
    %5189 = vmatpush2.xpose.msra.mxu0 0.0
    %5190 = vmatprep.subr.mxu0 0.0
    %5191 = vmatpush2.xpose.msra.mxu0 0.0
    %5192 = vmatprep.subr.mxu0 0.0
    %5193 = vmatpush2.xpose.msra.mxu0 0.0
    %5194 = vmatprep.subr.mxu0 0.0
    %5195 = vmatpush2.xpose.msra.mxu0 0.0
    %5196 = vmatprep.mubr.f32.mxu0 0.0
    %5197 = vmatmul.mubr.f32.gmra.mxu0 %v5124
    %v5198 = vpop.f32.mrf.mxu0
    %v5199 = vadd.f32 %v137, %v5198
    %v5200 = vpop.f32.mrf.mxu0
    %5201 = vmatprep.mubr.f32.mxu0 0.0
    %5202 = vmatmul.mubr.f32.gmra.mxu0 %v5126
    %v5203 = vpop.f32.mrf.mxu0
    %v5204 = vadd.f32 %v138, %v5203
    %v5205 = vpop.f32.mrf.mxu0
    %5206 = vdwg.mxu0
    %v5207 = vsel %vm348, %v5199, -inf
    %5208 = vmax.xlane.f32.xlu0 %v5207
    %v5209 = vpop.xlane.xlu0 %5208
    %v5210 = vsel %vm348, %v5204, -inf
    %5211 = vmax.xlane.f32.xlu0 %v5210
    %v5212 = vpop.xlane.xlu0 %5211
    %v5213 = vsub.f32 %v5199, %v5209
    %v5214 = vsub.f32 %v5204, %v5212
    %v5215 = vmul.f32 %v5213, 1.442695
    %v5216 = vpow.pop %v5215
    %v5217 = vmul.f32 %v5214, 1.442695
    %v5218 = vpow.pop %v5217
    %v5219 = vsel %vm348, %v5216, 0.0
    %5220 = vadd.xlane.f32.xlu0 %v5219
    %v5221 = vpop.xlane.xlu0 %5220
    %v5222 = vsel %vm348, %v5218, 0.0
    %5223 = vadd.xlane.f32.xlu0 %v5222
    %v5224 = vpop.xlane.xlu0 %5223
    %v5225 = vrcp.pop %v5221
    %v5226 = vrcp.pop %v5224
    %v5227 = vmul.f32 %v5216, %v5225
    %v5228 = vmul.f32 %v5218, %v5226
    %5229 = vrot.lane.b32.xlu0 %v4546, 80
    %v5230 = vpop.permute.xlu0 %5229
    %5231 = vrot.lane.b32.xlu0 %v4551, 80
    %v5232 = vpop.permute.xlu0 %5231
    %v5236 = vsel %vm348, %v5227, 0
    %v5239 = vsel %vm348, %v5228, 0
    %5241 = vmatprep.subr.mxu0 0.0
    %5242 = vmatpush1.msra.mxu0 0.0
    %5243 = vmatprep.subr.mxu0 0.0
    %5244 = vmatpush1.msra.mxu0 0.0
    %5245 = vmatprep.subr.mxu0 0.0
    %5246 = vmatpush1.msra.mxu0 0.0
    %5247 = vmatprep.subr.mxu0 0.0
    %5248 = vmatpush1.msra.mxu0 0.0
    %5249 = vmatprep.subr.mxu0 0.0
    %5250 = vmatpush1.msra.mxu0 0.0
    %5251 = vmatprep.subr.mxu0 0.0
    %5252 = vmatpush1.msra.mxu0 0.0
    %5253 = vmatprep.subr.mxu0 0.0
    %5254 = vmatpush1.msra.mxu0 0.0
    %5255 = vmatprep.subr.mxu0 0.0
    %5256 = vmatpush1.msra.mxu0 0.0
    %5257 = vmatprep.subr.mxu0 0.0
    %5258 = vmatpush1.msra.mxu0 0.0
    %5259 = vmatprep.subr.mxu0 0.0
    %5260 = vmatpush1.msra.mxu0 0.0
    %5261 = vmatprep.subr.mxu0 0.0
    %5262 = vmatpush1.msra.mxu0 0.0
    %5263 = vmatprep.subr.mxu0 0.0
    %5264 = vmatpush1.msra.mxu0 0.0
    %5265 = vmatprep.subr.mxu0 0.0
    %5266 = vmatpush1.msra.mxu0 0.0
    %5267 = vmatprep.subr.mxu0 0.0
    %5268 = vmatpush1.msra.mxu0 0.0
    %5269 = vmatprep.subr.mxu0 0.0
    %5270 = vmatpush1.msra.mxu0 %v5232
    %5271 = vmatprep.subr.mxu0 0.0
    %5272 = vmatpush1.msra.mxu0 %v5230
    %5273 = vmatprep.subr.mxu0 0.0
    %5274 = vmatpush2.msra.mxu0 0.0
    %5275 = vmatprep.subr.mxu0 0.0
    %5276 = vmatpush2.msra.mxu0 0.0
    %5277 = vmatprep.subr.mxu0 0.0
    %5278 = vmatpush2.msra.mxu0 0.0
    %5279 = vmatprep.subr.mxu0 0.0
    %5280 = vmatpush2.msra.mxu0 0.0
    %5281 = vmatprep.subr.mxu0 0.0
    %5282 = vmatpush2.msra.mxu0 0.0
    %5283 = vmatprep.subr.mxu0 0.0
    %5284 = vmatpush2.msra.mxu0 0.0
    %5285 = vmatprep.subr.mxu0 0.0
    %5286 = vmatpush2.msra.mxu0 0.0
    %5287 = vmatprep.subr.mxu0 0.0
    %5288 = vmatpush2.msra.mxu0 0.0
    %5289 = vmatprep.subr.mxu0 0.0
    %5290 = vmatpush2.msra.mxu0 0.0
    %5291 = vmatprep.subr.mxu0 0.0
    %5292 = vmatpush2.msra.mxu0 0.0
    %5293 = vmatprep.subr.mxu0 0.0
    %5294 = vmatpush2.msra.mxu0 0.0
    %5295 = vmatprep.subr.mxu0 0.0
    %5296 = vmatpush2.msra.mxu0 0.0
    %5297 = vmatprep.subr.mxu0 0.0
    %5298 = vmatpush2.msra.mxu0 0.0
    %5299 = vmatprep.subr.mxu0 0.0
    %5300 = vmatpush2.msra.mxu0 0.0
    %5301 = vmatprep.subr.mxu0 0.0
    %5302 = vmatpush2.msra.mxu0 0.0
    %5303 = vmatprep.subr.mxu0 0.0
    %5304 = vmatpush2.msra.mxu0 0.0
    %5305 = vmatprep.mubr.f32.mxu0 0.0
    %5306 = vmatmul.mubr.f32.gmra.mxu0 %v5236
    %v5307 = vpop.f32.mrf.mxu0
    %v5308 = vadd.f32 0.0, %v5307
    %v5309 = vpop.f32.mrf.mxu0
    %5310 = vmatprep.mubr.f32.mxu0 0.0
    %5311 = vmatmul.mubr.f32.gmra.mxu0 %v5239
    %v5312 = vpop.f32.mrf.mxu0
    %v5313 = vadd.f32 0.0, %v5312
    %v5314 = vpop.f32.mrf.mxu0
    %5315 = vdwg.mxu0
    %v5317 = vsel %vm264, %v5308, 0
    %v5320 = vsel %vm264, %v5313, 0
    %5322 = vmatprep.subr.mxu0 0.0
    %5323 = vmatpush1.msra.mxu0 0.0
    %5324 = vmatprep.subr.mxu0 0.0
    %5325 = vmatpush1.msra.mxu0 0.0
    %5326 = vmatprep.subr.mxu0 0.0
    %5327 = vmatpush1.msra.mxu0 0.0
    %5328 = vmatprep.subr.mxu0 0.0
    %5329 = vmatpush1.msra.mxu0 0.0
    %5330 = vmatprep.subr.mxu0 0.0
    %5331 = vmatpush1.msra.mxu0 0.0
    %5332 = vmatprep.subr.mxu0 0.0
    %5333 = vmatpush1.msra.mxu0 0.0
    %5334 = vmatprep.subr.mxu0 0.0
    %5335 = vmatpush1.msra.mxu0 0.0
    %5336 = vmatprep.subr.mxu0 0.0
    %5337 = vmatpush1.msra.mxu0 0.0
    %5338 = vmatprep.subr.mxu0 0.0
    %5339 = vmatpush1.msra.mxu0 0.0
    %5340 = vmatprep.subr.mxu0 0.0
    %5341 = vmatpush1.msra.mxu0 0.0
    %5342 = vmatprep.subr.mxu0 0.0
    %5343 = vmatpush1.msra.mxu0 0.0
    %5344 = vmatprep.subr.mxu0 0.0
    %5345 = vmatpush1.msra.mxu0 0.0
    %5346 = vmatprep.subr.mxu0 0.0
    %5347 = vmatpush1.msra.mxu0 0.0
    %5348 = vmatprep.subr.mxu0 0.0
    %5349 = vmatpush1.msra.mxu0 0.0
    %5350 = vmatprep.subr.mxu0 0.0
    %5351 = vmatpush1.msra.mxu0 0.0
    %5352 = vmatprep.subr.mxu0 0.0
    %5353 = vmatpush1.msra.mxu0 %v4556
    %5354 = vmatprep.subr.mxu0 0.0
    %5355 = vmatpush2.msra.mxu0 0.0
    %5356 = vmatprep.subr.mxu0 0.0
    %5357 = vmatpush2.msra.mxu0 0.0
    %5358 = vmatprep.subr.mxu0 0.0
    %5359 = vmatpush2.msra.mxu0 0.0
    %5360 = vmatprep.subr.mxu0 0.0
    %5361 = vmatpush2.msra.mxu0 0.0
    %5362 = vmatprep.subr.mxu0 0.0
    %5363 = vmatpush2.msra.mxu0 0.0
    %5364 = vmatprep.subr.mxu0 0.0
    %5365 = vmatpush2.msra.mxu0 0.0
    %5366 = vmatprep.subr.mxu0 0.0
    %5367 = vmatpush2.msra.mxu0 0.0
    %5368 = vmatprep.subr.mxu0 0.0
    %5369 = vmatpush2.msra.mxu0 0.0
    %5370 = vmatprep.subr.mxu0 0.0
    %5371 = vmatpush2.msra.mxu0 0.0
    %5372 = vmatprep.subr.mxu0 0.0
    %5373 = vmatpush2.msra.mxu0 0.0
    %5374 = vmatprep.subr.mxu0 0.0
    %5375 = vmatpush2.msra.mxu0 0.0
    %5376 = vmatprep.subr.mxu0 0.0
    %5377 = vmatpush2.msra.mxu0 0.0
    %5378 = vmatprep.subr.mxu0 0.0
    %5379 = vmatpush2.msra.mxu0 0.0
    %5380 = vmatprep.subr.mxu0 0.0
    %5381 = vmatpush2.msra.mxu0 0.0
    %5382 = vmatprep.subr.mxu0 0.0
    %5383 = vmatpush2.msra.mxu0 0.0
    %5384 = vmatprep.subr.mxu0 0.0
    %5385 = vmatpush2.msra.mxu0 0.0
    %5386 = vmatprep.mubr.f32.mxu0 0.0
    %5387 = vmatmul.mubr.f32.gmra.mxu0 %v5317
    %v5388 = vpop.f32.mrf.mxu0
    %v5389 = vadd.f32 0.0, %v5388
    %v5390 = vpop.f32.mrf.mxu0
    %5391 = vmatprep.mubr.f32.mxu0 0.0
    %5392 = vmatmul.mubr.f32.gmra.mxu0 %v5320
    %v5393 = vpop.f32.mrf.mxu0
    %v5394 = vadd.f32 0.0, %v5393
    %v5395 = vpop.f32.mrf.mxu0
    %5396 = vdwg.mxu0
    %v5397 = vadd.f32 %v5108, %v5389
    %v5398 = vadd.f32 %v5113, %v5394
    %5399 = vrot.lane.b32.xlu0 %v4454, 104
    %v5400 = vpop.permute.xlu0 %5399
    %5401 = vrot.lane.b32.xlu0 %v4459, 104
    %v5402 = vpop.permute.xlu0 %5401
    %5403 = vrot.lane.b32.xlu0 %v4546, 104
    %v5404 = vpop.permute.xlu0 %5403
    %5405 = vrot.lane.b32.xlu0 %v4551, 104
    %v5406 = vpop.permute.xlu0 %5405
    %v5407 = vsel %vm264, %v5400, 0
    %v5409 = vsel %vm264, %v5402, 0
    %v5411 = vsel %vm264, %v5404, 0
    %v5413 = vsel %vm264, %v5406, 0
    %5415 = vmatprep.subr.mxu0 0.0
    %5416 = vmatpush1.xpose.msra.mxu0 0.0
    %5417 = vmatprep.subr.mxu0 0.0
    %5418 = vmatpush1.xpose.msra.mxu0 0.0
    %5419 = vmatprep.subr.mxu0 0.0
    %5420 = vmatpush1.xpose.msra.mxu0 0.0
    %5421 = vmatprep.subr.mxu0 0.0
    %5422 = vmatpush1.xpose.msra.mxu0 0.0
    %5423 = vmatprep.subr.mxu0 0.0
    %5424 = vmatpush1.xpose.msra.mxu0 0.0
    %5425 = vmatprep.subr.mxu0 0.0
    %5426 = vmatpush1.xpose.msra.mxu0 0.0
    %5427 = vmatprep.subr.mxu0 0.0
    %5428 = vmatpush1.xpose.msra.mxu0 0.0
    %5429 = vmatprep.subr.mxu0 0.0
    %5430 = vmatpush1.xpose.msra.mxu0 0.0
    %5431 = vmatprep.subr.mxu0 0.0
    %5432 = vmatpush1.xpose.msra.mxu0 0.0
    %5433 = vmatprep.subr.mxu0 0.0
    %5434 = vmatpush1.xpose.msra.mxu0 0.0
    %5435 = vmatprep.subr.mxu0 0.0
    %5436 = vmatpush1.xpose.msra.mxu0 0.0
    %5437 = vmatprep.subr.mxu0 0.0
    %5438 = vmatpush1.xpose.msra.mxu0 0.0
    %5439 = vmatprep.subr.mxu0 0.0
    %5440 = vmatpush1.xpose.msra.mxu0 0.0
    %5441 = vmatprep.subr.mxu0 0.0
    %5442 = vmatpush1.xpose.msra.mxu0 0.0
    %5443 = vmatprep.subr.mxu0 0.0
    %5444 = vmatpush1.xpose.msra.mxu0 %v5413
    %5445 = vmatprep.subr.mxu0 0.0
    %5446 = vmatpush1.xpose.msra.mxu0 %v5411
    %5447 = vmatprep.subr.mxu0 0.0
    %5448 = vmatpush2.xpose.msra.mxu0 0.0
    %5449 = vmatprep.subr.mxu0 0.0
    %5450 = vmatpush2.xpose.msra.mxu0 0.0
    %5451 = vmatprep.subr.mxu0 0.0
    %5452 = vmatpush2.xpose.msra.mxu0 0.0
    %5453 = vmatprep.subr.mxu0 0.0
    %5454 = vmatpush2.xpose.msra.mxu0 0.0
    %5455 = vmatprep.subr.mxu0 0.0
    %5456 = vmatpush2.xpose.msra.mxu0 0.0
    %5457 = vmatprep.subr.mxu0 0.0
    %5458 = vmatpush2.xpose.msra.mxu0 0.0
    %5459 = vmatprep.subr.mxu0 0.0
    %5460 = vmatpush2.xpose.msra.mxu0 0.0
    %5461 = vmatprep.subr.mxu0 0.0
    %5462 = vmatpush2.xpose.msra.mxu0 0.0
    %5463 = vmatprep.subr.mxu0 0.0
    %5464 = vmatpush2.xpose.msra.mxu0 0.0
    %5465 = vmatprep.subr.mxu0 0.0
    %5466 = vmatpush2.xpose.msra.mxu0 0.0
    %5467 = vmatprep.subr.mxu0 0.0
    %5468 = vmatpush2.xpose.msra.mxu0 0.0
    %5469 = vmatprep.subr.mxu0 0.0
    %5470 = vmatpush2.xpose.msra.mxu0 0.0
    %5471 = vmatprep.subr.mxu0 0.0
    %5472 = vmatpush2.xpose.msra.mxu0 0.0
    %5473 = vmatprep.subr.mxu0 0.0
    %5474 = vmatpush2.xpose.msra.mxu0 0.0
    %5475 = vmatprep.subr.mxu0 0.0
    %5476 = vmatpush2.xpose.msra.mxu0 0.0
    %5477 = vmatprep.subr.mxu0 0.0
    %5478 = vmatpush2.xpose.msra.mxu0 0.0
    %5479 = vmatprep.mubr.f32.mxu0 0.0
    %5480 = vmatmul.mubr.f32.gmra.mxu0 %v5407
    %v5481 = vpop.f32.mrf.mxu0
    %v5482 = vadd.f32 %v137, %v5481
    %v5483 = vpop.f32.mrf.mxu0
    %5484 = vmatprep.mubr.f32.mxu0 0.0
    %5485 = vmatmul.mubr.f32.gmra.mxu0 %v5409
    %v5486 = vpop.f32.mrf.mxu0
    %v5487 = vadd.f32 %v138, %v5486
    %v5488 = vpop.f32.mrf.mxu0
    %5489 = vdwg.mxu0
    %v5490 = vsel %vm348, %v5482, -inf
    %5491 = vmax.xlane.f32.xlu0 %v5490
    %v5492 = vpop.xlane.xlu0 %5491
    %v5493 = vsel %vm348, %v5487, -inf
    %5494 = vmax.xlane.f32.xlu0 %v5493
    %v5495 = vpop.xlane.xlu0 %5494
    %v5496 = vsub.f32 %v5482, %v5492
    %v5497 = vsub.f32 %v5487, %v5495
    %v5498 = vmul.f32 %v5496, 1.442695
    %v5499 = vpow.pop %v5498
    %v5500 = vmul.f32 %v5497, 1.442695
    %v5501 = vpow.pop %v5500
    %v5502 = vsel %vm348, %v5499, 0.0
    %5503 = vadd.xlane.f32.xlu0 %v5502
    %v5504 = vpop.xlane.xlu0 %5503
    %v5505 = vsel %vm348, %v5501, 0.0
    %5506 = vadd.xlane.f32.xlu0 %v5505
    %v5507 = vpop.xlane.xlu0 %5506
    %v5508 = vrcp.pop %v5504
    %v5509 = vrcp.pop %v5507
    %v5510 = vmul.f32 %v5499, %v5508
    %v5511 = vmul.f32 %v5501, %v5509
    %5512 = vrot.lane.b32.xlu0 %v4546, 72
    %v5513 = vpop.permute.xlu0 %5512
    %5514 = vrot.lane.b32.xlu0 %v4551, 72
    %v5515 = vpop.permute.xlu0 %5514
    %v5519 = vsel %vm348, %v5510, 0
    %v5522 = vsel %vm348, %v5511, 0
    %5524 = vmatprep.subr.mxu0 0.0
    %5525 = vmatpush1.msra.mxu0 0.0
    %5526 = vmatprep.subr.mxu0 0.0
    %5527 = vmatpush1.msra.mxu0 0.0
    %5528 = vmatprep.subr.mxu0 0.0
    %5529 = vmatpush1.msra.mxu0 0.0
    %5530 = vmatprep.subr.mxu0 0.0
    %5531 = vmatpush1.msra.mxu0 0.0
    %5532 = vmatprep.subr.mxu0 0.0
    %5533 = vmatpush1.msra.mxu0 0.0
    %5534 = vmatprep.subr.mxu0 0.0
    %5535 = vmatpush1.msra.mxu0 0.0
    %5536 = vmatprep.subr.mxu0 0.0
    %5537 = vmatpush1.msra.mxu0 0.0
    %5538 = vmatprep.subr.mxu0 0.0
    %5539 = vmatpush1.msra.mxu0 0.0
    %5540 = vmatprep.subr.mxu0 0.0
    %5541 = vmatpush1.msra.mxu0 0.0
    %5542 = vmatprep.subr.mxu0 0.0
    %5543 = vmatpush1.msra.mxu0 0.0
    %5544 = vmatprep.subr.mxu0 0.0
    %5545 = vmatpush1.msra.mxu0 0.0
    %5546 = vmatprep.subr.mxu0 0.0
    %5547 = vmatpush1.msra.mxu0 0.0
    %5548 = vmatprep.subr.mxu0 0.0
    %5549 = vmatpush1.msra.mxu0 0.0
    %5550 = vmatprep.subr.mxu0 0.0
    %5551 = vmatpush1.msra.mxu0 0.0
    %5552 = vmatprep.subr.mxu0 0.0
    %5553 = vmatpush1.msra.mxu0 %v5515
    %5554 = vmatprep.subr.mxu0 0.0
    %5555 = vmatpush1.msra.mxu0 %v5513
    %5556 = vmatprep.subr.mxu0 0.0
    %5557 = vmatpush2.msra.mxu0 0.0
    %5558 = vmatprep.subr.mxu0 0.0
    %5559 = vmatpush2.msra.mxu0 0.0
    %5560 = vmatprep.subr.mxu0 0.0
    %5561 = vmatpush2.msra.mxu0 0.0
    %5562 = vmatprep.subr.mxu0 0.0
    %5563 = vmatpush2.msra.mxu0 0.0
    %5564 = vmatprep.subr.mxu0 0.0
    %5565 = vmatpush2.msra.mxu0 0.0
    %5566 = vmatprep.subr.mxu0 0.0
    %5567 = vmatpush2.msra.mxu0 0.0
    %5568 = vmatprep.subr.mxu0 0.0
    %5569 = vmatpush2.msra.mxu0 0.0
    %5570 = vmatprep.subr.mxu0 0.0
    %5571 = vmatpush2.msra.mxu0 0.0
    %5572 = vmatprep.subr.mxu0 0.0
    %5573 = vmatpush2.msra.mxu0 0.0
    %5574 = vmatprep.subr.mxu0 0.0
    %5575 = vmatpush2.msra.mxu0 0.0
    %5576 = vmatprep.subr.mxu0 0.0
    %5577 = vmatpush2.msra.mxu0 0.0
    %5578 = vmatprep.subr.mxu0 0.0
    %5579 = vmatpush2.msra.mxu0 0.0
    %5580 = vmatprep.subr.mxu0 0.0
    %5581 = vmatpush2.msra.mxu0 0.0
    %5582 = vmatprep.subr.mxu0 0.0
    %5583 = vmatpush2.msra.mxu0 0.0
    %5584 = vmatprep.subr.mxu0 0.0
    %5585 = vmatpush2.msra.mxu0 0.0
    %5586 = vmatprep.subr.mxu0 0.0
    %5587 = vmatpush2.msra.mxu0 0.0
    %5588 = vmatprep.mubr.f32.mxu0 0.0
    %5589 = vmatmul.mubr.f32.gmra.mxu0 %v5519
    %v5590 = vpop.f32.mrf.mxu0
    %v5591 = vadd.f32 0.0, %v5590
    %v5592 = vpop.f32.mrf.mxu0
    %5593 = vmatprep.mubr.f32.mxu0 0.0
    %5594 = vmatmul.mubr.f32.gmra.mxu0 %v5522
    %v5595 = vpop.f32.mrf.mxu0
    %v5596 = vadd.f32 0.0, %v5595
    %v5597 = vpop.f32.mrf.mxu0
    %5598 = vdwg.mxu0
    %v5600 = vsel %vm264, %v5591, 0
    %v5603 = vsel %vm264, %v5596, 0
    %5605 = vmatprep.subr.mxu0 0.0
    %5606 = vmatpush1.msra.mxu0 0.0
    %5607 = vmatprep.subr.mxu0 0.0
    %5608 = vmatpush1.msra.mxu0 0.0
    %5609 = vmatprep.subr.mxu0 0.0
    %5610 = vmatpush1.msra.mxu0 0.0
    %5611 = vmatprep.subr.mxu0 0.0
    %5612 = vmatpush1.msra.mxu0 0.0
    %5613 = vmatprep.subr.mxu0 0.0
    %5614 = vmatpush1.msra.mxu0 0.0
    %5615 = vmatprep.subr.mxu0 0.0
    %5616 = vmatpush1.msra.mxu0 0.0
    %5617 = vmatprep.subr.mxu0 0.0
    %5618 = vmatpush1.msra.mxu0 0.0
    %5619 = vmatprep.subr.mxu0 0.0
    %5620 = vmatpush1.msra.mxu0 0.0
    %5621 = vmatprep.subr.mxu0 0.0
    %5622 = vmatpush1.msra.mxu0 0.0
    %5623 = vmatprep.subr.mxu0 0.0
    %5624 = vmatpush1.msra.mxu0 0.0
    %5625 = vmatprep.subr.mxu0 0.0
    %5626 = vmatpush1.msra.mxu0 0.0
    %5627 = vmatprep.subr.mxu0 0.0
    %5628 = vmatpush1.msra.mxu0 0.0
    %5629 = vmatprep.subr.mxu0 0.0
    %5630 = vmatpush1.msra.mxu0 0.0
    %5631 = vmatprep.subr.mxu0 0.0
    %5632 = vmatpush1.msra.mxu0 0.0
    %5633 = vmatprep.subr.mxu0 0.0
    %5634 = vmatpush1.msra.mxu0 0.0
    %5635 = vmatprep.subr.mxu0 0.0
    %5636 = vmatpush1.msra.mxu0 %v4557
    %5637 = vmatprep.subr.mxu0 0.0
    %5638 = vmatpush2.msra.mxu0 0.0
    %5639 = vmatprep.subr.mxu0 0.0
    %5640 = vmatpush2.msra.mxu0 0.0
    %5641 = vmatprep.subr.mxu0 0.0
    %5642 = vmatpush2.msra.mxu0 0.0
    %5643 = vmatprep.subr.mxu0 0.0
    %5644 = vmatpush2.msra.mxu0 0.0
    %5645 = vmatprep.subr.mxu0 0.0
    %5646 = vmatpush2.msra.mxu0 0.0
    %5647 = vmatprep.subr.mxu0 0.0
    %5648 = vmatpush2.msra.mxu0 0.0
    %5649 = vmatprep.subr.mxu0 0.0
    %5650 = vmatpush2.msra.mxu0 0.0
    %5651 = vmatprep.subr.mxu0 0.0
    %5652 = vmatpush2.msra.mxu0 0.0
    %5653 = vmatprep.subr.mxu0 0.0
    %5654 = vmatpush2.msra.mxu0 0.0
    %5655 = vmatprep.subr.mxu0 0.0
    %5656 = vmatpush2.msra.mxu0 0.0
    %5657 = vmatprep.subr.mxu0 0.0
    %5658 = vmatpush2.msra.mxu0 0.0
    %5659 = vmatprep.subr.mxu0 0.0
    %5660 = vmatpush2.msra.mxu0 0.0
    %5661 = vmatprep.subr.mxu0 0.0
    %5662 = vmatpush2.msra.mxu0 0.0
    %5663 = vmatprep.subr.mxu0 0.0
    %5664 = vmatpush2.msra.mxu0 0.0
    %5665 = vmatprep.subr.mxu0 0.0
    %5666 = vmatpush2.msra.mxu0 0.0
    %5667 = vmatprep.subr.mxu0 0.0
    %5668 = vmatpush2.msra.mxu0 0.0
    %5669 = vmatprep.mubr.f32.mxu0 0.0
    %5670 = vmatmul.mubr.f32.gmra.mxu0 %v5600
    %v5671 = vpop.f32.mrf.mxu0
    %v5672 = vadd.f32 0.0, %v5671
    %v5673 = vpop.f32.mrf.mxu0
    %5674 = vmatprep.mubr.f32.mxu0 0.0
    %5675 = vmatmul.mubr.f32.gmra.mxu0 %v5603
    %v5676 = vpop.f32.mrf.mxu0
    %v5677 = vadd.f32 0.0, %v5676
    %v5678 = vpop.f32.mrf.mxu0
    %5679 = vdwg.mxu0
    %v5680 = vadd.f32 %v5397, %v5672
    %v5681 = vadd.f32 %v5398, %v5677
    %v5682 = vadd.f32 %v4350, %v5680
    %v5683 = vadd.f32 %v4351, %v5681
    %v5684 = vld [vmem:[%s47] sm:$0x1]
    %v5686 = vlaneseq
    %v5687 = vshrl.u32 %v5686, 7
    %v5688 = vsub.s32 0, %v5687
    %v5689 = vrot.slane %v5684, %v5688
    %v5691 = vadd.f32 %v5682, %v5689
    %v5692 = vadd.f32 %v5683, %v5689
    %s5693 = sld [smem:[#allocation2 + $0x7]]
    %v5694 = vmul.f32 %v5691, %v5691
    %v5695 = vmul.f32 %v5692, %v5692
    %v5696 = vsel %vm146, %v5694, 0.0
    %5697 = vadd.xlane.f32.xlu0 %v5696
    %v5698 = vpop.xlane.xlu0 %5697
    %v5699 = vsel %vm146, %v5695, 0.0
    %5700 = vadd.xlane.f32.xlu0 %v5699
    %v5701 = vpop.xlane.xlu0 %5700
    %v5702 = vmax.f32 %v5698, 1e-10
    %v5703 = vmax.f32 %v5701, 1e-10
    %v5704 = vrsqrt.pop %v5702
    %v5705 = vrsqrt.pop %v5703
    %v5706 = vstv %s5693
    %v5707 = vmul.f32 %v5706, %v5704
    %v5708 = vmul.f32 %v5706, %v5705
    %v5709 = vmul.f32 %v5691, %v5707
    %v5710 = vmul.f32 %v5692, %v5708
    %v5711 = vld [vmem:[%s49] sm:$0xff]
    %v5712 = vld [vmem:[%s49 + $0x8] sm:$0xff]
    %v5713 = vld [vmem:[%s49 + $0x10] sm:$0xff]
    %v5714 = vld [vmem:[%s49 + $0x18] sm:$0xff]
    %v5715 = vld [vmem:[%s51] sm:$0x1]
    %v5717 = vlaneseq
    %v5718 = vshrl.u32 %v5717, 7
    %v5719 = vsub.s32 0, %v5718
    %v5720 = vrot.slane %v5715, %v5719
    %v5723 = vsel %vm146, %v5709, 0
    %v5726 = vsel %vm146, %v5710, 0
    %5728 = vmatprep.subr.mxu0 0.0
    %5729 = vmatpush1.msra.mxu0 0.0
    %5730 = vmatprep.subr.mxu0 0.0
    %5731 = vmatpush1.msra.mxu0 0.0
    %5732 = vmatprep.subr.mxu0 0.0
    %5733 = vmatpush1.msra.mxu0 0.0
    %5734 = vmatprep.subr.mxu0 0.0
    %5735 = vmatpush1.msra.mxu0 0.0
    %5736 = vmatprep.subr.mxu0 0.0
    %5737 = vmatpush1.msra.mxu0 0.0
    %5738 = vmatprep.subr.mxu0 0.0
    %5739 = vmatpush1.msra.mxu0 0.0
    %5740 = vmatprep.subr.mxu0 0.0
    %5741 = vmatpush1.msra.mxu0 0.0
    %5742 = vmatprep.subr.mxu0 0.0
    %5743 = vmatpush1.msra.mxu0 0.0
    %5744 = vmatprep.subr.mxu0 0.0
    %5745 = vmatpush1.msra.mxu0 0.0
    %5746 = vmatprep.subr.mxu0 0.0
    %5747 = vmatpush1.msra.mxu0 0.0
    %5748 = vmatprep.subr.mxu0 0.0
    %5749 = vmatpush1.msra.mxu0 0.0
    %5750 = vmatprep.subr.mxu0 0.0
    %5751 = vmatpush1.msra.mxu0 0.0
    %5752 = vmatprep.subr.mxu0 0.0
    %5753 = vmatpush1.msra.mxu0 %v5714
    %5754 = vmatprep.subr.mxu0 0.0
    %5755 = vmatpush1.msra.mxu0 %v5713
    %5756 = vmatprep.subr.mxu0 0.0
    %5757 = vmatpush1.msra.mxu0 %v5712
    %5758 = vmatprep.subr.mxu0 0.0
    %5759 = vmatpush1.msra.mxu0 %v5711
    %5760 = vmatprep.subr.mxu0 0.0
    %5761 = vmatpush2.msra.mxu0 0.0
    %5762 = vmatprep.subr.mxu0 0.0
    %5763 = vmatpush2.msra.mxu0 0.0
    %5764 = vmatprep.subr.mxu0 0.0
    %5765 = vmatpush2.msra.mxu0 0.0
    %5766 = vmatprep.subr.mxu0 0.0
    %5767 = vmatpush2.msra.mxu0 0.0
    %5768 = vmatprep.subr.mxu0 0.0
    %5769 = vmatpush2.msra.mxu0 0.0
    %5770 = vmatprep.subr.mxu0 0.0
    %5771 = vmatpush2.msra.mxu0 0.0
    %5772 = vmatprep.subr.mxu0 0.0
    %5773 = vmatpush2.msra.mxu0 0.0
    %5774 = vmatprep.subr.mxu0 0.0
    %5775 = vmatpush2.msra.mxu0 0.0
    %5776 = vmatprep.subr.mxu0 0.0
    %5777 = vmatpush2.msra.mxu0 0.0
    %5778 = vmatprep.subr.mxu0 0.0
    %5779 = vmatpush2.msra.mxu0 0.0
    %5780 = vmatprep.subr.mxu0 0.0
    %5781 = vmatpush2.msra.mxu0 0.0
    %5782 = vmatprep.subr.mxu0 0.0
    %5783 = vmatpush2.msra.mxu0 0.0
    %5784 = vmatprep.subr.mxu0 0.0
    %5785 = vmatpush2.msra.mxu0 0.0
    %5786 = vmatprep.subr.mxu0 0.0
    %5787 = vmatpush2.msra.mxu0 0.0
    %5788 = vmatprep.subr.mxu0 0.0
    %5789 = vmatpush2.msra.mxu0 0.0
    %5790 = vmatprep.subr.mxu0 0.0
    %5791 = vmatpush2.msra.mxu0 0.0
    %5792 = vmatprep.mubr.f32.mxu0 0.0
    %5793 = vmatmul.mubr.f32.gmra.mxu0 %v5723
    %v5794 = vpop.f32.mrf.mxu0
    %v5795 = vadd.f32 %v5720, %v5794
    %v5796 = vpop.f32.mrf.mxu0
    %5797 = vmatprep.mubr.f32.mxu0 0.0
    %5798 = vmatmul.mubr.f32.gmra.mxu0 %v5726
    %v5799 = vpop.f32.mrf.mxu0
    %v5800 = vadd.f32 %v5720, %v5799
    %v5801 = vpop.f32.mrf.mxu0
    %5802 = vdwg.mxu0
    %v5803 = vmax.f32 %v5795, 0.0
    %v5804 = vmax.f32 %v5800, 0.0
    %v5805 = vld [vmem:[%s53] sm:$0xff]
    %v5806 = vld [vmem:[%s53 + $0x8] sm:$0xff]
    %v5807 = vld [vmem:[%s53 + $0x10] sm:$0xff]
    %v5808 = vld [vmem:[%s53 + $0x18] sm:$0xff]
    %v5809 = vld [vmem:[%s53 + $0x20] sm:$0xff]
    %v5810 = vld [vmem:[%s53 + $0x28] sm:$0xff]
    %v5811 = vld [vmem:[%s53 + $0x30] sm:$0xff]
    %v5812 = vld [vmem:[%s53 + $0x38] sm:$0xff]
    %v5814 = vsel %vm1517, %v5803, 0
    %v5817 = vsel %vm1517, %v5804, 0
    %5819 = vmatprep.subr.mxu0 0.0
    %5820 = vmatpush1.msra.mxu0 0.0
    %5821 = vmatprep.subr.mxu0 0.0
    %5822 = vmatpush1.msra.mxu0 0.0
    %5823 = vmatprep.subr.mxu0 0.0
    %5824 = vmatpush1.msra.mxu0 0.0
    %5825 = vmatprep.subr.mxu0 0.0
    %5826 = vmatpush1.msra.mxu0 0.0
    %5827 = vmatprep.subr.mxu0 0.0
    %5828 = vmatpush1.msra.mxu0 0.0
    %5829 = vmatprep.subr.mxu0 0.0
    %5830 = vmatpush1.msra.mxu0 0.0
    %5831 = vmatprep.subr.mxu0 0.0
    %5832 = vmatpush1.msra.mxu0 0.0
    %5833 = vmatprep.subr.mxu0 0.0
    %5834 = vmatpush1.msra.mxu0 0.0
    %5835 = vmatprep.subr.mxu0 0.0
    %5836 = vmatpush1.msra.mxu0 %v5812
    %5837 = vmatprep.subr.mxu0 0.0
    %5838 = vmatpush1.msra.mxu0 %v5811
    %5839 = vmatprep.subr.mxu0 0.0
    %5840 = vmatpush1.msra.mxu0 %v5810
    %5841 = vmatprep.subr.mxu0 0.0
    %5842 = vmatpush1.msra.mxu0 %v5809
    %5843 = vmatprep.subr.mxu0 0.0
    %5844 = vmatpush1.msra.mxu0 %v5808
    %5845 = vmatprep.subr.mxu0 0.0
    %5846 = vmatpush1.msra.mxu0 %v5807
    %5847 = vmatprep.subr.mxu0 0.0
    %5848 = vmatpush1.msra.mxu0 %v5806
    %5849 = vmatprep.subr.mxu0 0.0
    %5850 = vmatpush1.msra.mxu0 %v5805
    %5851 = vmatprep.subr.mxu0 0.0
    %5852 = vmatpush2.msra.mxu0 0.0
    %5853 = vmatprep.subr.mxu0 0.0
    %5854 = vmatpush2.msra.mxu0 0.0
    %5855 = vmatprep.subr.mxu0 0.0
    %5856 = vmatpush2.msra.mxu0 0.0
    %5857 = vmatprep.subr.mxu0 0.0
    %5858 = vmatpush2.msra.mxu0 0.0
    %5859 = vmatprep.subr.mxu0 0.0
    %5860 = vmatpush2.msra.mxu0 0.0
    %5861 = vmatprep.subr.mxu0 0.0
    %5862 = vmatpush2.msra.mxu0 0.0
    %5863 = vmatprep.subr.mxu0 0.0
    %5864 = vmatpush2.msra.mxu0 0.0
    %5865 = vmatprep.subr.mxu0 0.0
    %5866 = vmatpush2.msra.mxu0 0.0
    %5867 = vmatprep.subr.mxu0 0.0
    %5868 = vmatpush2.msra.mxu0 0.0
    %5869 = vmatprep.subr.mxu0 0.0
    %5870 = vmatpush2.msra.mxu0 0.0
    %5871 = vmatprep.subr.mxu0 0.0
    %5872 = vmatpush2.msra.mxu0 0.0
    %5873 = vmatprep.subr.mxu0 0.0
    %5874 = vmatpush2.msra.mxu0 0.0
    %5875 = vmatprep.subr.mxu0 0.0
    %5876 = vmatpush2.msra.mxu0 0.0
    %5877 = vmatprep.subr.mxu0 0.0
    %5878 = vmatpush2.msra.mxu0 0.0
    %5879 = vmatprep.subr.mxu0 0.0
    %5880 = vmatpush2.msra.mxu0 0.0
    %5881 = vmatprep.subr.mxu0 0.0
    %5882 = vmatpush2.msra.mxu0 0.0
    %5883 = vmatprep.mubr.f32.mxu0 0.0
    %5884 = vmatmul.mubr.f32.gmra.mxu0 %v5814
    %v5885 = vpop.f32.mrf.mxu0
    %v5886 = vadd.f32 0.0, %v5885
    %v5887 = vpop.f32.mrf.mxu0
    %5888 = vmatprep.mubr.f32.mxu0 0.0
    %5889 = vmatmul.mubr.f32.gmra.mxu0 %v5817
    %v5890 = vpop.f32.mrf.mxu0
    %v5891 = vadd.f32 0.0, %v5890
    %v5892 = vpop.f32.mrf.mxu0
    %5893 = vdwg.mxu0
    %v5894 = vadd.f32 %v5691, %v5886
    %v5895 = vadd.f32 %v5692, %v5891
    %v5896 = vld [vmem:[%s55] sm:$0x1]
    %v5898 = vlaneseq
    %v5899 = vshrl.u32 %v5898, 7
    %v5900 = vsub.s32 0, %v5899
    %v5901 = vrot.slane %v5896, %v5900
    %v5903 = vadd.f32 %v5894, %v5901
    %v5904 = vadd.f32 %v5895, %v5901
    %s5905 = sld [smem:[#allocation2 + $0x8]]
    %v5906 = vmul.f32 %v5903, %v5903
    %v5907 = vmul.f32 %v5904, %v5904
    %v5908 = vsel %vm146, %v5906, 0.0
    %5909 = vadd.xlane.f32.xlu0 %v5908
    %v5910 = vpop.xlane.xlu0 %5909
    %v5911 = vsel %vm146, %v5907, 0.0
    %5912 = vadd.xlane.f32.xlu0 %v5911
    %v5913 = vpop.xlane.xlu0 %5912
    %v5914 = vmax.f32 %v5910, 1e-10
    %v5915 = vmax.f32 %v5913, 1e-10
    %v5916 = vrsqrt.pop %v5914
    %v5917 = vrsqrt.pop %v5915
    %v5918 = vstv %s5905
    %v5919 = vmul.f32 %v5918, %v5916
    %v5920 = vmul.f32 %v5918, %v5917
    %v5921 = vmul.f32 %v5903, %v5919
    %v5922 = vmul.f32 %v5904, %v5920
    %s5923 = scalar_lea.vmem %s29, 32
    %v5924 = vld [vmem:[%s5923] sm:$0xff]
    %v5925 = vld [vmem:[%s5923 + $0x8] sm:$0xff]
    %v5926 = vld [vmem:[%s5923 + $0x10] sm:$0xff]
    %v5927 = vld [vmem:[%s5923 + $0x18] sm:$0xff]
    %s5928 = scalar_lea.vmem %s31, 1
    %v5929 = vld [vmem:[%s5928] sm:$0x1]
    %v5931 = vlaneseq
    %v5932 = vshrl.u32 %v5931, 7
    %v5933 = vsub.s32 0, %v5932
    %v5934 = vrot.slane %v5929, %v5933
    %v5937 = vsel %vm146, %v5921, 0
    %v5940 = vsel %vm146, %v5922, 0
    %5942 = vmatprep.subr.mxu0 0.0
    %5943 = vmatpush1.msra.mxu0 0.0
    %5944 = vmatprep.subr.mxu0 0.0
    %5945 = vmatpush1.msra.mxu0 0.0
    %5946 = vmatprep.subr.mxu0 0.0
    %5947 = vmatpush1.msra.mxu0 0.0
    %5948 = vmatprep.subr.mxu0 0.0
    %5949 = vmatpush1.msra.mxu0 0.0
    %5950 = vmatprep.subr.mxu0 0.0
    %5951 = vmatpush1.msra.mxu0 0.0
    %5952 = vmatprep.subr.mxu0 0.0
    %5953 = vmatpush1.msra.mxu0 0.0
    %5954 = vmatprep.subr.mxu0 0.0
    %5955 = vmatpush1.msra.mxu0 0.0
    %5956 = vmatprep.subr.mxu0 0.0
    %5957 = vmatpush1.msra.mxu0 0.0
    %5958 = vmatprep.subr.mxu0 0.0
    %5959 = vmatpush1.msra.mxu0 0.0
    %5960 = vmatprep.subr.mxu0 0.0
    %5961 = vmatpush1.msra.mxu0 0.0
    %5962 = vmatprep.subr.mxu0 0.0
    %5963 = vmatpush1.msra.mxu0 0.0
    %5964 = vmatprep.subr.mxu0 0.0
    %5965 = vmatpush1.msra.mxu0 0.0
    %5966 = vmatprep.subr.mxu0 0.0
    %5967 = vmatpush1.msra.mxu0 %v5927
    %5968 = vmatprep.subr.mxu0 0.0
    %5969 = vmatpush1.msra.mxu0 %v5926
    %5970 = vmatprep.subr.mxu0 0.0
    %5971 = vmatpush1.msra.mxu0 %v5925
    %5972 = vmatprep.subr.mxu0 0.0
    %5973 = vmatpush1.msra.mxu0 %v5924
    %5974 = vmatprep.subr.mxu0 0.0
    %5975 = vmatpush2.msra.mxu0 0.0
    %5976 = vmatprep.subr.mxu0 0.0
    %5977 = vmatpush2.msra.mxu0 0.0
    %5978 = vmatprep.subr.mxu0 0.0
    %5979 = vmatpush2.msra.mxu0 0.0
    %5980 = vmatprep.subr.mxu0 0.0
    %5981 = vmatpush2.msra.mxu0 0.0
    %5982 = vmatprep.subr.mxu0 0.0
    %5983 = vmatpush2.msra.mxu0 0.0
    %5984 = vmatprep.subr.mxu0 0.0
    %5985 = vmatpush2.msra.mxu0 0.0
    %5986 = vmatprep.subr.mxu0 0.0
    %5987 = vmatpush2.msra.mxu0 0.0
    %5988 = vmatprep.subr.mxu0 0.0
    %5989 = vmatpush2.msra.mxu0 0.0
    %5990 = vmatprep.subr.mxu0 0.0
    %5991 = vmatpush2.msra.mxu0 0.0
    %5992 = vmatprep.subr.mxu0 0.0
    %5993 = vmatpush2.msra.mxu0 0.0
    %5994 = vmatprep.subr.mxu0 0.0
    %5995 = vmatpush2.msra.mxu0 0.0
    %5996 = vmatprep.subr.mxu0 0.0
    %5997 = vmatpush2.msra.mxu0 0.0
    %5998 = vmatprep.subr.mxu0 0.0
    %5999 = vmatpush2.msra.mxu0 0.0
    %6000 = vmatprep.subr.mxu0 0.0
    %6001 = vmatpush2.msra.mxu0 0.0
    %6002 = vmatprep.subr.mxu0 0.0
    %6003 = vmatpush2.msra.mxu0 0.0
    %6004 = vmatprep.subr.mxu0 0.0
    %6005 = vmatpush2.msra.mxu0 0.0
    %6006 = vmatprep.mubr.f32.mxu0 0.0
    %6007 = vmatmul.mubr.f32.gmra.mxu0 %v5937
    %v6008 = vpop.f32.mrf.mxu0
    %v6009 = vadd.f32 %v5934, %v6008
    %v6010 = vpop.f32.mrf.mxu0
    %6011 = vmatprep.mubr.f32.mxu0 0.0
    %6012 = vmatmul.mubr.f32.gmra.mxu0 %v5940
    %v6013 = vpop.f32.mrf.mxu0
    %v6014 = vadd.f32 %v5934, %v6013
    %v6015 = vpop.f32.mrf.mxu0
    %6016 = vdwg.mxu0
    %s6017 = scalar_lea.vmem %s33, 32
    %v6018 = vld [vmem:[%s6017] sm:$0xff]
    %v6019 = vld [vmem:[%s6017 + $0x8] sm:$0xff]
    %v6020 = vld [vmem:[%s6017 + $0x10] sm:$0xff]
    %v6021 = vld [vmem:[%s6017 + $0x18] sm:$0xff]
    %6024 = vrot.lane.b32.xlu0 %v6009, 96
    %v6025 = vpop.permute.xlu0 %6024
    %6026 = vrot.lane.b32.xlu0 %v6014, 96
    %v6027 = vpop.permute.xlu0 %6026
    %v6028 = vsel %vm264, %v6009, 0
    %v6030 = vsel %vm264, %v6014, 0
    %v6032 = vsel %vm264, %v6025, 0
    %v6034 = vsel %vm264, %v6027, 0
    %6036 = vmatprep.subr.mxu0 0.0
    %6037 = vmatpush1.xpose.msra.mxu0 0.0
    %6038 = vmatprep.subr.mxu0 0.0
    %6039 = vmatpush1.xpose.msra.mxu0 0.0
    %6040 = vmatprep.subr.mxu0 0.0
    %6041 = vmatpush1.xpose.msra.mxu0 0.0
    %6042 = vmatprep.subr.mxu0 0.0
    %6043 = vmatpush1.xpose.msra.mxu0 0.0
    %6044 = vmatprep.subr.mxu0 0.0
    %6045 = vmatpush1.xpose.msra.mxu0 0.0
    %6046 = vmatprep.subr.mxu0 0.0
    %6047 = vmatpush1.xpose.msra.mxu0 0.0
    %6048 = vmatprep.subr.mxu0 0.0
    %6049 = vmatpush1.xpose.msra.mxu0 0.0
    %6050 = vmatprep.subr.mxu0 0.0
    %6051 = vmatpush1.xpose.msra.mxu0 0.0
    %6052 = vmatprep.subr.mxu0 0.0
    %6053 = vmatpush1.xpose.msra.mxu0 0.0
    %6054 = vmatprep.subr.mxu0 0.0
    %6055 = vmatpush1.xpose.msra.mxu0 0.0
    %6056 = vmatprep.subr.mxu0 0.0
    %6057 = vmatpush1.xpose.msra.mxu0 0.0
    %6058 = vmatprep.subr.mxu0 0.0
    %6059 = vmatpush1.xpose.msra.mxu0 0.0
    %6060 = vmatprep.subr.mxu0 0.0
    %6061 = vmatpush1.xpose.msra.mxu0 0.0
    %6062 = vmatprep.subr.mxu0 0.0
    %6063 = vmatpush1.xpose.msra.mxu0 0.0
    %6064 = vmatprep.subr.mxu0 0.0
    %6065 = vmatpush1.xpose.msra.mxu0 %v6034
    %6066 = vmatprep.subr.mxu0 0.0
    %6067 = vmatpush1.xpose.msra.mxu0 %v6032
    %6068 = vmatprep.subr.mxu0 0.0
    %6069 = vmatpush2.xpose.msra.mxu0 0.0
    %6070 = vmatprep.subr.mxu0 0.0
    %6071 = vmatpush2.xpose.msra.mxu0 0.0
    %6072 = vmatprep.subr.mxu0 0.0
    %6073 = vmatpush2.xpose.msra.mxu0 0.0
    %6074 = vmatprep.subr.mxu0 0.0
    %6075 = vmatpush2.xpose.msra.mxu0 0.0
    %6076 = vmatprep.subr.mxu0 0.0
    %6077 = vmatpush2.xpose.msra.mxu0 0.0
    %6078 = vmatprep.subr.mxu0 0.0
    %6079 = vmatpush2.xpose.msra.mxu0 0.0
    %6080 = vmatprep.subr.mxu0 0.0
    %6081 = vmatpush2.xpose.msra.mxu0 0.0
    %6082 = vmatprep.subr.mxu0 0.0
    %6083 = vmatpush2.xpose.msra.mxu0 0.0
    %6084 = vmatprep.subr.mxu0 0.0
    %6085 = vmatpush2.xpose.msra.mxu0 0.0
    %6086 = vmatprep.subr.mxu0 0.0
    %6087 = vmatpush2.xpose.msra.mxu0 0.0
    %6088 = vmatprep.subr.mxu0 0.0
    %6089 = vmatpush2.xpose.msra.mxu0 0.0
    %6090 = vmatprep.subr.mxu0 0.0
    %6091 = vmatpush2.xpose.msra.mxu0 0.0
    %6092 = vmatprep.subr.mxu0 0.0
    %6093 = vmatpush2.xpose.msra.mxu0 0.0
    %6094 = vmatprep.subr.mxu0 0.0
    %6095 = vmatpush2.xpose.msra.mxu0 0.0
    %6096 = vmatprep.subr.mxu0 0.0
    %6097 = vmatpush2.xpose.msra.mxu0 0.0
    %6098 = vmatprep.subr.mxu0 0.0
    %6099 = vmatpush2.xpose.msra.mxu0 0.0
    %6100 = vmatprep.mubr.f32.mxu0 0.0
    %6101 = vmatmul.mubr.f32.gmra.mxu0 %v6028
    %v6102 = vpop.f32.mrf.mxu0
    %v6103 = vadd.f32 %v139, %v6102
    %v6104 = vpop.f32.mrf.mxu0
    %6105 = vmatprep.mubr.f32.mxu0 0.0
    %6106 = vmatmul.mubr.f32.gmra.mxu0 %v6030
    %v6107 = vpop.f32.mrf.mxu0
    %v6108 = vadd.f32 %v140, %v6107
    %v6109 = vpop.f32.mrf.mxu0
    %6110 = vdwg.mxu0
    %v6111 = vsel %vm348, %v6103, -inf
    %6112 = vmax.xlane.f32.xlu0 %v6111
    %v6113 = vpop.xlane.xlu0 %6112
    %v6114 = vsel %vm348, %v6108, -inf
    %6115 = vmax.xlane.f32.xlu0 %v6114
    %v6116 = vpop.xlane.xlu0 %6115
    %v6117 = vsub.f32 %v6103, %v6113
    %v6118 = vsub.f32 %v6108, %v6116
    %v6119 = vmul.f32 %v6117, 1.442695
    %v6120 = vpow.pop %v6119
    %v6121 = vmul.f32 %v6118, 1.442695
    %v6122 = vpow.pop %v6121
    %v6123 = vsel %vm348, %v6120, 0.0
    %6124 = vadd.xlane.f32.xlu0 %v6123
    %v6125 = vpop.xlane.xlu0 %6124
    %v6126 = vsel %vm348, %v6122, 0.0
    %6127 = vadd.xlane.f32.xlu0 %v6126
    %v6128 = vpop.xlane.xlu0 %6127
    %v6129 = vrcp.pop %v6125
    %v6130 = vrcp.pop %v6128
    %v6131 = vmul.f32 %v6120, %v6129
    %v6132 = vmul.f32 %v6122, %v6130
    %6133 = vrot.lane.b32.xlu0 %v6009, 64
    %v6134 = vpop.permute.xlu0 %6133
    %6135 = vrot.lane.b32.xlu0 %v6014, 64
    %v6136 = vpop.permute.xlu0 %6135
    %v6140 = vsel %vm348, %v6131, 0
    %v6143 = vsel %vm348, %v6132, 0
    %6145 = vmatprep.subr.mxu0 0.0
    %6146 = vmatpush1.msra.mxu0 0.0
    %6147 = vmatprep.subr.mxu0 0.0
    %6148 = vmatpush1.msra.mxu0 0.0
    %6149 = vmatprep.subr.mxu0 0.0
    %6150 = vmatpush1.msra.mxu0 0.0
    %6151 = vmatprep.subr.mxu0 0.0
    %6152 = vmatpush1.msra.mxu0 0.0
    %6153 = vmatprep.subr.mxu0 0.0
    %6154 = vmatpush1.msra.mxu0 0.0
    %6155 = vmatprep.subr.mxu0 0.0
    %6156 = vmatpush1.msra.mxu0 0.0
    %6157 = vmatprep.subr.mxu0 0.0
    %6158 = vmatpush1.msra.mxu0 0.0
    %6159 = vmatprep.subr.mxu0 0.0
    %6160 = vmatpush1.msra.mxu0 0.0
    %6161 = vmatprep.subr.mxu0 0.0
    %6162 = vmatpush1.msra.mxu0 0.0
    %6163 = vmatprep.subr.mxu0 0.0
    %6164 = vmatpush1.msra.mxu0 0.0
    %6165 = vmatprep.subr.mxu0 0.0
    %6166 = vmatpush1.msra.mxu0 0.0
    %6167 = vmatprep.subr.mxu0 0.0
    %6168 = vmatpush1.msra.mxu0 0.0
    %6169 = vmatprep.subr.mxu0 0.0
    %6170 = vmatpush1.msra.mxu0 0.0
    %6171 = vmatprep.subr.mxu0 0.0
    %6172 = vmatpush1.msra.mxu0 0.0
    %6173 = vmatprep.subr.mxu0 0.0
    %6174 = vmatpush1.msra.mxu0 %v6136
    %6175 = vmatprep.subr.mxu0 0.0
    %6176 = vmatpush1.msra.mxu0 %v6134
    %6177 = vmatprep.subr.mxu0 0.0
    %6178 = vmatpush2.msra.mxu0 0.0
    %6179 = vmatprep.subr.mxu0 0.0
    %6180 = vmatpush2.msra.mxu0 0.0
    %6181 = vmatprep.subr.mxu0 0.0
    %6182 = vmatpush2.msra.mxu0 0.0
    %6183 = vmatprep.subr.mxu0 0.0
    %6184 = vmatpush2.msra.mxu0 0.0
    %6185 = vmatprep.subr.mxu0 0.0
    %6186 = vmatpush2.msra.mxu0 0.0
    %6187 = vmatprep.subr.mxu0 0.0
    %6188 = vmatpush2.msra.mxu0 0.0
    %6189 = vmatprep.subr.mxu0 0.0
    %6190 = vmatpush2.msra.mxu0 0.0
    %6191 = vmatprep.subr.mxu0 0.0
    %6192 = vmatpush2.msra.mxu0 0.0
    %6193 = vmatprep.subr.mxu0 0.0
    %6194 = vmatpush2.msra.mxu0 0.0
    %6195 = vmatprep.subr.mxu0 0.0
    %6196 = vmatpush2.msra.mxu0 0.0
    %6197 = vmatprep.subr.mxu0 0.0
    %6198 = vmatpush2.msra.mxu0 0.0
    %6199 = vmatprep.subr.mxu0 0.0
    %6200 = vmatpush2.msra.mxu0 0.0
    %6201 = vmatprep.subr.mxu0 0.0
    %6202 = vmatpush2.msra.mxu0 0.0
    %6203 = vmatprep.subr.mxu0 0.0
    %6204 = vmatpush2.msra.mxu0 0.0
    %6205 = vmatprep.subr.mxu0 0.0
    %6206 = vmatpush2.msra.mxu0 0.0
    %6207 = vmatprep.subr.mxu0 0.0
    %6208 = vmatpush2.msra.mxu0 0.0
    %6209 = vmatprep.mubr.f32.mxu0 0.0
    %6210 = vmatmul.mubr.f32.gmra.mxu0 %v6140
    %v6211 = vpop.f32.mrf.mxu0
    %v6212 = vadd.f32 0.0, %v6211
    %v6213 = vpop.f32.mrf.mxu0
    %6214 = vmatprep.mubr.f32.mxu0 0.0
    %6215 = vmatmul.mubr.f32.gmra.mxu0 %v6143
    %v6216 = vpop.f32.mrf.mxu0
    %v6217 = vadd.f32 0.0, %v6216
    %v6218 = vpop.f32.mrf.mxu0
    %6219 = vdwg.mxu0
    %6220 = vrot.lane.b32.xlu0 %v6009, 120
    %v6221 = vpop.permute.xlu0 %6220
    %6222 = vrot.lane.b32.xlu0 %v6014, 120
    %v6223 = vpop.permute.xlu0 %6222
    %6224 = vrot.lane.b32.xlu0 %v6009, 88
    %v6225 = vpop.permute.xlu0 %6224
    %6226 = vrot.lane.b32.xlu0 %v6014, 88
    %v6227 = vpop.permute.xlu0 %6226
    %v6228 = vsel %vm264, %v6221, 0
    %v6230 = vsel %vm264, %v6223, 0
    %v6232 = vsel %vm264, %v6225, 0
    %v6234 = vsel %vm264, %v6227, 0
    %6236 = vmatprep.subr.mxu0 0.0
    %6237 = vmatpush1.xpose.msra.mxu0 0.0
    %6238 = vmatprep.subr.mxu0 0.0
    %6239 = vmatpush1.xpose.msra.mxu0 0.0
    %6240 = vmatprep.subr.mxu0 0.0
    %6241 = vmatpush1.xpose.msra.mxu0 0.0
    %6242 = vmatprep.subr.mxu0 0.0
    %6243 = vmatpush1.xpose.msra.mxu0 0.0
    %6244 = vmatprep.subr.mxu0 0.0
    %6245 = vmatpush1.xpose.msra.mxu0 0.0
    %6246 = vmatprep.subr.mxu0 0.0
    %6247 = vmatpush1.xpose.msra.mxu0 0.0
    %6248 = vmatprep.subr.mxu0 0.0
    %6249 = vmatpush1.xpose.msra.mxu0 0.0
    %6250 = vmatprep.subr.mxu0 0.0
    %6251 = vmatpush1.xpose.msra.mxu0 0.0
    %6252 = vmatprep.subr.mxu0 0.0
    %6253 = vmatpush1.xpose.msra.mxu0 0.0
    %6254 = vmatprep.subr.mxu0 0.0
    %6255 = vmatpush1.xpose.msra.mxu0 0.0
    %6256 = vmatprep.subr.mxu0 0.0
    %6257 = vmatpush1.xpose.msra.mxu0 0.0
    %6258 = vmatprep.subr.mxu0 0.0
    %6259 = vmatpush1.xpose.msra.mxu0 0.0
    %6260 = vmatprep.subr.mxu0 0.0
    %6261 = vmatpush1.xpose.msra.mxu0 0.0
    %6262 = vmatprep.subr.mxu0 0.0
    %6263 = vmatpush1.xpose.msra.mxu0 0.0
    %6264 = vmatprep.subr.mxu0 0.0
    %6265 = vmatpush1.xpose.msra.mxu0 %v6234
    %6266 = vmatprep.subr.mxu0 0.0
    %6267 = vmatpush1.xpose.msra.mxu0 %v6232
    %6268 = vmatprep.subr.mxu0 0.0
    %6269 = vmatpush2.xpose.msra.mxu0 0.0
    %6270 = vmatprep.subr.mxu0 0.0
    %6271 = vmatpush2.xpose.msra.mxu0 0.0
    %6272 = vmatprep.subr.mxu0 0.0
    %6273 = vmatpush2.xpose.msra.mxu0 0.0
    %6274 = vmatprep.subr.mxu0 0.0
    %6275 = vmatpush2.xpose.msra.mxu0 0.0
    %6276 = vmatprep.subr.mxu0 0.0
    %6277 = vmatpush2.xpose.msra.mxu0 0.0
    %6278 = vmatprep.subr.mxu0 0.0
    %6279 = vmatpush2.xpose.msra.mxu0 0.0
    %6280 = vmatprep.subr.mxu0 0.0
    %6281 = vmatpush2.xpose.msra.mxu0 0.0
    %6282 = vmatprep.subr.mxu0 0.0
    %6283 = vmatpush2.xpose.msra.mxu0 0.0
    %6284 = vmatprep.subr.mxu0 0.0
    %6285 = vmatpush2.xpose.msra.mxu0 0.0
    %6286 = vmatprep.subr.mxu0 0.0
    %6287 = vmatpush2.xpose.msra.mxu0 0.0
    %6288 = vmatprep.subr.mxu0 0.0
    %6289 = vmatpush2.xpose.msra.mxu0 0.0
    %6290 = vmatprep.subr.mxu0 0.0
    %6291 = vmatpush2.xpose.msra.mxu0 0.0
    %6292 = vmatprep.subr.mxu0 0.0
    %6293 = vmatpush2.xpose.msra.mxu0 0.0
    %6294 = vmatprep.subr.mxu0 0.0
    %6295 = vmatpush2.xpose.msra.mxu0 0.0
    %6296 = vmatprep.subr.mxu0 0.0
    %6297 = vmatpush2.xpose.msra.mxu0 0.0
    %6298 = vmatprep.subr.mxu0 0.0
    %6299 = vmatpush2.xpose.msra.mxu0 0.0
    %6300 = vmatprep.mubr.f32.mxu0 0.0
    %6301 = vmatmul.mubr.f32.gmra.mxu0 %v6228
    %v6302 = vpop.f32.mrf.mxu0
    %v6303 = vadd.f32 %v139, %v6302
    %v6304 = vpop.f32.mrf.mxu0
    %6305 = vmatprep.mubr.f32.mxu0 0.0
    %6306 = vmatmul.mubr.f32.gmra.mxu0 %v6230
    %v6307 = vpop.f32.mrf.mxu0
    %v6308 = vadd.f32 %v140, %v6307
    %v6309 = vpop.f32.mrf.mxu0
    %6310 = vdwg.mxu0
    %v6311 = vsel %vm348, %v6303, -inf
    %6312 = vmax.xlane.f32.xlu0 %v6311
    %v6313 = vpop.xlane.xlu0 %6312
    %v6314 = vsel %vm348, %v6308, -inf
    %6315 = vmax.xlane.f32.xlu0 %v6314
    %v6316 = vpop.xlane.xlu0 %6315
    %v6317 = vsub.f32 %v6303, %v6313
    %v6318 = vsub.f32 %v6308, %v6316
    %v6319 = vmul.f32 %v6317, 1.442695
    %v6320 = vpow.pop %v6319
    %v6321 = vmul.f32 %v6318, 1.442695
    %v6322 = vpow.pop %v6321
    %v6323 = vsel %vm348, %v6320, 0.0
    %6324 = vadd.xlane.f32.xlu0 %v6323
    %v6325 = vpop.xlane.xlu0 %6324
    %v6326 = vsel %vm348, %v6322, 0.0
    %6327 = vadd.xlane.f32.xlu0 %v6326
    %v6328 = vpop.xlane.xlu0 %6327
    %v6329 = vrcp.pop %v6325
    %v6330 = vrcp.pop %v6328
    %v6331 = vmul.f32 %v6320, %v6329
    %v6332 = vmul.f32 %v6322, %v6330
    %6333 = vrot.lane.b32.xlu0 %v6009, 56
    %v6334 = vpop.permute.xlu0 %6333
    %6335 = vrot.lane.b32.xlu0 %v6014, 56
    %v6336 = vpop.permute.xlu0 %6335
    %v6340 = vsel %vm348, %v6331, 0
    %v6343 = vsel %vm348, %v6332, 0
    %6345 = vmatprep.subr.mxu0 0.0
    %6346 = vmatpush1.msra.mxu0 0.0
    %6347 = vmatprep.subr.mxu0 0.0
    %6348 = vmatpush1.msra.mxu0 0.0
    %6349 = vmatprep.subr.mxu0 0.0
    %6350 = vmatpush1.msra.mxu0 0.0
    %6351 = vmatprep.subr.mxu0 0.0
    %6352 = vmatpush1.msra.mxu0 0.0
    %6353 = vmatprep.subr.mxu0 0.0
    %6354 = vmatpush1.msra.mxu0 0.0
    %6355 = vmatprep.subr.mxu0 0.0
    %6356 = vmatpush1.msra.mxu0 0.0
    %6357 = vmatprep.subr.mxu0 0.0
    %6358 = vmatpush1.msra.mxu0 0.0
    %6359 = vmatprep.subr.mxu0 0.0
    %6360 = vmatpush1.msra.mxu0 0.0
    %6361 = vmatprep.subr.mxu0 0.0
    %6362 = vmatpush1.msra.mxu0 0.0
    %6363 = vmatprep.subr.mxu0 0.0
    %6364 = vmatpush1.msra.mxu0 0.0
    %6365 = vmatprep.subr.mxu0 0.0
    %6366 = vmatpush1.msra.mxu0 0.0
    %6367 = vmatprep.subr.mxu0 0.0
    %6368 = vmatpush1.msra.mxu0 0.0
    %6369 = vmatprep.subr.mxu0 0.0
    %6370 = vmatpush1.msra.mxu0 0.0
    %6371 = vmatprep.subr.mxu0 0.0
    %6372 = vmatpush1.msra.mxu0 0.0
    %6373 = vmatprep.subr.mxu0 0.0
    %6374 = vmatpush1.msra.mxu0 %v6336
    %6375 = vmatprep.subr.mxu0 0.0
    %6376 = vmatpush1.msra.mxu0 %v6334
    %6377 = vmatprep.subr.mxu0 0.0
    %6378 = vmatpush2.msra.mxu0 0.0
    %6379 = vmatprep.subr.mxu0 0.0
    %6380 = vmatpush2.msra.mxu0 0.0
    %6381 = vmatprep.subr.mxu0 0.0
    %6382 = vmatpush2.msra.mxu0 0.0
    %6383 = vmatprep.subr.mxu0 0.0
    %6384 = vmatpush2.msra.mxu0 0.0
    %6385 = vmatprep.subr.mxu0 0.0
    %6386 = vmatpush2.msra.mxu0 0.0
    %6387 = vmatprep.subr.mxu0 0.0
    %6388 = vmatpush2.msra.mxu0 0.0
    %6389 = vmatprep.subr.mxu0 0.0
    %6390 = vmatpush2.msra.mxu0 0.0
    %6391 = vmatprep.subr.mxu0 0.0
    %6392 = vmatpush2.msra.mxu0 0.0
    %6393 = vmatprep.subr.mxu0 0.0
    %6394 = vmatpush2.msra.mxu0 0.0
    %6395 = vmatprep.subr.mxu0 0.0
    %6396 = vmatpush2.msra.mxu0 0.0
    %6397 = vmatprep.subr.mxu0 0.0
    %6398 = vmatpush2.msra.mxu0 0.0
    %6399 = vmatprep.subr.mxu0 0.0
    %6400 = vmatpush2.msra.mxu0 0.0
    %6401 = vmatprep.subr.mxu0 0.0
    %6402 = vmatpush2.msra.mxu0 0.0
    %6403 = vmatprep.subr.mxu0 0.0
    %6404 = vmatpush2.msra.mxu0 0.0
    %6405 = vmatprep.subr.mxu0 0.0
    %6406 = vmatpush2.msra.mxu0 0.0
    %6407 = vmatprep.subr.mxu0 0.0
    %6408 = vmatpush2.msra.mxu0 0.0
    %6409 = vmatprep.mubr.f32.mxu0 0.0
    %6410 = vmatmul.mubr.f32.gmra.mxu0 %v6340
    %v6411 = vpop.f32.mrf.mxu0
    %v6412 = vadd.f32 0.0, %v6411
    %v6413 = vpop.f32.mrf.mxu0
    %6414 = vmatprep.mubr.f32.mxu0 0.0
    %6415 = vmatmul.mubr.f32.gmra.mxu0 %v6343
    %v6416 = vpop.f32.mrf.mxu0
    %v6417 = vadd.f32 0.0, %v6416
    %v6418 = vpop.f32.mrf.mxu0
    %6419 = vdwg.mxu0
    %v6421 = vsel %vm264, %v6412, 0
    %v6424 = vsel %vm264, %v6417, 0
    %6426 = vmatprep.subr.mxu0 0.0
    %6427 = vmatpush1.msra.mxu0 0.0
    %6428 = vmatprep.subr.mxu0 0.0
    %6429 = vmatpush1.msra.mxu0 0.0
    %6430 = vmatprep.subr.mxu0 0.0
    %6431 = vmatpush1.msra.mxu0 0.0
    %6432 = vmatprep.subr.mxu0 0.0
    %6433 = vmatpush1.msra.mxu0 0.0
    %6434 = vmatprep.subr.mxu0 0.0
    %6435 = vmatpush1.msra.mxu0 0.0
    %6436 = vmatprep.subr.mxu0 0.0
    %6437 = vmatpush1.msra.mxu0 0.0
    %6438 = vmatprep.subr.mxu0 0.0
    %6439 = vmatpush1.msra.mxu0 0.0
    %6440 = vmatprep.subr.mxu0 0.0
    %6441 = vmatpush1.msra.mxu0 0.0
    %6442 = vmatprep.subr.mxu0 0.0
    %6443 = vmatpush1.msra.mxu0 0.0
    %6444 = vmatprep.subr.mxu0 0.0
    %6445 = vmatpush1.msra.mxu0 0.0
    %6446 = vmatprep.subr.mxu0 0.0
    %6447 = vmatpush1.msra.mxu0 0.0
    %6448 = vmatprep.subr.mxu0 0.0
    %6449 = vmatpush1.msra.mxu0 0.0
    %6450 = vmatprep.subr.mxu0 0.0
    %6451 = vmatpush1.msra.mxu0 0.0
    %6452 = vmatprep.subr.mxu0 0.0
    %6453 = vmatpush1.msra.mxu0 0.0
    %6454 = vmatprep.subr.mxu0 0.0
    %6455 = vmatpush1.msra.mxu0 0.0
    %6456 = vmatprep.subr.mxu0 0.0
    %6457 = vmatpush1.msra.mxu0 %v6019
    %6458 = vmatprep.subr.mxu0 0.0
    %6459 = vmatpush2.msra.mxu0 0.0
    %6460 = vmatprep.subr.mxu0 0.0
    %6461 = vmatpush2.msra.mxu0 0.0
    %6462 = vmatprep.subr.mxu0 0.0
    %6463 = vmatpush2.msra.mxu0 0.0
    %6464 = vmatprep.subr.mxu0 0.0
    %6465 = vmatpush2.msra.mxu0 0.0
    %6466 = vmatprep.subr.mxu0 0.0
    %6467 = vmatpush2.msra.mxu0 0.0
    %6468 = vmatprep.subr.mxu0 0.0
    %6469 = vmatpush2.msra.mxu0 0.0
    %6470 = vmatprep.subr.mxu0 0.0
    %6471 = vmatpush2.msra.mxu0 0.0
    %6472 = vmatprep.subr.mxu0 0.0
    %6473 = vmatpush2.msra.mxu0 0.0
    %6474 = vmatprep.subr.mxu0 0.0
    %6475 = vmatpush2.msra.mxu0 0.0
    %6476 = vmatprep.subr.mxu0 0.0
    %6477 = vmatpush2.msra.mxu0 0.0
    %6478 = vmatprep.subr.mxu0 0.0
    %6479 = vmatpush2.msra.mxu0 0.0
    %6480 = vmatprep.subr.mxu0 0.0
    %6481 = vmatpush2.msra.mxu0 0.0
    %6482 = vmatprep.subr.mxu0 0.0
    %6483 = vmatpush2.msra.mxu0 0.0
    %6484 = vmatprep.subr.mxu0 0.0
    %6485 = vmatpush2.msra.mxu0 0.0
    %6486 = vmatprep.subr.mxu0 0.0
    %6487 = vmatpush2.msra.mxu0 0.0
    %6488 = vmatprep.subr.mxu0 0.0
    %6489 = vmatpush2.msra.mxu0 0.0
    %6490 = vmatprep.mubr.f32.mxu0 0.0
    %6491 = vmatmul.mubr.f32.gmra.mxu0 %v6421
    %v6492 = vpop.f32.mrf.mxu0
    %v6493 = vadd.f32 0.0, %v6492
    %v6494 = vpop.f32.mrf.mxu0
    %6495 = vmatprep.mubr.f32.mxu0 0.0
    %6496 = vmatmul.mubr.f32.gmra.mxu0 %v6424
    %v6497 = vpop.f32.mrf.mxu0
    %v6498 = vadd.f32 0.0, %v6497
    %v6499 = vpop.f32.mrf.mxu0
    %6500 = vdwg.mxu0
    %v6502 = vsel %vm264, %v6212, 0
    %v6505 = vsel %vm264, %v6217, 0
    %6507 = vmatprep.subr.mxu0 0.0
    %6508 = vmatpush1.msra.mxu0 0.0
    %6509 = vmatprep.subr.mxu0 0.0
    %6510 = vmatpush1.msra.mxu0 0.0
    %6511 = vmatprep.subr.mxu0 0.0
    %6512 = vmatpush1.msra.mxu0 0.0
    %6513 = vmatprep.subr.mxu0 0.0
    %6514 = vmatpush1.msra.mxu0 0.0
    %6515 = vmatprep.subr.mxu0 0.0
    %6516 = vmatpush1.msra.mxu0 0.0
    %6517 = vmatprep.subr.mxu0 0.0
    %6518 = vmatpush1.msra.mxu0 0.0
    %6519 = vmatprep.subr.mxu0 0.0
    %6520 = vmatpush1.msra.mxu0 0.0
    %6521 = vmatprep.subr.mxu0 0.0
    %6522 = vmatpush1.msra.mxu0 0.0
    %6523 = vmatprep.subr.mxu0 0.0
    %6524 = vmatpush1.msra.mxu0 0.0
    %6525 = vmatprep.subr.mxu0 0.0
    %6526 = vmatpush1.msra.mxu0 0.0
    %6527 = vmatprep.subr.mxu0 0.0
    %6528 = vmatpush1.msra.mxu0 0.0
    %6529 = vmatprep.subr.mxu0 0.0
    %6530 = vmatpush1.msra.mxu0 0.0
    %6531 = vmatprep.subr.mxu0 0.0
    %6532 = vmatpush1.msra.mxu0 0.0
    %6533 = vmatprep.subr.mxu0 0.0
    %6534 = vmatpush1.msra.mxu0 0.0
    %6535 = vmatprep.subr.mxu0 0.0
    %6536 = vmatpush1.msra.mxu0 0.0
    %6537 = vmatprep.subr.mxu0 0.0
    %6538 = vmatpush1.msra.mxu0 %v6018
    %6539 = vmatprep.subr.mxu0 0.0
    %6540 = vmatpush2.msra.mxu0 0.0
    %6541 = vmatprep.subr.mxu0 0.0
    %6542 = vmatpush2.msra.mxu0 0.0
    %6543 = vmatprep.subr.mxu0 0.0
    %6544 = vmatpush2.msra.mxu0 0.0
    %6545 = vmatprep.subr.mxu0 0.0
    %6546 = vmatpush2.msra.mxu0 0.0
    %6547 = vmatprep.subr.mxu0 0.0
    %6548 = vmatpush2.msra.mxu0 0.0
    %6549 = vmatprep.subr.mxu0 0.0
    %6550 = vmatpush2.msra.mxu0 0.0
    %6551 = vmatprep.subr.mxu0 0.0
    %6552 = vmatpush2.msra.mxu0 0.0
    %6553 = vmatprep.subr.mxu0 0.0
    %6554 = vmatpush2.msra.mxu0 0.0
    %6555 = vmatprep.subr.mxu0 0.0
    %6556 = vmatpush2.msra.mxu0 0.0
    %6557 = vmatprep.subr.mxu0 0.0
    %6558 = vmatpush2.msra.mxu0 0.0
    %6559 = vmatprep.subr.mxu0 0.0
    %6560 = vmatpush2.msra.mxu0 0.0
    %6561 = vmatprep.subr.mxu0 0.0
    %6562 = vmatpush2.msra.mxu0 0.0
    %6563 = vmatprep.subr.mxu0 0.0
    %6564 = vmatpush2.msra.mxu0 0.0
    %6565 = vmatprep.subr.mxu0 0.0
    %6566 = vmatpush2.msra.mxu0 0.0
    %6567 = vmatprep.subr.mxu0 0.0
    %6568 = vmatpush2.msra.mxu0 0.0
    %6569 = vmatprep.subr.mxu0 0.0
    %6570 = vmatpush2.msra.mxu0 0.0
    %6571 = vmatprep.mubr.f32.mxu0 0.0
    %6572 = vmatmul.mubr.f32.gmra.mxu0 %v6502
    %v6573 = vpop.f32.mrf.mxu0
    %v6574 = vadd.f32 %v6493, %v6573
    %v6575 = vpop.f32.mrf.mxu0
    %6576 = vmatprep.mubr.f32.mxu0 0.0
    %6577 = vmatmul.mubr.f32.gmra.mxu0 %v6505
    %v6578 = vpop.f32.mrf.mxu0
    %v6579 = vadd.f32 %v6498, %v6578
    %v6580 = vpop.f32.mrf.mxu0
    %6581 = vdwg.mxu0
    %6582 = vrot.lane.b32.xlu0 %v6009, 112
    %v6583 = vpop.permute.xlu0 %6582
    %6584 = vrot.lane.b32.xlu0 %v6014, 112
    %v6585 = vpop.permute.xlu0 %6584
    %6586 = vrot.lane.b32.xlu0 %v6009, 80
    %v6587 = vpop.permute.xlu0 %6586
    %6588 = vrot.lane.b32.xlu0 %v6014, 80
    %v6589 = vpop.permute.xlu0 %6588
    %v6590 = vsel %vm264, %v6583, 0
    %v6592 = vsel %vm264, %v6585, 0
    %v6594 = vsel %vm264, %v6587, 0
    %v6596 = vsel %vm264, %v6589, 0
    %6598 = vmatprep.subr.mxu0 0.0
    %6599 = vmatpush1.xpose.msra.mxu0 0.0
    %6600 = vmatprep.subr.mxu0 0.0
    %6601 = vmatpush1.xpose.msra.mxu0 0.0
    %6602 = vmatprep.subr.mxu0 0.0
    %6603 = vmatpush1.xpose.msra.mxu0 0.0
    %6604 = vmatprep.subr.mxu0 0.0
    %6605 = vmatpush1.xpose.msra.mxu0 0.0
    %6606 = vmatprep.subr.mxu0 0.0
    %6607 = vmatpush1.xpose.msra.mxu0 0.0
    %6608 = vmatprep.subr.mxu0 0.0
    %6609 = vmatpush1.xpose.msra.mxu0 0.0
    %6610 = vmatprep.subr.mxu0 0.0
    %6611 = vmatpush1.xpose.msra.mxu0 0.0
    %6612 = vmatprep.subr.mxu0 0.0
    %6613 = vmatpush1.xpose.msra.mxu0 0.0
    %6614 = vmatprep.subr.mxu0 0.0
    %6615 = vmatpush1.xpose.msra.mxu0 0.0
    %6616 = vmatprep.subr.mxu0 0.0
    %6617 = vmatpush1.xpose.msra.mxu0 0.0
    %6618 = vmatprep.subr.mxu0 0.0
    %6619 = vmatpush1.xpose.msra.mxu0 0.0
    %6620 = vmatprep.subr.mxu0 0.0
    %6621 = vmatpush1.xpose.msra.mxu0 0.0
    %6622 = vmatprep.subr.mxu0 0.0
    %6623 = vmatpush1.xpose.msra.mxu0 0.0
    %6624 = vmatprep.subr.mxu0 0.0
    %6625 = vmatpush1.xpose.msra.mxu0 0.0
    %6626 = vmatprep.subr.mxu0 0.0
    %6627 = vmatpush1.xpose.msra.mxu0 %v6596
    %6628 = vmatprep.subr.mxu0 0.0
    %6629 = vmatpush1.xpose.msra.mxu0 %v6594
    %6630 = vmatprep.subr.mxu0 0.0
    %6631 = vmatpush2.xpose.msra.mxu0 0.0
    %6632 = vmatprep.subr.mxu0 0.0
    %6633 = vmatpush2.xpose.msra.mxu0 0.0
    %6634 = vmatprep.subr.mxu0 0.0
    %6635 = vmatpush2.xpose.msra.mxu0 0.0
    %6636 = vmatprep.subr.mxu0 0.0
    %6637 = vmatpush2.xpose.msra.mxu0 0.0
    %6638 = vmatprep.subr.mxu0 0.0
    %6639 = vmatpush2.xpose.msra.mxu0 0.0
    %6640 = vmatprep.subr.mxu0 0.0
    %6641 = vmatpush2.xpose.msra.mxu0 0.0
    %6642 = vmatprep.subr.mxu0 0.0
    %6643 = vmatpush2.xpose.msra.mxu0 0.0
    %6644 = vmatprep.subr.mxu0 0.0
    %6645 = vmatpush2.xpose.msra.mxu0 0.0
    %6646 = vmatprep.subr.mxu0 0.0
    %6647 = vmatpush2.xpose.msra.mxu0 0.0
    %6648 = vmatprep.subr.mxu0 0.0
    %6649 = vmatpush2.xpose.msra.mxu0 0.0
    %6650 = vmatprep.subr.mxu0 0.0
    %6651 = vmatpush2.xpose.msra.mxu0 0.0
    %6652 = vmatprep.subr.mxu0 0.0
    %6653 = vmatpush2.xpose.msra.mxu0 0.0
    %6654 = vmatprep.subr.mxu0 0.0
    %6655 = vmatpush2.xpose.msra.mxu0 0.0
    %6656 = vmatprep.subr.mxu0 0.0
    %6657 = vmatpush2.xpose.msra.mxu0 0.0
    %6658 = vmatprep.subr.mxu0 0.0
    %6659 = vmatpush2.xpose.msra.mxu0 0.0
    %6660 = vmatprep.subr.mxu0 0.0
    %6661 = vmatpush2.xpose.msra.mxu0 0.0
    %6662 = vmatprep.mubr.f32.mxu0 0.0
    %6663 = vmatmul.mubr.f32.gmra.mxu0 %v6590
    %v6664 = vpop.f32.mrf.mxu0
    %v6665 = vadd.f32 %v139, %v6664
    %v6666 = vpop.f32.mrf.mxu0
    %6667 = vmatprep.mubr.f32.mxu0 0.0
    %6668 = vmatmul.mubr.f32.gmra.mxu0 %v6592
    %v6669 = vpop.f32.mrf.mxu0
    %v6670 = vadd.f32 %v140, %v6669
    %v6671 = vpop.f32.mrf.mxu0
    %6672 = vdwg.mxu0
    %v6673 = vsel %vm348, %v6665, -inf
    %6674 = vmax.xlane.f32.xlu0 %v6673
    %v6675 = vpop.xlane.xlu0 %6674
    %v6676 = vsel %vm348, %v6670, -inf
    %6677 = vmax.xlane.f32.xlu0 %v6676
    %v6678 = vpop.xlane.xlu0 %6677
    %v6679 = vsub.f32 %v6665, %v6675
    %v6680 = vsub.f32 %v6670, %v6678
    %v6681 = vmul.f32 %v6679, 1.442695
    %v6682 = vpow.pop %v6681
    %v6683 = vmul.f32 %v6680, 1.442695
    %v6684 = vpow.pop %v6683
    %v6685 = vsel %vm348, %v6682, 0.0
    %6686 = vadd.xlane.f32.xlu0 %v6685
    %v6687 = vpop.xlane.xlu0 %6686
    %v6688 = vsel %vm348, %v6684, 0.0
    %6689 = vadd.xlane.f32.xlu0 %v6688
    %v6690 = vpop.xlane.xlu0 %6689
    %v6691 = vrcp.pop %v6687
    %v6692 = vrcp.pop %v6690
    %v6693 = vmul.f32 %v6682, %v6691
    %v6694 = vmul.f32 %v6684, %v6692
    %6695 = vrot.lane.b32.xlu0 %v6009, 48
    %v6696 = vpop.permute.xlu0 %6695
    %6697 = vrot.lane.b32.xlu0 %v6014, 48
    %v6698 = vpop.permute.xlu0 %6697
    %v6702 = vsel %vm348, %v6693, 0
    %v6705 = vsel %vm348, %v6694, 0
    %6707 = vmatprep.subr.mxu0 0.0
    %6708 = vmatpush1.msra.mxu0 0.0
    %6709 = vmatprep.subr.mxu0 0.0
    %6710 = vmatpush1.msra.mxu0 0.0
    %6711 = vmatprep.subr.mxu0 0.0
    %6712 = vmatpush1.msra.mxu0 0.0
    %6713 = vmatprep.subr.mxu0 0.0
    %6714 = vmatpush1.msra.mxu0 0.0
    %6715 = vmatprep.subr.mxu0 0.0
    %6716 = vmatpush1.msra.mxu0 0.0
    %6717 = vmatprep.subr.mxu0 0.0
    %6718 = vmatpush1.msra.mxu0 0.0
    %6719 = vmatprep.subr.mxu0 0.0
    %6720 = vmatpush1.msra.mxu0 0.0
    %6721 = vmatprep.subr.mxu0 0.0
    %6722 = vmatpush1.msra.mxu0 0.0
    %6723 = vmatprep.subr.mxu0 0.0
    %6724 = vmatpush1.msra.mxu0 0.0
    %6725 = vmatprep.subr.mxu0 0.0
    %6726 = vmatpush1.msra.mxu0 0.0
    %6727 = vmatprep.subr.mxu0 0.0
    %6728 = vmatpush1.msra.mxu0 0.0
    %6729 = vmatprep.subr.mxu0 0.0
    %6730 = vmatpush1.msra.mxu0 0.0
    %6731 = vmatprep.subr.mxu0 0.0
    %6732 = vmatpush1.msra.mxu0 0.0
    %6733 = vmatprep.subr.mxu0 0.0
    %6734 = vmatpush1.msra.mxu0 0.0
    %6735 = vmatprep.subr.mxu0 0.0
    %6736 = vmatpush1.msra.mxu0 %v6698
    %6737 = vmatprep.subr.mxu0 0.0
    %6738 = vmatpush1.msra.mxu0 %v6696
    %6739 = vmatprep.subr.mxu0 0.0
    %6740 = vmatpush2.msra.mxu0 0.0
    %6741 = vmatprep.subr.mxu0 0.0
    %6742 = vmatpush2.msra.mxu0 0.0
    %6743 = vmatprep.subr.mxu0 0.0
    %6744 = vmatpush2.msra.mxu0 0.0
    %6745 = vmatprep.subr.mxu0 0.0
    %6746 = vmatpush2.msra.mxu0 0.0
    %6747 = vmatprep.subr.mxu0 0.0
    %6748 = vmatpush2.msra.mxu0 0.0
    %6749 = vmatprep.subr.mxu0 0.0
    %6750 = vmatpush2.msra.mxu0 0.0
    %6751 = vmatprep.subr.mxu0 0.0
    %6752 = vmatpush2.msra.mxu0 0.0
    %6753 = vmatprep.subr.mxu0 0.0
    %6754 = vmatpush2.msra.mxu0 0.0
    %6755 = vmatprep.subr.mxu0 0.0
    %6756 = vmatpush2.msra.mxu0 0.0
    %6757 = vmatprep.subr.mxu0 0.0
    %6758 = vmatpush2.msra.mxu0 0.0
    %6759 = vmatprep.subr.mxu0 0.0
    %6760 = vmatpush2.msra.mxu0 0.0
    %6761 = vmatprep.subr.mxu0 0.0
    %6762 = vmatpush2.msra.mxu0 0.0
    %6763 = vmatprep.subr.mxu0 0.0
    %6764 = vmatpush2.msra.mxu0 0.0
    %6765 = vmatprep.subr.mxu0 0.0
    %6766 = vmatpush2.msra.mxu0 0.0
    %6767 = vmatprep.subr.mxu0 0.0
    %6768 = vmatpush2.msra.mxu0 0.0
    %6769 = vmatprep.subr.mxu0 0.0
    %6770 = vmatpush2.msra.mxu0 0.0
    %6771 = vmatprep.mubr.f32.mxu0 0.0
    %6772 = vmatmul.mubr.f32.gmra.mxu0 %v6702
    %v6773 = vpop.f32.mrf.mxu0
    %v6774 = vadd.f32 0.0, %v6773
    %v6775 = vpop.f32.mrf.mxu0
    %6776 = vmatprep.mubr.f32.mxu0 0.0
    %6777 = vmatmul.mubr.f32.gmra.mxu0 %v6705
    %v6778 = vpop.f32.mrf.mxu0
    %v6779 = vadd.f32 0.0, %v6778
    %v6780 = vpop.f32.mrf.mxu0
    %6781 = vdwg.mxu0
    %v6783 = vsel %vm264, %v6774, 0
    %v6786 = vsel %vm264, %v6779, 0
    %6788 = vmatprep.subr.mxu0 0.0
    %6789 = vmatpush1.msra.mxu0 0.0
    %6790 = vmatprep.subr.mxu0 0.0
    %6791 = vmatpush1.msra.mxu0 0.0
    %6792 = vmatprep.subr.mxu0 0.0
    %6793 = vmatpush1.msra.mxu0 0.0
    %6794 = vmatprep.subr.mxu0 0.0
    %6795 = vmatpush1.msra.mxu0 0.0
    %6796 = vmatprep.subr.mxu0 0.0
    %6797 = vmatpush1.msra.mxu0 0.0
    %6798 = vmatprep.subr.mxu0 0.0
    %6799 = vmatpush1.msra.mxu0 0.0
    %6800 = vmatprep.subr.mxu0 0.0
    %6801 = vmatpush1.msra.mxu0 0.0
    %6802 = vmatprep.subr.mxu0 0.0
    %6803 = vmatpush1.msra.mxu0 0.0
    %6804 = vmatprep.subr.mxu0 0.0
    %6805 = vmatpush1.msra.mxu0 0.0
    %6806 = vmatprep.subr.mxu0 0.0
    %6807 = vmatpush1.msra.mxu0 0.0
    %6808 = vmatprep.subr.mxu0 0.0
    %6809 = vmatpush1.msra.mxu0 0.0
    %6810 = vmatprep.subr.mxu0 0.0
    %6811 = vmatpush1.msra.mxu0 0.0
    %6812 = vmatprep.subr.mxu0 0.0
    %6813 = vmatpush1.msra.mxu0 0.0
    %6814 = vmatprep.subr.mxu0 0.0
    %6815 = vmatpush1.msra.mxu0 0.0
    %6816 = vmatprep.subr.mxu0 0.0
    %6817 = vmatpush1.msra.mxu0 0.0
    %6818 = vmatprep.subr.mxu0 0.0
    %6819 = vmatpush1.msra.mxu0 %v6020
    %6820 = vmatprep.subr.mxu0 0.0
    %6821 = vmatpush2.msra.mxu0 0.0
    %6822 = vmatprep.subr.mxu0 0.0
    %6823 = vmatpush2.msra.mxu0 0.0
    %6824 = vmatprep.subr.mxu0 0.0
    %6825 = vmatpush2.msra.mxu0 0.0
    %6826 = vmatprep.subr.mxu0 0.0
    %6827 = vmatpush2.msra.mxu0 0.0
    %6828 = vmatprep.subr.mxu0 0.0
    %6829 = vmatpush2.msra.mxu0 0.0
    %6830 = vmatprep.subr.mxu0 0.0
    %6831 = vmatpush2.msra.mxu0 0.0
    %6832 = vmatprep.subr.mxu0 0.0
    %6833 = vmatpush2.msra.mxu0 0.0
    %6834 = vmatprep.subr.mxu0 0.0
    %6835 = vmatpush2.msra.mxu0 0.0
    %6836 = vmatprep.subr.mxu0 0.0
    %6837 = vmatpush2.msra.mxu0 0.0
    %6838 = vmatprep.subr.mxu0 0.0
    %6839 = vmatpush2.msra.mxu0 0.0
    %6840 = vmatprep.subr.mxu0 0.0
    %6841 = vmatpush2.msra.mxu0 0.0
    %6842 = vmatprep.subr.mxu0 0.0
    %6843 = vmatpush2.msra.mxu0 0.0
    %6844 = vmatprep.subr.mxu0 0.0
    %6845 = vmatpush2.msra.mxu0 0.0
    %6846 = vmatprep.subr.mxu0 0.0
    %6847 = vmatpush2.msra.mxu0 0.0
    %6848 = vmatprep.subr.mxu0 0.0
    %6849 = vmatpush2.msra.mxu0 0.0
    %6850 = vmatprep.subr.mxu0 0.0
    %6851 = vmatpush2.msra.mxu0 0.0
    %6852 = vmatprep.mubr.f32.mxu0 0.0
    %6853 = vmatmul.mubr.f32.gmra.mxu0 %v6783
    %v6854 = vpop.f32.mrf.mxu0
    %v6855 = vadd.f32 0.0, %v6854
    %v6856 = vpop.f32.mrf.mxu0
    %6857 = vmatprep.mubr.f32.mxu0 0.0
    %6858 = vmatmul.mubr.f32.gmra.mxu0 %v6786
    %v6859 = vpop.f32.mrf.mxu0
    %v6860 = vadd.f32 0.0, %v6859
    %v6861 = vpop.f32.mrf.mxu0
    %6862 = vdwg.mxu0
    %v6863 = vadd.f32 %v6574, %v6855
    %v6864 = vadd.f32 %v6579, %v6860
    %6865 = vrot.lane.b32.xlu0 %v6009, 104
    %v6866 = vpop.permute.xlu0 %6865
    %6867 = vrot.lane.b32.xlu0 %v6014, 104
    %v6868 = vpop.permute.xlu0 %6867
    %6869 = vrot.lane.b32.xlu0 %v6009, 72
    %v6870 = vpop.permute.xlu0 %6869
    %6871 = vrot.lane.b32.xlu0 %v6014, 72
    %v6872 = vpop.permute.xlu0 %6871
    %v6873 = vsel %vm264, %v6866, 0
    %v6875 = vsel %vm264, %v6868, 0
    %v6877 = vsel %vm264, %v6870, 0
    %v6879 = vsel %vm264, %v6872, 0
    %6881 = vmatprep.subr.mxu0 0.0
    %6882 = vmatpush1.xpose.msra.mxu0 0.0
    %6883 = vmatprep.subr.mxu0 0.0
    %6884 = vmatpush1.xpose.msra.mxu0 0.0
    %6885 = vmatprep.subr.mxu0 0.0
    %6886 = vmatpush1.xpose.msra.mxu0 0.0
    %6887 = vmatprep.subr.mxu0 0.0
    %6888 = vmatpush1.xpose.msra.mxu0 0.0
    %6889 = vmatprep.subr.mxu0 0.0
    %6890 = vmatpush1.xpose.msra.mxu0 0.0
    %6891 = vmatprep.subr.mxu0 0.0
    %6892 = vmatpush1.xpose.msra.mxu0 0.0
    %6893 = vmatprep.subr.mxu0 0.0
    %6894 = vmatpush1.xpose.msra.mxu0 0.0
    %6895 = vmatprep.subr.mxu0 0.0
    %6896 = vmatpush1.xpose.msra.mxu0 0.0
    %6897 = vmatprep.subr.mxu0 0.0
    %6898 = vmatpush1.xpose.msra.mxu0 0.0
    %6899 = vmatprep.subr.mxu0 0.0
    %6900 = vmatpush1.xpose.msra.mxu0 0.0
    %6901 = vmatprep.subr.mxu0 0.0
    %6902 = vmatpush1.xpose.msra.mxu0 0.0
    %6903 = vmatprep.subr.mxu0 0.0
    %6904 = vmatpush1.xpose.msra.mxu0 0.0
    %6905 = vmatprep.subr.mxu0 0.0
    %6906 = vmatpush1.xpose.msra.mxu0 0.0
    %6907 = vmatprep.subr.mxu0 0.0
    %6908 = vmatpush1.xpose.msra.mxu0 0.0
    %6909 = vmatprep.subr.mxu0 0.0
    %6910 = vmatpush1.xpose.msra.mxu0 %v6879
    %6911 = vmatprep.subr.mxu0 0.0
    %6912 = vmatpush1.xpose.msra.mxu0 %v6877
    %6913 = vmatprep.subr.mxu0 0.0
    %6914 = vmatpush2.xpose.msra.mxu0 0.0
    %6915 = vmatprep.subr.mxu0 0.0
    %6916 = vmatpush2.xpose.msra.mxu0 0.0
    %6917 = vmatprep.subr.mxu0 0.0
    %6918 = vmatpush2.xpose.msra.mxu0 0.0
    %6919 = vmatprep.subr.mxu0 0.0
    %6920 = vmatpush2.xpose.msra.mxu0 0.0
    %6921 = vmatprep.subr.mxu0 0.0
    %6922 = vmatpush2.xpose.msra.mxu0 0.0
    %6923 = vmatprep.subr.mxu0 0.0
    %6924 = vmatpush2.xpose.msra.mxu0 0.0
    %6925 = vmatprep.subr.mxu0 0.0
    %6926 = vmatpush2.xpose.msra.mxu0 0.0
    %6927 = vmatprep.subr.mxu0 0.0
    %6928 = vmatpush2.xpose.msra.mxu0 0.0
    %6929 = vmatprep.subr.mxu0 0.0
    %6930 = vmatpush2.xpose.msra.mxu0 0.0
    %6931 = vmatprep.subr.mxu0 0.0
    %6932 = vmatpush2.xpose.msra.mxu0 0.0
    %6933 = vmatprep.subr.mxu0 0.0
    %6934 = vmatpush2.xpose.msra.mxu0 0.0
    %6935 = vmatprep.subr.mxu0 0.0
    %6936 = vmatpush2.xpose.msra.mxu0 0.0
    %6937 = vmatprep.subr.mxu0 0.0
    %6938 = vmatpush2.xpose.msra.mxu0 0.0
    %6939 = vmatprep.subr.mxu0 0.0
    %6940 = vmatpush2.xpose.msra.mxu0 0.0
    %6941 = vmatprep.subr.mxu0 0.0
    %6942 = vmatpush2.xpose.msra.mxu0 0.0
    %6943 = vmatprep.subr.mxu0 0.0
    %6944 = vmatpush2.xpose.msra.mxu0 0.0
    %6945 = vmatprep.mubr.f32.mxu0 0.0
    %6946 = vmatmul.mubr.f32.gmra.mxu0 %v6873
    %v6947 = vpop.f32.mrf.mxu0
    %v6948 = vadd.f32 %v139, %v6947
    %v6949 = vpop.f32.mrf.mxu0
    %6950 = vmatprep.mubr.f32.mxu0 0.0
    %6951 = vmatmul.mubr.f32.gmra.mxu0 %v6875
    %v6952 = vpop.f32.mrf.mxu0
    %v6953 = vadd.f32 %v140, %v6952
    %v6954 = vpop.f32.mrf.mxu0
    %6955 = vdwg.mxu0
    %v6956 = vsel %vm348, %v6948, -inf
    %6957 = vmax.xlane.f32.xlu0 %v6956
    %v6958 = vpop.xlane.xlu0 %6957
    %v6959 = vsel %vm348, %v6953, -inf
    %6960 = vmax.xlane.f32.xlu0 %v6959
    %v6961 = vpop.xlane.xlu0 %6960
    %v6962 = vsub.f32 %v6948, %v6958
    %v6963 = vsub.f32 %v6953, %v6961
    %v6964 = vmul.f32 %v6962, 1.442695
    %v6965 = vpow.pop %v6964
    %v6966 = vmul.f32 %v6963, 1.442695
    %v6967 = vpow.pop %v6966
    %v6968 = vsel %vm348, %v6965, 0.0
    %6969 = vadd.xlane.f32.xlu0 %v6968
    %v6970 = vpop.xlane.xlu0 %6969
    %v6971 = vsel %vm348, %v6967, 0.0
    %6972 = vadd.xlane.f32.xlu0 %v6971
    %v6973 = vpop.xlane.xlu0 %6972
    %v6974 = vrcp.pop %v6970
    %v6975 = vrcp.pop %v6973
    %v6976 = vmul.f32 %v6965, %v6974
    %v6977 = vmul.f32 %v6967, %v6975
    %6978 = vrot.lane.b32.xlu0 %v6009, 40
    %v6979 = vpop.permute.xlu0 %6978
    %6980 = vrot.lane.b32.xlu0 %v6014, 40
    %v6981 = vpop.permute.xlu0 %6980
    %v6985 = vsel %vm348, %v6976, 0
    %v6988 = vsel %vm348, %v6977, 0
    %6990 = vmatprep.subr.mxu0 0.0
    %6991 = vmatpush1.msra.mxu0 0.0
    %6992 = vmatprep.subr.mxu0 0.0
    %6993 = vmatpush1.msra.mxu0 0.0
    %6994 = vmatprep.subr.mxu0 0.0
    %6995 = vmatpush1.msra.mxu0 0.0
    %6996 = vmatprep.subr.mxu0 0.0
    %6997 = vmatpush1.msra.mxu0 0.0
    %6998 = vmatprep.subr.mxu0 0.0
    %6999 = vmatpush1.msra.mxu0 0.0
    %7000 = vmatprep.subr.mxu0 0.0
    %7001 = vmatpush1.msra.mxu0 0.0
    %7002 = vmatprep.subr.mxu0 0.0
    %7003 = vmatpush1.msra.mxu0 0.0
    %7004 = vmatprep.subr.mxu0 0.0
    %7005 = vmatpush1.msra.mxu0 0.0
    %7006 = vmatprep.subr.mxu0 0.0
    %7007 = vmatpush1.msra.mxu0 0.0
    %7008 = vmatprep.subr.mxu0 0.0
    %7009 = vmatpush1.msra.mxu0 0.0
    %7010 = vmatprep.subr.mxu0 0.0
    %7011 = vmatpush1.msra.mxu0 0.0
    %7012 = vmatprep.subr.mxu0 0.0
    %7013 = vmatpush1.msra.mxu0 0.0
    %7014 = vmatprep.subr.mxu0 0.0
    %7015 = vmatpush1.msra.mxu0 0.0
    %7016 = vmatprep.subr.mxu0 0.0
    %7017 = vmatpush1.msra.mxu0 0.0
    %7018 = vmatprep.subr.mxu0 0.0
    %7019 = vmatpush1.msra.mxu0 %v6981
    %7020 = vmatprep.subr.mxu0 0.0
    %7021 = vmatpush1.msra.mxu0 %v6979
    %7022 = vmatprep.subr.mxu0 0.0
    %7023 = vmatpush2.msra.mxu0 0.0
    %7024 = vmatprep.subr.mxu0 0.0
    %7025 = vmatpush2.msra.mxu0 0.0
    %7026 = vmatprep.subr.mxu0 0.0
    %7027 = vmatpush2.msra.mxu0 0.0
    %7028 = vmatprep.subr.mxu0 0.0
    %7029 = vmatpush2.msra.mxu0 0.0
    %7030 = vmatprep.subr.mxu0 0.0
    %7031 = vmatpush2.msra.mxu0 0.0
    %7032 = vmatprep.subr.mxu0 0.0
    %7033 = vmatpush2.msra.mxu0 0.0
    %7034 = vmatprep.subr.mxu0 0.0
    %7035 = vmatpush2.msra.mxu0 0.0
    %7036 = vmatprep.subr.mxu0 0.0
    %7037 = vmatpush2.msra.mxu0 0.0
    %7038 = vmatprep.subr.mxu0 0.0
    %7039 = vmatpush2.msra.mxu0 0.0
    %7040 = vmatprep.subr.mxu0 0.0
    %7041 = vmatpush2.msra.mxu0 0.0
    %7042 = vmatprep.subr.mxu0 0.0
    %7043 = vmatpush2.msra.mxu0 0.0
    %7044 = vmatprep.subr.mxu0 0.0
    %7045 = vmatpush2.msra.mxu0 0.0
    %7046 = vmatprep.subr.mxu0 0.0
    %7047 = vmatpush2.msra.mxu0 0.0
    %7048 = vmatprep.subr.mxu0 0.0
    %7049 = vmatpush2.msra.mxu0 0.0
    %7050 = vmatprep.subr.mxu0 0.0
    %7051 = vmatpush2.msra.mxu0 0.0
    %7052 = vmatprep.subr.mxu0 0.0
    %7053 = vmatpush2.msra.mxu0 0.0
    %7054 = vmatprep.mubr.f32.mxu0 0.0
    %7055 = vmatmul.mubr.f32.gmra.mxu0 %v6985
    %v7056 = vpop.f32.mrf.mxu0
    %v7057 = vadd.f32 0.0, %v7056
    %v7058 = vpop.f32.mrf.mxu0
    %7059 = vmatprep.mubr.f32.mxu0 0.0
    %7060 = vmatmul.mubr.f32.gmra.mxu0 %v6988
    %v7061 = vpop.f32.mrf.mxu0
    %v7062 = vadd.f32 0.0, %v7061
    %v7063 = vpop.f32.mrf.mxu0
    %7064 = vdwg.mxu0
    %v7066 = vsel %vm264, %v7057, 0
    %v7069 = vsel %vm264, %v7062, 0
    %7071 = vmatprep.subr.mxu0 0.0
    %7072 = vmatpush1.msra.mxu0 0.0
    %7073 = vmatprep.subr.mxu0 0.0
    %7074 = vmatpush1.msra.mxu0 0.0
    %7075 = vmatprep.subr.mxu0 0.0
    %7076 = vmatpush1.msra.mxu0 0.0
    %7077 = vmatprep.subr.mxu0 0.0
    %7078 = vmatpush1.msra.mxu0 0.0
    %7079 = vmatprep.subr.mxu0 0.0
    %7080 = vmatpush1.msra.mxu0 0.0
    %7081 = vmatprep.subr.mxu0 0.0
    %7082 = vmatpush1.msra.mxu0 0.0
    %7083 = vmatprep.subr.mxu0 0.0
    %7084 = vmatpush1.msra.mxu0 0.0
    %7085 = vmatprep.subr.mxu0 0.0
    %7086 = vmatpush1.msra.mxu0 0.0
    %7087 = vmatprep.subr.mxu0 0.0
    %7088 = vmatpush1.msra.mxu0 0.0
    %7089 = vmatprep.subr.mxu0 0.0
    %7090 = vmatpush1.msra.mxu0 0.0
    %7091 = vmatprep.subr.mxu0 0.0
    %7092 = vmatpush1.msra.mxu0 0.0
    %7093 = vmatprep.subr.mxu0 0.0
    %7094 = vmatpush1.msra.mxu0 0.0
    %7095 = vmatprep.subr.mxu0 0.0
    %7096 = vmatpush1.msra.mxu0 0.0
    %7097 = vmatprep.subr.mxu0 0.0
    %7098 = vmatpush1.msra.mxu0 0.0
    %7099 = vmatprep.subr.mxu0 0.0
    %7100 = vmatpush1.msra.mxu0 0.0
    %7101 = vmatprep.subr.mxu0 0.0
    %7102 = vmatpush1.msra.mxu0 %v6021
    %7103 = vmatprep.subr.mxu0 0.0
    %7104 = vmatpush2.msra.mxu0 0.0
    %7105 = vmatprep.subr.mxu0 0.0
    %7106 = vmatpush2.msra.mxu0 0.0
    %7107 = vmatprep.subr.mxu0 0.0
    %7108 = vmatpush2.msra.mxu0 0.0
    %7109 = vmatprep.subr.mxu0 0.0
    %7110 = vmatpush2.msra.mxu0 0.0
    %7111 = vmatprep.subr.mxu0 0.0
    %7112 = vmatpush2.msra.mxu0 0.0
    %7113 = vmatprep.subr.mxu0 0.0
    %7114 = vmatpush2.msra.mxu0 0.0
    %7115 = vmatprep.subr.mxu0 0.0
    %7116 = vmatpush2.msra.mxu0 0.0
    %7117 = vmatprep.subr.mxu0 0.0
    %7118 = vmatpush2.msra.mxu0 0.0
    %7119 = vmatprep.subr.mxu0 0.0
    %7120 = vmatpush2.msra.mxu0 0.0
    %7121 = vmatprep.subr.mxu0 0.0
    %7122 = vmatpush2.msra.mxu0 0.0
    %7123 = vmatprep.subr.mxu0 0.0
    %7124 = vmatpush2.msra.mxu0 0.0
    %7125 = vmatprep.subr.mxu0 0.0
    %7126 = vmatpush2.msra.mxu0 0.0
    %7127 = vmatprep.subr.mxu0 0.0
    %7128 = vmatpush2.msra.mxu0 0.0
    %7129 = vmatprep.subr.mxu0 0.0
    %7130 = vmatpush2.msra.mxu0 0.0
    %7131 = vmatprep.subr.mxu0 0.0
    %7132 = vmatpush2.msra.mxu0 0.0
    %7133 = vmatprep.subr.mxu0 0.0
    %7134 = vmatpush2.msra.mxu0 0.0
    %7135 = vmatprep.mubr.f32.mxu0 0.0
    %7136 = vmatmul.mubr.f32.gmra.mxu0 %v7066
    %v7137 = vpop.f32.mrf.mxu0
    %v7138 = vadd.f32 0.0, %v7137
    %v7139 = vpop.f32.mrf.mxu0
    %7140 = vmatprep.mubr.f32.mxu0 0.0
    %7141 = vmatmul.mubr.f32.gmra.mxu0 %v7069
    %v7142 = vpop.f32.mrf.mxu0
    %v7143 = vadd.f32 0.0, %v7142
    %v7144 = vpop.f32.mrf.mxu0
    %7145 = vdwg.mxu0
    %v7146 = vadd.f32 %v6863, %v7138
    %v7147 = vadd.f32 %v6864, %v7143
    %v7148 = vadd.f32 %v5903, %v7146
    %v7149 = vadd.f32 %v5904, %v7147
    %s7150 = scalar_lea.vmem %s35, 1
    %v7151 = vld [vmem:[%s7150] sm:$0x1]
    %v7153 = vlaneseq
    %v7154 = vshrl.u32 %v7153, 7
    %v7155 = vsub.s32 0, %v7154
    %v7156 = vrot.slane %v7151, %v7155
    %v7158 = vadd.f32 %v7148, %v7156
    %v7159 = vadd.f32 %v7149, %v7156
    %s7160 = sld [smem:[#allocation2 + $0x9]]
    %v7161 = vmul.f32 %v7158, %v7158
    %v7162 = vmul.f32 %v7159, %v7159
    %v7163 = vsel %vm146, %v7161, 0.0
    %7164 = vadd.xlane.f32.xlu0 %v7163
    %v7165 = vpop.xlane.xlu0 %7164
    %v7166 = vsel %vm146, %v7162, 0.0
    %7167 = vadd.xlane.f32.xlu0 %v7166
    %v7168 = vpop.xlane.xlu0 %7167
    %v7169 = vmax.f32 %v7165, 1e-10
    %v7170 = vmax.f32 %v7168, 1e-10
    %v7171 = vrsqrt.pop %v7169
    %v7172 = vrsqrt.pop %v7170
    %v7173 = vstv %s7160
    %v7174 = vmul.f32 %v7173, %v7171
    %v7175 = vmul.f32 %v7173, %v7172
    %v7176 = vmul.f32 %v7158, %v7174
    %v7177 = vmul.f32 %v7159, %v7175
    %s7178 = scalar_lea.vmem %s37, 32
    %v7179 = vld [vmem:[%s7178] sm:$0xff]
    %v7180 = vld [vmem:[%s7178 + $0x8] sm:$0xff]
    %v7181 = vld [vmem:[%s7178 + $0x10] sm:$0xff]
    %v7182 = vld [vmem:[%s7178 + $0x18] sm:$0xff]
    %s7183 = scalar_lea.vmem %s39, 1
    %v7184 = vld [vmem:[%s7183] sm:$0x1]
    %v7186 = vlaneseq
    %v7187 = vshrl.u32 %v7186, 7
    %v7188 = vsub.s32 0, %v7187
    %v7189 = vrot.slane %v7184, %v7188
    %v7192 = vsel %vm146, %v7176, 0
    %v7195 = vsel %vm146, %v7177, 0
    %7197 = vmatprep.subr.mxu0 0.0
    %7198 = vmatpush1.msra.mxu0 0.0
    %7199 = vmatprep.subr.mxu0 0.0
    %7200 = vmatpush1.msra.mxu0 0.0
    %7201 = vmatprep.subr.mxu0 0.0
    %7202 = vmatpush1.msra.mxu0 0.0
    %7203 = vmatprep.subr.mxu0 0.0
    %7204 = vmatpush1.msra.mxu0 0.0
    %7205 = vmatprep.subr.mxu0 0.0
    %7206 = vmatpush1.msra.mxu0 0.0
    %7207 = vmatprep.subr.mxu0 0.0
    %7208 = vmatpush1.msra.mxu0 0.0
    %7209 = vmatprep.subr.mxu0 0.0
    %7210 = vmatpush1.msra.mxu0 0.0
    %7211 = vmatprep.subr.mxu0 0.0
    %7212 = vmatpush1.msra.mxu0 0.0
    %7213 = vmatprep.subr.mxu0 0.0
    %7214 = vmatpush1.msra.mxu0 0.0
    %7215 = vmatprep.subr.mxu0 0.0
    %7216 = vmatpush1.msra.mxu0 0.0
    %7217 = vmatprep.subr.mxu0 0.0
    %7218 = vmatpush1.msra.mxu0 0.0
    %7219 = vmatprep.subr.mxu0 0.0
    %7220 = vmatpush1.msra.mxu0 0.0
    %7221 = vmatprep.subr.mxu0 0.0
    %7222 = vmatpush1.msra.mxu0 %v7182
    %7223 = vmatprep.subr.mxu0 0.0
    %7224 = vmatpush1.msra.mxu0 %v7181
    %7225 = vmatprep.subr.mxu0 0.0
    %7226 = vmatpush1.msra.mxu0 %v7180
    %7227 = vmatprep.subr.mxu0 0.0
    %7228 = vmatpush1.msra.mxu0 %v7179
    %7229 = vmatprep.subr.mxu0 0.0
    %7230 = vmatpush2.msra.mxu0 0.0
    %7231 = vmatprep.subr.mxu0 0.0
    %7232 = vmatpush2.msra.mxu0 0.0
    %7233 = vmatprep.subr.mxu0 0.0
    %7234 = vmatpush2.msra.mxu0 0.0
    %7235 = vmatprep.subr.mxu0 0.0
    %7236 = vmatpush2.msra.mxu0 0.0
    %7237 = vmatprep.subr.mxu0 0.0
    %7238 = vmatpush2.msra.mxu0 0.0
    %7239 = vmatprep.subr.mxu0 0.0
    %7240 = vmatpush2.msra.mxu0 0.0
    %7241 = vmatprep.subr.mxu0 0.0
    %7242 = vmatpush2.msra.mxu0 0.0
    %7243 = vmatprep.subr.mxu0 0.0
    %7244 = vmatpush2.msra.mxu0 0.0
    %7245 = vmatprep.subr.mxu0 0.0
    %7246 = vmatpush2.msra.mxu0 0.0
    %7247 = vmatprep.subr.mxu0 0.0
    %7248 = vmatpush2.msra.mxu0 0.0
    %7249 = vmatprep.subr.mxu0 0.0
    %7250 = vmatpush2.msra.mxu0 0.0
    %7251 = vmatprep.subr.mxu0 0.0
    %7252 = vmatpush2.msra.mxu0 0.0
    %7253 = vmatprep.subr.mxu0 0.0
    %7254 = vmatpush2.msra.mxu0 0.0
    %7255 = vmatprep.subr.mxu0 0.0
    %7256 = vmatpush2.msra.mxu0 0.0
    %7257 = vmatprep.subr.mxu0 0.0
    %7258 = vmatpush2.msra.mxu0 0.0
    %7259 = vmatprep.subr.mxu0 0.0
    %7260 = vmatpush2.msra.mxu0 0.0
    %7261 = vmatprep.mubr.f32.mxu0 0.0
    %7262 = vmatmul.mubr.f32.gmra.mxu0 %v7192
    %v7263 = vpop.f32.mrf.mxu0
    %v7264 = vadd.f32 %v7189, %v7263
    %v7265 = vpop.f32.mrf.mxu0
    %7266 = vmatprep.mubr.f32.mxu0 0.0
    %7267 = vmatmul.mubr.f32.gmra.mxu0 %v7195
    %v7268 = vpop.f32.mrf.mxu0
    %v7269 = vadd.f32 %v7189, %v7268
    %v7270 = vpop.f32.mrf.mxu0
    %7271 = vdwg.mxu0
    %s7272 = scalar_lea.vmem %s41, 32
    %v7273 = vld [vmem:[%s7272] sm:$0xff]
    %v7274 = vld [vmem:[%s7272 + $0x8] sm:$0xff]
    %v7275 = vld [vmem:[%s7272 + $0x10] sm:$0xff]
    %v7276 = vld [vmem:[%s7272 + $0x18] sm:$0xff]
    %s7277 = scalar_lea.vmem %s43, 1
    %v7278 = vld [vmem:[%s7277] sm:$0x1]
    %v7280 = vlaneseq
    %v7281 = vshrl.u32 %v7280, 7
    %v7282 = vsub.s32 0, %v7281
    %v7283 = vrot.slane %v7278, %v7282
    %7285 = vmatprep.subr.mxu0 0.0
    %7286 = vmatpush1.msra.mxu0 0.0
    %7287 = vmatprep.subr.mxu0 0.0
    %7288 = vmatpush1.msra.mxu0 0.0
    %7289 = vmatprep.subr.mxu0 0.0
    %7290 = vmatpush1.msra.mxu0 0.0
    %7291 = vmatprep.subr.mxu0 0.0
    %7292 = vmatpush1.msra.mxu0 0.0
    %7293 = vmatprep.subr.mxu0 0.0
    %7294 = vmatpush1.msra.mxu0 0.0
    %7295 = vmatprep.subr.mxu0 0.0
    %7296 = vmatpush1.msra.mxu0 0.0
    %7297 = vmatprep.subr.mxu0 0.0
    %7298 = vmatpush1.msra.mxu0 0.0
    %7299 = vmatprep.subr.mxu0 0.0
    %7300 = vmatpush1.msra.mxu0 0.0
    %7301 = vmatprep.subr.mxu0 0.0
    %7302 = vmatpush1.msra.mxu0 0.0
    %7303 = vmatprep.subr.mxu0 0.0
    %7304 = vmatpush1.msra.mxu0 0.0
    %7305 = vmatprep.subr.mxu0 0.0
    %7306 = vmatpush1.msra.mxu0 0.0
    %7307 = vmatprep.subr.mxu0 0.0
    %7308 = vmatpush1.msra.mxu0 0.0
    %7309 = vmatprep.subr.mxu0 0.0
    %7310 = vmatpush1.msra.mxu0 %v7276
    %7311 = vmatprep.subr.mxu0 0.0
    %7312 = vmatpush1.msra.mxu0 %v7275
    %7313 = vmatprep.subr.mxu0 0.0
    %7314 = vmatpush1.msra.mxu0 %v7274
    %7315 = vmatprep.subr.mxu0 0.0
    %7316 = vmatpush1.msra.mxu0 %v7273
    %7317 = vmatprep.subr.mxu0 0.0
    %7318 = vmatpush2.msra.mxu0 0.0
    %7319 = vmatprep.subr.mxu0 0.0
    %7320 = vmatpush2.msra.mxu0 0.0
    %7321 = vmatprep.subr.mxu0 0.0
    %7322 = vmatpush2.msra.mxu0 0.0
    %7323 = vmatprep.subr.mxu0 0.0
    %7324 = vmatpush2.msra.mxu0 0.0
    %7325 = vmatprep.subr.mxu0 0.0
    %7326 = vmatpush2.msra.mxu0 0.0
    %7327 = vmatprep.subr.mxu0 0.0
    %7328 = vmatpush2.msra.mxu0 0.0
    %7329 = vmatprep.subr.mxu0 0.0
    %7330 = vmatpush2.msra.mxu0 0.0
    %7331 = vmatprep.subr.mxu0 0.0
    %7332 = vmatpush2.msra.mxu0 0.0
    %7333 = vmatprep.subr.mxu0 0.0
    %7334 = vmatpush2.msra.mxu0 0.0
    %7335 = vmatprep.subr.mxu0 0.0
    %7336 = vmatpush2.msra.mxu0 0.0
    %7337 = vmatprep.subr.mxu0 0.0
    %7338 = vmatpush2.msra.mxu0 0.0
    %7339 = vmatprep.subr.mxu0 0.0
    %7340 = vmatpush2.msra.mxu0 0.0
    %7341 = vmatprep.subr.mxu0 0.0
    %7342 = vmatpush2.msra.mxu0 0.0
    %7343 = vmatprep.subr.mxu0 0.0
    %7344 = vmatpush2.msra.mxu0 0.0
    %7345 = vmatprep.subr.mxu0 0.0
    %7346 = vmatpush2.msra.mxu0 0.0
    %7347 = vmatprep.subr.mxu0 0.0
    %7348 = vmatpush2.msra.mxu0 0.0
    %7349 = vmatprep.mubr.f32.mxu0 0.0
    %7350 = vmatmul.mubr.f32.gmra.mxu0 %v4474
    %v7351 = vpop.f32.mrf.mxu0
    %v7352 = vadd.f32 %v7283, %v7351
    %v7353 = vpop.f32.mrf.mxu0
    %7354 = vmatprep.mubr.f32.mxu0 0.0
    %7355 = vmatmul.mubr.f32.gmra.mxu0 %v4477
    %v7356 = vpop.f32.mrf.mxu0
    %v7357 = vadd.f32 %v7283, %v7356
    %v7358 = vpop.f32.mrf.mxu0
    %7359 = vdwg.mxu0
    %s7360 = scalar_lea.vmem %s45, 32
    %v7361 = vld [vmem:[%s7360] sm:$0xff]
    %v7362 = vld [vmem:[%s7360 + $0x8] sm:$0xff]
    %v7363 = vld [vmem:[%s7360 + $0x10] sm:$0xff]
    %v7364 = vld [vmem:[%s7360 + $0x18] sm:$0xff]
    %v7366 = vsel %vm264, %v7264, 0
    %v7369 = vsel %vm264, %v7269, 0
    %v7372 = vsel %vm264, %v7352, 0
    %v7375 = vsel %vm264, %v7357, 0
    %7377 = vmatprep.subr.mxu0 0.0
    %7378 = vmatpush1.xpose.msra.mxu0 0.0
    %7379 = vmatprep.subr.mxu0 0.0
    %7380 = vmatpush1.xpose.msra.mxu0 0.0
    %7381 = vmatprep.subr.mxu0 0.0
    %7382 = vmatpush1.xpose.msra.mxu0 0.0
    %7383 = vmatprep.subr.mxu0 0.0
    %7384 = vmatpush1.xpose.msra.mxu0 0.0
    %7385 = vmatprep.subr.mxu0 0.0
    %7386 = vmatpush1.xpose.msra.mxu0 0.0
    %7387 = vmatprep.subr.mxu0 0.0
    %7388 = vmatpush1.xpose.msra.mxu0 0.0
    %7389 = vmatprep.subr.mxu0 0.0
    %7390 = vmatpush1.xpose.msra.mxu0 0.0
    %7391 = vmatprep.subr.mxu0 0.0
    %7392 = vmatpush1.xpose.msra.mxu0 0.0
    %7393 = vmatprep.subr.mxu0 0.0
    %7394 = vmatpush1.xpose.msra.mxu0 0.0
    %7395 = vmatprep.subr.mxu0 0.0
    %7396 = vmatpush1.xpose.msra.mxu0 0.0
    %7397 = vmatprep.subr.mxu0 0.0
    %7398 = vmatpush1.xpose.msra.mxu0 0.0
    %7399 = vmatprep.subr.mxu0 0.0
    %7400 = vmatpush1.xpose.msra.mxu0 0.0
    %7401 = vmatprep.subr.mxu0 0.0
    %7402 = vmatpush1.xpose.msra.mxu0 0.0
    %7403 = vmatprep.subr.mxu0 0.0
    %7404 = vmatpush1.xpose.msra.mxu0 0.0
    %7405 = vmatprep.subr.mxu0 0.0
    %7406 = vmatpush1.xpose.msra.mxu0 %v7375
    %7407 = vmatprep.subr.mxu0 0.0
    %7408 = vmatpush1.xpose.msra.mxu0 %v7372
    %7409 = vmatprep.subr.mxu0 0.0
    %7410 = vmatpush2.xpose.msra.mxu0 0.0
    %7411 = vmatprep.subr.mxu0 0.0
    %7412 = vmatpush2.xpose.msra.mxu0 0.0
    %7413 = vmatprep.subr.mxu0 0.0
    %7414 = vmatpush2.xpose.msra.mxu0 0.0
    %7415 = vmatprep.subr.mxu0 0.0
    %7416 = vmatpush2.xpose.msra.mxu0 0.0
    %7417 = vmatprep.subr.mxu0 0.0
    %7418 = vmatpush2.xpose.msra.mxu0 0.0
    %7419 = vmatprep.subr.mxu0 0.0
    %7420 = vmatpush2.xpose.msra.mxu0 0.0
    %7421 = vmatprep.subr.mxu0 0.0
    %7422 = vmatpush2.xpose.msra.mxu0 0.0
    %7423 = vmatprep.subr.mxu0 0.0
    %7424 = vmatpush2.xpose.msra.mxu0 0.0
    %7425 = vmatprep.subr.mxu0 0.0
    %7426 = vmatpush2.xpose.msra.mxu0 0.0
    %7427 = vmatprep.subr.mxu0 0.0
    %7428 = vmatpush2.xpose.msra.mxu0 0.0
    %7429 = vmatprep.subr.mxu0 0.0
    %7430 = vmatpush2.xpose.msra.mxu0 0.0
    %7431 = vmatprep.subr.mxu0 0.0
    %7432 = vmatpush2.xpose.msra.mxu0 0.0
    %7433 = vmatprep.subr.mxu0 0.0
    %7434 = vmatpush2.xpose.msra.mxu0 0.0
    %7435 = vmatprep.subr.mxu0 0.0
    %7436 = vmatpush2.xpose.msra.mxu0 0.0
    %7437 = vmatprep.subr.mxu0 0.0
    %7438 = vmatpush2.xpose.msra.mxu0 0.0
    %7439 = vmatprep.subr.mxu0 0.0
    %7440 = vmatpush2.xpose.msra.mxu0 0.0
    %7441 = vmatprep.mubr.f32.mxu0 0.0
    %7442 = vmatmul.mubr.f32.gmra.mxu0 %v7366
    %v7443 = vpop.f32.mrf.mxu0
    %v7444 = vadd.f32 %v137, %v7443
    %v7445 = vpop.f32.mrf.mxu0
    %7446 = vmatprep.mubr.f32.mxu0 0.0
    %7447 = vmatmul.mubr.f32.gmra.mxu0 %v7369
    %v7448 = vpop.f32.mrf.mxu0
    %v7449 = vadd.f32 %v138, %v7448
    %v7450 = vpop.f32.mrf.mxu0
    %7451 = vdwg.mxu0
    %v7452 = vsel %vm348, %v7444, -inf
    %7453 = vmax.xlane.f32.xlu0 %v7452
    %v7454 = vpop.xlane.xlu0 %7453
    %v7455 = vsel %vm348, %v7449, -inf
    %7456 = vmax.xlane.f32.xlu0 %v7455
    %v7457 = vpop.xlane.xlu0 %7456
    %v7458 = vsub.f32 %v7444, %v7454
    %v7459 = vsub.f32 %v7449, %v7457
    %v7460 = vmul.f32 %v7458, 1.442695
    %v7461 = vpow.pop %v7460
    %v7462 = vmul.f32 %v7459, 1.442695
    %v7463 = vpow.pop %v7462
    %v7464 = vsel %vm348, %v7461, 0.0
    %7465 = vadd.xlane.f32.xlu0 %v7464
    %v7466 = vpop.xlane.xlu0 %7465
    %v7467 = vsel %vm348, %v7463, 0.0
    %7468 = vadd.xlane.f32.xlu0 %v7467
    %v7469 = vpop.xlane.xlu0 %7468
    %v7470 = vrcp.pop %v7466
    %v7471 = vrcp.pop %v7469
    %v7472 = vmul.f32 %v7461, %v7470
    %v7473 = vmul.f32 %v7463, %v7471
    %7474 = vrot.lane.b32.xlu0 %v7352, 96
    %v7475 = vpop.permute.xlu0 %7474
    %7476 = vrot.lane.b32.xlu0 %v7357, 96
    %v7477 = vpop.permute.xlu0 %7476
    %v7481 = vsel %vm348, %v7472, 0
    %v7484 = vsel %vm348, %v7473, 0
    %7486 = vmatprep.subr.mxu0 0.0
    %7487 = vmatpush1.msra.mxu0 0.0
    %7488 = vmatprep.subr.mxu0 0.0
    %7489 = vmatpush1.msra.mxu0 0.0
    %7490 = vmatprep.subr.mxu0 0.0
    %7491 = vmatpush1.msra.mxu0 0.0
    %7492 = vmatprep.subr.mxu0 0.0
    %7493 = vmatpush1.msra.mxu0 0.0
    %7494 = vmatprep.subr.mxu0 0.0
    %7495 = vmatpush1.msra.mxu0 0.0
    %7496 = vmatprep.subr.mxu0 0.0
    %7497 = vmatpush1.msra.mxu0 0.0
    %7498 = vmatprep.subr.mxu0 0.0
    %7499 = vmatpush1.msra.mxu0 0.0
    %7500 = vmatprep.subr.mxu0 0.0
    %7501 = vmatpush1.msra.mxu0 0.0
    %7502 = vmatprep.subr.mxu0 0.0
    %7503 = vmatpush1.msra.mxu0 0.0
    %7504 = vmatprep.subr.mxu0 0.0
    %7505 = vmatpush1.msra.mxu0 0.0
    %7506 = vmatprep.subr.mxu0 0.0
    %7507 = vmatpush1.msra.mxu0 0.0
    %7508 = vmatprep.subr.mxu0 0.0
    %7509 = vmatpush1.msra.mxu0 0.0
    %7510 = vmatprep.subr.mxu0 0.0
    %7511 = vmatpush1.msra.mxu0 0.0
    %7512 = vmatprep.subr.mxu0 0.0
    %7513 = vmatpush1.msra.mxu0 0.0
    %7514 = vmatprep.subr.mxu0 0.0
    %7515 = vmatpush1.msra.mxu0 %v7477
    %7516 = vmatprep.subr.mxu0 0.0
    %7517 = vmatpush1.msra.mxu0 %v7475
    %7518 = vmatprep.subr.mxu0 0.0
    %7519 = vmatpush2.msra.mxu0 0.0
    %7520 = vmatprep.subr.mxu0 0.0
    %7521 = vmatpush2.msra.mxu0 0.0
    %7522 = vmatprep.subr.mxu0 0.0
    %7523 = vmatpush2.msra.mxu0 0.0
    %7524 = vmatprep.subr.mxu0 0.0
    %7525 = vmatpush2.msra.mxu0 0.0
    %7526 = vmatprep.subr.mxu0 0.0
    %7527 = vmatpush2.msra.mxu0 0.0
    %7528 = vmatprep.subr.mxu0 0.0
    %7529 = vmatpush2.msra.mxu0 0.0
    %7530 = vmatprep.subr.mxu0 0.0
    %7531 = vmatpush2.msra.mxu0 0.0
    %7532 = vmatprep.subr.mxu0 0.0
    %7533 = vmatpush2.msra.mxu0 0.0
    %7534 = vmatprep.subr.mxu0 0.0
    %7535 = vmatpush2.msra.mxu0 0.0
    %7536 = vmatprep.subr.mxu0 0.0
    %7537 = vmatpush2.msra.mxu0 0.0
    %7538 = vmatprep.subr.mxu0 0.0
    %7539 = vmatpush2.msra.mxu0 0.0
    %7540 = vmatprep.subr.mxu0 0.0
    %7541 = vmatpush2.msra.mxu0 0.0
    %7542 = vmatprep.subr.mxu0 0.0
    %7543 = vmatpush2.msra.mxu0 0.0
    %7544 = vmatprep.subr.mxu0 0.0
    %7545 = vmatpush2.msra.mxu0 0.0
    %7546 = vmatprep.subr.mxu0 0.0
    %7547 = vmatpush2.msra.mxu0 0.0
    %7548 = vmatprep.subr.mxu0 0.0
    %7549 = vmatpush2.msra.mxu0 0.0
    %7550 = vmatprep.mubr.f32.mxu0 0.0
    %7551 = vmatmul.mubr.f32.gmra.mxu0 %v7481
    %v7552 = vpop.f32.mrf.mxu0
    %v7553 = vadd.f32 0.0, %v7552
    %v7554 = vpop.f32.mrf.mxu0
    %7555 = vmatprep.mubr.f32.mxu0 0.0
    %7556 = vmatmul.mubr.f32.gmra.mxu0 %v7484
    %v7557 = vpop.f32.mrf.mxu0
    %v7558 = vadd.f32 0.0, %v7557
    %v7559 = vpop.f32.mrf.mxu0
    %7560 = vdwg.mxu0
    %7561 = vrot.lane.b32.xlu0 %v7264, 120
    %v7562 = vpop.permute.xlu0 %7561
    %7563 = vrot.lane.b32.xlu0 %v7269, 120
    %v7564 = vpop.permute.xlu0 %7563
    %7565 = vrot.lane.b32.xlu0 %v7352, 120
    %v7566 = vpop.permute.xlu0 %7565
    %7567 = vrot.lane.b32.xlu0 %v7357, 120
    %v7568 = vpop.permute.xlu0 %7567
    %v7569 = vsel %vm264, %v7562, 0
    %v7571 = vsel %vm264, %v7564, 0
    %v7573 = vsel %vm264, %v7566, 0
    %v7575 = vsel %vm264, %v7568, 0
    %7577 = vmatprep.subr.mxu0 0.0
    %7578 = vmatpush1.xpose.msra.mxu0 0.0
    %7579 = vmatprep.subr.mxu0 0.0
    %7580 = vmatpush1.xpose.msra.mxu0 0.0
    %7581 = vmatprep.subr.mxu0 0.0
    %7582 = vmatpush1.xpose.msra.mxu0 0.0
    %7583 = vmatprep.subr.mxu0 0.0
    %7584 = vmatpush1.xpose.msra.mxu0 0.0
    %7585 = vmatprep.subr.mxu0 0.0
    %7586 = vmatpush1.xpose.msra.mxu0 0.0
    %7587 = vmatprep.subr.mxu0 0.0
    %7588 = vmatpush1.xpose.msra.mxu0 0.0
    %7589 = vmatprep.subr.mxu0 0.0
    %7590 = vmatpush1.xpose.msra.mxu0 0.0
    %7591 = vmatprep.subr.mxu0 0.0
    %7592 = vmatpush1.xpose.msra.mxu0 0.0
    %7593 = vmatprep.subr.mxu0 0.0
    %7594 = vmatpush1.xpose.msra.mxu0 0.0
    %7595 = vmatprep.subr.mxu0 0.0
    %7596 = vmatpush1.xpose.msra.mxu0 0.0
    %7597 = vmatprep.subr.mxu0 0.0
    %7598 = vmatpush1.xpose.msra.mxu0 0.0
    %7599 = vmatprep.subr.mxu0 0.0
    %7600 = vmatpush1.xpose.msra.mxu0 0.0
    %7601 = vmatprep.subr.mxu0 0.0
    %7602 = vmatpush1.xpose.msra.mxu0 0.0
    %7603 = vmatprep.subr.mxu0 0.0
    %7604 = vmatpush1.xpose.msra.mxu0 0.0
    %7605 = vmatprep.subr.mxu0 0.0
    %7606 = vmatpush1.xpose.msra.mxu0 %v7575
    %7607 = vmatprep.subr.mxu0 0.0
    %7608 = vmatpush1.xpose.msra.mxu0 %v7573
    %7609 = vmatprep.subr.mxu0 0.0
    %7610 = vmatpush2.xpose.msra.mxu0 0.0
    %7611 = vmatprep.subr.mxu0 0.0
    %7612 = vmatpush2.xpose.msra.mxu0 0.0
    %7613 = vmatprep.subr.mxu0 0.0
    %7614 = vmatpush2.xpose.msra.mxu0 0.0
    %7615 = vmatprep.subr.mxu0 0.0
    %7616 = vmatpush2.xpose.msra.mxu0 0.0
    %7617 = vmatprep.subr.mxu0 0.0
    %7618 = vmatpush2.xpose.msra.mxu0 0.0
    %7619 = vmatprep.subr.mxu0 0.0
    %7620 = vmatpush2.xpose.msra.mxu0 0.0
    %7621 = vmatprep.subr.mxu0 0.0
    %7622 = vmatpush2.xpose.msra.mxu0 0.0
    %7623 = vmatprep.subr.mxu0 0.0
    %7624 = vmatpush2.xpose.msra.mxu0 0.0
    %7625 = vmatprep.subr.mxu0 0.0
    %7626 = vmatpush2.xpose.msra.mxu0 0.0
    %7627 = vmatprep.subr.mxu0 0.0
    %7628 = vmatpush2.xpose.msra.mxu0 0.0
    %7629 = vmatprep.subr.mxu0 0.0
    %7630 = vmatpush2.xpose.msra.mxu0 0.0
    %7631 = vmatprep.subr.mxu0 0.0
    %7632 = vmatpush2.xpose.msra.mxu0 0.0
    %7633 = vmatprep.subr.mxu0 0.0
    %7634 = vmatpush2.xpose.msra.mxu0 0.0
    %7635 = vmatprep.subr.mxu0 0.0
    %7636 = vmatpush2.xpose.msra.mxu0 0.0
    %7637 = vmatprep.subr.mxu0 0.0
    %7638 = vmatpush2.xpose.msra.mxu0 0.0
    %7639 = vmatprep.subr.mxu0 0.0
    %7640 = vmatpush2.xpose.msra.mxu0 0.0
    %7641 = vmatprep.mubr.f32.mxu0 0.0
    %7642 = vmatmul.mubr.f32.gmra.mxu0 %v7569
    %v7643 = vpop.f32.mrf.mxu0
    %v7644 = vadd.f32 %v137, %v7643
    %v7645 = vpop.f32.mrf.mxu0
    %7646 = vmatprep.mubr.f32.mxu0 0.0
    %7647 = vmatmul.mubr.f32.gmra.mxu0 %v7571
    %v7648 = vpop.f32.mrf.mxu0
    %v7649 = vadd.f32 %v138, %v7648
    %v7650 = vpop.f32.mrf.mxu0
    %7651 = vdwg.mxu0
    %v7652 = vsel %vm348, %v7644, -inf
    %7653 = vmax.xlane.f32.xlu0 %v7652
    %v7654 = vpop.xlane.xlu0 %7653
    %v7655 = vsel %vm348, %v7649, -inf
    %7656 = vmax.xlane.f32.xlu0 %v7655
    %v7657 = vpop.xlane.xlu0 %7656
    %v7658 = vsub.f32 %v7644, %v7654
    %v7659 = vsub.f32 %v7649, %v7657
    %v7660 = vmul.f32 %v7658, 1.442695
    %v7661 = vpow.pop %v7660
    %v7662 = vmul.f32 %v7659, 1.442695
    %v7663 = vpow.pop %v7662
    %v7664 = vsel %vm348, %v7661, 0.0
    %7665 = vadd.xlane.f32.xlu0 %v7664
    %v7666 = vpop.xlane.xlu0 %7665
    %v7667 = vsel %vm348, %v7663, 0.0
    %7668 = vadd.xlane.f32.xlu0 %v7667
    %v7669 = vpop.xlane.xlu0 %7668
    %v7670 = vrcp.pop %v7666
    %v7671 = vrcp.pop %v7669
    %v7672 = vmul.f32 %v7661, %v7670
    %v7673 = vmul.f32 %v7663, %v7671
    %7674 = vrot.lane.b32.xlu0 %v7352, 88
    %v7675 = vpop.permute.xlu0 %7674
    %7676 = vrot.lane.b32.xlu0 %v7357, 88
    %v7677 = vpop.permute.xlu0 %7676
    %v7681 = vsel %vm348, %v7672, 0
    %v7684 = vsel %vm348, %v7673, 0
    %7686 = vmatprep.subr.mxu0 0.0
    %7687 = vmatpush1.msra.mxu0 0.0
    %7688 = vmatprep.subr.mxu0 0.0
    %7689 = vmatpush1.msra.mxu0 0.0
    %7690 = vmatprep.subr.mxu0 0.0
    %7691 = vmatpush1.msra.mxu0 0.0
    %7692 = vmatprep.subr.mxu0 0.0
    %7693 = vmatpush1.msra.mxu0 0.0
    %7694 = vmatprep.subr.mxu0 0.0
    %7695 = vmatpush1.msra.mxu0 0.0
    %7696 = vmatprep.subr.mxu0 0.0
    %7697 = vmatpush1.msra.mxu0 0.0
    %7698 = vmatprep.subr.mxu0 0.0
    %7699 = vmatpush1.msra.mxu0 0.0
    %7700 = vmatprep.subr.mxu0 0.0
    %7701 = vmatpush1.msra.mxu0 0.0
    %7702 = vmatprep.subr.mxu0 0.0
    %7703 = vmatpush1.msra.mxu0 0.0
    %7704 = vmatprep.subr.mxu0 0.0
    %7705 = vmatpush1.msra.mxu0 0.0
    %7706 = vmatprep.subr.mxu0 0.0
    %7707 = vmatpush1.msra.mxu0 0.0
    %7708 = vmatprep.subr.mxu0 0.0
    %7709 = vmatpush1.msra.mxu0 0.0
    %7710 = vmatprep.subr.mxu0 0.0
    %7711 = vmatpush1.msra.mxu0 0.0
    %7712 = vmatprep.subr.mxu0 0.0
    %7713 = vmatpush1.msra.mxu0 0.0
    %7714 = vmatprep.subr.mxu0 0.0
    %7715 = vmatpush1.msra.mxu0 %v7677
    %7716 = vmatprep.subr.mxu0 0.0
    %7717 = vmatpush1.msra.mxu0 %v7675
    %7718 = vmatprep.subr.mxu0 0.0
    %7719 = vmatpush2.msra.mxu0 0.0
    %7720 = vmatprep.subr.mxu0 0.0
    %7721 = vmatpush2.msra.mxu0 0.0
    %7722 = vmatprep.subr.mxu0 0.0
    %7723 = vmatpush2.msra.mxu0 0.0
    %7724 = vmatprep.subr.mxu0 0.0
    %7725 = vmatpush2.msra.mxu0 0.0
    %7726 = vmatprep.subr.mxu0 0.0
    %7727 = vmatpush2.msra.mxu0 0.0
    %7728 = vmatprep.subr.mxu0 0.0
    %7729 = vmatpush2.msra.mxu0 0.0
    %7730 = vmatprep.subr.mxu0 0.0
    %7731 = vmatpush2.msra.mxu0 0.0
    %7732 = vmatprep.subr.mxu0 0.0
    %7733 = vmatpush2.msra.mxu0 0.0
    %7734 = vmatprep.subr.mxu0 0.0
    %7735 = vmatpush2.msra.mxu0 0.0
    %7736 = vmatprep.subr.mxu0 0.0
    %7737 = vmatpush2.msra.mxu0 0.0
    %7738 = vmatprep.subr.mxu0 0.0
    %7739 = vmatpush2.msra.mxu0 0.0
    %7740 = vmatprep.subr.mxu0 0.0
    %7741 = vmatpush2.msra.mxu0 0.0
    %7742 = vmatprep.subr.mxu0 0.0
    %7743 = vmatpush2.msra.mxu0 0.0
    %7744 = vmatprep.subr.mxu0 0.0
    %7745 = vmatpush2.msra.mxu0 0.0
    %7746 = vmatprep.subr.mxu0 0.0
    %7747 = vmatpush2.msra.mxu0 0.0
    %7748 = vmatprep.subr.mxu0 0.0
    %7749 = vmatpush2.msra.mxu0 0.0
    %7750 = vmatprep.mubr.f32.mxu0 0.0
    %7751 = vmatmul.mubr.f32.gmra.mxu0 %v7681
    %v7752 = vpop.f32.mrf.mxu0
    %v7753 = vadd.f32 0.0, %v7752
    %v7754 = vpop.f32.mrf.mxu0
    %7755 = vmatprep.mubr.f32.mxu0 0.0
    %7756 = vmatmul.mubr.f32.gmra.mxu0 %v7684
    %v7757 = vpop.f32.mrf.mxu0
    %v7758 = vadd.f32 0.0, %v7757
    %v7759 = vpop.f32.mrf.mxu0
    %7760 = vdwg.mxu0
    %v7762 = vsel %vm264, %v7753, 0
    %v7765 = vsel %vm264, %v7758, 0
    %7767 = vmatprep.subr.mxu0 0.0
    %7768 = vmatpush1.msra.mxu0 0.0
    %7769 = vmatprep.subr.mxu0 0.0
    %7770 = vmatpush1.msra.mxu0 0.0
    %7771 = vmatprep.subr.mxu0 0.0
    %7772 = vmatpush1.msra.mxu0 0.0
    %7773 = vmatprep.subr.mxu0 0.0
    %7774 = vmatpush1.msra.mxu0 0.0
    %7775 = vmatprep.subr.mxu0 0.0
    %7776 = vmatpush1.msra.mxu0 0.0
    %7777 = vmatprep.subr.mxu0 0.0
    %7778 = vmatpush1.msra.mxu0 0.0
    %7779 = vmatprep.subr.mxu0 0.0
    %7780 = vmatpush1.msra.mxu0 0.0
    %7781 = vmatprep.subr.mxu0 0.0
    %7782 = vmatpush1.msra.mxu0 0.0
    %7783 = vmatprep.subr.mxu0 0.0
    %7784 = vmatpush1.msra.mxu0 0.0
    %7785 = vmatprep.subr.mxu0 0.0
    %7786 = vmatpush1.msra.mxu0 0.0
    %7787 = vmatprep.subr.mxu0 0.0
    %7788 = vmatpush1.msra.mxu0 0.0
    %7789 = vmatprep.subr.mxu0 0.0
    %7790 = vmatpush1.msra.mxu0 0.0
    %7791 = vmatprep.subr.mxu0 0.0
    %7792 = vmatpush1.msra.mxu0 0.0
    %7793 = vmatprep.subr.mxu0 0.0
    %7794 = vmatpush1.msra.mxu0 0.0
    %7795 = vmatprep.subr.mxu0 0.0
    %7796 = vmatpush1.msra.mxu0 0.0
    %7797 = vmatprep.subr.mxu0 0.0
    %7798 = vmatpush1.msra.mxu0 %v7362
    %7799 = vmatprep.subr.mxu0 0.0
    %7800 = vmatpush2.msra.mxu0 0.0
    %7801 = vmatprep.subr.mxu0 0.0
    %7802 = vmatpush2.msra.mxu0 0.0
    %7803 = vmatprep.subr.mxu0 0.0
    %7804 = vmatpush2.msra.mxu0 0.0
    %7805 = vmatprep.subr.mxu0 0.0
    %7806 = vmatpush2.msra.mxu0 0.0
    %7807 = vmatprep.subr.mxu0 0.0
    %7808 = vmatpush2.msra.mxu0 0.0
    %7809 = vmatprep.subr.mxu0 0.0
    %7810 = vmatpush2.msra.mxu0 0.0
    %7811 = vmatprep.subr.mxu0 0.0
    %7812 = vmatpush2.msra.mxu0 0.0
    %7813 = vmatprep.subr.mxu0 0.0
    %7814 = vmatpush2.msra.mxu0 0.0
    %7815 = vmatprep.subr.mxu0 0.0
    %7816 = vmatpush2.msra.mxu0 0.0
    %7817 = vmatprep.subr.mxu0 0.0
    %7818 = vmatpush2.msra.mxu0 0.0
    %7819 = vmatprep.subr.mxu0 0.0
    %7820 = vmatpush2.msra.mxu0 0.0
    %7821 = vmatprep.subr.mxu0 0.0
    %7822 = vmatpush2.msra.mxu0 0.0
    %7823 = vmatprep.subr.mxu0 0.0
    %7824 = vmatpush2.msra.mxu0 0.0
    %7825 = vmatprep.subr.mxu0 0.0
    %7826 = vmatpush2.msra.mxu0 0.0
    %7827 = vmatprep.subr.mxu0 0.0
    %7828 = vmatpush2.msra.mxu0 0.0
    %7829 = vmatprep.subr.mxu0 0.0
    %7830 = vmatpush2.msra.mxu0 0.0
    %7831 = vmatprep.mubr.f32.mxu0 0.0
    %7832 = vmatmul.mubr.f32.gmra.mxu0 %v7762
    %v7833 = vpop.f32.mrf.mxu0
    %v7834 = vadd.f32 0.0, %v7833
    %v7835 = vpop.f32.mrf.mxu0
    %7836 = vmatprep.mubr.f32.mxu0 0.0
    %7837 = vmatmul.mubr.f32.gmra.mxu0 %v7765
    %v7838 = vpop.f32.mrf.mxu0
    %v7839 = vadd.f32 0.0, %v7838
    %v7840 = vpop.f32.mrf.mxu0
    %7841 = vdwg.mxu0
    %v7843 = vsel %vm264, %v7553, 0
    %v7846 = vsel %vm264, %v7558, 0
    %7848 = vmatprep.subr.mxu0 0.0
    %7849 = vmatpush1.msra.mxu0 0.0
    %7850 = vmatprep.subr.mxu0 0.0
    %7851 = vmatpush1.msra.mxu0 0.0
    %7852 = vmatprep.subr.mxu0 0.0
    %7853 = vmatpush1.msra.mxu0 0.0
    %7854 = vmatprep.subr.mxu0 0.0
    %7855 = vmatpush1.msra.mxu0 0.0
    %7856 = vmatprep.subr.mxu0 0.0
    %7857 = vmatpush1.msra.mxu0 0.0
    %7858 = vmatprep.subr.mxu0 0.0
    %7859 = vmatpush1.msra.mxu0 0.0
    %7860 = vmatprep.subr.mxu0 0.0
    %7861 = vmatpush1.msra.mxu0 0.0
    %7862 = vmatprep.subr.mxu0 0.0
    %7863 = vmatpush1.msra.mxu0 0.0
    %7864 = vmatprep.subr.mxu0 0.0
    %7865 = vmatpush1.msra.mxu0 0.0
    %7866 = vmatprep.subr.mxu0 0.0
    %7867 = vmatpush1.msra.mxu0 0.0
    %7868 = vmatprep.subr.mxu0 0.0
    %7869 = vmatpush1.msra.mxu0 0.0
    %7870 = vmatprep.subr.mxu0 0.0
    %7871 = vmatpush1.msra.mxu0 0.0
    %7872 = vmatprep.subr.mxu0 0.0
    %7873 = vmatpush1.msra.mxu0 0.0
    %7874 = vmatprep.subr.mxu0 0.0
    %7875 = vmatpush1.msra.mxu0 0.0
    %7876 = vmatprep.subr.mxu0 0.0
    %7877 = vmatpush1.msra.mxu0 0.0
    %7878 = vmatprep.subr.mxu0 0.0
    %7879 = vmatpush1.msra.mxu0 %v7361
    %7880 = vmatprep.subr.mxu0 0.0
    %7881 = vmatpush2.msra.mxu0 0.0
    %7882 = vmatprep.subr.mxu0 0.0
    %7883 = vmatpush2.msra.mxu0 0.0
    %7884 = vmatprep.subr.mxu0 0.0
    %7885 = vmatpush2.msra.mxu0 0.0
    %7886 = vmatprep.subr.mxu0 0.0
    %7887 = vmatpush2.msra.mxu0 0.0
    %7888 = vmatprep.subr.mxu0 0.0
    %7889 = vmatpush2.msra.mxu0 0.0
    %7890 = vmatprep.subr.mxu0 0.0
    %7891 = vmatpush2.msra.mxu0 0.0
    %7892 = vmatprep.subr.mxu0 0.0
    %7893 = vmatpush2.msra.mxu0 0.0
    %7894 = vmatprep.subr.mxu0 0.0
    %7895 = vmatpush2.msra.mxu0 0.0
    %7896 = vmatprep.subr.mxu0 0.0
    %7897 = vmatpush2.msra.mxu0 0.0
    %7898 = vmatprep.subr.mxu0 0.0
    %7899 = vmatpush2.msra.mxu0 0.0
    %7900 = vmatprep.subr.mxu0 0.0
    %7901 = vmatpush2.msra.mxu0 0.0
    %7902 = vmatprep.subr.mxu0 0.0
    %7903 = vmatpush2.msra.mxu0 0.0
    %7904 = vmatprep.subr.mxu0 0.0
    %7905 = vmatpush2.msra.mxu0 0.0
    %7906 = vmatprep.subr.mxu0 0.0
    %7907 = vmatpush2.msra.mxu0 0.0
    %7908 = vmatprep.subr.mxu0 0.0
    %7909 = vmatpush2.msra.mxu0 0.0
    %7910 = vmatprep.subr.mxu0 0.0
    %7911 = vmatpush2.msra.mxu0 0.0
    %7912 = vmatprep.mubr.f32.mxu0 0.0
    %7913 = vmatmul.mubr.f32.gmra.mxu0 %v7843
    %v7914 = vpop.f32.mrf.mxu0
    %v7915 = vadd.f32 %v7834, %v7914
    %v7916 = vpop.f32.mrf.mxu0
    %7917 = vmatprep.mubr.f32.mxu0 0.0
    %7918 = vmatmul.mubr.f32.gmra.mxu0 %v7846
    %v7919 = vpop.f32.mrf.mxu0
    %v7920 = vadd.f32 %v7839, %v7919
    %v7921 = vpop.f32.mrf.mxu0
    %7922 = vdwg.mxu0
    %7923 = vrot.lane.b32.xlu0 %v7264, 112
    %v7924 = vpop.permute.xlu0 %7923
    %7925 = vrot.lane.b32.xlu0 %v7269, 112
    %v7926 = vpop.permute.xlu0 %7925
    %7927 = vrot.lane.b32.xlu0 %v7352, 112
    %v7928 = vpop.permute.xlu0 %7927
    %7929 = vrot.lane.b32.xlu0 %v7357, 112
    %v7930 = vpop.permute.xlu0 %7929
    %v7931 = vsel %vm264, %v7924, 0
    %v7933 = vsel %vm264, %v7926, 0
    %v7935 = vsel %vm264, %v7928, 0
    %v7937 = vsel %vm264, %v7930, 0
    %7939 = vmatprep.subr.mxu0 0.0
    %7940 = vmatpush1.xpose.msra.mxu0 0.0
    %7941 = vmatprep.subr.mxu0 0.0
    %7942 = vmatpush1.xpose.msra.mxu0 0.0
    %7943 = vmatprep.subr.mxu0 0.0
    %7944 = vmatpush1.xpose.msra.mxu0 0.0
    %7945 = vmatprep.subr.mxu0 0.0
    %7946 = vmatpush1.xpose.msra.mxu0 0.0
    %7947 = vmatprep.subr.mxu0 0.0
    %7948 = vmatpush1.xpose.msra.mxu0 0.0
    %7949 = vmatprep.subr.mxu0 0.0
    %7950 = vmatpush1.xpose.msra.mxu0 0.0
    %7951 = vmatprep.subr.mxu0 0.0
    %7952 = vmatpush1.xpose.msra.mxu0 0.0
    %7953 = vmatprep.subr.mxu0 0.0
    %7954 = vmatpush1.xpose.msra.mxu0 0.0
    %7955 = vmatprep.subr.mxu0 0.0
    %7956 = vmatpush1.xpose.msra.mxu0 0.0
    %7957 = vmatprep.subr.mxu0 0.0
    %7958 = vmatpush1.xpose.msra.mxu0 0.0
    %7959 = vmatprep.subr.mxu0 0.0
    %7960 = vmatpush1.xpose.msra.mxu0 0.0
    %7961 = vmatprep.subr.mxu0 0.0
    %7962 = vmatpush1.xpose.msra.mxu0 0.0
    %7963 = vmatprep.subr.mxu0 0.0
    %7964 = vmatpush1.xpose.msra.mxu0 0.0
    %7965 = vmatprep.subr.mxu0 0.0
    %7966 = vmatpush1.xpose.msra.mxu0 0.0
    %7967 = vmatprep.subr.mxu0 0.0
    %7968 = vmatpush1.xpose.msra.mxu0 %v7937
    %7969 = vmatprep.subr.mxu0 0.0
    %7970 = vmatpush1.xpose.msra.mxu0 %v7935
    %7971 = vmatprep.subr.mxu0 0.0
    %7972 = vmatpush2.xpose.msra.mxu0 0.0
    %7973 = vmatprep.subr.mxu0 0.0
    %7974 = vmatpush2.xpose.msra.mxu0 0.0
    %7975 = vmatprep.subr.mxu0 0.0
    %7976 = vmatpush2.xpose.msra.mxu0 0.0
    %7977 = vmatprep.subr.mxu0 0.0
    %7978 = vmatpush2.xpose.msra.mxu0 0.0
    %7979 = vmatprep.subr.mxu0 0.0
    %7980 = vmatpush2.xpose.msra.mxu0 0.0
    %7981 = vmatprep.subr.mxu0 0.0
    %7982 = vmatpush2.xpose.msra.mxu0 0.0
    %7983 = vmatprep.subr.mxu0 0.0
    %7984 = vmatpush2.xpose.msra.mxu0 0.0
    %7985 = vmatprep.subr.mxu0 0.0
    %7986 = vmatpush2.xpose.msra.mxu0 0.0
    %7987 = vmatprep.subr.mxu0 0.0
    %7988 = vmatpush2.xpose.msra.mxu0 0.0
    %7989 = vmatprep.subr.mxu0 0.0
    %7990 = vmatpush2.xpose.msra.mxu0 0.0
    %7991 = vmatprep.subr.mxu0 0.0
    %7992 = vmatpush2.xpose.msra.mxu0 0.0
    %7993 = vmatprep.subr.mxu0 0.0
    %7994 = vmatpush2.xpose.msra.mxu0 0.0
    %7995 = vmatprep.subr.mxu0 0.0
    %7996 = vmatpush2.xpose.msra.mxu0 0.0
    %7997 = vmatprep.subr.mxu0 0.0
    %7998 = vmatpush2.xpose.msra.mxu0 0.0
    %7999 = vmatprep.subr.mxu0 0.0
    %8000 = vmatpush2.xpose.msra.mxu0 0.0
    %8001 = vmatprep.subr.mxu0 0.0
    %8002 = vmatpush2.xpose.msra.mxu0 0.0
    %8003 = vmatprep.mubr.f32.mxu0 0.0
    %8004 = vmatmul.mubr.f32.gmra.mxu0 %v7931
    %v8005 = vpop.f32.mrf.mxu0
    %v8006 = vadd.f32 %v137, %v8005
    %v8007 = vpop.f32.mrf.mxu0
    %8008 = vmatprep.mubr.f32.mxu0 0.0
    %8009 = vmatmul.mubr.f32.gmra.mxu0 %v7933
    %v8010 = vpop.f32.mrf.mxu0
    %v8011 = vadd.f32 %v138, %v8010
    %v8012 = vpop.f32.mrf.mxu0
    %8013 = vdwg.mxu0
    %v8014 = vsel %vm348, %v8006, -inf
    %8015 = vmax.xlane.f32.xlu0 %v8014
    %v8016 = vpop.xlane.xlu0 %8015
    %v8017 = vsel %vm348, %v8011, -inf
    %8018 = vmax.xlane.f32.xlu0 %v8017
    %v8019 = vpop.xlane.xlu0 %8018
    %v8020 = vsub.f32 %v8006, %v8016
    %v8021 = vsub.f32 %v8011, %v8019
    %v8022 = vmul.f32 %v8020, 1.442695
    %v8023 = vpow.pop %v8022
    %v8024 = vmul.f32 %v8021, 1.442695
    %v8025 = vpow.pop %v8024
    %v8026 = vsel %vm348, %v8023, 0.0
    %8027 = vadd.xlane.f32.xlu0 %v8026
    %v8028 = vpop.xlane.xlu0 %8027
    %v8029 = vsel %vm348, %v8025, 0.0
    %8030 = vadd.xlane.f32.xlu0 %v8029
    %v8031 = vpop.xlane.xlu0 %8030
    %v8032 = vrcp.pop %v8028
    %v8033 = vrcp.pop %v8031
    %v8034 = vmul.f32 %v8023, %v8032
    %v8035 = vmul.f32 %v8025, %v8033
    %8036 = vrot.lane.b32.xlu0 %v7352, 80
    %v8037 = vpop.permute.xlu0 %8036
    %8038 = vrot.lane.b32.xlu0 %v7357, 80
    %v8039 = vpop.permute.xlu0 %8038
    %v8043 = vsel %vm348, %v8034, 0
    %v8046 = vsel %vm348, %v8035, 0
    %8048 = vmatprep.subr.mxu0 0.0
    %8049 = vmatpush1.msra.mxu0 0.0
    %8050 = vmatprep.subr.mxu0 0.0
    %8051 = vmatpush1.msra.mxu0 0.0
    %8052 = vmatprep.subr.mxu0 0.0
    %8053 = vmatpush1.msra.mxu0 0.0
    %8054 = vmatprep.subr.mxu0 0.0
    %8055 = vmatpush1.msra.mxu0 0.0
    %8056 = vmatprep.subr.mxu0 0.0
    %8057 = vmatpush1.msra.mxu0 0.0
    %8058 = vmatprep.subr.mxu0 0.0
    %8059 = vmatpush1.msra.mxu0 0.0
    %8060 = vmatprep.subr.mxu0 0.0
    %8061 = vmatpush1.msra.mxu0 0.0
    %8062 = vmatprep.subr.mxu0 0.0
    %8063 = vmatpush1.msra.mxu0 0.0
    %8064 = vmatprep.subr.mxu0 0.0
    %8065 = vmatpush1.msra.mxu0 0.0
    %8066 = vmatprep.subr.mxu0 0.0
    %8067 = vmatpush1.msra.mxu0 0.0
    %8068 = vmatprep.subr.mxu0 0.0
    %8069 = vmatpush1.msra.mxu0 0.0
    %8070 = vmatprep.subr.mxu0 0.0
    %8071 = vmatpush1.msra.mxu0 0.0
    %8072 = vmatprep.subr.mxu0 0.0
    %8073 = vmatpush1.msra.mxu0 0.0
    %8074 = vmatprep.subr.mxu0 0.0
    %8075 = vmatpush1.msra.mxu0 0.0
    %8076 = vmatprep.subr.mxu0 0.0
    %8077 = vmatpush1.msra.mxu0 %v8039
    %8078 = vmatprep.subr.mxu0 0.0
    %8079 = vmatpush1.msra.mxu0 %v8037
    %8080 = vmatprep.subr.mxu0 0.0
    %8081 = vmatpush2.msra.mxu0 0.0
    %8082 = vmatprep.subr.mxu0 0.0
    %8083 = vmatpush2.msra.mxu0 0.0
    %8084 = vmatprep.subr.mxu0 0.0
    %8085 = vmatpush2.msra.mxu0 0.0
    %8086 = vmatprep.subr.mxu0 0.0
    %8087 = vmatpush2.msra.mxu0 0.0
    %8088 = vmatprep.subr.mxu0 0.0
    %8089 = vmatpush2.msra.mxu0 0.0
    %8090 = vmatprep.subr.mxu0 0.0
    %8091 = vmatpush2.msra.mxu0 0.0
    %8092 = vmatprep.subr.mxu0 0.0
    %8093 = vmatpush2.msra.mxu0 0.0
    %8094 = vmatprep.subr.mxu0 0.0
    %8095 = vmatpush2.msra.mxu0 0.0
    %8096 = vmatprep.subr.mxu0 0.0
    %8097 = vmatpush2.msra.mxu0 0.0
    %8098 = vmatprep.subr.mxu0 0.0
    %8099 = vmatpush2.msra.mxu0 0.0
    %8100 = vmatprep.subr.mxu0 0.0
    %8101 = vmatpush2.msra.mxu0 0.0
    %8102 = vmatprep.subr.mxu0 0.0
    %8103 = vmatpush2.msra.mxu0 0.0
    %8104 = vmatprep.subr.mxu0 0.0
    %8105 = vmatpush2.msra.mxu0 0.0
    %8106 = vmatprep.subr.mxu0 0.0
    %8107 = vmatpush2.msra.mxu0 0.0
    %8108 = vmatprep.subr.mxu0 0.0
    %8109 = vmatpush2.msra.mxu0 0.0
    %8110 = vmatprep.subr.mxu0 0.0
    %8111 = vmatpush2.msra.mxu0 0.0
    %8112 = vmatprep.mubr.f32.mxu0 0.0
    %8113 = vmatmul.mubr.f32.gmra.mxu0 %v8043
    %v8114 = vpop.f32.mrf.mxu0
    %v8115 = vadd.f32 0.0, %v8114
    %v8116 = vpop.f32.mrf.mxu0
    %8117 = vmatprep.mubr.f32.mxu0 0.0
    %8118 = vmatmul.mubr.f32.gmra.mxu0 %v8046
    %v8119 = vpop.f32.mrf.mxu0
    %v8120 = vadd.f32 0.0, %v8119
    %v8121 = vpop.f32.mrf.mxu0
    %8122 = vdwg.mxu0
    %v8124 = vsel %vm264, %v8115, 0
    %v8127 = vsel %vm264, %v8120, 0
    %8129 = vmatprep.subr.mxu0 0.0
    %8130 = vmatpush1.msra.mxu0 0.0
    %8131 = vmatprep.subr.mxu0 0.0
    %8132 = vmatpush1.msra.mxu0 0.0
    %8133 = vmatprep.subr.mxu0 0.0
    %8134 = vmatpush1.msra.mxu0 0.0
    %8135 = vmatprep.subr.mxu0 0.0
    %8136 = vmatpush1.msra.mxu0 0.0
    %8137 = vmatprep.subr.mxu0 0.0
    %8138 = vmatpush1.msra.mxu0 0.0
    %8139 = vmatprep.subr.mxu0 0.0
    %8140 = vmatpush1.msra.mxu0 0.0
    %8141 = vmatprep.subr.mxu0 0.0
    %8142 = vmatpush1.msra.mxu0 0.0
    %8143 = vmatprep.subr.mxu0 0.0
    %8144 = vmatpush1.msra.mxu0 0.0
    %8145 = vmatprep.subr.mxu0 0.0
    %8146 = vmatpush1.msra.mxu0 0.0
    %8147 = vmatprep.subr.mxu0 0.0
    %8148 = vmatpush1.msra.mxu0 0.0
    %8149 = vmatprep.subr.mxu0 0.0
    %8150 = vmatpush1.msra.mxu0 0.0
    %8151 = vmatprep.subr.mxu0 0.0
    %8152 = vmatpush1.msra.mxu0 0.0
    %8153 = vmatprep.subr.mxu0 0.0
    %8154 = vmatpush1.msra.mxu0 0.0
    %8155 = vmatprep.subr.mxu0 0.0
    %8156 = vmatpush1.msra.mxu0 0.0
    %8157 = vmatprep.subr.mxu0 0.0
    %8158 = vmatpush1.msra.mxu0 0.0
    %8159 = vmatprep.subr.mxu0 0.0
    %8160 = vmatpush1.msra.mxu0 %v7363
    %8161 = vmatprep.subr.mxu0 0.0
    %8162 = vmatpush2.msra.mxu0 0.0
    %8163 = vmatprep.subr.mxu0 0.0
    %8164 = vmatpush2.msra.mxu0 0.0
    %8165 = vmatprep.subr.mxu0 0.0
    %8166 = vmatpush2.msra.mxu0 0.0
    %8167 = vmatprep.subr.mxu0 0.0
    %8168 = vmatpush2.msra.mxu0 0.0
    %8169 = vmatprep.subr.mxu0 0.0
    %8170 = vmatpush2.msra.mxu0 0.0
    %8171 = vmatprep.subr.mxu0 0.0
    %8172 = vmatpush2.msra.mxu0 0.0
    %8173 = vmatprep.subr.mxu0 0.0
    %8174 = vmatpush2.msra.mxu0 0.0
    %8175 = vmatprep.subr.mxu0 0.0
    %8176 = vmatpush2.msra.mxu0 0.0
    %8177 = vmatprep.subr.mxu0 0.0
    %8178 = vmatpush2.msra.mxu0 0.0
    %8179 = vmatprep.subr.mxu0 0.0
    %8180 = vmatpush2.msra.mxu0 0.0
    %8181 = vmatprep.subr.mxu0 0.0
    %8182 = vmatpush2.msra.mxu0 0.0
    %8183 = vmatprep.subr.mxu0 0.0
    %8184 = vmatpush2.msra.mxu0 0.0
    %8185 = vmatprep.subr.mxu0 0.0
    %8186 = vmatpush2.msra.mxu0 0.0
    %8187 = vmatprep.subr.mxu0 0.0
    %8188 = vmatpush2.msra.mxu0 0.0
    %8189 = vmatprep.subr.mxu0 0.0
    %8190 = vmatpush2.msra.mxu0 0.0
    %8191 = vmatprep.subr.mxu0 0.0
    %8192 = vmatpush2.msra.mxu0 0.0
    %8193 = vmatprep.mubr.f32.mxu0 0.0
    %8194 = vmatmul.mubr.f32.gmra.mxu0 %v8124
    %v8195 = vpop.f32.mrf.mxu0
    %v8196 = vadd.f32 0.0, %v8195
    %v8197 = vpop.f32.mrf.mxu0
    %8198 = vmatprep.mubr.f32.mxu0 0.0
    %8199 = vmatmul.mubr.f32.gmra.mxu0 %v8127
    %v8200 = vpop.f32.mrf.mxu0
    %v8201 = vadd.f32 0.0, %v8200
    %v8202 = vpop.f32.mrf.mxu0
    %8203 = vdwg.mxu0
    %v8204 = vadd.f32 %v7915, %v8196
    %v8205 = vadd.f32 %v7920, %v8201
    %8206 = vrot.lane.b32.xlu0 %v7264, 104
    %v8207 = vpop.permute.xlu0 %8206
    %8208 = vrot.lane.b32.xlu0 %v7269, 104
    %v8209 = vpop.permute.xlu0 %8208
    %8210 = vrot.lane.b32.xlu0 %v7352, 104
    %v8211 = vpop.permute.xlu0 %8210
    %8212 = vrot.lane.b32.xlu0 %v7357, 104
    %v8213 = vpop.permute.xlu0 %8212
    %v8214 = vsel %vm264, %v8207, 0
    %v8216 = vsel %vm264, %v8209, 0
    %v8218 = vsel %vm264, %v8211, 0
    %v8220 = vsel %vm264, %v8213, 0
    %8222 = vmatprep.subr.mxu0 0.0
    %8223 = vmatpush1.xpose.msra.mxu0 0.0
    %8224 = vmatprep.subr.mxu0 0.0
    %8225 = vmatpush1.xpose.msra.mxu0 0.0
    %8226 = vmatprep.subr.mxu0 0.0
    %8227 = vmatpush1.xpose.msra.mxu0 0.0
    %8228 = vmatprep.subr.mxu0 0.0
    %8229 = vmatpush1.xpose.msra.mxu0 0.0
    %8230 = vmatprep.subr.mxu0 0.0
    %8231 = vmatpush1.xpose.msra.mxu0 0.0
    %8232 = vmatprep.subr.mxu0 0.0
    %8233 = vmatpush1.xpose.msra.mxu0 0.0
    %8234 = vmatprep.subr.mxu0 0.0
    %8235 = vmatpush1.xpose.msra.mxu0 0.0
    %8236 = vmatprep.subr.mxu0 0.0
    %8237 = vmatpush1.xpose.msra.mxu0 0.0
    %8238 = vmatprep.subr.mxu0 0.0
    %8239 = vmatpush1.xpose.msra.mxu0 0.0
    %8240 = vmatprep.subr.mxu0 0.0
    %8241 = vmatpush1.xpose.msra.mxu0 0.0
    %8242 = vmatprep.subr.mxu0 0.0
    %8243 = vmatpush1.xpose.msra.mxu0 0.0
    %8244 = vmatprep.subr.mxu0 0.0
    %8245 = vmatpush1.xpose.msra.mxu0 0.0
    %8246 = vmatprep.subr.mxu0 0.0
    %8247 = vmatpush1.xpose.msra.mxu0 0.0
    %8248 = vmatprep.subr.mxu0 0.0
    %8249 = vmatpush1.xpose.msra.mxu0 0.0
    %8250 = vmatprep.subr.mxu0 0.0
    %8251 = vmatpush1.xpose.msra.mxu0 %v8220
    %8252 = vmatprep.subr.mxu0 0.0
    %8253 = vmatpush1.xpose.msra.mxu0 %v8218
    %8254 = vmatprep.subr.mxu0 0.0
    %8255 = vmatpush2.xpose.msra.mxu0 0.0
    %8256 = vmatprep.subr.mxu0 0.0
    %8257 = vmatpush2.xpose.msra.mxu0 0.0
    %8258 = vmatprep.subr.mxu0 0.0
    %8259 = vmatpush2.xpose.msra.mxu0 0.0
    %8260 = vmatprep.subr.mxu0 0.0
    %8261 = vmatpush2.xpose.msra.mxu0 0.0
    %8262 = vmatprep.subr.mxu0 0.0
    %8263 = vmatpush2.xpose.msra.mxu0 0.0
    %8264 = vmatprep.subr.mxu0 0.0
    %8265 = vmatpush2.xpose.msra.mxu0 0.0
    %8266 = vmatprep.subr.mxu0 0.0
    %8267 = vmatpush2.xpose.msra.mxu0 0.0
    %8268 = vmatprep.subr.mxu0 0.0
    %8269 = vmatpush2.xpose.msra.mxu0 0.0
    %8270 = vmatprep.subr.mxu0 0.0
    %8271 = vmatpush2.xpose.msra.mxu0 0.0
    %8272 = vmatprep.subr.mxu0 0.0
    %8273 = vmatpush2.xpose.msra.mxu0 0.0
    %8274 = vmatprep.subr.mxu0 0.0
    %8275 = vmatpush2.xpose.msra.mxu0 0.0
    %8276 = vmatprep.subr.mxu0 0.0
    %8277 = vmatpush2.xpose.msra.mxu0 0.0
    %8278 = vmatprep.subr.mxu0 0.0
    %8279 = vmatpush2.xpose.msra.mxu0 0.0
    %8280 = vmatprep.subr.mxu0 0.0
    %8281 = vmatpush2.xpose.msra.mxu0 0.0
    %8282 = vmatprep.subr.mxu0 0.0
    %8283 = vmatpush2.xpose.msra.mxu0 0.0
    %8284 = vmatprep.subr.mxu0 0.0
    %8285 = vmatpush2.xpose.msra.mxu0 0.0
    %8286 = vmatprep.mubr.f32.mxu0 0.0
    %8287 = vmatmul.mubr.f32.gmra.mxu0 %v8214
    %v8288 = vpop.f32.mrf.mxu0
    %v8289 = vadd.f32 %v137, %v8288
    %v8290 = vpop.f32.mrf.mxu0
    %8291 = vmatprep.mubr.f32.mxu0 0.0
    %8292 = vmatmul.mubr.f32.gmra.mxu0 %v8216
    %v8293 = vpop.f32.mrf.mxu0
    %v8294 = vadd.f32 %v138, %v8293
    %v8295 = vpop.f32.mrf.mxu0
    %8296 = vdwg.mxu0
    %v8297 = vsel %vm348, %v8289, -inf
    %8298 = vmax.xlane.f32.xlu0 %v8297
    %v8299 = vpop.xlane.xlu0 %8298
    %v8300 = vsel %vm348, %v8294, -inf
    %8301 = vmax.xlane.f32.xlu0 %v8300
    %v8302 = vpop.xlane.xlu0 %8301
    %v8303 = vsub.f32 %v8289, %v8299
    %v8304 = vsub.f32 %v8294, %v8302
    %v8305 = vmul.f32 %v8303, 1.442695
    %v8306 = vpow.pop %v8305
    %v8307 = vmul.f32 %v8304, 1.442695
    %v8308 = vpow.pop %v8307
    %v8309 = vsel %vm348, %v8306, 0.0
    %8310 = vadd.xlane.f32.xlu0 %v8309
    %v8311 = vpop.xlane.xlu0 %8310
    %v8312 = vsel %vm348, %v8308, 0.0
    %8313 = vadd.xlane.f32.xlu0 %v8312
    %v8314 = vpop.xlane.xlu0 %8313
    %v8315 = vrcp.pop %v8311
    %v8316 = vrcp.pop %v8314
    %v8317 = vmul.f32 %v8306, %v8315
    %v8318 = vmul.f32 %v8308, %v8316
    %8319 = vrot.lane.b32.xlu0 %v7352, 72
    %v8320 = vpop.permute.xlu0 %8319
    %8321 = vrot.lane.b32.xlu0 %v7357, 72
    %v8322 = vpop.permute.xlu0 %8321
    %v8326 = vsel %vm348, %v8317, 0
    %v8329 = vsel %vm348, %v8318, 0
    %8331 = vmatprep.subr.mxu0 0.0
    %8332 = vmatpush1.msra.mxu0 0.0
    %8333 = vmatprep.subr.mxu0 0.0
    %8334 = vmatpush1.msra.mxu0 0.0
    %8335 = vmatprep.subr.mxu0 0.0
    %8336 = vmatpush1.msra.mxu0 0.0
    %8337 = vmatprep.subr.mxu0 0.0
    %8338 = vmatpush1.msra.mxu0 0.0
    %8339 = vmatprep.subr.mxu0 0.0
    %8340 = vmatpush1.msra.mxu0 0.0
    %8341 = vmatprep.subr.mxu0 0.0
    %8342 = vmatpush1.msra.mxu0 0.0
    %8343 = vmatprep.subr.mxu0 0.0
    %8344 = vmatpush1.msra.mxu0 0.0
    %8345 = vmatprep.subr.mxu0 0.0
    %8346 = vmatpush1.msra.mxu0 0.0
    %8347 = vmatprep.subr.mxu0 0.0
    %8348 = vmatpush1.msra.mxu0 0.0
    %8349 = vmatprep.subr.mxu0 0.0
    %8350 = vmatpush1.msra.mxu0 0.0
    %8351 = vmatprep.subr.mxu0 0.0
    %8352 = vmatpush1.msra.mxu0 0.0
    %8353 = vmatprep.subr.mxu0 0.0
    %8354 = vmatpush1.msra.mxu0 0.0
    %8355 = vmatprep.subr.mxu0 0.0
    %8356 = vmatpush1.msra.mxu0 0.0
    %8357 = vmatprep.subr.mxu0 0.0
    %8358 = vmatpush1.msra.mxu0 0.0
    %8359 = vmatprep.subr.mxu0 0.0
    %8360 = vmatpush1.msra.mxu0 %v8322
    %8361 = vmatprep.subr.mxu0 0.0
    %8362 = vmatpush1.msra.mxu0 %v8320
    %8363 = vmatprep.subr.mxu0 0.0
    %8364 = vmatpush2.msra.mxu0 0.0
    %8365 = vmatprep.subr.mxu0 0.0
    %8366 = vmatpush2.msra.mxu0 0.0
    %8367 = vmatprep.subr.mxu0 0.0
    %8368 = vmatpush2.msra.mxu0 0.0
    %8369 = vmatprep.subr.mxu0 0.0
    %8370 = vmatpush2.msra.mxu0 0.0
    %8371 = vmatprep.subr.mxu0 0.0
    %8372 = vmatpush2.msra.mxu0 0.0
    %8373 = vmatprep.subr.mxu0 0.0
    %8374 = vmatpush2.msra.mxu0 0.0
    %8375 = vmatprep.subr.mxu0 0.0
    %8376 = vmatpush2.msra.mxu0 0.0
    %8377 = vmatprep.subr.mxu0 0.0
    %8378 = vmatpush2.msra.mxu0 0.0
    %8379 = vmatprep.subr.mxu0 0.0
    %8380 = vmatpush2.msra.mxu0 0.0
    %8381 = vmatprep.subr.mxu0 0.0
    %8382 = vmatpush2.msra.mxu0 0.0
    %8383 = vmatprep.subr.mxu0 0.0
    %8384 = vmatpush2.msra.mxu0 0.0
    %8385 = vmatprep.subr.mxu0 0.0
    %8386 = vmatpush2.msra.mxu0 0.0
    %8387 = vmatprep.subr.mxu0 0.0
    %8388 = vmatpush2.msra.mxu0 0.0
    %8389 = vmatprep.subr.mxu0 0.0
    %8390 = vmatpush2.msra.mxu0 0.0
    %8391 = vmatprep.subr.mxu0 0.0
    %8392 = vmatpush2.msra.mxu0 0.0
    %8393 = vmatprep.subr.mxu0 0.0
    %8394 = vmatpush2.msra.mxu0 0.0
    %8395 = vmatprep.mubr.f32.mxu0 0.0
    %8396 = vmatmul.mubr.f32.gmra.mxu0 %v8326
    %v8397 = vpop.f32.mrf.mxu0
    %v8398 = vadd.f32 0.0, %v8397
    %v8399 = vpop.f32.mrf.mxu0
    %8400 = vmatprep.mubr.f32.mxu0 0.0
    %8401 = vmatmul.mubr.f32.gmra.mxu0 %v8329
    %v8402 = vpop.f32.mrf.mxu0
    %v8403 = vadd.f32 0.0, %v8402
    %v8404 = vpop.f32.mrf.mxu0
    %8405 = vdwg.mxu0
    %v8407 = vsel %vm264, %v8398, 0
    %v8410 = vsel %vm264, %v8403, 0
    %8412 = vmatprep.subr.mxu0 0.0
    %8413 = vmatpush1.msra.mxu0 0.0
    %8414 = vmatprep.subr.mxu0 0.0
    %8415 = vmatpush1.msra.mxu0 0.0
    %8416 = vmatprep.subr.mxu0 0.0
    %8417 = vmatpush1.msra.mxu0 0.0
    %8418 = vmatprep.subr.mxu0 0.0
    %8419 = vmatpush1.msra.mxu0 0.0
    %8420 = vmatprep.subr.mxu0 0.0
    %8421 = vmatpush1.msra.mxu0 0.0
    %8422 = vmatprep.subr.mxu0 0.0
    %8423 = vmatpush1.msra.mxu0 0.0
    %8424 = vmatprep.subr.mxu0 0.0
    %8425 = vmatpush1.msra.mxu0 0.0
    %8426 = vmatprep.subr.mxu0 0.0
    %8427 = vmatpush1.msra.mxu0 0.0
    %8428 = vmatprep.subr.mxu0 0.0
    %8429 = vmatpush1.msra.mxu0 0.0
    %8430 = vmatprep.subr.mxu0 0.0
    %8431 = vmatpush1.msra.mxu0 0.0
    %8432 = vmatprep.subr.mxu0 0.0
    %8433 = vmatpush1.msra.mxu0 0.0
    %8434 = vmatprep.subr.mxu0 0.0
    %8435 = vmatpush1.msra.mxu0 0.0
    %8436 = vmatprep.subr.mxu0 0.0
    %8437 = vmatpush1.msra.mxu0 0.0
    %8438 = vmatprep.subr.mxu0 0.0
    %8439 = vmatpush1.msra.mxu0 0.0
    %8440 = vmatprep.subr.mxu0 0.0
    %8441 = vmatpush1.msra.mxu0 0.0
    %8442 = vmatprep.subr.mxu0 0.0
    %8443 = vmatpush1.msra.mxu0 %v7364
    %8444 = vmatprep.subr.mxu0 0.0
    %8445 = vmatpush2.msra.mxu0 0.0
    %8446 = vmatprep.subr.mxu0 0.0
    %8447 = vmatpush2.msra.mxu0 0.0
    %8448 = vmatprep.subr.mxu0 0.0
    %8449 = vmatpush2.msra.mxu0 0.0
    %8450 = vmatprep.subr.mxu0 0.0
    %8451 = vmatpush2.msra.mxu0 0.0
    %8452 = vmatprep.subr.mxu0 0.0
    %8453 = vmatpush2.msra.mxu0 0.0
    %8454 = vmatprep.subr.mxu0 0.0
    %8455 = vmatpush2.msra.mxu0 0.0
    %8456 = vmatprep.subr.mxu0 0.0
    %8457 = vmatpush2.msra.mxu0 0.0
    %8458 = vmatprep.subr.mxu0 0.0
    %8459 = vmatpush2.msra.mxu0 0.0
    %8460 = vmatprep.subr.mxu0 0.0
    %8461 = vmatpush2.msra.mxu0 0.0
    %8462 = vmatprep.subr.mxu0 0.0
    %8463 = vmatpush2.msra.mxu0 0.0
    %8464 = vmatprep.subr.mxu0 0.0
    %8465 = vmatpush2.msra.mxu0 0.0
    %8466 = vmatprep.subr.mxu0 0.0
    %8467 = vmatpush2.msra.mxu0 0.0
    %8468 = vmatprep.subr.mxu0 0.0
    %8469 = vmatpush2.msra.mxu0 0.0
    %8470 = vmatprep.subr.mxu0 0.0
    %8471 = vmatpush2.msra.mxu0 0.0
    %8472 = vmatprep.subr.mxu0 0.0
    %8473 = vmatpush2.msra.mxu0 0.0
    %8474 = vmatprep.subr.mxu0 0.0
    %8475 = vmatpush2.msra.mxu0 0.0
    %8476 = vmatprep.mubr.f32.mxu0 0.0
    %8477 = vmatmul.mubr.f32.gmra.mxu0 %v8407
    %v8478 = vpop.f32.mrf.mxu0
    %v8479 = vadd.f32 0.0, %v8478
    %v8480 = vpop.f32.mrf.mxu0
    %8481 = vmatprep.mubr.f32.mxu0 0.0
    %8482 = vmatmul.mubr.f32.gmra.mxu0 %v8410
    %v8483 = vpop.f32.mrf.mxu0
    %v8484 = vadd.f32 0.0, %v8483
    %v8485 = vpop.f32.mrf.mxu0
    %8486 = vdwg.mxu0
    %v8487 = vadd.f32 %v8204, %v8479
    %v8488 = vadd.f32 %v8205, %v8484
    %v8489 = vadd.f32 %v7158, %v8487
    %v8490 = vadd.f32 %v7159, %v8488
    %s8491 = scalar_lea.vmem %s47, 1
    %v8492 = vld [vmem:[%s8491] sm:$0x1]
    %v8494 = vlaneseq
    %v8495 = vshrl.u32 %v8494, 7
    %v8496 = vsub.s32 0, %v8495
    %v8497 = vrot.slane %v8492, %v8496
    %v8499 = vadd.f32 %v8489, %v8497
    %v8500 = vadd.f32 %v8490, %v8497
    %s8501 = sld [smem:[#allocation2 + $0xa]]
    %v8502 = vmul.f32 %v8499, %v8499
    %v8503 = vmul.f32 %v8500, %v8500
    %v8504 = vsel %vm146, %v8502, 0.0
    %8505 = vadd.xlane.f32.xlu0 %v8504
    %v8506 = vpop.xlane.xlu0 %8505
    %v8507 = vsel %vm146, %v8503, 0.0
    %8508 = vadd.xlane.f32.xlu0 %v8507
    %v8509 = vpop.xlane.xlu0 %8508
    %v8510 = vmax.f32 %v8506, 1e-10
    %v8511 = vmax.f32 %v8509, 1e-10
    %v8512 = vrsqrt.pop %v8510
    %v8513 = vrsqrt.pop %v8511
    %v8514 = vstv %s8501
    %v8515 = vmul.f32 %v8514, %v8512
    %v8516 = vmul.f32 %v8514, %v8513
    %v8517 = vmul.f32 %v8499, %v8515
    %v8518 = vmul.f32 %v8500, %v8516
    %s8519 = scalar_lea.vmem %s49, 32
    %v8520 = vld [vmem:[%s8519] sm:$0xff]
    %v8521 = vld [vmem:[%s8519 + $0x8] sm:$0xff]
    %v8522 = vld [vmem:[%s8519 + $0x10] sm:$0xff]
    %v8523 = vld [vmem:[%s8519 + $0x18] sm:$0xff]
    %s8524 = scalar_lea.vmem %s51, 1
    %v8525 = vld [vmem:[%s8524] sm:$0x1]
    %v8527 = vlaneseq
    %v8528 = vshrl.u32 %v8527, 7
    %v8529 = vsub.s32 0, %v8528
    %v8530 = vrot.slane %v8525, %v8529
    %v8533 = vsel %vm146, %v8517, 0
    %v8536 = vsel %vm146, %v8518, 0
    %8538 = vmatprep.subr.mxu0 0.0
    %8539 = vmatpush1.msra.mxu0 0.0
    %8540 = vmatprep.subr.mxu0 0.0
    %8541 = vmatpush1.msra.mxu0 0.0
    %8542 = vmatprep.subr.mxu0 0.0
    %8543 = vmatpush1.msra.mxu0 0.0
    %8544 = vmatprep.subr.mxu0 0.0
    %8545 = vmatpush1.msra.mxu0 0.0
    %8546 = vmatprep.subr.mxu0 0.0
    %8547 = vmatpush1.msra.mxu0 0.0
    %8548 = vmatprep.subr.mxu0 0.0
    %8549 = vmatpush1.msra.mxu0 0.0
    %8550 = vmatprep.subr.mxu0 0.0
    %8551 = vmatpush1.msra.mxu0 0.0
    %8552 = vmatprep.subr.mxu0 0.0
    %8553 = vmatpush1.msra.mxu0 0.0
    %8554 = vmatprep.subr.mxu0 0.0
    %8555 = vmatpush1.msra.mxu0 0.0
    %8556 = vmatprep.subr.mxu0 0.0
    %8557 = vmatpush1.msra.mxu0 0.0
    %8558 = vmatprep.subr.mxu0 0.0
    %8559 = vmatpush1.msra.mxu0 0.0
    %8560 = vmatprep.subr.mxu0 0.0
    %8561 = vmatpush1.msra.mxu0 0.0
    %8562 = vmatprep.subr.mxu0 0.0
    %8563 = vmatpush1.msra.mxu0 %v8523
    %8564 = vmatprep.subr.mxu0 0.0
    %8565 = vmatpush1.msra.mxu0 %v8522
    %8566 = vmatprep.subr.mxu0 0.0
    %8567 = vmatpush1.msra.mxu0 %v8521
    %8568 = vmatprep.subr.mxu0 0.0
    %8569 = vmatpush1.msra.mxu0 %v8520
    %8570 = vmatprep.subr.mxu0 0.0
    %8571 = vmatpush2.msra.mxu0 0.0
    %8572 = vmatprep.subr.mxu0 0.0
    %8573 = vmatpush2.msra.mxu0 0.0
    %8574 = vmatprep.subr.mxu0 0.0
    %8575 = vmatpush2.msra.mxu0 0.0
    %8576 = vmatprep.subr.mxu0 0.0
    %8577 = vmatpush2.msra.mxu0 0.0
    %8578 = vmatprep.subr.mxu0 0.0
    %8579 = vmatpush2.msra.mxu0 0.0
    %8580 = vmatprep.subr.mxu0 0.0
    %8581 = vmatpush2.msra.mxu0 0.0
    %8582 = vmatprep.subr.mxu0 0.0
    %8583 = vmatpush2.msra.mxu0 0.0
    %8584 = vmatprep.subr.mxu0 0.0
    %8585 = vmatpush2.msra.mxu0 0.0
    %8586 = vmatprep.subr.mxu0 0.0
    %8587 = vmatpush2.msra.mxu0 0.0
    %8588 = vmatprep.subr.mxu0 0.0
    %8589 = vmatpush2.msra.mxu0 0.0
    %8590 = vmatprep.subr.mxu0 0.0
    %8591 = vmatpush2.msra.mxu0 0.0
    %8592 = vmatprep.subr.mxu0 0.0
    %8593 = vmatpush2.msra.mxu0 0.0
    %8594 = vmatprep.subr.mxu0 0.0
    %8595 = vmatpush2.msra.mxu0 0.0
    %8596 = vmatprep.subr.mxu0 0.0
    %8597 = vmatpush2.msra.mxu0 0.0
    %8598 = vmatprep.subr.mxu0 0.0
    %8599 = vmatpush2.msra.mxu0 0.0
    %8600 = vmatprep.subr.mxu0 0.0
    %8601 = vmatpush2.msra.mxu0 0.0
    %8602 = vmatprep.mubr.f32.mxu0 0.0
    %8603 = vmatmul.mubr.f32.gmra.mxu0 %v8533
    %v8604 = vpop.f32.mrf.mxu0
    %v8605 = vadd.f32 %v8530, %v8604
    %v8606 = vpop.f32.mrf.mxu0
    %8607 = vmatprep.mubr.f32.mxu0 0.0
    %8608 = vmatmul.mubr.f32.gmra.mxu0 %v8536
    %v8609 = vpop.f32.mrf.mxu0
    %v8610 = vadd.f32 %v8530, %v8609
    %v8611 = vpop.f32.mrf.mxu0
    %8612 = vdwg.mxu0
    %v8613 = vmax.f32 %v8605, 0.0
    %v8614 = vmax.f32 %v8610, 0.0
    %s8615 = scalar_lea.vmem %s53, 64
    %v8616 = vld [vmem:[%s8615] sm:$0xff]
    %v8617 = vld [vmem:[%s8615 + $0x8] sm:$0xff]
    %v8618 = vld [vmem:[%s8615 + $0x10] sm:$0xff]
    %v8619 = vld [vmem:[%s8615 + $0x18] sm:$0xff]
    %v8620 = vld [vmem:[%s8615 + $0x20] sm:$0xff]
    %v8621 = vld [vmem:[%s8615 + $0x28] sm:$0xff]
    %v8622 = vld [vmem:[%s8615 + $0x30] sm:$0xff]
    %v8623 = vld [vmem:[%s8615 + $0x38] sm:$0xff]
    %v8625 = vsel %vm1517, %v8613, 0
    %v8628 = vsel %vm1517, %v8614, 0
    %8630 = vmatprep.subr.mxu0 0.0
    %8631 = vmatpush1.msra.mxu0 0.0
    %8632 = vmatprep.subr.mxu0 0.0
    %8633 = vmatpush1.msra.mxu0 0.0
    %8634 = vmatprep.subr.mxu0 0.0
    %8635 = vmatpush1.msra.mxu0 0.0
    %8636 = vmatprep.subr.mxu0 0.0
    %8637 = vmatpush1.msra.mxu0 0.0
    %8638 = vmatprep.subr.mxu0 0.0
    %8639 = vmatpush1.msra.mxu0 0.0
    %8640 = vmatprep.subr.mxu0 0.0
    %8641 = vmatpush1.msra.mxu0 0.0
    %8642 = vmatprep.subr.mxu0 0.0
    %8643 = vmatpush1.msra.mxu0 0.0
    %8644 = vmatprep.subr.mxu0 0.0
    %8645 = vmatpush1.msra.mxu0 0.0
    %8646 = vmatprep.subr.mxu0 0.0
    %8647 = vmatpush1.msra.mxu0 %v8623
    %8648 = vmatprep.subr.mxu0 0.0
    %8649 = vmatpush1.msra.mxu0 %v8622
    %8650 = vmatprep.subr.mxu0 0.0
    %8651 = vmatpush1.msra.mxu0 %v8621
    %8652 = vmatprep.subr.mxu0 0.0
    %8653 = vmatpush1.msra.mxu0 %v8620
    %8654 = vmatprep.subr.mxu0 0.0
    %8655 = vmatpush1.msra.mxu0 %v8619
    %8656 = vmatprep.subr.mxu0 0.0
    %8657 = vmatpush1.msra.mxu0 %v8618
    %8658 = vmatprep.subr.mxu0 0.0
    %8659 = vmatpush1.msra.mxu0 %v8617
    %8660 = vmatprep.subr.mxu0 0.0
    %8661 = vmatpush1.msra.mxu0 %v8616
    %8662 = vmatprep.subr.mxu0 0.0
    %8663 = vmatpush2.msra.mxu0 0.0
    %8664 = vmatprep.subr.mxu0 0.0
    %8665 = vmatpush2.msra.mxu0 0.0
    %8666 = vmatprep.subr.mxu0 0.0
    %8667 = vmatpush2.msra.mxu0 0.0
    %8668 = vmatprep.subr.mxu0 0.0
    %8669 = vmatpush2.msra.mxu0 0.0
    %8670 = vmatprep.subr.mxu0 0.0
    %8671 = vmatpush2.msra.mxu0 0.0
    %8672 = vmatprep.subr.mxu0 0.0
    %8673 = vmatpush2.msra.mxu0 0.0
    %8674 = vmatprep.subr.mxu0 0.0
    %8675 = vmatpush2.msra.mxu0 0.0
    %8676 = vmatprep.subr.mxu0 0.0
    %8677 = vmatpush2.msra.mxu0 0.0
    %8678 = vmatprep.subr.mxu0 0.0
    %8679 = vmatpush2.msra.mxu0 0.0
    %8680 = vmatprep.subr.mxu0 0.0
    %8681 = vmatpush2.msra.mxu0 0.0
    %8682 = vmatprep.subr.mxu0 0.0
    %8683 = vmatpush2.msra.mxu0 0.0
    %8684 = vmatprep.subr.mxu0 0.0
    %8685 = vmatpush2.msra.mxu0 0.0
    %8686 = vmatprep.subr.mxu0 0.0
    %8687 = vmatpush2.msra.mxu0 0.0
    %8688 = vmatprep.subr.mxu0 0.0
    %8689 = vmatpush2.msra.mxu0 0.0
    %8690 = vmatprep.subr.mxu0 0.0
    %8691 = vmatpush2.msra.mxu0 0.0
    %8692 = vmatprep.subr.mxu0 0.0
    %8693 = vmatpush2.msra.mxu0 0.0
    %8694 = vmatprep.mubr.f32.mxu0 0.0
    %8695 = vmatmul.mubr.f32.gmra.mxu0 %v8625
    %v8696 = vpop.f32.mrf.mxu0
    %v8697 = vadd.f32 0.0, %v8696
    %v8698 = vpop.f32.mrf.mxu0
    %8699 = vmatprep.mubr.f32.mxu0 0.0
    %8700 = vmatmul.mubr.f32.gmra.mxu0 %v8628
    %v8701 = vpop.f32.mrf.mxu0
    %v8702 = vadd.f32 0.0, %v8701
    %v8703 = vpop.f32.mrf.mxu0
    %8704 = vdwg.mxu0
    %v8705 = vadd.f32 %v8499, %v8697
    %v8706 = vadd.f32 %v8500, %v8702
    %s8707 = scalar_lea.vmem %s55, 1
    %v8708 = vld [vmem:[%s8707] sm:$0x1]
    %v8710 = vlaneseq
    %v8711 = vshrl.u32 %v8710, 7
    %v8712 = vsub.s32 0, %v8711
    %v8713 = vrot.slane %v8708, %v8712
    %v8715 = vadd.f32 %v8705, %v8713
    %v8716 = vadd.f32 %v8706, %v8713
    %s8717 = sld [smem:[#allocation2 + $0xb]]
    %v8718 = vmul.f32 %v8715, %v8715
    %v8719 = vmul.f32 %v8716, %v8716
    %v8720 = vsel %vm146, %v8718, 0.0
    %8721 = vadd.xlane.f32.xlu0 %v8720
    %v8722 = vpop.xlane.xlu0 %8721
    %v8723 = vsel %vm146, %v8719, 0.0
    %8724 = vadd.xlane.f32.xlu0 %v8723
    %v8725 = vpop.xlane.xlu0 %8724
    %v8726 = vmax.f32 %v8722, 1e-10
    %v8727 = vmax.f32 %v8725, 1e-10
    %v8728 = vrsqrt.pop %v8726
    %v8729 = vrsqrt.pop %v8727
    %v8730 = vstv %s8717
    %v8731 = vmul.f32 %v8730, %v8728
    %v8732 = vmul.f32 %v8730, %v8729
    %v8733 = vmul.f32 %v8715, %v8731
    %v8734 = vmul.f32 %v8716, %v8732
    %v8735 = vld [vmem:[%s57] sm:$0xff]
    %v8736 = vld [vmem:[%s57 + $0x8] sm:$0xff]
    %v8737 = vld [vmem:[%s57 + $0x10] sm:$0xff]
    %v8738 = vld [vmem:[%s57 + $0x18] sm:$0xff]
    %v8740 = vsel %vm146, %v8733, 0
    %v8743 = vsel %vm146, %v8734, 0
    %8745 = vmatprep.subr.mxu0 0.0
    %8746 = vmatpush1.msra.mxu0 0.0
    %8747 = vmatprep.subr.mxu0 0.0
    %8748 = vmatpush1.msra.mxu0 0.0
    %8749 = vmatprep.subr.mxu0 0.0
    %8750 = vmatpush1.msra.mxu0 0.0
    %8751 = vmatprep.subr.mxu0 0.0
    %8752 = vmatpush1.msra.mxu0 0.0
    %8753 = vmatprep.subr.mxu0 0.0
    %8754 = vmatpush1.msra.mxu0 0.0
    %8755 = vmatprep.subr.mxu0 0.0
    %8756 = vmatpush1.msra.mxu0 0.0
    %8757 = vmatprep.subr.mxu0 0.0
    %8758 = vmatpush1.msra.mxu0 0.0
    %8759 = vmatprep.subr.mxu0 0.0
    %8760 = vmatpush1.msra.mxu0 0.0
    %8761 = vmatprep.subr.mxu0 0.0
    %8762 = vmatpush1.msra.mxu0 0.0
    %8763 = vmatprep.subr.mxu0 0.0
    %8764 = vmatpush1.msra.mxu0 0.0
    %8765 = vmatprep.subr.mxu0 0.0
    %8766 = vmatpush1.msra.mxu0 0.0
    %8767 = vmatprep.subr.mxu0 0.0
    %8768 = vmatpush1.msra.mxu0 0.0
    %8769 = vmatprep.subr.mxu0 0.0
    %8770 = vmatpush1.msra.mxu0 %v8738
    %8771 = vmatprep.subr.mxu0 0.0
    %8772 = vmatpush1.msra.mxu0 %v8737
    %8773 = vmatprep.subr.mxu0 0.0
    %8774 = vmatpush1.msra.mxu0 %v8736
    %8775 = vmatprep.subr.mxu0 0.0
    %8776 = vmatpush1.msra.mxu0 %v8735
    %8777 = vmatprep.subr.mxu0 0.0
    %8778 = vmatpush2.msra.mxu0 0.0
    %8779 = vmatprep.subr.mxu0 0.0
    %8780 = vmatpush2.msra.mxu0 0.0
    %8781 = vmatprep.subr.mxu0 0.0
    %8782 = vmatpush2.msra.mxu0 0.0
    %8783 = vmatprep.subr.mxu0 0.0
    %8784 = vmatpush2.msra.mxu0 0.0
    %8785 = vmatprep.subr.mxu0 0.0
    %8786 = vmatpush2.msra.mxu0 0.0
    %8787 = vmatprep.subr.mxu0 0.0
    %8788 = vmatpush2.msra.mxu0 0.0
    %8789 = vmatprep.subr.mxu0 0.0
    %8790 = vmatpush2.msra.mxu0 0.0
    %8791 = vmatprep.subr.mxu0 0.0
    %8792 = vmatpush2.msra.mxu0 0.0
    %8793 = vmatprep.subr.mxu0 0.0
    %8794 = vmatpush2.msra.mxu0 0.0
    %8795 = vmatprep.subr.mxu0 0.0
    %8796 = vmatpush2.msra.mxu0 0.0
    %8797 = vmatprep.subr.mxu0 0.0
    %8798 = vmatpush2.msra.mxu0 0.0
    %8799 = vmatprep.subr.mxu0 0.0
    %8800 = vmatpush2.msra.mxu0 0.0
    %8801 = vmatprep.subr.mxu0 0.0
    %8802 = vmatpush2.msra.mxu0 0.0
    %8803 = vmatprep.subr.mxu0 0.0
    %8804 = vmatpush2.msra.mxu0 0.0
    %8805 = vmatprep.subr.mxu0 0.0
    %8806 = vmatpush2.msra.mxu0 0.0
    %8807 = vmatprep.subr.mxu0 0.0
    %8808 = vmatpush2.msra.mxu0 0.0
    %8809 = vmatprep.mubr.f32.mxu0 0.0
    %8810 = vmatmul.mubr.f32.gmra.mxu0 %v8740
    %v8811 = vpop.f32.mrf.mxu0
    %v8812 = vadd.f32 0.0, %v8811
    %v8813 = vpop.f32.mrf.mxu0
    %8814 = vmatprep.mubr.f32.mxu0 0.0
    %8815 = vmatmul.mubr.f32.gmra.mxu0 %v8743
    %v8816 = vpop.f32.mrf.mxu0
    %v8817 = vadd.f32 0.0, %v8816
    %v8818 = vpop.f32.mrf.mxu0
    %8819 = vdwg.mxu0
    %8820 = vst [vmem:[%s59] sm:$0xff] %v8812
    %8821 = vst [vmem:[%s59 + $0x8] sm:$0xff] %v8817
    // Predicated region
    $region122: #{fwd.1} parent=1 // pred_check
      _
    $region123: #{fwd.1} parent=1 // pred_check_branch
      %8823 = sbr.rel (0) target = $region125
    $region124: #{fwd.1} parent=1 // pred_region
      _
    $region125: #{fwd.1} parent=1 // pred_fallthru
      _
    // Predicated region
    $region126: #{fwd.1} parent=1 // pred_check
      _
    $region127: #{fwd.1} parent=1 // pred_check_branch
      %8825 = sbr.rel (0) target = $region129
    $region128: #{fwd.1} parent=1 // pred_region
      _
    $region129: #{fwd.1} parent=1 // pred_fallthru
      _
    %8826 = vsyncpa [#allocation3], 1

</llo_original>
